<compile_context>
chip_gen: v7x
topology: tpu7x:2x2x1
jax: 0.10.0
libtpu: 0.0.40
codegen_flags: <defaults>
</compile_context>

<pallas_src>
import functools

import jax
import jax.numpy as jnp
from jax.experimental import pallas as pl
from jax.experimental.pallas import tpu as pltpu


# ----------------------------- kernels --------------------------------------


def _branch_kernel(x_ref, w_stem_ref, s_stem_ref, b_stem_ref,
                   w13_ref, s13_ref, b13_ref,
                   w31_ref, s31_ref, b31_ref,
                   cat_ref, *, width, c0):
    """Fused branch0 + branch1 for one image (rows = H*W)."""
    rows = x_ref.shape[0]
    f32 = jnp.float32
    bf16 = jnp.bfloat16

    # Merged 1x1 stem: branch0 (cols :c0) and branch1's first 1x1 (cols c0:).
    xb = x_ref[...].astype(bf16)
    stem = jnp.dot(xb, w_stem_ref[...], preferred_element_type=f32)
    stem = jnp.maximum(stem * s_stem_ref[...] + b_stem_ref[...], 0.0)
    x0 = stem[:, :c0]          # (rows, 192) branch0 output      (f32)
    b1 = stem[:, c0:]          # (rows, 192) branch1 intermediate (f32)

    ri = jax.lax.broadcasted_iota(jnp.int32, (rows, 1), 0)

    def shifted(v, delta, valid):
        # shifted[r] = v[r - delta] where `valid`, else 0 (zero padding).
        rolled = pltpu.roll(v, (rows + delta) % rows, 0)
        return jnp.where(valid, rolled, 0.0).astype(bf16)

    # (1,3) conv along W: taps kw=0,1,2 use x[w-1], x[w], x[w+1].
    t0 = shifted(b1, 1, (ri % width) != 0)
    t2 = shifted(b1, -1, (ri % width) != width - 1)
    y = jnp.dot(t0, w13_ref[0], preferred_element_type=f32)
    y += jnp.dot(b1.astype(bf16), w13_ref[1], preferred_element_type=f32)
    y += jnp.dot(t2, w13_ref[2], preferred_element_type=f32)
    b2 = jnp.maximum(y * s13_ref[...] + b13_ref[...], 0.0)      # (rows, 224)

    # (3,1) conv along H: a +-1 image-row shift is a +-width flattened-row shift.
    t0 = shifted(b2, width, ri >= width)
    t2 = shifted(b2, -width, ri < rows - width)
    y = jnp.dot(t0, w31_ref[0], preferred_element_type=f32)
    y += jnp.dot(b2.astype(bf16), w31_ref[1], preferred_element_type=f32)
    y += jnp.dot(t2, w31_ref[2], preferred_element_type=f32)
    x1 = jnp.maximum(y * s31_ref[...] + b31_ref[...], 0.0)      # (rows, 256)

    cat_ref[...] = jnp.concatenate([x0.astype(bf16), x1.astype(bf16)], axis=1)


def _head_kernel(cat_ref, w_ref, b_ref, res_ref, o_ref, *, scale, apply_relu):
    # concat(x0, x1) @ W (1x1 conv with bias), * scale + residual (+ ReLU).
    y = jnp.dot(cat_ref[...], w_ref[...], preferred_element_type=jnp.float32)
    y = (y + b_ref[...]) * scale + res_ref[...]
    if apply_relu:
        y = jnp.maximum(y, 0.0)
    o_ref[...] = y.astype(o_ref.dtype)


# --------------------------- pallas_call wrappers ----------------------------


def branch_call(x2d, pk, *, n, height, width):
    rows = height * width
    m, cin = x2d.shape
    c_stem = pk['w_stem'].shape[1]
    c0 = c_stem - pk['w13'].shape[1]              # 192 branch0 channels
    c_cat = c0 + pk['w31'].shape[2]               # 192 + 256 = 448

    kern = functools.partial(_branch_kernel, width=width, c0=c0)
    flops = 2 * m * (cin * c_stem
                     + 3 * pk['w13'].shape[1] * pk['w13'].shape[2]
                     + 3 * pk['w31'].shape[1] * pk['w31'].shape[2])
    bytes_accessed = (x2d.size * x2d.dtype.itemsize
                      + sum(pk[k].size * pk[k].dtype.itemsize
                            for k in ('w_stem', 's_stem', 'b_stem',
                                      'w13', 's13', 'b13',
                                      'w31', 's31', 'b31'))
                      + m * c_cat * 2)

    return pl.pallas_call(
        kern,
        out_shape=jax.ShapeDtypeStruct((m, c_cat), jnp.bfloat16),
        grid=(n,),
        in_specs=[
            pl.BlockSpec((rows, cin), lambda i: (i, 0)),
            pl.BlockSpec(pk['w_stem'].shape, lambda i: (0, 0)),
            pl.BlockSpec(pk['s_stem'].shape, lambda i: (0, 0)),
            pl.BlockSpec(pk['b_stem'].shape, lambda i: (0, 0)),
            pl.BlockSpec(pk['w13'].shape, lambda i: (0, 0, 0)),
            pl.BlockSpec(pk['s13'].shape, lambda i: (0, 0)),
            pl.BlockSpec(pk['b13'].shape, lambda i: (0, 0)),
            pl.BlockSpec(pk['w31'].shape, lambda i: (0, 0, 0)),
            pl.BlockSpec(pk['s31'].shape, lambda i: (0, 0)),
            pl.BlockSpec(pk['b31'].shape, lambda i: (0, 0)),
        ],
        out_specs=pl.BlockSpec((rows, c_cat), lambda i: (i, 0)),
        compiler_params=pltpu.CompilerParams(
            dimension_semantics=("parallel",)),
        cost_estimate=pl.CostEstimate(flops=int(flops), transcendentals=0,
                                      bytes_accessed=int(bytes_accessed)),
    )(x2d, pk['w_stem'], pk['s_stem'], pk['b_stem'],
      pk['w13'], pk['s13'], pk['b13'],
      pk['w31'], pk['s31'], pk['b31'])


def head_call(cat, w_out, bias, res, *, scale, apply_relu, tile_cout=512):
    m, k = cat.shape
    cout = w_out.shape[1]
    tn = min(tile_cout, cout)
    kern = functools.partial(_head_kernel, scale=scale, apply_relu=apply_relu)
    flops = 2 * m * k * cout
    bytes_accessed = (cat.size * cat.dtype.itemsize
                      + w_out.size * w_out.dtype.itemsize
                      + bias.size * 4 + res.size * 4 + m * cout * 4)
    return pl.pallas_call(
        kern,
        out_shape=jax.ShapeDtypeStruct((m, cout), jnp.float32),
        grid=(pl.cdiv(cout, tn),),
        in_specs=[
            pl.BlockSpec((m, k), lambda j: (0, 0)),     # resident across grid
            pl.BlockSpec((k, tn), lambda j: (0, j)),
            pl.BlockSpec((1, tn), lambda j: (0, j)),
            pl.BlockSpec((m, tn), lambda j: (0, j)),
        ],
        out_specs=pl.BlockSpec((m, tn), lambda j: (0, j)),
        compiler_params=pltpu.CompilerParams(
            dimension_semantics=("parallel",)),
        cost_estimate=pl.CostEstimate(flops=int(flops), transcendentals=0,
                                      bytes_accessed=int(bytes_accessed)),
    )(cat, w_out, bias, res)


# -------------------------- parameters / wrapper -----------------------------


def fold_bn(gamma, beta, mean, var, eps=1e-3):
    s = gamma / jnp.sqrt(var + eps)
    return s, beta - mean * s


def init_params(key):
    ks = iter(jax.random.split(key, 32))

    def conv_w(cin, cout, taps=None):
        shape = (cin, cout) if taps is None else (taps, cin, cout)
        fan_in = cin if taps is None else cin * taps
        return jax.random.normal(next(ks), shape, jnp.float32) / jnp.sqrt(fan_in)

    def bn(c):
        gamma = 1.0 + 0.1 * jax.random.normal(next(ks), (c,), jnp.float32)
        beta = 0.1 * jax.random.normal(next(ks), (c,), jnp.float32)
        mean = 0.1 * jax.random.normal(next(ks), (c,), jnp.float32)
        var = 1.0 + 0.1 * jnp.abs(jax.random.normal(next(ks), (c,), jnp.float32))
        return fold_bn(gamma, beta, mean, var)

    p = {}
    p['w_b0'] = conv_w(2080, 192)
    p['s_b0'], p['b_b0'] = bn(192)
    p['w_b1_0'] = conv_w(2080, 192)
    p['s_b1_0'], p['b_b1_0'] = bn(192)
    p['w_b1_1'] = conv_w(192, 224, taps=3)       # (1,3) conv taps along W
    p['s_b1_1'], p['b_b1_1'] = bn(224)
    p['w_b1_2'] = conv_w(224, 256, taps=3)       # (3,1) conv taps along H
    p['s_b1_2'], p['b_b1_2'] = bn(256)
    p['w_out_a'] = conv_w(192, 2080)             # rows 0:192 of the 448x2080 weight
    p['w_out_b'] = conv_w(256, 2080)             # rows 192:448
    p['b_out'] = 0.05 * jax.random.normal(next(ks), (2080,), jnp.float32)
    return p


def pack_params(p):
    """Kernel-ready params: merged stem, bf16 weights, (1, C) scale/bias."""
    bf16 = jnp.bfloat16
    return {
        'w_stem': jnp.concatenate([p['w_b0'], p['w_b1_0']], axis=1).astype(bf16),
        's_stem': jnp.concatenate([p['s_b0'], p['s_b1_0']]).reshape(1, -1),
        'b_stem': jnp.concatenate([p['b_b0'], p['b_b1_0']]).reshape(1, -1),
        'w13': p['w_b1_1'].astype(bf16),
        's13': p['s_b1_1'].reshape(1, -1),
        'b13': p['b_b1_1'].reshape(1, -1),
        'w31': p['w_b1_2'].astype(bf16),
        's31': p['s_b1_2'].reshape(1, -1),
        'b31': p['b_b1_2'].reshape(1, -1),
        'w_out': jnp.concatenate([p['w_out_a'], p['w_out_b']], axis=0).astype(bf16),
        'b_out': p['b_out'].reshape(1, -1),
    }


@functools.partial(jax.jit, static_argnames=("scale", "noReLU"))
def block8_forward(x_nchw, packed, scale=1.0, noReLU=False):
    n, c, h, w = x_nchw.shape
    x2d = jnp.transpose(x_nchw, (0, 2, 3, 1)).reshape(n * h * w, c)   # NHWC rows
    cat = branch_call(x2d, packed, n=n, height=h, width=w)
    out2d = head_call(cat, packed['w_out'], packed['b_out'], x2d,
                      scale=scale, apply_relu=not noReLU)
    return jnp.transpose(out2d.reshape(n, h, w, c), (0, 3, 1, 2))     # NCHW


# ------------------------------ reference ------------------------------------


def block8_reference(x_nchw, p, scale=1.0, noReLU=False):
    # Same math via lax.conv; operands quantized to bf16 at the same points as
    # the kernels (f32 accumulation), so only accumulation-order noise remains.
    x = jnp.transpose(x_nchw, (0, 2, 3, 1))
    dn = ('NHWC', 'HWIO', 'NHWC')
    bf16 = jnp.bfloat16

    def conv(a, k, pad):
        return jax.lax.conv_general_dilated(
            a.astype(bf16), k.astype(bf16), (1, 1), pad,
            dimension_numbers=dn, preferred_element_type=jnp.float32)

    def bnrelu(y, s, b):
        return jnp.maximum(y * s + b, 0.0)

    x0 = bnrelu(conv(x, p['w_b0'][None, None], [(0, 0), (0, 0)]),
                p['s_b0'], p['b_b0'])
    b1 = bnrelu(conv(x, p['w_b1_0'][None, None], [(0, 0), (0, 0)]),
                p['s_b1_0'], p['b_b1_0'])
    b1 = bnrelu(conv(b1, p['w_b1_1'][None], [(0, 0), (1, 1)]),
                p['s_b1_1'], p['b_b1_1'])
    b1 = bnrelu(conv(b1, p['w_b1_2'][:, None], [(1, 1), (0, 0)]),
                p['s_b1_2'], p['b_b1_2'])
    cat = jnp.concatenate([x0, b1], axis=-1)
    wfull = jnp.concatenate([p['w_out_a'], p['w_out_b']], axis=0)
    y = conv(cat, wfull[None, None], [(0, 0), (0, 0)]) + p['b_out']
    out = y * scale + x
    if not noReLU:
        out = jnp.maximum(out, 0.0)
    return jnp.transpose(out, (0, 3, 1, 2))


# -------------------------------- main ---------------------------------------


if __name__ == "__main__":
    key = jax.random.PRNGKey(0)
    kp, kx = jax.random.split(key)
    params = init_params(kp)
    packed = pack_params(params)

    # Channel count (2080) is fixed by the module; keep spatial/batch small.
    N, C, H, W = 2, 2080, 8, 8
    x = jax.random.normal(kx, (N, C, H, W), jnp.float32)

    out = jax.block_until_ready(block8_forward(x, packed, scale=1.0, noReLU=False))
    assert out.shape == (N, C, H, W)

    ref = block8_reference(x, params, scale=1.0, noReLU=False)
    max_err = float(jnp.max(jnp.abs(out - ref)))
    if not bool(jnp.allclose(out, ref, atol=2e-2, rtol=2e-2)):
        raise AssertionError(f"kernel/reference mismatch, max abs err={max_err}")

    print("KERNEL_OK")
</pallas_src>

<mosaic_0001>
module attributes {stable_mosaic.version = 11 : i64} {
  func.func @_head_kernel(%arg0: i32, %arg1: memref<128x448xbf16, #tpu.memory_space<vmem>>, %arg2: memref<448x512xbf16, #tpu.memory_space<vmem>>, %arg3: memref<1x512xf32, #tpu.memory_space<vmem>>, %arg4: memref<128x512xf32, #tpu.memory_space<vmem>>, %arg5: memref<128x512xf32, #tpu.memory_space<vmem>>) attributes {dimension_semantics = [#tpu.dimension_semantics<parallel>], iteration_bounds = array<i64: 5>, scalar_prefetch = 0 : i64, scratch_operands = 0 : i64, tpu.core_type = #tpu.core_type<tc>, window_params = [{pipeline_mode = #tpu.pipeline_mode<synchronous>, transform_indices = @transform_0, window_bounds = array<i64: 128, 448>}, {transform_indices = @transform_1, window_bounds = array<i64: 448, 512>}, {transform_indices = @transform_2, window_bounds = array<i64: 1, 512>}, {transform_indices = @transform_3, window_bounds = array<i64: 128, 512>}, {transform_indices = @transform_4, window_bounds = array<i64: 128, 512>}]} {
    %c0 = arith.constant 0 : index
    %c0_0 = arith.constant 0 : index
    %0 = vector.load %arg1[%c0, %c0_0] : memref<128x448xbf16, #tpu.memory_space<vmem>>, vector<128x448xbf16>
    %c0_1 = arith.constant 0 : index
    %c0_2 = arith.constant 0 : index
    %1 = vector.load %arg2[%c0_1, %c0_2] : memref<448x512xbf16, #tpu.memory_space<vmem>>, vector<448x512xbf16>
    %cst = arith.constant dense<0.000000e+00> : vector<128x512xf32>
    %2 = tpu.matmul %0, %1, %cst {dimension_numbers = #tpu.dot_dimension_numbers<[1], [0], [0], [1], [0, 0, 1, 1], [], []>} : vector<128x448xbf16>, vector<448x512xbf16>, vector<128x512xf32> -> vector<128x512xf32>
    %c0_3 = arith.constant 0 : index
    %c0_4 = arith.constant 0 : index
    %3 = vector.load %arg3[%c0_3, %c0_4] : memref<1x512xf32, #tpu.memory_space<vmem>>, vector<1x512xf32>
    %4 = vector.broadcast %3 : vector<1x512xf32> to vector<128x512xf32>
    %5 = arith.addf %2, %4 : vector<128x512xf32>
    %cst_5 = arith.constant 1.000000e+00 : f32
    %6 = vector.broadcast %cst_5 : f32 to vector<128x512xf32>
    %7 = arith.mulf %5, %6 : vector<128x512xf32>
    %c0_6 = arith.constant 0 : index
    %c0_7 = arith.constant 0 : index
    %8 = vector.load %arg4[%c0_6, %c0_7] : memref<128x512xf32, #tpu.memory_space<vmem>>, vector<128x512xf32>
    %9 = arith.addf %7, %8 : vector<128x512xf32>
    %cst_8 = arith.constant 0.000000e+00 : f32
    %10 = vector.broadcast %cst_8 : f32 to vector<128x512xf32>
    %11 = arith.maximumf %9, %10 : vector<128x512xf32>
    %c0_9 = arith.constant 0 : index
    %c0_10 = arith.constant 0 : index
    %12 = vector.load %arg5[%c0_9, %c0_10] : memref<128x512xf32, #tpu.memory_space<vmem>>, vector<128x512xf32>
    tpu.vector_store %arg5[%c0_9, %c0_10], %11 {strides = array<i32>} : memref<128x512xf32, #tpu.memory_space<vmem>>, vector<128x512xf32>,
    return
  }
  func.func @transform_0(%arg0: i32) -> (i32, i32) {
    %c0_i32 = arith.constant 0 : i32
    %c0_i32_0 = arith.constant 0 : i32
    %c0_i32_1 = arith.constant 0 : i32
    return %c0_i32, %c0_i32_0 : i32, i32
  }
  func.func @transform_1(%arg0: i32) -> (i32, i32) {
    %c0_i32 = arith.constant 0 : i32
    %c0_i32_0 = arith.constant 0 : i32
    return %c0_i32, %arg0 : i32, i32
  }
  func.func @transform_2(%arg0: i32) -> (i32, i32) {
    %c0_i32 = arith.constant 0 : i32
    %c0_i32_0 = arith.constant 0 : i32
    return %c0_i32, %arg0 : i32, i32
  }
  func.func @transform_3(%arg0: i32) -> (i32, i32) {
    %c0_i32 = arith.constant 0 : i32
    %c0_i32_0 = arith.constant 0 : i32
    return %c0_i32, %arg0 : i32, i32
  }
  func.func @transform_4(%arg0: i32) -> (i32, i32) {
    %c0_i32 = arith.constant 0 : i32
    %c0_i32_0 = arith.constant 0 : i32
    return %c0_i32, %arg0 : i32, i32
  }
}

module attributes {stable_mosaic.version = 11 : i64} {
  func.func @_branch_kernel(%arg0: i32, %arg1: memref<64x2080xf32, #tpu.memory_space<vmem>>, %arg2: memref<2080x384xbf16, #tpu.memory_space<vmem>>, %arg3: memref<1x384xf32, #tpu.memory_space<vmem>>, %arg4: memref<1x384xf32, #tpu.memory_space<vmem>>, %arg5: memref<3x192x224xbf16, #tpu.memory_space<vmem>>, %arg6: memref<1x224xf32, #tpu.memory_space<vmem>>, %arg7: memref<1x224xf32, #tpu.memory_space<vmem>>, %arg8: memref<3x224x256xbf16, #tpu.memory_space<vmem>>, %arg9: memref<1x256xf32, #tpu.memory_space<vmem>>, %arg10: memref<1x256xf32, #tpu.memory_space<vmem>>, %arg11: memref<64x448xbf16, #tpu.memory_space<vmem>>) attributes {dimension_semantics = [#tpu.dimension_semantics<parallel>], iteration_bounds = array<i64: 2>, scalar_prefetch = 0 : i64, scratch_operands = 0 : i64, tpu.core_type = #tpu.core_type<tc>, window_params = [{transform_indices = @transform_0, window_bounds = array<i64: 64, 2080>}, {pipeline_mode = #tpu.pipeline_mode<synchronous>, transform_indices = @transform_1, window_bounds = array<i64: 2080, 384>}, {pipeline_mode = #tpu.pipeline_mode<synchronous>, transform_indices = @transform_2, window_bounds = array<i64: 1, 384>}, {pipeline_mode = #tpu.pipeline_mode<synchronous>, transform_indices = @transform_3, window_bounds = array<i64: 1, 384>}, {pipeline_mode = #tpu.pipeline_mode<synchronous>, transform_indices = @transform_4, window_bounds = array<i64: 3, 192, 224>}, {pipeline_mode = #tpu.pipeline_mode<synchronous>, transform_indices = @transform_5, window_bounds = array<i64: 1, 224>}, {pipeline_mode = #tpu.pipeline_mode<synchronous>, transform_indices = @transform_6, window_bounds = array<i64: 1, 224>}, {pipeline_mode = #tpu.pipeline_mode<synchronous>, transform_indices = @transform_7, window_bounds = array<i64: 3, 224, 256>}, {pipeline_mode = #tpu.pipeline_mode<synchronous>, transform_indices = @transform_8, window_bounds = array<i64: 1, 256>}, {pipeline_mode = #tpu.pipeline_mode<synchronous>, transform_indices = @transform_9, window_bounds = array<i64: 1, 256>}, {transform_indices = @transform_10, window_bounds = array<i64: 64, 448>}]} {
    %c0 = arith.constant 0 : index
    %c0_0 = arith.constant 0 : index
    %0 = vector.load %arg1[%c0, %c0_0] : memref<64x2080xf32, #tpu.memory_space<vmem>>, vector<64x2080xf32>
    %1 = arith.truncf %0 : vector<64x2080xf32> to vector<64x2080xbf16>
    %c0_1 = arith.constant 0 : index
    %c0_2 = arith.constant 0 : index
    %2 = vector.load %arg2[%c0_1, %c0_2] : memref<2080x384xbf16, #tpu.memory_space<vmem>>, vector<2080x384xbf16>
    %cst = arith.constant dense<0.000000e+00> : vector<64x384xf32>
    %3 = tpu.matmul %1, %2, %cst {dimension_numbers = #tpu.dot_dimension_numbers<[1], [0], [0], [1], [0, 0, 1, 1], [], []>} : vector<64x2080xbf16>, vector<2080x384xbf16>, vector<64x384xf32> -> vector<64x384xf32>
    %c0_3 = arith.constant 0 : index
    %c0_4 = arith.constant 0 : index
    %4 = vector.load %arg3[%c0_3, %c0_4] : memref<1x384xf32, #tpu.memory_space<vmem>>, vector<1x384xf32>
    %5 = vector.broadcast %4 : vector<1x384xf32> to vector<64x384xf32>
    %6 = arith.mulf %3, %5 : vector<64x384xf32>
    %c0_5 = arith.constant 0 : index
    %c0_6 = arith.constant 0 : index
    %7 = vector.load %arg4[%c0_5, %c0_6] : memref<1x384xf32, #tpu.memory_space<vmem>>, vector<1x384xf32>
    %8 = vector.broadcast %7 : vector<1x384xf32> to vector<64x384xf32>
    %9 = arith.addf %6, %8 : vector<64x384xf32>
    %cst_7 = arith.constant 0.000000e+00 : f32
    %10 = vector.broadcast %cst_7 : f32 to vector<64x384xf32>
    %11 = arith.maximumf %9, %10 : vector<64x384xf32>
    %12 = vector.extract_strided_slice %11 {offsets = [0, 0], sizes = [64, 192], strides = [1, 1]} : vector<64x384xf32> to vector<64x192xf32>
    %13 = vector.extract_strided_slice %11 {offsets = [0, 192], sizes = [64, 192], strides = [1, 1]} : vector<64x384xf32> to vector<64x192xf32>
    %14 = tpu.iota {dimensions = array<i32: 0>} : vector<64x1xi32>
    %c8_i32 = arith.constant 8 : i32
    %c0_i32 = arith.constant 0 : i32
    %15 = arith.cmpi eq, %c8_i32, %c0_i32 : i32
    %c1_i32 = arith.constant 1 : i32
    %16 = arith.select %15, %c1_i32, %c8_i32 : i32
    %17 = vector.broadcast %16 : i32 to vector<64x1xi32>
    %18 = arith.remsi %14, %17 : vector<64x1xi32>
    %c0_i32_8 = arith.constant 0 : i32
    %19 = vector.broadcast %c0_i32_8 : i32 to vector<64x1xi32>
    %20 = arith.cmpi ne, %18, %19 : vector<64x1xi32>
    %c0_i32_9 = arith.constant 0 : i32
    %21 = vector.broadcast %c0_i32_9 : i32 to vector<64x1xi32>
    %22 = arith.cmpi slt, %18, %21 : vector<64x1xi32>
    %c0_i32_10 = arith.constant 0 : i32
    %23 = arith.cmpi slt, %16, %c0_i32_10 : i32
    %24 = vector.broadcast %23 : i1 to vector<64x1xi1>
    %25 = vector.broadcast %24 : vector<64x1xi1> to vector<64x1xi1>
    %26 = arith.xori %22, %25 : vector<64x1xi1>
    %27 = arith.andi %26, %20 : vector<64x1xi1>
    %28 = vector.broadcast %16 : i32 to vector<64x1xi32>
    %29 = arith.addi %18, %28 : vector<64x1xi32>
    %30 = arith.select %27, %29, %18 : vector<64x1xi1>, vector<64x1xi32>
    %c0_i32_11 = arith.constant 0 : i32
    %31 = vector.broadcast %c0_i32_11 : i32 to vector<64x1xi32>
    %32 = arith.cmpi ne, %30, %31 : vector<64x1xi32>
    %c1_i32_12 = arith.constant 1 : i32
    %33 = tpu.dynamic_rotate %13 by %c1_i32_12 dim 0 : vector<64x192xf32>, i32 -> vector<64x192xf32>
    %cst_13 = arith.constant 0.000000e+00 : f32
    %34 = vector.shape_cast %32 : vector<64x1xi1> to vector<64x1xi1>
    %35 = vector.broadcast %34 : vector<64x1xi1> to vector<64x192xi1>
    %36 = vector.broadcast %cst_13 : f32 to vector<64x192xf32>
    %37 = arith.select %35, %33, %36 : vector<64x192xi1>, vector<64x192xf32>
    %38 = arith.truncf %37 : vector<64x192xf32> to vector<64x192xbf16>
    %c8_i32_14 = arith.constant 8 : i32
    %c0_i32_15 = arith.constant 0 : i32
    %39 = arith.cmpi eq, %c8_i32_14, %c0_i32_15 : i32
    %c1_i32_16 = arith.constant 1 : i32
    %40 = arith.select %39, %c1_i32_16, %c8_i32_14 : i32
    %41 = vector.broadcast %40 : i32 to vector<64x1xi32>
    %42 = arith.remsi %14, %41 : vector<64x1xi32>
    %c0_i32_17 = arith.constant 0 : i32
    %43 = vector.broadcast %c0_i32_17 : i32 to vector<64x1xi32>
    %44 = arith.cmpi ne, %42, %43 : vector<64x1xi32>
    %c0_i32_18 = arith.constant 0 : i32
    %45 = vector.broadcast %c0_i32_18 : i32 to vector<64x1xi32>
    %46 = arith.cmpi slt, %42, %45 : vector<64x1xi32>
    %c0_i32_19 = arith.constant 0 : i32
    %47 = arith.cmpi slt, %40, %c0_i32_19 : i32
    %48 = vector.broadcast %47 : i1 to vector<64x1xi1>
    %49 = vector.broadcast %48 : vector<64x1xi1> to vector<64x1xi1>
    %50 = arith.xori %46, %49 : vector<64x1xi1>
    %51 = arith.andi %50, %44 : vector<64x1xi1>
    %52 = vector.broadcast %40 : i32 to vector<64x1xi32>
    %53 = arith.addi %42, %52 : vector<64x1xi32>
    %54 = arith.select %51, %53, %42 : vector<64x1xi1>, vector<64x1xi32>
    %c7_i32 = arith.constant 7 : i32
    %55 = vector.broadcast %c7_i32 : i32 to vector<64x1xi32>
    %56 = arith.cmpi ne, %54, %55 : vector<64x1xi32>
    %c63_i32 = arith.constant 63 : i32
    %57 = tpu.dynamic_rotate %13 by %c63_i32 dim 0 : vector<64x192xf32>, i32 -> vector<64x192xf32>
    %cst_20 = arith.constant 0.000000e+00 : f32
    %58 = vector.shape_cast %56 : vector<64x1xi1> to vector<64x1xi1>
    %59 = vector.broadcast %58 : vector<64x1xi1> to vector<64x192xi1>
    %60 = vector.broadcast %cst_20 : f32 to vector<64x192xf32>
    %61 = arith.select %59, %57, %60 : vector<64x192xi1>, vector<64x192xf32>
    %62 = arith.truncf %61 : vector<64x192xf32> to vector<64x192xbf16>
    %c0_21 = arith.constant 0 : index
    %c0_22 = arith.constant 0 : index
    %c0_23 = arith.constant 0 : index
    %63 = vector.load %arg5[%c0_21, %c0_22, %c0_23] : memref<3x192x224xbf16, #tpu.memory_space<vmem>>, vector<1x192x224xbf16>
    %64 = vector.shape_cast %63 : vector<1x192x224xbf16> to vector<192x224xbf16>
    %cst_24 = arith.constant dense<0.000000e+00> : vector<64x224xf32>
    %65 = tpu.matmul %38, %64, %cst_24 {dimension_numbers = #tpu.dot_dimension_numbers<[1], [0], [0], [1], [0, 0, 1, 1], [], []>} : vector<64x192xbf16>, vector<192x224xbf16>, vector<64x224xf32> -> vector<64x224xf32>
    %66 = arith.truncf %13 : vector<64x192xf32> to vector<64x192xbf16>
    %c1 = arith.constant 1 : index
    %c0_25 = arith.constant 0 : index
    %c0_26 = arith.constant 0 : index
    %67 = vector.load %arg5[%c1, %c0_25, %c0_26] : memref<3x192x224xbf16, #tpu.memory_space<vmem>>, vector<1x192x224xbf16>
    %68 = vector.shape_cast %67 : vector<1x192x224xbf16> to vector<192x224xbf16>
    %cst_27 = arith.constant dense<0.000000e+00> : vector<64x224xf32>
    %69 = tpu.matmul %66, %68, %cst_27 {dimension_numbers = #tpu.dot_dimension_numbers<[1], [0], [0], [1], [0, 0, 1, 1], [], []>} : vector<64x192xbf16>, vector<192x224xbf16>, vector<64x224xf32> -> vector<64x224xf32>
    %70 = arith.addf %65, %69 : vector<64x224xf32>
    %c2 = arith.constant 2 : index
    %c0_28 = arith.constant 0 : index
    %c0_29 = arith.constant 0 : index
    %71 = vector.load %arg5[%c2, %c0_28, %c0_29] : memref<3x192x224xbf16, #tpu.memory_space<vmem>>, vector<1x192x224xbf16>
    %72 = vector.shape_cast %71 : vector<1x192x224xbf16> to vector<192x224xbf16>
    %cst_30 = arith.constant dense<0.000000e+00> : vector<64x224xf32>
    %73 = tpu.matmul %62, %72, %cst_30 {dimension_numbers = #tpu.dot_dimension_numbers<[1], [0], [0], [1], [0, 0, 1, 1], [], []>} : vector<64x192xbf16>, vector<192x224xbf16>, vector<64x224xf32> -> vector<64x224xf32>
    %74 = arith.addf %70, %73 : vector<64x224xf32>
    %c0_31 = arith.constant 0 : index
    %c0_32 = arith.constant 0 : index
    %75 = vector.load %arg6[%c0_31, %c0_32] : memref<1x224xf32, #tpu.memory_space<vmem>>, vector<1x224xf32>
    %76 = vector.broadcast %75 : vector<1x224xf32> to vector<64x224xf32>
    %77 = arith.mulf %74, %76 : vector<64x224xf32>
    %c0_33 = arith.constant 0 : index
    %c0_34 = arith.constant 0 : index
    %78 = vector.load %arg7[%c0_33, %c0_34] : memref<1x224xf32, #tpu.memory_space<vmem>>, vector<1x224xf32>
    %79 = vector.broadcast %78 : vector<1x224xf32> to vector<64x224xf32>
    %80 = arith.addf %77, %79 : vector<64x224xf32>
    %cst_35 = arith.constant 0.000000e+00 : f32
    %81 = vector.broadcast %cst_35 : f32 to vector<64x224xf32>
    %82 = arith.maximumf %80, %81 : vector<64x224xf32>
    %c8_i32_36 = arith.constant 8 : i32
    %83 = vector.broadcast %c8_i32_36 : i32 to vector<64x1xi32>
    %84 = arith.cmpi sge, %14, %83 : vector<64x1xi32>
    %c8_i32_37 = arith.constant 8 : i32
    %85 = tpu.dynamic_rotate %82 by %c8_i32_37 dim 0 : vector<64x224xf32>, i32 -> vector<64x224xf32>
    %cst_38 = arith.constant 0.000000e+00 : f32
    %86 = vector.shape_cast %84 : vector<64x1xi1> to vector<64x1xi1>
    %87 = vector.broadcast %86 : vector<64x1xi1> to vector<64x224xi1>
    %88 = vector.broadcast %cst_38 : f32 to vector<64x224xf32>
    %89 = arith.select %87, %85, %88 : vector<64x224xi1>, vector<64x224xf32>
    %90 = arith.truncf %89 : vector<64x224xf32> to vector<64x224xbf16>
    %c56_i32 = arith.constant 56 : i32
    %91 = vector.broadcast %c56_i32 : i32 to vector<64x1xi32>
    %92 = arith.cmpi slt, %14, %91 : vector<64x1xi32>
    %c56_i32_39 = arith.constant 56 : i32
    %93 = tpu.dynamic_rotate %82 by %c56_i32_39 dim 0 : vector<64x224xf32>, i32 -> vector<64x224xf32>
    %cst_40 = arith.constant 0.000000e+00 : f32
    %94 = vector.shape_cast %92 : vector<64x1xi1> to vector<64x1xi1>
    %95 = vector.broadcast %94 : vector<64x1xi1> to vector<64x224xi1>
    %96 = vector.broadcast %cst_40 : f32 to vector<64x224xf32>
    %97 = arith.select %95, %93, %96 : vector<64x224xi1>, vector<64x224xf32>
    %98 = arith.truncf %97 : vector<64x224xf32> to vector<64x224xbf16>
    %c0_41 = arith.constant 0 : index
    %c0_42 = arith.constant 0 : index
    %c0_43 = arith.constant 0 : index
    %99 = vector.load %arg8[%c0_41, %c0_42, %c0_43] : memref<3x224x256xbf16, #tpu.memory_space<vmem>>, vector<1x224x256xbf16>
    %100 = vector.shape_cast %99 : vector<1x224x256xbf16> to vector<224x256xbf16>
    %cst_44 = arith.constant dense<0.000000e+00> : vector<64x256xf32>
    %101 = tpu.matmul %90, %100, %cst_44 {dimension_numbers = #tpu.dot_dimension_numbers<[1], [0], [0], [1], [0, 0, 1, 1], [], []>} : vector<64x224xbf16>, vector<224x256xbf16>, vector<64x256xf32> -> vector<64x256xf32>
    %102 = arith.truncf %82 : vector<64x224xf32> to vector<64x224xbf16>
    %c1_45 = arith.constant 1 : index
    %c0_46 = arith.constant 0 : index
    %c0_47 = arith.constant 0 : index
    %103 = vector.load %arg8[%c1_45, %c0_46, %c0_47] : memref<3x224x256xbf16, #tpu.memory_space<vmem>>, vector<1x224x256xbf16>
    %104 = vector.shape_cast %103 : vector<1x224x256xbf16> to vector<224x256xbf16>
    %cst_48 = arith.constant dense<0.000000e+00> : vector<64x256xf32>
    %105 = tpu.matmul %102, %104, %cst_48 {dimension_numbers = #tpu.dot_dimension_numbers<[1], [0], [0], [1], [0, 0, 1, 1], [], []>} : vector<64x224xbf16>, vector<224x256xbf16>, vector<64x256xf32> -> vector<64x256xf32>
    %106 = arith.addf %101, %105 : vector<64x256xf32>
    %c2_49 = arith.constant 2 : index
    %c0_50 = arith.constant 0 : index
    %c0_51 = arith.constant 0 : index
    %107 = vector.load %arg8[%c2_49, %c0_50, %c0_51] : memref<3x224x256xbf16, #tpu.memory_space<vmem>>, vector<1x224x256xbf16>
    %108 = vector.shape_cast %107 : vector<1x224x256xbf16> to vector<224x256xbf16>
    %cst_52 = arith.constant dense<0.000000e+00> : vector<64x256xf32>
    %109 = tpu.matmul %98, %108, %cst_52 {dimension_numbers = #tpu.dot_dimension_numbers<[1], [0], [0], [1], [0, 0, 1, 1], [], []>} : vector<64x224xbf16>, vector<224x256xbf16>, vector<64x256xf32> -> vector<64x256xf32>
    %110 = arith.addf %106, %109 : vector<64x256xf32>
    %c0_53 = arith.constant 0 : index
    %c0_54 = arith.constant 0 : index
    %111 = vector.load %arg9[%c0_53, %c0_54] : memref<1x256xf32, #tpu.memory_space<vmem>>, vector<1x256xf32>
    %112 = vector.broadcast %111 : vector<1x256xf32> to vector<64x256xf32>
    %113 = arith.mulf %110, %112 : vector<64x256xf32>
    %c0_55 = arith.constant 0 : index
    %c0_56 = arith.constant 0 : index
    %114 = vector.load %arg10[%c0_55, %c0_56] : memref<1x256xf32, #tpu.memory_space<vmem>>, vector<1x256xf32>
    %115 = vector.broadcast %114 : vector<1x256xf32> to vector<64x256xf32>
    %116 = arith.addf %113, %115 : vector<64x256xf32>
    %cst_57 = arith.constant 0.000000e+00 : f32
    %117 = vector.broadcast %cst_57 : f32 to vector<64x256xf32>
    %118 = arith.maximumf %116, %117 : vector<64x256xf32>
    %119 = arith.truncf %12 : vector<64x192xf32> to vector<64x192xbf16>
    %120 = arith.truncf %118 : vector<64x256xf32> to vector<64x256xbf16>
    %121 = tpu.concatenate %119, %120 in 1 : vector<64x192xbf16>, vector<64x256xbf16> -> vector<64x448xbf16>
    %c0_58 = arith.constant 0 : index
    %c0_59 = arith.constant 0 : index
    %122 = vector.load %arg11[%c0_58, %c0_59] : memref<64x448xbf16, #tpu.memory_space<vmem>>, vector<64x448xbf16>
    tpu.vector_store %arg11[%c0_58, %c0_59], %121 {strides = array<i32>} : memref<64x448xbf16, #tpu.memory_space<vmem>>, vector<64x448xbf16>,
    return
  }
  func.func @transform_0(%arg0: i32) -> (i32, i32) {
    %c0_i32 = arith.constant 0 : i32
    %c0_i32_0 = arith.constant 0 : i32
    return %arg0, %c0_i32 : i32, i32
  }
  func.func @transform_1(%arg0: i32) -> (i32, i32) {
    %c0_i32 = arith.constant 0 : i32
    %c0_i32_0 = arith.constant 0 : i32
    %c0_i32_1 = arith.constant 0 : i32
    return %c0_i32, %c0_i32_0 : i32, i32
  }
  func.func @transform_2(%arg0: i32) -> (i32, i32) {
    %c0_i32 = arith.constant 0 : i32
    %c0_i32_0 = arith.constant 0 : i32
    %c0_i32_1 = arith.constant 0 : i32
    return %c0_i32, %c0_i32_0 : i32, i32
  }
  func.func @transform_3(%arg0: i32) -> (i32, i32) {
    %c0_i32 = arith.constant 0 : i32
    %c0_i32_0 = arith.constant 0 : i32
    %c0_i32_1 = arith.constant 0 : i32
    return %c0_i32, %c0_i32_0 : i32, i32
  }
  func.func @transform_4(%arg0: i32) -> (i32, i32, i32) {
    %c0_i32 = arith.constant 0 : i32
    %c0_i32_0 = arith.constant 0 : i32
    %c0_i32_1 = arith.constant 0 : i32
    %c0_i32_2 = arith.constant 0 : i32
    return %c0_i32, %c0_i32_0, %c0_i32_1 : i32, i32, i32
  }
  func.func @transform_5(%arg0: i32) -> (i32, i32) {
    %c0_i32 = arith.constant 0 : i32
    %c0_i32_0 = arith.constant 0 : i32
    %c0_i32_1 = arith.constant 0 : i32
    return %c0_i32, %c0_i32_0 : i32, i32
  }
  func.func @transform_6(%arg0: i32) -> (i32, i32) {
    %c0_i32 = arith.constant 0 : i32
    %c0_i32_0 = arith.constant 0 : i32
    %c0_i32_1 = arith.constant 0 : i32
    return %c0_i32, %c0_i32_0 : i32, i32
  }
  func.func @transform_7(%arg0: i32) -> (i32, i32, i32) {
    %c0_i32 = arith.constant 0 : i32
    %c0_i32_0 = arith.constant 0 : i32
    %c0_i32_1 = arith.constant 0 : i32
    %c0_i32_2 = arith.constant 0 : i32
    return %c0_i32, %c0_i32_0, %c0_i32_1 : i32, i32, i32
  }
  func.func @transform_8(%arg0: i32) -> (i32, i32) {
    %c0_i32 = arith.constant 0 : i32
    %c0_i32_0 = arith.constant 0 : i32
    %c0_i32_1 = arith.constant 0 : i32
    return %c0_i32, %c0_i32_0 : i32, i32
  }
  func.func @transform_9(%arg0: i32) -> (i32, i32) {
    %c0_i32 = arith.constant 0 : i32
    %c0_i32_0 = arith.constant 0 : i32
    %c0_i32_1 = arith.constant 0 : i32
    return %c0_i32, %c0_i32_0 : i32, i32
  }
  func.func @transform_10(%arg0: i32) -> (i32, i32) {
    %c0_i32 = arith.constant 0 : i32
    %c0_i32_0 = arith.constant 0 : i32
    return %arg0, %c0_i32 : i32, i32
  }
}

</mosaic_0001>

<llo_original>
// kernel: block8_forward.3
$region0: #{block8_forward.3}
  #allocation0 [shape = 'u32[]', space=smem, size = 0x4, offset = 0x4, fixed_abs, tag = 'smem constant byte address 0x4 - core index']
  #allocation1 [shape = 'u32[144,128]{1,0:T(1,128)}', space=vmem, size = 0x12000, scoped, tag = 'internal scratch']
  %s0 = inlined_call_operand.vmem [shape: bf16[128,448], index: 0, kind: input, shape index: {}]
  %s1 = inlined_call_operand.vmem [shape: bf16[448,2080], index: 1, kind: input, shape index: {}]
  %s2 = inlined_call_operand.vmem [shape: f32[1,2080], index: 2, kind: input, shape index: {}]
  %s3 = inlined_call_operand.vmem [shape: f32[128,2080], index: 3, kind: input, shape index: {}]
  %s4 = inlined_call_operand.hbm [shape: f32[128,2080], index: 4, kind: output, shape index: {}]
  %s5 = sld [smem:[#allocation0]]
  $region181: #{block8_forward.3} parent=0
    _
  %s7 = ssub.s32 1, %s5
  %s8 = scalar_select 0, %s7, %s5
  $region1: #{block8_forward.3} parent=0
    #allocation2 [shape = 'u8[917504]{0}', space=vmem, size = 0xe0000, scoped, tag = 'input window, operand 1']
    #allocation3 [shape = 'u8[524288]{0}', space=vmem, size = 0x80000, scoped, tag = 'input window, operand 3']
    #allocation4 [shape = 'u8[524288]{0}', space=vmem, size = 0x80000, scoped, tag = 'output window, operand 0']
    #allocation5 [shape = 's32[2]{0}', space=sflag, size = 0x8, scoped, tag = 'scoped memory for block8_forward.3']
    %9 = vsyncpa [#allocation5], 0
    %s10 = scalar_lea.sflag [#allocation5], 1
    %11 = vsyncpa %s10, 0
    loop: start=0, step=1, limit=7
    $region2: #{block8_forward.3} parent=1 // loop_pre_header
      _
    $region3: #{block8_forward.3} parent=1 // loop_header
      %s13 = sphi 0, %s17
      %p14 = scmp.ge.s32.totalorder %s13, 7
      %s21 = sphi 0, %s21
      %s23 = sphi 0, %s21
      %s24 = sphi 0, %s23
      %s38 = sphi 0, %s24
      %s44 = sphi 0, %s46
      %s47 = sphi 0, %s44
      %s48 = sphi 0, %s47
      %s64 = sphi 0, %s48
      %s70 = sphi 0, %s72
      %s73 = sphi 0, %s70
      %s74 = sphi 0, %s73
      %s90 = sphi 0, %s74
      %s96 = sphi 0, %s98
      %s99 = sphi 0, %s96
      %s100 = sphi 0, %s99
      %s116 = sphi 0, %s100
      %s122 = sphi 0, %s124
      %s125 = sphi 0, %s122
      %s126 = sphi 0, %s125
      %s142 = sphi 0, %s126
    $region4: #{block8_forward.3} parent=1 // loop_header_branch
      %16 = sbr.rel (%p14) target = $region8
    $region5: #{block8_forward.3} parent=1 // loop_body
      %s18 = ssub.s32 %s13, 1
      %s19 = ssub.s32 %s13, 2
      %s20 = sadd.s32 %s13, 1
      %s22 = sadd.s32 %s21, 1
      %p25 = scmp.eq.s32.totalorder %s13, 4
      %p26 = scmp.ne.s32.totalorder %s21, %s23
      %p27 = scmp.eq.s32.totalorder %s13, 0
      %p28 = por %p26, %p27
      %p29 = scmp.ne.s32.totalorder %s21, %s23
      %p30 = scmp.eq.s32.totalorder %s18, 4
      %p31 = por %p29, %p30
      %p32 = scmp.ne.s32.totalorder %s23, %s24
      %p33 = scmp.eq.s32.totalorder %s18, 0
      %p34 = por %p32, %p33
      %p35 = scmp.ne.s32.totalorder %s23, %s24
      %p36 = scmp.eq.s32.totalorder %s19, 4
      %p37 = por %p35, %p36
      %p39 = scmp.ne.s32.totalorder %s24, %s38
      %p40 = scmp.eq.s32.totalorder %s19, 0
      %p41 = por %p39, %p40
      %s42 = ssub.s32 %s13, %s20
      %p43 = scmp.eq.s32.totalorder %s42, 0
      %s45 = sadd.s32 %s44, 1
      %s46 = scalar_select %p43, %s44, %s45
      %p49 = pneg %p43
      %p50 = scmp.eq.s32.totalorder %s13, 4
      %p51 = por %p49, %p50
      %p52 = scmp.ne.s32.totalorder %s44, %s47
      %p53 = scmp.eq.s32.totalorder %s13, 0
      %p54 = por %p52, %p53
      %p55 = scmp.ne.s32.totalorder %s44, %s47
      %p56 = scmp.eq.s32.totalorder %s18, 4
      %p57 = por %p55, %p56
      %p58 = scmp.ne.s32.totalorder %s47, %s48
      %p59 = scmp.eq.s32.totalorder %s18, 0
      %p60 = por %p58, %p59
      %p61 = scmp.ne.s32.totalorder %s47, %s48
      %p62 = scmp.eq.s32.totalorder %s19, 4
      %p63 = por %p61, %p62
      %p65 = scmp.ne.s32.totalorder %s48, %s64
      %p66 = scmp.eq.s32.totalorder %s19, 0
      %p67 = por %p65, %p66
      %s68 = ssub.s32 %s13, %s20
      %p69 = scmp.eq.s32.totalorder %s68, 0
      %s71 = sadd.s32 %s70, 1
      %s72 = scalar_select %p69, %s70, %s71
      %p75 = pneg %p69
      %p76 = scmp.eq.s32.totalorder %s13, 4
      %p77 = por %p75, %p76
      %p78 = scmp.ne.s32.totalorder %s70, %s73
      %p79 = scmp.eq.s32.totalorder %s13, 0
      %p80 = por %p78, %p79
      %p81 = scmp.ne.s32.totalorder %s70, %s73
      %p82 = scmp.eq.s32.totalorder %s18, 4
      %p83 = por %p81, %p82
      %p84 = scmp.ne.s32.totalorder %s73, %s74
      %p85 = scmp.eq.s32.totalorder %s18, 0
      %p86 = por %p84, %p85
      %p87 = scmp.ne.s32.totalorder %s73, %s74
      %p88 = scmp.eq.s32.totalorder %s19, 4
      %p89 = por %p87, %p88
      %p91 = scmp.ne.s32.totalorder %s74, %s90
      %p92 = scmp.eq.s32.totalorder %s19, 0
      %p93 = por %p91, %p92
      %s94 = ssub.s32 %s13, %s20
      %p95 = scmp.eq.s32.totalorder %s94, 0
      %s97 = sadd.s32 %s96, 1
      %s98 = scalar_select %p95, %s96, %s97
      %p101 = pneg %p95
      %p102 = scmp.eq.s32.totalorder %s13, 4
      %p103 = por %p101, %p102
      %p104 = scmp.ne.s32.totalorder %s96, %s99
      %p105 = scmp.eq.s32.totalorder %s13, 0
      %p106 = por %p104, %p105
      %p107 = scmp.ne.s32.totalorder %s96, %s99
      %p108 = scmp.eq.s32.totalorder %s18, 4
      %p109 = por %p107, %p108
      %p110 = scmp.ne.s32.totalorder %s99, %s100
      %p111 = scmp.eq.s32.totalorder %s18, 0
      %p112 = por %p110, %p111
      %p113 = scmp.ne.s32.totalorder %s99, %s100
      %p114 = scmp.eq.s32.totalorder %s19, 4
      %p115 = por %p113, %p114
      %p117 = scmp.ne.s32.totalorder %s100, %s116
      %p118 = scmp.eq.s32.totalorder %s19, 0
      %p119 = por %p117, %p118
      %s120 = ssub.s32 %s13, %s20
      %p121 = scmp.eq.s32.totalorder %s120, 0
      %s123 = sadd.s32 %s122, 1
      %s124 = scalar_select %p121, %s122, %s123
      %p127 = pneg %p121
      %p128 = scmp.eq.s32.totalorder %s13, 4
      %p129 = por %p127, %p128
      %p130 = scmp.ne.s32.totalorder %s122, %s125
      %p131 = scmp.eq.s32.totalorder %s13, 0
      %p132 = por %p130, %p131
      %p133 = scmp.ne.s32.totalorder %s122, %s125
      %p134 = scmp.eq.s32.totalorder %s18, 4
      %p135 = por %p133, %p134
      %p136 = scmp.ne.s32.totalorder %s125, %s126
      %p137 = scmp.eq.s32.totalorder %s18, 0
      %p138 = por %p136, %p137
      %p139 = scmp.ne.s32.totalorder %s125, %s126
      %p140 = scmp.eq.s32.totalorder %s19, 4
      %p141 = por %p139, %p140
      %p143 = scmp.ne.s32.totalorder %s126, %s142
      %p144 = scmp.eq.s32.totalorder %s19, 0
      %p145 = por %p143, %p144
      %p146 = scmp.le.s32.totalorder 1, %s13
      %p147 = scmp.lt.s32.totalorder %s13, 6
      %p148 = pnand %p146, %p147
      %p149 = pneg %p148
      // Predicated region
      $region9: #{block8_forward.3} parent=5 // pred_check
        _
      $region10: #{block8_forward.3} parent=5 // pred_check_branch
        %151 = sbr.rel (%p148) target = $region12
      $region11: #{block8_forward.3} parent=5 // pred_region
        %s152 = ssub.s32 %s13, 1
        // Predicated region
        $region13: #{block8_forward.3} parent=11 // pred_check
          %p153 = pneg %p34
        $region14: #{block8_forward.3} parent=11 // pred_check_branch
          %155 = sbr.rel (%p153) target = $region16
        $region15: #{block8_forward.3} parent=11 // pred_region
          _
        $region16: #{block8_forward.3} parent=11 // pred_fallthru
          _
      $region12: #{block8_forward.3} parent=5 // pred_fallthru
        _
      %p156 = scmp.lt.s32.totalorder %s13, 5
      // Predicated region
      $region17: #{block8_forward.3} parent=5 // pred_check
        %p157 = pneg %p156
      $region18: #{block8_forward.3} parent=5 // pred_check_branch
        %159 = sbr.rel (%p157) target = $region20
      $region19: #{block8_forward.3} parent=5 // pred_region
        // Predicated region
        $region21: #{block8_forward.3} parent=19 // pred_check
          %p160 = pneg %p54
        $region22: #{block8_forward.3} parent=19 // pred_check_branch
          %162 = sbr.rel (%p160) target = $region24
        $region23: #{block8_forward.3} parent=19 // pred_region
          %s163 = sand.u32 %s44, 1
          %s164 = sand.u32 %s44, 1
          %s165 = smul.addr %s164, 896
          %s166 = scalar_lea.vmem [#allocation2], %s165
          %s167 = smul.u32 4, %s13
          %s168 = ssub.s32 17, %s167
          %p169 = scmp.lt.s32.totalorder %s168, 4
          %s170 = scalar_select %p169, %s168, 4
          %s171 = smul.u32 3584, %s170
          %p172 = scmp.ne.s32.totalorder 0, %s171
          %s173 = smul.addr %s167, 4
          %s174 = scalar_lea.vmem %s1, %s173
          %s175 = smul.u32 %s170, 4
          // Predicated region
          $region25: #{block8_forward.3} parent=23 // pred_check
            %p176 = pneg %p172
          $region26: #{block8_forward.3} parent=23 // pred_check_branch
            %178 = sbr.rel (%p176) target = $region28
          $region27: #{block8_forward.3} parent=23 // pred_region
            %p179 = scmp.lt.u32.totalorder %s175, 8
            %p180 = pneg %p179
            // Predicated region
            $region29: #{block8_forward.3} parent=27 // pred_check
              _
            $region30: #{block8_forward.3} parent=27 // pred_check_branch
              %182 = sbr.rel (%p179) target = $region32
            $region31: #{block8_forward.3} parent=27 // pred_region
              %s307 = sand.u32 %s175, 7
              %p308 = scmp.eq.s32.totalorder %s307, 0
              // Predicated region
              $region44: #{block8_forward.3} parent=31 // pred_check
                %p309 = pneg %p308
              $region45: #{block8_forward.3} parent=31 // pred_check_branch
                %311 = sbr.rel (%p309) target = $region47
              $region46: #{block8_forward.3} parent=31 // pred_region
                %s312 = sshrl.u32 %s175, 3
                %s313 = sshrl.u32 %s312, 1
                // While loop
                $region48: #{block8_forward.3} parent=46 // loop_pre_header
                  _
                $region49: #{block8_forward.3} parent=46 // loop_header
                  %s317 = sphi 0, %s319
                  %p318 = scmp.ge.s32.totalorder %s317, %s313
                  %s322 = sphi 0, %s551
                  %s323 = sphi %s174, %s554
                  %s324 = sphi %s166, %s555
                $region50: #{block8_forward.3} parent=46 // loop_header_branch
                  %321 = sbr.rel (%p318) target = $region54
                $region51: #{block8_forward.3} parent=46 // loop_body
                  %v325 = vld [vmem:[%s323] sm:$0xff]
                  %326 = vst [vmem:[%s324] sm:$0xff] %v325
                  %v327 = vld [vmem:[%s323 + $0x8] sm:$0xff]
                  %328 = vst [vmem:[%s324 + $0x8] sm:$0xff] %v327
                  %v329 = vld [vmem:[%s323 + $0x44] sm:$0xff]
                  %330 = vst [vmem:[%s324 + $0x10] sm:$0xff] %v329
                  %v331 = vld [vmem:[%s323 + $0x4c] sm:$0xff]
                  %332 = vst [vmem:[%s324 + $0x18] sm:$0xff] %v331
                  %v333 = vld [vmem:[%s323 + $0x88] sm:$0xff]
                  %334 = vst [vmem:[%s324 + $0x20] sm:$0xff] %v333
                  %v335 = vld [vmem:[%s323 + $0x90] sm:$0xff]
                  %336 = vst [vmem:[%s324 + $0x28] sm:$0xff] %v335
                  %v337 = vld [vmem:[%s323 + $0xcc] sm:$0xff]
                  %338 = vst [vmem:[%s324 + $0x30] sm:$0xff] %v337
                  %v339 = vld [vmem:[%s323 + $0xd4] sm:$0xff]
                  %340 = vst [vmem:[%s324 + $0x38] sm:$0xff] %v339
                  %v341 = vld [vmem:[%s323 + $0x110] sm:$0xff]
                  %342 = vst [vmem:[%s324 + $0x40] sm:$0xff] %v341
                  %v343 = vld [vmem:[%s323 + $0x118] sm:$0xff]
                  %344 = vst [vmem:[%s324 + $0x48] sm:$0xff] %v343
                  %v345 = vld [vmem:[%s323 + $0x154] sm:$0xff]
                  %346 = vst [vmem:[%s324 + $0x50] sm:$0xff] %v345
                  %v347 = vld [vmem:[%s323 + $0x15c] sm:$0xff]
                  %348 = vst [vmem:[%s324 + $0x58] sm:$0xff] %v347
                  %v349 = vld [vmem:[%s323 + $0x198] sm:$0xff]
                  %350 = vst [vmem:[%s324 + $0x60] sm:$0xff] %v349
                  %v351 = vld [vmem:[%s323 + $0x1a0] sm:$0xff]
                  %352 = vst [vmem:[%s324 + $0x68] sm:$0xff] %v351
                  %v353 = vld [vmem:[%s323 + $0x1dc] sm:$0xff]
                  %354 = vst [vmem:[%s324 + $0x70] sm:$0xff] %v353
                  %v355 = vld [vmem:[%s323 + $0x1e4] sm:$0xff]
                  %356 = vst [vmem:[%s324 + $0x78] sm:$0xff] %v355
                  %v357 = vld [vmem:[%s323 + $0x220] sm:$0xff]
                  %358 = vst [vmem:[%s324 + $0x80] sm:$0xff] %v357
                  %v359 = vld [vmem:[%s323 + $0x228] sm:$0xff]
                  %360 = vst [vmem:[%s324 + $0x88] sm:$0xff] %v359
                  %v361 = vld [vmem:[%s323 + $0x264] sm:$0xff]
                  %362 = vst [vmem:[%s324 + $0x90] sm:$0xff] %v361
                  %v363 = vld [vmem:[%s323 + $0x26c] sm:$0xff]
                  %364 = vst [vmem:[%s324 + $0x98] sm:$0xff] %v363
                  %v365 = vld [vmem:[%s323 + $0x2a8] sm:$0xff]
                  %366 = vst [vmem:[%s324 + $0xa0] sm:$0xff] %v365
                  %v367 = vld [vmem:[%s323 + $0x2b0] sm:$0xff]
                  %368 = vst [vmem:[%s324 + $0xa8] sm:$0xff] %v367
                  %v369 = vld [vmem:[%s323 + $0x2ec] sm:$0xff]
                  %370 = vst [vmem:[%s324 + $0xb0] sm:$0xff] %v369
                  %v371 = vld [vmem:[%s323 + $0x2f4] sm:$0xff]
                  %372 = vst [vmem:[%s324 + $0xb8] sm:$0xff] %v371
                  %v373 = vld [vmem:[%s323 + $0x330] sm:$0xff]
                  %374 = vst [vmem:[%s324 + $0xc0] sm:$0xff] %v373
                  %v375 = vld [vmem:[%s323 + $0x338] sm:$0xff]
                  %376 = vst [vmem:[%s324 + $0xc8] sm:$0xff] %v375
                  %v377 = vld [vmem:[%s323 + $0x374] sm:$0xff]
                  %378 = vst [vmem:[%s324 + $0xd0] sm:$0xff] %v377
                  %v379 = vld [vmem:[%s323 + $0x37c] sm:$0xff]
                  %380 = vst [vmem:[%s324 + $0xd8] sm:$0xff] %v379
                  %v381 = vld [vmem:[%s323 + $0x3b8] sm:$0xff]
                  %382 = vst [vmem:[%s324 + $0xe0] sm:$0xff] %v381
                  %v383 = vld [vmem:[%s323 + $0x3c0] sm:$0xff]
                  %384 = vst [vmem:[%s324 + $0xe8] sm:$0xff] %v383
                  %v385 = vld [vmem:[%s323 + $0x3fc] sm:$0xff]
                  %386 = vst [vmem:[%s324 + $0xf0] sm:$0xff] %v385
                  %v387 = vld [vmem:[%s323 + $0x404] sm:$0xff]
                  %388 = vst [vmem:[%s324 + $0xf8] sm:$0xff] %v387
                  %v389 = vld [vmem:[%s323 + $0x440] sm:$0xff]
                  %390 = vst [vmem:[%s324 + $0x100] sm:$0xff] %v389
                  %v391 = vld [vmem:[%s323 + $0x448] sm:$0xff]
                  %392 = vst [vmem:[%s324 + $0x108] sm:$0xff] %v391
                  %v393 = vld [vmem:[%s323 + $0x484] sm:$0xff]
                  %394 = vst [vmem:[%s324 + $0x110] sm:$0xff] %v393
                  %v395 = vld [vmem:[%s323 + $0x48c] sm:$0xff]
                  %396 = vst [vmem:[%s324 + $0x118] sm:$0xff] %v395
                  %v397 = vld [vmem:[%s323 + $0x4c8] sm:$0xff]
                  %398 = vst [vmem:[%s324 + $0x120] sm:$0xff] %v397
                  %v399 = vld [vmem:[%s323 + $0x4d0] sm:$0xff]
                  %400 = vst [vmem:[%s324 + $0x128] sm:$0xff] %v399
                  %v401 = vld [vmem:[%s323 + $0x50c] sm:$0xff]
                  %402 = vst [vmem:[%s324 + $0x130] sm:$0xff] %v401
                  %v403 = vld [vmem:[%s323 + $0x514] sm:$0xff]
                  %404 = vst [vmem:[%s324 + $0x138] sm:$0xff] %v403
                  %v405 = vld [vmem:[%s323 + $0x550] sm:$0xff]
                  %406 = vst [vmem:[%s324 + $0x140] sm:$0xff] %v405
                  %v407 = vld [vmem:[%s323 + $0x558] sm:$0xff]
                  %408 = vst [vmem:[%s324 + $0x148] sm:$0xff] %v407
                  %v409 = vld [vmem:[%s323 + $0x594] sm:$0xff]
                  %410 = vst [vmem:[%s324 + $0x150] sm:$0xff] %v409
                  %v411 = vld [vmem:[%s323 + $0x59c] sm:$0xff]
                  %412 = vst [vmem:[%s324 + $0x158] sm:$0xff] %v411
                  %v413 = vld [vmem:[%s323 + $0x5d8] sm:$0xff]
                  %414 = vst [vmem:[%s324 + $0x160] sm:$0xff] %v413
                  %v415 = vld [vmem:[%s323 + $0x5e0] sm:$0xff]
                  %416 = vst [vmem:[%s324 + $0x168] sm:$0xff] %v415
                  %v417 = vld [vmem:[%s323 + $0x61c] sm:$0xff]
                  %418 = vst [vmem:[%s324 + $0x170] sm:$0xff] %v417
                  %v419 = vld [vmem:[%s323 + $0x624] sm:$0xff]
                  %420 = vst [vmem:[%s324 + $0x178] sm:$0xff] %v419
                  %v421 = vld [vmem:[%s323 + $0x660] sm:$0xff]
                  %422 = vst [vmem:[%s324 + $0x180] sm:$0xff] %v421
                  %v423 = vld [vmem:[%s323 + $0x668] sm:$0xff]
                  %424 = vst [vmem:[%s324 + $0x188] sm:$0xff] %v423
                  %v425 = vld [vmem:[%s323 + $0x6a4] sm:$0xff]
                  %426 = vst [vmem:[%s324 + $0x190] sm:$0xff] %v425
                  %v427 = vld [vmem:[%s323 + $0x6ac] sm:$0xff]
                  %428 = vst [vmem:[%s324 + $0x198] sm:$0xff] %v427
                  %v429 = vld [vmem:[%s323 + $0x6e8] sm:$0xff]
                  %430 = vst [vmem:[%s324 + $0x1a0] sm:$0xff] %v429
                  %v431 = vld [vmem:[%s323 + $0x6f0] sm:$0xff]
                  %432 = vst [vmem:[%s324 + $0x1a8] sm:$0xff] %v431
                  %v433 = vld [vmem:[%s323 + $0x72c] sm:$0xff]
                  %434 = vst [vmem:[%s324 + $0x1b0] sm:$0xff] %v433
                  %v435 = vld [vmem:[%s323 + $0x734] sm:$0xff]
                  %436 = vst [vmem:[%s324 + $0x1b8] sm:$0xff] %v435
                  %v437 = vld [vmem:[%s323 + $0x770] sm:$0xff]
                  %438 = vst [vmem:[%s324 + $0x1c0] sm:$0xff] %v437
                  %v439 = vld [vmem:[%s323 + $0x778] sm:$0xff]
                  %440 = vst [vmem:[%s324 + $0x1c8] sm:$0xff] %v439
                  %v441 = vld [vmem:[%s323 + $0x7b4] sm:$0xff]
                  %442 = vst [vmem:[%s324 + $0x1d0] sm:$0xff] %v441
                  %v443 = vld [vmem:[%s323 + $0x7bc] sm:$0xff]
                  %444 = vst [vmem:[%s324 + $0x1d8] sm:$0xff] %v443
                  %v445 = vld [vmem:[%s323 + $0x7f8] sm:$0xff]
                  %446 = vst [vmem:[%s324 + $0x1e0] sm:$0xff] %v445
                  %v447 = vld [vmem:[%s323 + $0x800] sm:$0xff]
                  %448 = vst [vmem:[%s324 + $0x1e8] sm:$0xff] %v447
                  %v449 = vld [vmem:[%s323 + $0x83c] sm:$0xff]
                  %450 = vst [vmem:[%s324 + $0x1f0] sm:$0xff] %v449
                  %v451 = vld [vmem:[%s323 + $0x844] sm:$0xff]
                  %452 = vst [vmem:[%s324 + $0x1f8] sm:$0xff] %v451
                  %v453 = vld [vmem:[%s323 + $0x880] sm:$0xff]
                  %454 = vst [vmem:[%s324 + $0x200] sm:$0xff] %v453
                  %v455 = vld [vmem:[%s323 + $0x888] sm:$0xff]
                  %456 = vst [vmem:[%s324 + $0x208] sm:$0xff] %v455
                  %v457 = vld [vmem:[%s323 + $0x8c4] sm:$0xff]
                  %458 = vst [vmem:[%s324 + $0x210] sm:$0xff] %v457
                  %v459 = vld [vmem:[%s323 + $0x8cc] sm:$0xff]
                  %460 = vst [vmem:[%s324 + $0x218] sm:$0xff] %v459
                  %v461 = vld [vmem:[%s323 + $0x908] sm:$0xff]
                  %462 = vst [vmem:[%s324 + $0x220] sm:$0xff] %v461
                  %v463 = vld [vmem:[%s323 + $0x910] sm:$0xff]
                  %464 = vst [vmem:[%s324 + $0x228] sm:$0xff] %v463
                  %v465 = vld [vmem:[%s323 + $0x94c] sm:$0xff]
                  %466 = vst [vmem:[%s324 + $0x230] sm:$0xff] %v465
                  %v467 = vld [vmem:[%s323 + $0x954] sm:$0xff]
                  %468 = vst [vmem:[%s324 + $0x238] sm:$0xff] %v467
                  %v469 = vld [vmem:[%s323 + $0x990] sm:$0xff]
                  %470 = vst [vmem:[%s324 + $0x240] sm:$0xff] %v469
                  %v471 = vld [vmem:[%s323 + $0x998] sm:$0xff]
                  %472 = vst [vmem:[%s324 + $0x248] sm:$0xff] %v471
                  %v473 = vld [vmem:[%s323 + $0x9d4] sm:$0xff]
                  %474 = vst [vmem:[%s324 + $0x250] sm:$0xff] %v473
                  %v475 = vld [vmem:[%s323 + $0x9dc] sm:$0xff]
                  %476 = vst [vmem:[%s324 + $0x258] sm:$0xff] %v475
                  %v477 = vld [vmem:[%s323 + $0xa18] sm:$0xff]
                  %478 = vst [vmem:[%s324 + $0x260] sm:$0xff] %v477
                  %v479 = vld [vmem:[%s323 + $0xa20] sm:$0xff]
                  %480 = vst [vmem:[%s324 + $0x268] sm:$0xff] %v479
                  %v481 = vld [vmem:[%s323 + $0xa5c] sm:$0xff]
                  %482 = vst [vmem:[%s324 + $0x270] sm:$0xff] %v481
                  %v483 = vld [vmem:[%s323 + $0xa64] sm:$0xff]
                  %484 = vst [vmem:[%s324 + $0x278] sm:$0xff] %v483
                  %v485 = vld [vmem:[%s323 + $0xaa0] sm:$0xff]
                  %486 = vst [vmem:[%s324 + $0x280] sm:$0xff] %v485
                  %v487 = vld [vmem:[%s323 + $0xaa8] sm:$0xff]
                  %488 = vst [vmem:[%s324 + $0x288] sm:$0xff] %v487
                  %v489 = vld [vmem:[%s323 + $0xae4] sm:$0xff]
                  %490 = vst [vmem:[%s324 + $0x290] sm:$0xff] %v489
                  %v491 = vld [vmem:[%s323 + $0xaec] sm:$0xff]
                  %492 = vst [vmem:[%s324 + $0x298] sm:$0xff] %v491
                  %v493 = vld [vmem:[%s323 + $0xb28] sm:$0xff]
                  %494 = vst [vmem:[%s324 + $0x2a0] sm:$0xff] %v493
                  %v495 = vld [vmem:[%s323 + $0xb30] sm:$0xff]
                  %496 = vst [vmem:[%s324 + $0x2a8] sm:$0xff] %v495
                  %v497 = vld [vmem:[%s323 + $0xb6c] sm:$0xff]
                  %498 = vst [vmem:[%s324 + $0x2b0] sm:$0xff] %v497
                  %v499 = vld [vmem:[%s323 + $0xb74] sm:$0xff]
                  %500 = vst [vmem:[%s324 + $0x2b8] sm:$0xff] %v499
                  %v501 = vld [vmem:[%s323 + $0xbb0] sm:$0xff]
                  %502 = vst [vmem:[%s324 + $0x2c0] sm:$0xff] %v501
                  %v503 = vld [vmem:[%s323 + $0xbb8] sm:$0xff]
                  %504 = vst [vmem:[%s324 + $0x2c8] sm:$0xff] %v503
                  %v505 = vld [vmem:[%s323 + $0xbf4] sm:$0xff]
                  %506 = vst [vmem:[%s324 + $0x2d0] sm:$0xff] %v505
                  %v507 = vld [vmem:[%s323 + $0xbfc] sm:$0xff]
                  %508 = vst [vmem:[%s324 + $0x2d8] sm:$0xff] %v507
                  %v509 = vld [vmem:[%s323 + $0xc38] sm:$0xff]
                  %510 = vst [vmem:[%s324 + $0x2e0] sm:$0xff] %v509
                  %v511 = vld [vmem:[%s323 + $0xc40] sm:$0xff]
                  %512 = vst [vmem:[%s324 + $0x2e8] sm:$0xff] %v511
                  %v513 = vld [vmem:[%s323 + $0xc7c] sm:$0xff]
                  %514 = vst [vmem:[%s324 + $0x2f0] sm:$0xff] %v513
                  %v515 = vld [vmem:[%s323 + $0xc84] sm:$0xff]
                  %516 = vst [vmem:[%s324 + $0x2f8] sm:$0xff] %v515
                  %v517 = vld [vmem:[%s323 + $0xcc0] sm:$0xff]
                  %518 = vst [vmem:[%s324 + $0x300] sm:$0xff] %v517
                  %v519 = vld [vmem:[%s323 + $0xcc8] sm:$0xff]
                  %520 = vst [vmem:[%s324 + $0x308] sm:$0xff] %v519
                  %v521 = vld [vmem:[%s323 + $0xd04] sm:$0xff]
                  %522 = vst [vmem:[%s324 + $0x310] sm:$0xff] %v521
                  %v523 = vld [vmem:[%s323 + $0xd0c] sm:$0xff]
                  %524 = vst [vmem:[%s324 + $0x318] sm:$0xff] %v523
                  %v525 = vld [vmem:[%s323 + $0xd48] sm:$0xff]
                  %526 = vst [vmem:[%s324 + $0x320] sm:$0xff] %v525
                  %v527 = vld [vmem:[%s323 + $0xd50] sm:$0xff]
                  %528 = vst [vmem:[%s324 + $0x328] sm:$0xff] %v527
                  %v529 = vld [vmem:[%s323 + $0xd8c] sm:$0xff]
                  %530 = vst [vmem:[%s324 + $0x330] sm:$0xff] %v529
                  %v531 = vld [vmem:[%s323 + $0xd94] sm:$0xff]
                  %532 = vst [vmem:[%s324 + $0x338] sm:$0xff] %v531
                  %v533 = vld [vmem:[%s323 + $0xdd0] sm:$0xff]
                  %534 = vst [vmem:[%s324 + $0x340] sm:$0xff] %v533
                  %v535 = vld [vmem:[%s323 + $0xdd8] sm:$0xff]
                  %536 = vst [vmem:[%s324 + $0x348] sm:$0xff] %v535
                  %v537 = vld [vmem:[%s323 + $0xe14] sm:$0xff]
                  %538 = vst [vmem:[%s324 + $0x350] sm:$0xff] %v537
                  %v539 = vld [vmem:[%s323 + $0xe1c] sm:$0xff]
                  %540 = vst [vmem:[%s324 + $0x358] sm:$0xff] %v539
                  %v541 = vld [vmem:[%s323 + $0xe58] sm:$0xff]
                  %542 = vst [vmem:[%s324 + $0x360] sm:$0xff] %v541
                  %v543 = vld [vmem:[%s323 + $0xe60] sm:$0xff]
                  %544 = vst [vmem:[%s324 + $0x368] sm:$0xff] %v543
                  %v545 = vld [vmem:[%s323 + $0xe9c] sm:$0xff]
                  %546 = vst [vmem:[%s324 + $0x370] sm:$0xff] %v545
                  %v547 = vld [vmem:[%s323 + $0xea4] sm:$0xff]
                  %548 = vst [vmem:[%s324 + $0x378] sm:$0xff] %v547
                  %s549 = sadd.s32 1, %s322
                  %p550 = scmp.ge.s32.totalorder %s549, %s313
                  %s551 = scalar_select %p550, 0, %s549
                  %s552 = smul.u32 %s551, 16
                  %s553 = smul.u32 %s551, 16
                  %s554 = scalar_lea.vmem %s174, %s552
                  %s555 = scalar_lea.vmem %s166, %s553 [#allocation2]
                $region52: #{block8_forward.3} parent=46 // loop_footer
                  %s319 = sadd.s32 %s317, 1
                $region53: #{block8_forward.3} parent=46 // loop_footer_branch
                  %316 = sbr.rel target = $region49
                $region54: #{block8_forward.3} parent=46 // loop_exit
                  _
                %s556 = sshrl.u32 %s312, 1
                %s557 = sand.u32 %s312, 1
                %s558 = smul.u32 %s556, 2
                %s559 = smul.u32 128, %s558
                %s560 = sshra.s32 %s559, 4
                %s561 = scalar_lea.vmem %s174, %s560
                %s562 = smul.u32 128, %s558
                %s563 = sshra.s32 %s562, 4
                %s564 = scalar_lea.vmem %s166, %s563 [#allocation2]
                // While loop
                $region55: #{block8_forward.3} parent=46 // loop_pre_header
                  _
                $region56: #{block8_forward.3} parent=46 // loop_header
                  %s568 = sphi 0, %s570
                  %p569 = scmp.ge.s32.totalorder %s568, %s557
                  %s573 = sphi 0, %s690
                  %s574 = sphi %s561, %s693
                  %s575 = sphi %s564, %s694
                $region57: #{block8_forward.3} parent=46 // loop_header_branch
                  %572 = sbr.rel (%p569) target = $region61
                $region58: #{block8_forward.3} parent=46 // loop_body
                  %v576 = vld [vmem:[%s574] sm:$0xff]
                  %577 = vst [vmem:[%s575] sm:$0xff] %v576
                  %v578 = vld [vmem:[%s574 + $0x44] sm:$0xff]
                  %579 = vst [vmem:[%s575 + $0x10] sm:$0xff] %v578
                  %v580 = vld [vmem:[%s574 + $0x88] sm:$0xff]
                  %581 = vst [vmem:[%s575 + $0x20] sm:$0xff] %v580
                  %v582 = vld [vmem:[%s574 + $0xcc] sm:$0xff]
                  %583 = vst [vmem:[%s575 + $0x30] sm:$0xff] %v582
                  %v584 = vld [vmem:[%s574 + $0x110] sm:$0xff]
                  %585 = vst [vmem:[%s575 + $0x40] sm:$0xff] %v584
                  %v586 = vld [vmem:[%s574 + $0x154] sm:$0xff]
                  %587 = vst [vmem:[%s575 + $0x50] sm:$0xff] %v586
                  %v588 = vld [vmem:[%s574 + $0x198] sm:$0xff]
                  %589 = vst [vmem:[%s575 + $0x60] sm:$0xff] %v588
                  %v590 = vld [vmem:[%s574 + $0x1dc] sm:$0xff]
                  %591 = vst [vmem:[%s575 + $0x70] sm:$0xff] %v590
                  %v592 = vld [vmem:[%s574 + $0x220] sm:$0xff]
                  %593 = vst [vmem:[%s575 + $0x80] sm:$0xff] %v592
                  %v594 = vld [vmem:[%s574 + $0x264] sm:$0xff]
                  %595 = vst [vmem:[%s575 + $0x90] sm:$0xff] %v594
                  %v596 = vld [vmem:[%s574 + $0x2a8] sm:$0xff]
                  %597 = vst [vmem:[%s575 + $0xa0] sm:$0xff] %v596
                  %v598 = vld [vmem:[%s574 + $0x2ec] sm:$0xff]
                  %599 = vst [vmem:[%s575 + $0xb0] sm:$0xff] %v598
                  %v600 = vld [vmem:[%s574 + $0x330] sm:$0xff]
                  %601 = vst [vmem:[%s575 + $0xc0] sm:$0xff] %v600
                  %v602 = vld [vmem:[%s574 + $0x374] sm:$0xff]
                  %603 = vst [vmem:[%s575 + $0xd0] sm:$0xff] %v602
                  %v604 = vld [vmem:[%s574 + $0x3b8] sm:$0xff]
                  %605 = vst [vmem:[%s575 + $0xe0] sm:$0xff] %v604
                  %v606 = vld [vmem:[%s574 + $0x3fc] sm:$0xff]
                  %607 = vst [vmem:[%s575 + $0xf0] sm:$0xff] %v606
                  %v608 = vld [vmem:[%s574 + $0x440] sm:$0xff]
                  %609 = vst [vmem:[%s575 + $0x100] sm:$0xff] %v608
                  %v610 = vld [vmem:[%s574 + $0x484] sm:$0xff]
                  %611 = vst [vmem:[%s575 + $0x110] sm:$0xff] %v610
                  %v612 = vld [vmem:[%s574 + $0x4c8] sm:$0xff]
                  %613 = vst [vmem:[%s575 + $0x120] sm:$0xff] %v612
                  %v614 = vld [vmem:[%s574 + $0x50c] sm:$0xff]
                  %615 = vst [vmem:[%s575 + $0x130] sm:$0xff] %v614
                  %v616 = vld [vmem:[%s574 + $0x550] sm:$0xff]
                  %617 = vst [vmem:[%s575 + $0x140] sm:$0xff] %v616
                  %v618 = vld [vmem:[%s574 + $0x594] sm:$0xff]
                  %619 = vst [vmem:[%s575 + $0x150] sm:$0xff] %v618
                  %v620 = vld [vmem:[%s574 + $0x5d8] sm:$0xff]
                  %621 = vst [vmem:[%s575 + $0x160] sm:$0xff] %v620
                  %v622 = vld [vmem:[%s574 + $0x61c] sm:$0xff]
                  %623 = vst [vmem:[%s575 + $0x170] sm:$0xff] %v622
                  %v624 = vld [vmem:[%s574 + $0x660] sm:$0xff]
                  %625 = vst [vmem:[%s575 + $0x180] sm:$0xff] %v624
                  %v626 = vld [vmem:[%s574 + $0x6a4] sm:$0xff]
                  %627 = vst [vmem:[%s575 + $0x190] sm:$0xff] %v626
                  %v628 = vld [vmem:[%s574 + $0x6e8] sm:$0xff]
                  %629 = vst [vmem:[%s575 + $0x1a0] sm:$0xff] %v628
                  %v630 = vld [vmem:[%s574 + $0x72c] sm:$0xff]
                  %631 = vst [vmem:[%s575 + $0x1b0] sm:$0xff] %v630
                  %v632 = vld [vmem:[%s574 + $0x770] sm:$0xff]
                  %633 = vst [vmem:[%s575 + $0x1c0] sm:$0xff] %v632
                  %v634 = vld [vmem:[%s574 + $0x7b4] sm:$0xff]
                  %635 = vst [vmem:[%s575 + $0x1d0] sm:$0xff] %v634
                  %v636 = vld [vmem:[%s574 + $0x7f8] sm:$0xff]
                  %637 = vst [vmem:[%s575 + $0x1e0] sm:$0xff] %v636
                  %v638 = vld [vmem:[%s574 + $0x83c] sm:$0xff]
                  %639 = vst [vmem:[%s575 + $0x1f0] sm:$0xff] %v638
                  %v640 = vld [vmem:[%s574 + $0x880] sm:$0xff]
                  %641 = vst [vmem:[%s575 + $0x200] sm:$0xff] %v640
                  %v642 = vld [vmem:[%s574 + $0x8c4] sm:$0xff]
                  %643 = vst [vmem:[%s575 + $0x210] sm:$0xff] %v642
                  %v644 = vld [vmem:[%s574 + $0x908] sm:$0xff]
                  %645 = vst [vmem:[%s575 + $0x220] sm:$0xff] %v644
                  %v646 = vld [vmem:[%s574 + $0x94c] sm:$0xff]
                  %647 = vst [vmem:[%s575 + $0x230] sm:$0xff] %v646
                  %v648 = vld [vmem:[%s574 + $0x990] sm:$0xff]
                  %649 = vst [vmem:[%s575 + $0x240] sm:$0xff] %v648
                  %v650 = vld [vmem:[%s574 + $0x9d4] sm:$0xff]
                  %651 = vst [vmem:[%s575 + $0x250] sm:$0xff] %v650
                  %v652 = vld [vmem:[%s574 + $0xa18] sm:$0xff]
                  %653 = vst [vmem:[%s575 + $0x260] sm:$0xff] %v652
                  %v654 = vld [vmem:[%s574 + $0xa5c] sm:$0xff]
                  %655 = vst [vmem:[%s575 + $0x270] sm:$0xff] %v654
                  %v656 = vld [vmem:[%s574 + $0xaa0] sm:$0xff]
                  %657 = vst [vmem:[%s575 + $0x280] sm:$0xff] %v656
                  %v658 = vld [vmem:[%s574 + $0xae4] sm:$0xff]
                  %659 = vst [vmem:[%s575 + $0x290] sm:$0xff] %v658
                  %v660 = vld [vmem:[%s574 + $0xb28] sm:$0xff]
                  %661 = vst [vmem:[%s575 + $0x2a0] sm:$0xff] %v660
                  %v662 = vld [vmem:[%s574 + $0xb6c] sm:$0xff]
                  %663 = vst [vmem:[%s575 + $0x2b0] sm:$0xff] %v662
                  %v664 = vld [vmem:[%s574 + $0xbb0] sm:$0xff]
                  %665 = vst [vmem:[%s575 + $0x2c0] sm:$0xff] %v664
                  %v666 = vld [vmem:[%s574 + $0xbf4] sm:$0xff]
                  %667 = vst [vmem:[%s575 + $0x2d0] sm:$0xff] %v666
                  %v668 = vld [vmem:[%s574 + $0xc38] sm:$0xff]
                  %669 = vst [vmem:[%s575 + $0x2e0] sm:$0xff] %v668
                  %v670 = vld [vmem:[%s574 + $0xc7c] sm:$0xff]
                  %671 = vst [vmem:[%s575 + $0x2f0] sm:$0xff] %v670
                  %v672 = vld [vmem:[%s574 + $0xcc0] sm:$0xff]
                  %673 = vst [vmem:[%s575 + $0x300] sm:$0xff] %v672
                  %v674 = vld [vmem:[%s574 + $0xd04] sm:$0xff]
                  %675 = vst [vmem:[%s575 + $0x310] sm:$0xff] %v674
                  %v676 = vld [vmem:[%s574 + $0xd48] sm:$0xff]
                  %677 = vst [vmem:[%s575 + $0x320] sm:$0xff] %v676
                  %v678 = vld [vmem:[%s574 + $0xd8c] sm:$0xff]
                  %679 = vst [vmem:[%s575 + $0x330] sm:$0xff] %v678
                  %v680 = vld [vmem:[%s574 + $0xdd0] sm:$0xff]
                  %681 = vst [vmem:[%s575 + $0x340] sm:$0xff] %v680
                  %v682 = vld [vmem:[%s574 + $0xe14] sm:$0xff]
                  %683 = vst [vmem:[%s575 + $0x350] sm:$0xff] %v682
                  %v684 = vld [vmem:[%s574 + $0xe58] sm:$0xff]
                  %685 = vst [vmem:[%s575 + $0x360] sm:$0xff] %v684
                  %v686 = vld [vmem:[%s574 + $0xe9c] sm:$0xff]
                  %687 = vst [vmem:[%s575 + $0x370] sm:$0xff] %v686
                  %s688 = sadd.s32 1, %s573
                  %p689 = scmp.ge.s32.totalorder %s688, %s557
                  %s690 = scalar_select %p689, 0, %s688
                  %s691 = smul.u32 %s690, 8
                  %s692 = smul.u32 %s690, 8
                  %s693 = scalar_lea.vmem %s561, %s691
                  %s694 = scalar_lea.vmem %s564, %s692 [#allocation2]
                $region59: #{block8_forward.3} parent=46 // loop_footer
                  %s570 = sadd.s32 %s568, 1
                $region60: #{block8_forward.3} parent=46 // loop_footer_branch
                  %567 = sbr.rel target = $region56
                $region61: #{block8_forward.3} parent=46 // loop_exit
                  _
              $region47: #{block8_forward.3} parent=31 // pred_fallthru
                _
              %p695 = pneg %p308
              // Predicated region
              $region62: #{block8_forward.3} parent=31 // pred_check
                _
              $region63: #{block8_forward.3} parent=31 // pred_check_branch
                %697 = sbr.rel (%p308) target = $region65
              $region64: #{block8_forward.3} parent=31 // pred_region
                %s698 = sand.u32 %s175, 7
                %s699 = ssub.s32 %s175, %s698
                %s700 = scalar_lea.vmem %s174, %s699
                %s701 = ssub.s32 %s175, %s698
                %s702 = scalar_lea.vmem %s166, %s701 [#allocation2]
                %s703 = sshrl.u32 %s175, 3
                %s704 = sshrl.u32 %s703, 1
                // While loop
                $region66: #{block8_forward.3} parent=64 // loop_pre_header
                  _
                $region67: #{block8_forward.3} parent=64 // loop_header
                  %s708 = sphi 0, %s710
                  %p709 = scmp.ge.s32.totalorder %s708, %s704
                  %s713 = sphi 0, %s942
                  %s714 = sphi %s174, %s945
                  %s715 = sphi %s166, %s946
                $region68: #{block8_forward.3} parent=64 // loop_header_branch
                  %712 = sbr.rel (%p709) target = $region72
                $region69: #{block8_forward.3} parent=64 // loop_body
                  %v716 = vld [vmem:[%s714] sm:$0xff]
                  %717 = vst [vmem:[%s715] sm:$0xff] %v716
                  %v718 = vld [vmem:[%s714 + $0x8] sm:$0xff]
                  %719 = vst [vmem:[%s715 + $0x8] sm:$0xff] %v718
                  %v720 = vld [vmem:[%s714 + $0x44] sm:$0xff]
                  %721 = vst [vmem:[%s715 + $0x10] sm:$0xff] %v720
                  %v722 = vld [vmem:[%s714 + $0x4c] sm:$0xff]
                  %723 = vst [vmem:[%s715 + $0x18] sm:$0xff] %v722
                  %v724 = vld [vmem:[%s714 + $0x88] sm:$0xff]
                  %725 = vst [vmem:[%s715 + $0x20] sm:$0xff] %v724
                  %v726 = vld [vmem:[%s714 + $0x90] sm:$0xff]
                  %727 = vst [vmem:[%s715 + $0x28] sm:$0xff] %v726
                  %v728 = vld [vmem:[%s714 + $0xcc] sm:$0xff]
                  %729 = vst [vmem:[%s715 + $0x30] sm:$0xff] %v728
                  %v730 = vld [vmem:[%s714 + $0xd4] sm:$0xff]
                  %731 = vst [vmem:[%s715 + $0x38] sm:$0xff] %v730
                  %v732 = vld [vmem:[%s714 + $0x110] sm:$0xff]
                  %733 = vst [vmem:[%s715 + $0x40] sm:$0xff] %v732
                  %v734 = vld [vmem:[%s714 + $0x118] sm:$0xff]
                  %735 = vst [vmem:[%s715 + $0x48] sm:$0xff] %v734
                  %v736 = vld [vmem:[%s714 + $0x154] sm:$0xff]
                  %737 = vst [vmem:[%s715 + $0x50] sm:$0xff] %v736
                  %v738 = vld [vmem:[%s714 + $0x15c] sm:$0xff]
                  %739 = vst [vmem:[%s715 + $0x58] sm:$0xff] %v738
                  %v740 = vld [vmem:[%s714 + $0x198] sm:$0xff]
                  %741 = vst [vmem:[%s715 + $0x60] sm:$0xff] %v740
                  %v742 = vld [vmem:[%s714 + $0x1a0] sm:$0xff]
                  %743 = vst [vmem:[%s715 + $0x68] sm:$0xff] %v742
                  %v744 = vld [vmem:[%s714 + $0x1dc] sm:$0xff]
                  %745 = vst [vmem:[%s715 + $0x70] sm:$0xff] %v744
                  %v746 = vld [vmem:[%s714 + $0x1e4] sm:$0xff]
                  %747 = vst [vmem:[%s715 + $0x78] sm:$0xff] %v746
                  %v748 = vld [vmem:[%s714 + $0x220] sm:$0xff]
                  %749 = vst [vmem:[%s715 + $0x80] sm:$0xff] %v748
                  %v750 = vld [vmem:[%s714 + $0x228] sm:$0xff]
                  %751 = vst [vmem:[%s715 + $0x88] sm:$0xff] %v750
                  %v752 = vld [vmem:[%s714 + $0x264] sm:$0xff]
                  %753 = vst [vmem:[%s715 + $0x90] sm:$0xff] %v752
                  %v754 = vld [vmem:[%s714 + $0x26c] sm:$0xff]
                  %755 = vst [vmem:[%s715 + $0x98] sm:$0xff] %v754
                  %v756 = vld [vmem:[%s714 + $0x2a8] sm:$0xff]
                  %757 = vst [vmem:[%s715 + $0xa0] sm:$0xff] %v756
                  %v758 = vld [vmem:[%s714 + $0x2b0] sm:$0xff]
                  %759 = vst [vmem:[%s715 + $0xa8] sm:$0xff] %v758
                  %v760 = vld [vmem:[%s714 + $0x2ec] sm:$0xff]
                  %761 = vst [vmem:[%s715 + $0xb0] sm:$0xff] %v760
                  %v762 = vld [vmem:[%s714 + $0x2f4] sm:$0xff]
                  %763 = vst [vmem:[%s715 + $0xb8] sm:$0xff] %v762
                  %v764 = vld [vmem:[%s714 + $0x330] sm:$0xff]
                  %765 = vst [vmem:[%s715 + $0xc0] sm:$0xff] %v764
                  %v766 = vld [vmem:[%s714 + $0x338] sm:$0xff]
                  %767 = vst [vmem:[%s715 + $0xc8] sm:$0xff] %v766
                  %v768 = vld [vmem:[%s714 + $0x374] sm:$0xff]
                  %769 = vst [vmem:[%s715 + $0xd0] sm:$0xff] %v768
                  %v770 = vld [vmem:[%s714 + $0x37c] sm:$0xff]
                  %771 = vst [vmem:[%s715 + $0xd8] sm:$0xff] %v770
                  %v772 = vld [vmem:[%s714 + $0x3b8] sm:$0xff]
                  %773 = vst [vmem:[%s715 + $0xe0] sm:$0xff] %v772
                  %v774 = vld [vmem:[%s714 + $0x3c0] sm:$0xff]
                  %775 = vst [vmem:[%s715 + $0xe8] sm:$0xff] %v774
                  %v776 = vld [vmem:[%s714 + $0x3fc] sm:$0xff]
                  %777 = vst [vmem:[%s715 + $0xf0] sm:$0xff] %v776
                  %v778 = vld [vmem:[%s714 + $0x404] sm:$0xff]
                  %779 = vst [vmem:[%s715 + $0xf8] sm:$0xff] %v778
                  %v780 = vld [vmem:[%s714 + $0x440] sm:$0xff]
                  %781 = vst [vmem:[%s715 + $0x100] sm:$0xff] %v780
                  %v782 = vld [vmem:[%s714 + $0x448] sm:$0xff]
                  %783 = vst [vmem:[%s715 + $0x108] sm:$0xff] %v782
                  %v784 = vld [vmem:[%s714 + $0x484] sm:$0xff]
                  %785 = vst [vmem:[%s715 + $0x110] sm:$0xff] %v784
                  %v786 = vld [vmem:[%s714 + $0x48c] sm:$0xff]
                  %787 = vst [vmem:[%s715 + $0x118] sm:$0xff] %v786
                  %v788 = vld [vmem:[%s714 + $0x4c8] sm:$0xff]
                  %789 = vst [vmem:[%s715 + $0x120] sm:$0xff] %v788
                  %v790 = vld [vmem:[%s714 + $0x4d0] sm:$0xff]
                  %791 = vst [vmem:[%s715 + $0x128] sm:$0xff] %v790
                  %v792 = vld [vmem:[%s714 + $0x50c] sm:$0xff]
                  %793 = vst [vmem:[%s715 + $0x130] sm:$0xff] %v792
                  %v794 = vld [vmem:[%s714 + $0x514] sm:$0xff]
                  %795 = vst [vmem:[%s715 + $0x138] sm:$0xff] %v794
                  %v796 = vld [vmem:[%s714 + $0x550] sm:$0xff]
                  %797 = vst [vmem:[%s715 + $0x140] sm:$0xff] %v796
                  %v798 = vld [vmem:[%s714 + $0x558] sm:$0xff]
                  %799 = vst [vmem:[%s715 + $0x148] sm:$0xff] %v798
                  %v800 = vld [vmem:[%s714 + $0x594] sm:$0xff]
                  %801 = vst [vmem:[%s715 + $0x150] sm:$0xff] %v800
                  %v802 = vld [vmem:[%s714 + $0x59c] sm:$0xff]
                  %803 = vst [vmem:[%s715 + $0x158] sm:$0xff] %v802
                  %v804 = vld [vmem:[%s714 + $0x5d8] sm:$0xff]
                  %805 = vst [vmem:[%s715 + $0x160] sm:$0xff] %v804
                  %v806 = vld [vmem:[%s714 + $0x5e0] sm:$0xff]
                  %807 = vst [vmem:[%s715 + $0x168] sm:$0xff] %v806
                  %v808 = vld [vmem:[%s714 + $0x61c] sm:$0xff]
                  %809 = vst [vmem:[%s715 + $0x170] sm:$0xff] %v808
                  %v810 = vld [vmem:[%s714 + $0x624] sm:$0xff]
                  %811 = vst [vmem:[%s715 + $0x178] sm:$0xff] %v810
                  %v812 = vld [vmem:[%s714 + $0x660] sm:$0xff]
                  %813 = vst [vmem:[%s715 + $0x180] sm:$0xff] %v812
                  %v814 = vld [vmem:[%s714 + $0x668] sm:$0xff]
                  %815 = vst [vmem:[%s715 + $0x188] sm:$0xff] %v814
                  %v816 = vld [vmem:[%s714 + $0x6a4] sm:$0xff]
                  %817 = vst [vmem:[%s715 + $0x190] sm:$0xff] %v816
                  %v818 = vld [vmem:[%s714 + $0x6ac] sm:$0xff]
                  %819 = vst [vmem:[%s715 + $0x198] sm:$0xff] %v818
                  %v820 = vld [vmem:[%s714 + $0x6e8] sm:$0xff]
                  %821 = vst [vmem:[%s715 + $0x1a0] sm:$0xff] %v820
                  %v822 = vld [vmem:[%s714 + $0x6f0] sm:$0xff]
                  %823 = vst [vmem:[%s715 + $0x1a8] sm:$0xff] %v822
                  %v824 = vld [vmem:[%s714 + $0x72c] sm:$0xff]
                  %825 = vst [vmem:[%s715 + $0x1b0] sm:$0xff] %v824
                  %v826 = vld [vmem:[%s714 + $0x734] sm:$0xff]
                  %827 = vst [vmem:[%s715 + $0x1b8] sm:$0xff] %v826
                  %v828 = vld [vmem:[%s714 + $0x770] sm:$0xff]
                  %829 = vst [vmem:[%s715 + $0x1c0] sm:$0xff] %v828
                  %v830 = vld [vmem:[%s714 + $0x778] sm:$0xff]
                  %831 = vst [vmem:[%s715 + $0x1c8] sm:$0xff] %v830
                  %v832 = vld [vmem:[%s714 + $0x7b4] sm:$0xff]
                  %833 = vst [vmem:[%s715 + $0x1d0] sm:$0xff] %v832
                  %v834 = vld [vmem:[%s714 + $0x7bc] sm:$0xff]
                  %835 = vst [vmem:[%s715 + $0x1d8] sm:$0xff] %v834
                  %v836 = vld [vmem:[%s714 + $0x7f8] sm:$0xff]
                  %837 = vst [vmem:[%s715 + $0x1e0] sm:$0xff] %v836
                  %v838 = vld [vmem:[%s714 + $0x800] sm:$0xff]
                  %839 = vst [vmem:[%s715 + $0x1e8] sm:$0xff] %v838
                  %v840 = vld [vmem:[%s714 + $0x83c] sm:$0xff]
                  %841 = vst [vmem:[%s715 + $0x1f0] sm:$0xff] %v840
                  %v842 = vld [vmem:[%s714 + $0x844] sm:$0xff]
                  %843 = vst [vmem:[%s715 + $0x1f8] sm:$0xff] %v842
                  %v844 = vld [vmem:[%s714 + $0x880] sm:$0xff]
                  %845 = vst [vmem:[%s715 + $0x200] sm:$0xff] %v844
                  %v846 = vld [vmem:[%s714 + $0x888] sm:$0xff]
                  %847 = vst [vmem:[%s715 + $0x208] sm:$0xff] %v846
                  %v848 = vld [vmem:[%s714 + $0x8c4] sm:$0xff]
                  %849 = vst [vmem:[%s715 + $0x210] sm:$0xff] %v848
                  %v850 = vld [vmem:[%s714 + $0x8cc] sm:$0xff]
                  %851 = vst [vmem:[%s715 + $0x218] sm:$0xff] %v850
                  %v852 = vld [vmem:[%s714 + $0x908] sm:$0xff]
                  %853 = vst [vmem:[%s715 + $0x220] sm:$0xff] %v852
                  %v854 = vld [vmem:[%s714 + $0x910] sm:$0xff]
                  %855 = vst [vmem:[%s715 + $0x228] sm:$0xff] %v854
                  %v856 = vld [vmem:[%s714 + $0x94c] sm:$0xff]
                  %857 = vst [vmem:[%s715 + $0x230] sm:$0xff] %v856
                  %v858 = vld [vmem:[%s714 + $0x954] sm:$0xff]
                  %859 = vst [vmem:[%s715 + $0x238] sm:$0xff] %v858
                  %v860 = vld [vmem:[%s714 + $0x990] sm:$0xff]
                  %861 = vst [vmem:[%s715 + $0x240] sm:$0xff] %v860
                  %v862 = vld [vmem:[%s714 + $0x998] sm:$0xff]
                  %863 = vst [vmem:[%s715 + $0x248] sm:$0xff] %v862
                  %v864 = vld [vmem:[%s714 + $0x9d4] sm:$0xff]
                  %865 = vst [vmem:[%s715 + $0x250] sm:$0xff] %v864
                  %v866 = vld [vmem:[%s714 + $0x9dc] sm:$0xff]
                  %867 = vst [vmem:[%s715 + $0x258] sm:$0xff] %v866
                  %v868 = vld [vmem:[%s714 + $0xa18] sm:$0xff]
                  %869 = vst [vmem:[%s715 + $0x260] sm:$0xff] %v868
                  %v870 = vld [vmem:[%s714 + $0xa20] sm:$0xff]
                  %871 = vst [vmem:[%s715 + $0x268] sm:$0xff] %v870
                  %v872 = vld [vmem:[%s714 + $0xa5c] sm:$0xff]
                  %873 = vst [vmem:[%s715 + $0x270] sm:$0xff] %v872
                  %v874 = vld [vmem:[%s714 + $0xa64] sm:$0xff]
                  %875 = vst [vmem:[%s715 + $0x278] sm:$0xff] %v874
                  %v876 = vld [vmem:[%s714 + $0xaa0] sm:$0xff]
                  %877 = vst [vmem:[%s715 + $0x280] sm:$0xff] %v876
                  %v878 = vld [vmem:[%s714 + $0xaa8] sm:$0xff]
                  %879 = vst [vmem:[%s715 + $0x288] sm:$0xff] %v878
                  %v880 = vld [vmem:[%s714 + $0xae4] sm:$0xff]
                  %881 = vst [vmem:[%s715 + $0x290] sm:$0xff] %v880
                  %v882 = vld [vmem:[%s714 + $0xaec] sm:$0xff]
                  %883 = vst [vmem:[%s715 + $0x298] sm:$0xff] %v882
                  %v884 = vld [vmem:[%s714 + $0xb28] sm:$0xff]
                  %885 = vst [vmem:[%s715 + $0x2a0] sm:$0xff] %v884
                  %v886 = vld [vmem:[%s714 + $0xb30] sm:$0xff]
                  %887 = vst [vmem:[%s715 + $0x2a8] sm:$0xff] %v886
                  %v888 = vld [vmem:[%s714 + $0xb6c] sm:$0xff]
                  %889 = vst [vmem:[%s715 + $0x2b0] sm:$0xff] %v888
                  %v890 = vld [vmem:[%s714 + $0xb74] sm:$0xff]
                  %891 = vst [vmem:[%s715 + $0x2b8] sm:$0xff] %v890
                  %v892 = vld [vmem:[%s714 + $0xbb0] sm:$0xff]
                  %893 = vst [vmem:[%s715 + $0x2c0] sm:$0xff] %v892
                  %v894 = vld [vmem:[%s714 + $0xbb8] sm:$0xff]
                  %895 = vst [vmem:[%s715 + $0x2c8] sm:$0xff] %v894
                  %v896 = vld [vmem:[%s714 + $0xbf4] sm:$0xff]
                  %897 = vst [vmem:[%s715 + $0x2d0] sm:$0xff] %v896
                  %v898 = vld [vmem:[%s714 + $0xbfc] sm:$0xff]
                  %899 = vst [vmem:[%s715 + $0x2d8] sm:$0xff] %v898
                  %v900 = vld [vmem:[%s714 + $0xc38] sm:$0xff]
                  %901 = vst [vmem:[%s715 + $0x2e0] sm:$0xff] %v900
                  %v902 = vld [vmem:[%s714 + $0xc40] sm:$0xff]
                  %903 = vst [vmem:[%s715 + $0x2e8] sm:$0xff] %v902
                  %v904 = vld [vmem:[%s714 + $0xc7c] sm:$0xff]
                  %905 = vst [vmem:[%s715 + $0x2f0] sm:$0xff] %v904
                  %v906 = vld [vmem:[%s714 + $0xc84] sm:$0xff]
                  %907 = vst [vmem:[%s715 + $0x2f8] sm:$0xff] %v906
                  %v908 = vld [vmem:[%s714 + $0xcc0] sm:$0xff]
                  %909 = vst [vmem:[%s715 + $0x300] sm:$0xff] %v908
                  %v910 = vld [vmem:[%s714 + $0xcc8] sm:$0xff]
                  %911 = vst [vmem:[%s715 + $0x308] sm:$0xff] %v910
                  %v912 = vld [vmem:[%s714 + $0xd04] sm:$0xff]
                  %913 = vst [vmem:[%s715 + $0x310] sm:$0xff] %v912
                  %v914 = vld [vmem:[%s714 + $0xd0c] sm:$0xff]
                  %915 = vst [vmem:[%s715 + $0x318] sm:$0xff] %v914
                  %v916 = vld [vmem:[%s714 + $0xd48] sm:$0xff]
                  %917 = vst [vmem:[%s715 + $0x320] sm:$0xff] %v916
                  %v918 = vld [vmem:[%s714 + $0xd50] sm:$0xff]
                  %919 = vst [vmem:[%s715 + $0x328] sm:$0xff] %v918
                  %v920 = vld [vmem:[%s714 + $0xd8c] sm:$0xff]
                  %921 = vst [vmem:[%s715 + $0x330] sm:$0xff] %v920
                  %v922 = vld [vmem:[%s714 + $0xd94] sm:$0xff]
                  %923 = vst [vmem:[%s715 + $0x338] sm:$0xff] %v922
                  %v924 = vld [vmem:[%s714 + $0xdd0] sm:$0xff]
                  %925 = vst [vmem:[%s715 + $0x340] sm:$0xff] %v924
                  %v926 = vld [vmem:[%s714 + $0xdd8] sm:$0xff]
                  %927 = vst [vmem:[%s715 + $0x348] sm:$0xff] %v926
                  %v928 = vld [vmem:[%s714 + $0xe14] sm:$0xff]
                  %929 = vst [vmem:[%s715 + $0x350] sm:$0xff] %v928
                  %v930 = vld [vmem:[%s714 + $0xe1c] sm:$0xff]
                  %931 = vst [vmem:[%s715 + $0x358] sm:$0xff] %v930
                  %v932 = vld [vmem:[%s714 + $0xe58] sm:$0xff]
                  %933 = vst [vmem:[%s715 + $0x360] sm:$0xff] %v932
                  %v934 = vld [vmem:[%s714 + $0xe60] sm:$0xff]
                  %935 = vst [vmem:[%s715 + $0x368] sm:$0xff] %v934
                  %v936 = vld [vmem:[%s714 + $0xe9c] sm:$0xff]
                  %937 = vst [vmem:[%s715 + $0x370] sm:$0xff] %v936
                  %v938 = vld [vmem:[%s714 + $0xea4] sm:$0xff]
                  %939 = vst [vmem:[%s715 + $0x378] sm:$0xff] %v938
                  %s940 = sadd.s32 1, %s713
                  %p941 = scmp.ge.s32.totalorder %s940, %s704
                  %s942 = scalar_select %p941, 0, %s940
                  %s943 = smul.u32 %s942, 16
                  %s944 = smul.u32 %s942, 16
                  %s945 = scalar_lea.vmem %s174, %s943
                  %s946 = scalar_lea.vmem %s166, %s944 [#allocation2]
                $region70: #{block8_forward.3} parent=64 // loop_footer
                  %s710 = sadd.s32 %s708, 1
                $region71: #{block8_forward.3} parent=64 // loop_footer_branch
                  %707 = sbr.rel target = $region67
                $region72: #{block8_forward.3} parent=64 // loop_exit
                  _
                %s947 = sshrl.u32 %s703, 1
                %s948 = sand.u32 %s703, 1
                %s949 = smul.u32 %s947, 2
                %s950 = smul.u32 128, %s949
                %s951 = sshra.s32 %s950, 4
                %s952 = scalar_lea.vmem %s174, %s951
                %s953 = smul.u32 128, %s949
                %s954 = sshra.s32 %s953, 4
                %s955 = scalar_lea.vmem %s166, %s954 [#allocation2]
                // While loop
                $region73: #{block8_forward.3} parent=64 // loop_pre_header
                  _
                $region74: #{block8_forward.3} parent=64 // loop_header
                  %s959 = sphi 0, %s961
                  %p960 = scmp.ge.s32.totalorder %s959, %s948
                  %s964 = sphi 0, %s1081
                  %s965 = sphi %s952, %s1084
                  %s966 = sphi %s955, %s1085
                $region75: #{block8_forward.3} parent=64 // loop_header_branch
                  %963 = sbr.rel (%p960) target = $region79
                $region76: #{block8_forward.3} parent=64 // loop_body
                  %v967 = vld [vmem:[%s965] sm:$0xff]
                  %968 = vst [vmem:[%s966] sm:$0xff] %v967
                  %v969 = vld [vmem:[%s965 + $0x44] sm:$0xff]
                  %970 = vst [vmem:[%s966 + $0x10] sm:$0xff] %v969
                  %v971 = vld [vmem:[%s965 + $0x88] sm:$0xff]
                  %972 = vst [vmem:[%s966 + $0x20] sm:$0xff] %v971
                  %v973 = vld [vmem:[%s965 + $0xcc] sm:$0xff]
                  %974 = vst [vmem:[%s966 + $0x30] sm:$0xff] %v973
                  %v975 = vld [vmem:[%s965 + $0x110] sm:$0xff]
                  %976 = vst [vmem:[%s966 + $0x40] sm:$0xff] %v975
                  %v977 = vld [vmem:[%s965 + $0x154] sm:$0xff]
                  %978 = vst [vmem:[%s966 + $0x50] sm:$0xff] %v977
                  %v979 = vld [vmem:[%s965 + $0x198] sm:$0xff]
                  %980 = vst [vmem:[%s966 + $0x60] sm:$0xff] %v979
                  %v981 = vld [vmem:[%s965 + $0x1dc] sm:$0xff]
                  %982 = vst [vmem:[%s966 + $0x70] sm:$0xff] %v981
                  %v983 = vld [vmem:[%s965 + $0x220] sm:$0xff]
                  %984 = vst [vmem:[%s966 + $0x80] sm:$0xff] %v983
                  %v985 = vld [vmem:[%s965 + $0x264] sm:$0xff]
                  %986 = vst [vmem:[%s966 + $0x90] sm:$0xff] %v985
                  %v987 = vld [vmem:[%s965 + $0x2a8] sm:$0xff]
                  %988 = vst [vmem:[%s966 + $0xa0] sm:$0xff] %v987
                  %v989 = vld [vmem:[%s965 + $0x2ec] sm:$0xff]
                  %990 = vst [vmem:[%s966 + $0xb0] sm:$0xff] %v989
                  %v991 = vld [vmem:[%s965 + $0x330] sm:$0xff]
                  %992 = vst [vmem:[%s966 + $0xc0] sm:$0xff] %v991
                  %v993 = vld [vmem:[%s965 + $0x374] sm:$0xff]
                  %994 = vst [vmem:[%s966 + $0xd0] sm:$0xff] %v993
                  %v995 = vld [vmem:[%s965 + $0x3b8] sm:$0xff]
                  %996 = vst [vmem:[%s966 + $0xe0] sm:$0xff] %v995
                  %v997 = vld [vmem:[%s965 + $0x3fc] sm:$0xff]
                  %998 = vst [vmem:[%s966 + $0xf0] sm:$0xff] %v997
                  %v999 = vld [vmem:[%s965 + $0x440] sm:$0xff]
                  %1000 = vst [vmem:[%s966 + $0x100] sm:$0xff] %v999
                  %v1001 = vld [vmem:[%s965 + $0x484] sm:$0xff]
                  %1002 = vst [vmem:[%s966 + $0x110] sm:$0xff] %v1001
                  %v1003 = vld [vmem:[%s965 + $0x4c8] sm:$0xff]
                  %1004 = vst [vmem:[%s966 + $0x120] sm:$0xff] %v1003
                  %v1005 = vld [vmem:[%s965 + $0x50c] sm:$0xff]
                  %1006 = vst [vmem:[%s966 + $0x130] sm:$0xff] %v1005
                  %v1007 = vld [vmem:[%s965 + $0x550] sm:$0xff]
                  %1008 = vst [vmem:[%s966 + $0x140] sm:$0xff] %v1007
                  %v1009 = vld [vmem:[%s965 + $0x594] sm:$0xff]
                  %1010 = vst [vmem:[%s966 + $0x150] sm:$0xff] %v1009
                  %v1011 = vld [vmem:[%s965 + $0x5d8] sm:$0xff]
                  %1012 = vst [vmem:[%s966 + $0x160] sm:$0xff] %v1011
                  %v1013 = vld [vmem:[%s965 + $0x61c] sm:$0xff]
                  %1014 = vst [vmem:[%s966 + $0x170] sm:$0xff] %v1013
                  %v1015 = vld [vmem:[%s965 + $0x660] sm:$0xff]
                  %1016 = vst [vmem:[%s966 + $0x180] sm:$0xff] %v1015
                  %v1017 = vld [vmem:[%s965 + $0x6a4] sm:$0xff]
                  %1018 = vst [vmem:[%s966 + $0x190] sm:$0xff] %v1017
                  %v1019 = vld [vmem:[%s965 + $0x6e8] sm:$0xff]
                  %1020 = vst [vmem:[%s966 + $0x1a0] sm:$0xff] %v1019
                  %v1021 = vld [vmem:[%s965 + $0x72c] sm:$0xff]
                  %1022 = vst [vmem:[%s966 + $0x1b0] sm:$0xff] %v1021
                  %v1023 = vld [vmem:[%s965 + $0x770] sm:$0xff]
                  %1024 = vst [vmem:[%s966 + $0x1c0] sm:$0xff] %v1023
                  %v1025 = vld [vmem:[%s965 + $0x7b4] sm:$0xff]
                  %1026 = vst [vmem:[%s966 + $0x1d0] sm:$0xff] %v1025
                  %v1027 = vld [vmem:[%s965 + $0x7f8] sm:$0xff]
                  %1028 = vst [vmem:[%s966 + $0x1e0] sm:$0xff] %v1027
                  %v1029 = vld [vmem:[%s965 + $0x83c] sm:$0xff]
                  %1030 = vst [vmem:[%s966 + $0x1f0] sm:$0xff] %v1029
                  %v1031 = vld [vmem:[%s965 + $0x880] sm:$0xff]
                  %1032 = vst [vmem:[%s966 + $0x200] sm:$0xff] %v1031
                  %v1033 = vld [vmem:[%s965 + $0x8c4] sm:$0xff]
                  %1034 = vst [vmem:[%s966 + $0x210] sm:$0xff] %v1033
                  %v1035 = vld [vmem:[%s965 + $0x908] sm:$0xff]
                  %1036 = vst [vmem:[%s966 + $0x220] sm:$0xff] %v1035
                  %v1037 = vld [vmem:[%s965 + $0x94c] sm:$0xff]
                  %1038 = vst [vmem:[%s966 + $0x230] sm:$0xff] %v1037
                  %v1039 = vld [vmem:[%s965 + $0x990] sm:$0xff]
                  %1040 = vst [vmem:[%s966 + $0x240] sm:$0xff] %v1039
                  %v1041 = vld [vmem:[%s965 + $0x9d4] sm:$0xff]
                  %1042 = vst [vmem:[%s966 + $0x250] sm:$0xff] %v1041
                  %v1043 = vld [vmem:[%s965 + $0xa18] sm:$0xff]
                  %1044 = vst [vmem:[%s966 + $0x260] sm:$0xff] %v1043
                  %v1045 = vld [vmem:[%s965 + $0xa5c] sm:$0xff]
                  %1046 = vst [vmem:[%s966 + $0x270] sm:$0xff] %v1045
                  %v1047 = vld [vmem:[%s965 + $0xaa0] sm:$0xff]
                  %1048 = vst [vmem:[%s966 + $0x280] sm:$0xff] %v1047
                  %v1049 = vld [vmem:[%s965 + $0xae4] sm:$0xff]
                  %1050 = vst [vmem:[%s966 + $0x290] sm:$0xff] %v1049
                  %v1051 = vld [vmem:[%s965 + $0xb28] sm:$0xff]
                  %1052 = vst [vmem:[%s966 + $0x2a0] sm:$0xff] %v1051
                  %v1053 = vld [vmem:[%s965 + $0xb6c] sm:$0xff]
                  %1054 = vst [vmem:[%s966 + $0x2b0] sm:$0xff] %v1053
                  %v1055 = vld [vmem:[%s965 + $0xbb0] sm:$0xff]
                  %1056 = vst [vmem:[%s966 + $0x2c0] sm:$0xff] %v1055
                  %v1057 = vld [vmem:[%s965 + $0xbf4] sm:$0xff]
                  %1058 = vst [vmem:[%s966 + $0x2d0] sm:$0xff] %v1057
                  %v1059 = vld [vmem:[%s965 + $0xc38] sm:$0xff]
                  %1060 = vst [vmem:[%s966 + $0x2e0] sm:$0xff] %v1059
                  %v1061 = vld [vmem:[%s965 + $0xc7c] sm:$0xff]
                  %1062 = vst [vmem:[%s966 + $0x2f0] sm:$0xff] %v1061
                  %v1063 = vld [vmem:[%s965 + $0xcc0] sm:$0xff]
                  %1064 = vst [vmem:[%s966 + $0x300] sm:$0xff] %v1063
                  %v1065 = vld [vmem:[%s965 + $0xd04] sm:$0xff]
                  %1066 = vst [vmem:[%s966 + $0x310] sm:$0xff] %v1065
                  %v1067 = vld [vmem:[%s965 + $0xd48] sm:$0xff]
                  %1068 = vst [vmem:[%s966 + $0x320] sm:$0xff] %v1067
                  %v1069 = vld [vmem:[%s965 + $0xd8c] sm:$0xff]
                  %1070 = vst [vmem:[%s966 + $0x330] sm:$0xff] %v1069
                  %v1071 = vld [vmem:[%s965 + $0xdd0] sm:$0xff]
                  %1072 = vst [vmem:[%s966 + $0x340] sm:$0xff] %v1071
                  %v1073 = vld [vmem:[%s965 + $0xe14] sm:$0xff]
                  %1074 = vst [vmem:[%s966 + $0x350] sm:$0xff] %v1073
                  %v1075 = vld [vmem:[%s965 + $0xe58] sm:$0xff]
                  %1076 = vst [vmem:[%s966 + $0x360] sm:$0xff] %v1075
                  %v1077 = vld [vmem:[%s965 + $0xe9c] sm:$0xff]
                  %1078 = vst [vmem:[%s966 + $0x370] sm:$0xff] %v1077
                  %s1079 = sadd.s32 1, %s964
                  %p1080 = scmp.ge.s32.totalorder %s1079, %s948
                  %s1081 = scalar_select %p1080, 0, %s1079
                  %s1082 = smul.u32 %s1081, 8
                  %s1083 = smul.u32 %s1081, 8
                  %s1084 = scalar_lea.vmem %s952, %s1082
                  %s1085 = scalar_lea.vmem %s955, %s1083 [#allocation2]
                $region77: #{block8_forward.3} parent=64 // loop_footer
                  %s961 = sadd.s32 %s959, 1
                $region78: #{block8_forward.3} parent=64 // loop_footer_branch
                  %958 = sbr.rel target = $region74
                $region79: #{block8_forward.3} parent=64 // loop_exit
                  _
                %s1086 = sshllo.u32 0, %s698
                loop: start=0, step=1, limit=1
                $region80: #{block8_forward.3} parent=64 // loop_pre_header
                  _
                $region81: #{block8_forward.3} parent=64 // loop_header
                  %s1088 = sphi 0, %s1092
                  %p1089 = scmp.ge.s32.totalorder %s1088, 1
                  %s1093 = sphi %s700, %s700
                  %s1094 = sphi %s702, %s702
                $region82: #{block8_forward.3} parent=64 // loop_header_branch
                  %1091 = sbr.rel (%p1089) target = $region86
                $region83: #{block8_forward.3} parent=64 // loop_body
                  %v1095 = vld [vmem:[%s1093] sm:%s1086]
                  %1096 = vst [vmem:[%s1094] sm:%s1086] %v1095
                  %v1097 = vld [vmem:[%s1093 + $0x44] sm:%s1086]
                  %1098 = vst [vmem:[%s1094 + $0x10] sm:%s1086] %v1097
                  %v1099 = vld [vmem:[%s1093 + $0x88] sm:%s1086]
                  %1100 = vst [vmem:[%s1094 + $0x20] sm:%s1086] %v1099
                  %v1101 = vld [vmem:[%s1093 + $0xcc] sm:%s1086]
                  %1102 = vst [vmem:[%s1094 + $0x30] sm:%s1086] %v1101
                  %v1103 = vld [vmem:[%s1093 + $0x110] sm:%s1086]
                  %1104 = vst [vmem:[%s1094 + $0x40] sm:%s1086] %v1103
                  %v1105 = vld [vmem:[%s1093 + $0x154] sm:%s1086]
                  %1106 = vst [vmem:[%s1094 + $0x50] sm:%s1086] %v1105
                  %v1107 = vld [vmem:[%s1093 + $0x198] sm:%s1086]
                  %1108 = vst [vmem:[%s1094 + $0x60] sm:%s1086] %v1107
                  %v1109 = vld [vmem:[%s1093 + $0x1dc] sm:%s1086]
                  %1110 = vst [vmem:[%s1094 + $0x70] sm:%s1086] %v1109
                  %v1111 = vld [vmem:[%s1093 + $0x220] sm:%s1086]
                  %1112 = vst [vmem:[%s1094 + $0x80] sm:%s1086] %v1111
                  %v1113 = vld [vmem:[%s1093 + $0x264] sm:%s1086]
                  %1114 = vst [vmem:[%s1094 + $0x90] sm:%s1086] %v1113
                  %v1115 = vld [vmem:[%s1093 + $0x2a8] sm:%s1086]
                  %1116 = vst [vmem:[%s1094 + $0xa0] sm:%s1086] %v1115
                  %v1117 = vld [vmem:[%s1093 + $0x2ec] sm:%s1086]
                  %1118 = vst [vmem:[%s1094 + $0xb0] sm:%s1086] %v1117
                  %v1119 = vld [vmem:[%s1093 + $0x330] sm:%s1086]
                  %1120 = vst [vmem:[%s1094 + $0xc0] sm:%s1086] %v1119
                  %v1121 = vld [vmem:[%s1093 + $0x374] sm:%s1086]
                  %1122 = vst [vmem:[%s1094 + $0xd0] sm:%s1086] %v1121
                  %v1123 = vld [vmem:[%s1093 + $0x3b8] sm:%s1086]
                  %1124 = vst [vmem:[%s1094 + $0xe0] sm:%s1086] %v1123
                  %v1125 = vld [vmem:[%s1093 + $0x3fc] sm:%s1086]
                  %1126 = vst [vmem:[%s1094 + $0xf0] sm:%s1086] %v1125
                  %v1127 = vld [vmem:[%s1093 + $0x440] sm:%s1086]
                  %1128 = vst [vmem:[%s1094 + $0x100] sm:%s1086] %v1127
                  %v1129 = vld [vmem:[%s1093 + $0x484] sm:%s1086]
                  %1130 = vst [vmem:[%s1094 + $0x110] sm:%s1086] %v1129
                  %v1131 = vld [vmem:[%s1093 + $0x4c8] sm:%s1086]
                  %1132 = vst [vmem:[%s1094 + $0x120] sm:%s1086] %v1131
                  %v1133 = vld [vmem:[%s1093 + $0x50c] sm:%s1086]
                  %1134 = vst [vmem:[%s1094 + $0x130] sm:%s1086] %v1133
                  %v1135 = vld [vmem:[%s1093 + $0x550] sm:%s1086]
                  %1136 = vst [vmem:[%s1094 + $0x140] sm:%s1086] %v1135
                  %v1137 = vld [vmem:[%s1093 + $0x594] sm:%s1086]
                  %1138 = vst [vmem:[%s1094 + $0x150] sm:%s1086] %v1137
                  %v1139 = vld [vmem:[%s1093 + $0x5d8] sm:%s1086]
                  %1140 = vst [vmem:[%s1094 + $0x160] sm:%s1086] %v1139
                  %v1141 = vld [vmem:[%s1093 + $0x61c] sm:%s1086]
                  %1142 = vst [vmem:[%s1094 + $0x170] sm:%s1086] %v1141
                  %v1143 = vld [vmem:[%s1093 + $0x660] sm:%s1086]
                  %1144 = vst [vmem:[%s1094 + $0x180] sm:%s1086] %v1143
                  %v1145 = vld [vmem:[%s1093 + $0x6a4] sm:%s1086]
                  %1146 = vst [vmem:[%s1094 + $0x190] sm:%s1086] %v1145
                  %v1147 = vld [vmem:[%s1093 + $0x6e8] sm:%s1086]
                  %1148 = vst [vmem:[%s1094 + $0x1a0] sm:%s1086] %v1147
                  %v1149 = vld [vmem:[%s1093 + $0x72c] sm:%s1086]
                  %1150 = vst [vmem:[%s1094 + $0x1b0] sm:%s1086] %v1149
                  %v1151 = vld [vmem:[%s1093 + $0x770] sm:%s1086]
                  %1152 = vst [vmem:[%s1094 + $0x1c0] sm:%s1086] %v1151
                  %v1153 = vld [vmem:[%s1093 + $0x7b4] sm:%s1086]
                  %1154 = vst [vmem:[%s1094 + $0x1d0] sm:%s1086] %v1153
                  %v1155 = vld [vmem:[%s1093 + $0x7f8] sm:%s1086]
                  %1156 = vst [vmem:[%s1094 + $0x1e0] sm:%s1086] %v1155
                  %v1157 = vld [vmem:[%s1093 + $0x83c] sm:%s1086]
                  %1158 = vst [vmem:[%s1094 + $0x1f0] sm:%s1086] %v1157
                  %v1159 = vld [vmem:[%s1093 + $0x880] sm:%s1086]
                  %1160 = vst [vmem:[%s1094 + $0x200] sm:%s1086] %v1159
                  %v1161 = vld [vmem:[%s1093 + $0x8c4] sm:%s1086]
                  %1162 = vst [vmem:[%s1094 + $0x210] sm:%s1086] %v1161
                  %v1163 = vld [vmem:[%s1093 + $0x908] sm:%s1086]
                  %1164 = vst [vmem:[%s1094 + $0x220] sm:%s1086] %v1163
                  %v1165 = vld [vmem:[%s1093 + $0x94c] sm:%s1086]
                  %1166 = vst [vmem:[%s1094 + $0x230] sm:%s1086] %v1165
                  %v1167 = vld [vmem:[%s1093 + $0x990] sm:%s1086]
                  %1168 = vst [vmem:[%s1094 + $0x240] sm:%s1086] %v1167
                  %v1169 = vld [vmem:[%s1093 + $0x9d4] sm:%s1086]
                  %1170 = vst [vmem:[%s1094 + $0x250] sm:%s1086] %v1169
                  %v1171 = vld [vmem:[%s1093 + $0xa18] sm:%s1086]
                  %1172 = vst [vmem:[%s1094 + $0x260] sm:%s1086] %v1171
                  %v1173 = vld [vmem:[%s1093 + $0xa5c] sm:%s1086]
                  %1174 = vst [vmem:[%s1094 + $0x270] sm:%s1086] %v1173
                  %v1175 = vld [vmem:[%s1093 + $0xaa0] sm:%s1086]
                  %1176 = vst [vmem:[%s1094 + $0x280] sm:%s1086] %v1175
                  %v1177 = vld [vmem:[%s1093 + $0xae4] sm:%s1086]
                  %1178 = vst [vmem:[%s1094 + $0x290] sm:%s1086] %v1177
                  %v1179 = vld [vmem:[%s1093 + $0xb28] sm:%s1086]
                  %1180 = vst [vmem:[%s1094 + $0x2a0] sm:%s1086] %v1179
                  %v1181 = vld [vmem:[%s1093 + $0xb6c] sm:%s1086]
                  %1182 = vst [vmem:[%s1094 + $0x2b0] sm:%s1086] %v1181
                  %v1183 = vld [vmem:[%s1093 + $0xbb0] sm:%s1086]
                  %1184 = vst [vmem:[%s1094 + $0x2c0] sm:%s1086] %v1183
                  %v1185 = vld [vmem:[%s1093 + $0xbf4] sm:%s1086]
                  %1186 = vst [vmem:[%s1094 + $0x2d0] sm:%s1086] %v1185
                  %v1187 = vld [vmem:[%s1093 + $0xc38] sm:%s1086]
                  %1188 = vst [vmem:[%s1094 + $0x2e0] sm:%s1086] %v1187
                  %v1189 = vld [vmem:[%s1093 + $0xc7c] sm:%s1086]
                  %1190 = vst [vmem:[%s1094 + $0x2f0] sm:%s1086] %v1189
                  %v1191 = vld [vmem:[%s1093 + $0xcc0] sm:%s1086]
                  %1192 = vst [vmem:[%s1094 + $0x300] sm:%s1086] %v1191
                  %v1193 = vld [vmem:[%s1093 + $0xd04] sm:%s1086]
                  %1194 = vst [vmem:[%s1094 + $0x310] sm:%s1086] %v1193
                  %v1195 = vld [vmem:[%s1093 + $0xd48] sm:%s1086]
                  %1196 = vst [vmem:[%s1094 + $0x320] sm:%s1086] %v1195
                  %v1197 = vld [vmem:[%s1093 + $0xd8c] sm:%s1086]
                  %1198 = vst [vmem:[%s1094 + $0x330] sm:%s1086] %v1197
                  %v1199 = vld [vmem:[%s1093 + $0xdd0] sm:%s1086]
                  %1200 = vst [vmem:[%s1094 + $0x340] sm:%s1086] %v1199
                  %v1201 = vld [vmem:[%s1093 + $0xe14] sm:%s1086]
                  %1202 = vst [vmem:[%s1094 + $0x350] sm:%s1086] %v1201
                  %v1203 = vld [vmem:[%s1093 + $0xe58] sm:%s1086]
                  %1204 = vst [vmem:[%s1094 + $0x360] sm:%s1086] %v1203
                  %v1205 = vld [vmem:[%s1093 + $0xe9c] sm:%s1086]
                  %1206 = vst [vmem:[%s1094 + $0x370] sm:%s1086] %v1205
                $region84: #{block8_forward.3} parent=64 // loop_footer
                  %s1092 = sadd.s32 1, %s1088
                $region85: #{block8_forward.3} parent=64 // loop_footer_branch
                  %1087 = sbr.rel target = $region81
                $region86: #{block8_forward.3} parent=64 // loop_exit
                  _
              $region65: #{block8_forward.3} parent=31 // pred_fallthru
                _
            $region32: #{block8_forward.3} parent=27 // pred_fallthru
              _
            // Predicated region
            $region33: #{block8_forward.3} parent=27 // pred_check
              %p183 = pneg %p179
            $region34: #{block8_forward.3} parent=27 // pred_check_branch
              %185 = sbr.rel (%p183) target = $region36
            $region35: #{block8_forward.3} parent=27 // pred_region
              %s186 = sshllo.u32 0, %s175
              loop: start=0, step=1, limit=1
              $region37: #{block8_forward.3} parent=35 // loop_pre_header
                _
              $region38: #{block8_forward.3} parent=35 // loop_header
                %s188 = sphi 0, %s192
                %p189 = scmp.ge.s32.totalorder %s188, 1
                %s193 = sphi %s174, %s174
                %s194 = sphi %s166, %s166
              $region39: #{block8_forward.3} parent=35 // loop_header_branch
                %191 = sbr.rel (%p189) target = $region43
              $region40: #{block8_forward.3} parent=35 // loop_body
                %v195 = vld [vmem:[%s193] sm:%s186]
                %196 = vst [vmem:[%s194] sm:%s186] %v195
                %v197 = vld [vmem:[%s193 + $0x44] sm:%s186]
                %198 = vst [vmem:[%s194 + $0x10] sm:%s186] %v197
                %v199 = vld [vmem:[%s193 + $0x88] sm:%s186]
                %200 = vst [vmem:[%s194 + $0x20] sm:%s186] %v199
                %v201 = vld [vmem:[%s193 + $0xcc] sm:%s186]
                %202 = vst [vmem:[%s194 + $0x30] sm:%s186] %v201
                %v203 = vld [vmem:[%s193 + $0x110] sm:%s186]
                %204 = vst [vmem:[%s194 + $0x40] sm:%s186] %v203
                %v205 = vld [vmem:[%s193 + $0x154] sm:%s186]
                %206 = vst [vmem:[%s194 + $0x50] sm:%s186] %v205
                %v207 = vld [vmem:[%s193 + $0x198] sm:%s186]
                %208 = vst [vmem:[%s194 + $0x60] sm:%s186] %v207
                %v209 = vld [vmem:[%s193 + $0x1dc] sm:%s186]
                %210 = vst [vmem:[%s194 + $0x70] sm:%s186] %v209
                %v211 = vld [vmem:[%s193 + $0x220] sm:%s186]
                %212 = vst [vmem:[%s194 + $0x80] sm:%s186] %v211
                %v213 = vld [vmem:[%s193 + $0x264] sm:%s186]
                %214 = vst [vmem:[%s194 + $0x90] sm:%s186] %v213
                %v215 = vld [vmem:[%s193 + $0x2a8] sm:%s186]
                %216 = vst [vmem:[%s194 + $0xa0] sm:%s186] %v215
                %v217 = vld [vmem:[%s193 + $0x2ec] sm:%s186]
                %218 = vst [vmem:[%s194 + $0xb0] sm:%s186] %v217
                %v219 = vld [vmem:[%s193 + $0x330] sm:%s186]
                %220 = vst [vmem:[%s194 + $0xc0] sm:%s186] %v219
                %v221 = vld [vmem:[%s193 + $0x374] sm:%s186]
                %222 = vst [vmem:[%s194 + $0xd0] sm:%s186] %v221
                %v223 = vld [vmem:[%s193 + $0x3b8] sm:%s186]
                %224 = vst [vmem:[%s194 + $0xe0] sm:%s186] %v223
                %v225 = vld [vmem:[%s193 + $0x3fc] sm:%s186]
                %226 = vst [vmem:[%s194 + $0xf0] sm:%s186] %v225
                %v227 = vld [vmem:[%s193 + $0x440] sm:%s186]
                %228 = vst [vmem:[%s194 + $0x100] sm:%s186] %v227
                %v229 = vld [vmem:[%s193 + $0x484] sm:%s186]
                %230 = vst [vmem:[%s194 + $0x110] sm:%s186] %v229
                %v231 = vld [vmem:[%s193 + $0x4c8] sm:%s186]
                %232 = vst [vmem:[%s194 + $0x120] sm:%s186] %v231
                %v233 = vld [vmem:[%s193 + $0x50c] sm:%s186]
                %234 = vst [vmem:[%s194 + $0x130] sm:%s186] %v233
                %v235 = vld [vmem:[%s193 + $0x550] sm:%s186]
                %236 = vst [vmem:[%s194 + $0x140] sm:%s186] %v235
                %v237 = vld [vmem:[%s193 + $0x594] sm:%s186]
                %238 = vst [vmem:[%s194 + $0x150] sm:%s186] %v237
                %v239 = vld [vmem:[%s193 + $0x5d8] sm:%s186]
                %240 = vst [vmem:[%s194 + $0x160] sm:%s186] %v239
                %v241 = vld [vmem:[%s193 + $0x61c] sm:%s186]
                %242 = vst [vmem:[%s194 + $0x170] sm:%s186] %v241
                %v243 = vld [vmem:[%s193 + $0x660] sm:%s186]
                %244 = vst [vmem:[%s194 + $0x180] sm:%s186] %v243
                %v245 = vld [vmem:[%s193 + $0x6a4] sm:%s186]
                %246 = vst [vmem:[%s194 + $0x190] sm:%s186] %v245
                %v247 = vld [vmem:[%s193 + $0x6e8] sm:%s186]
                %248 = vst [vmem:[%s194 + $0x1a0] sm:%s186] %v247
                %v249 = vld [vmem:[%s193 + $0x72c] sm:%s186]
                %250 = vst [vmem:[%s194 + $0x1b0] sm:%s186] %v249
                %v251 = vld [vmem:[%s193 + $0x770] sm:%s186]
                %252 = vst [vmem:[%s194 + $0x1c0] sm:%s186] %v251
                %v253 = vld [vmem:[%s193 + $0x7b4] sm:%s186]
                %254 = vst [vmem:[%s194 + $0x1d0] sm:%s186] %v253
                %v255 = vld [vmem:[%s193 + $0x7f8] sm:%s186]
                %256 = vst [vmem:[%s194 + $0x1e0] sm:%s186] %v255
                %v257 = vld [vmem:[%s193 + $0x83c] sm:%s186]
                %258 = vst [vmem:[%s194 + $0x1f0] sm:%s186] %v257
                %v259 = vld [vmem:[%s193 + $0x880] sm:%s186]
                %260 = vst [vmem:[%s194 + $0x200] sm:%s186] %v259
                %v261 = vld [vmem:[%s193 + $0x8c4] sm:%s186]
                %262 = vst [vmem:[%s194 + $0x210] sm:%s186] %v261
                %v263 = vld [vmem:[%s193 + $0x908] sm:%s186]
                %264 = vst [vmem:[%s194 + $0x220] sm:%s186] %v263
                %v265 = vld [vmem:[%s193 + $0x94c] sm:%s186]
                %266 = vst [vmem:[%s194 + $0x230] sm:%s186] %v265
                %v267 = vld [vmem:[%s193 + $0x990] sm:%s186]
                %268 = vst [vmem:[%s194 + $0x240] sm:%s186] %v267
                %v269 = vld [vmem:[%s193 + $0x9d4] sm:%s186]
                %270 = vst [vmem:[%s194 + $0x250] sm:%s186] %v269
                %v271 = vld [vmem:[%s193 + $0xa18] sm:%s186]
                %272 = vst [vmem:[%s194 + $0x260] sm:%s186] %v271
                %v273 = vld [vmem:[%s193 + $0xa5c] sm:%s186]
                %274 = vst [vmem:[%s194 + $0x270] sm:%s186] %v273
                %v275 = vld [vmem:[%s193 + $0xaa0] sm:%s186]
                %276 = vst [vmem:[%s194 + $0x280] sm:%s186] %v275
                %v277 = vld [vmem:[%s193 + $0xae4] sm:%s186]
                %278 = vst [vmem:[%s194 + $0x290] sm:%s186] %v277
                %v279 = vld [vmem:[%s193 + $0xb28] sm:%s186]
                %280 = vst [vmem:[%s194 + $0x2a0] sm:%s186] %v279
                %v281 = vld [vmem:[%s193 + $0xb6c] sm:%s186]
                %282 = vst [vmem:[%s194 + $0x2b0] sm:%s186] %v281
                %v283 = vld [vmem:[%s193 + $0xbb0] sm:%s186]
                %284 = vst [vmem:[%s194 + $0x2c0] sm:%s186] %v283
                %v285 = vld [vmem:[%s193 + $0xbf4] sm:%s186]
                %286 = vst [vmem:[%s194 + $0x2d0] sm:%s186] %v285
                %v287 = vld [vmem:[%s193 + $0xc38] sm:%s186]
                %288 = vst [vmem:[%s194 + $0x2e0] sm:%s186] %v287
                %v289 = vld [vmem:[%s193 + $0xc7c] sm:%s186]
                %290 = vst [vmem:[%s194 + $0x2f0] sm:%s186] %v289
                %v291 = vld [vmem:[%s193 + $0xcc0] sm:%s186]
                %292 = vst [vmem:[%s194 + $0x300] sm:%s186] %v291
                %v293 = vld [vmem:[%s193 + $0xd04] sm:%s186]
                %294 = vst [vmem:[%s194 + $0x310] sm:%s186] %v293
                %v295 = vld [vmem:[%s193 + $0xd48] sm:%s186]
                %296 = vst [vmem:[%s194 + $0x320] sm:%s186] %v295
                %v297 = vld [vmem:[%s193 + $0xd8c] sm:%s186]
                %298 = vst [vmem:[%s194 + $0x330] sm:%s186] %v297
                %v299 = vld [vmem:[%s193 + $0xdd0] sm:%s186]
                %300 = vst [vmem:[%s194 + $0x340] sm:%s186] %v299
                %v301 = vld [vmem:[%s193 + $0xe14] sm:%s186]
                %302 = vst [vmem:[%s194 + $0x350] sm:%s186] %v301
                %v303 = vld [vmem:[%s193 + $0xe58] sm:%s186]
                %304 = vst [vmem:[%s194 + $0x360] sm:%s186] %v303
                %v305 = vld [vmem:[%s193 + $0xe9c] sm:%s186]
                %306 = vst [vmem:[%s194 + $0x370] sm:%s186] %v305
              $region41: #{block8_forward.3} parent=35 // loop_footer
                %s192 = sadd.s32 1, %s188
              $region42: #{block8_forward.3} parent=35 // loop_footer_branch
                %187 = sbr.rel target = $region38
              $region43: #{block8_forward.3} parent=35 // loop_exit
                _
            $region36: #{block8_forward.3} parent=27 // pred_fallthru
              _
          $region28: #{block8_forward.3} parent=23 // pred_fallthru
            _
          %1207 = vnop
        $region24: #{block8_forward.3} parent=19 // pred_fallthru
          _
        // Predicated region
        $region87: #{block8_forward.3} parent=19 // pred_check
          %p1208 = pneg %p80
        $region88: #{block8_forward.3} parent=19 // pred_check_branch
          %1210 = sbr.rel (%p1208) target = $region90
        $region89: #{block8_forward.3} parent=19 // pred_region
          %s1211 = smul.u32 4, %s13
          %s1212 = ssub.s32 17, %s1211
          %p1213 = scmp.lt.s32.totalorder %s1212, 4
          %s1214 = scalar_select %p1213, %s1212, 4
          %s1215 = smul.u32 16, %s1214
          %p1216 = scmp.lt.s32.totalorder %s1211, 16
          %s1217 = scalar_select %p1216, %s1211, 16
          %s1218 = scalar_lea.vmem %s2, %s1217
          %s1219 = smul.u32 4, %s13
          %s1220 = ssub.s32 17, %s1219
          %p1221 = scmp.lt.s32.totalorder %s1220, 4
          %s1222 = scalar_select %p1221, %s1220, 4
          %s1223 = smul.u32 16, %s1222
        $region90: #{block8_forward.3} parent=19 // pred_fallthru
          _
        // Predicated region
        $region91: #{block8_forward.3} parent=19 // pred_check
          %p1224 = pneg %p106
        $region92: #{block8_forward.3} parent=19 // pred_check_branch
          %1226 = sbr.rel (%p1224) target = $region94
        $region93: #{block8_forward.3} parent=19 // pred_region
          %s1227 = sand.u32 %s96, 1
          %s1228 = sand.u32 %s96, 1
          %s1229 = smul.addr %s1228, 512
          %s1230 = scalar_lea.vmem [#allocation3], %s1229
          %s1231 = smul.u32 4, %s13
          %s1232 = ssub.s32 17, %s1231
          %p1233 = scmp.lt.s32.totalorder %s1232, 4
          %s1234 = scalar_select %p1233, %s1232, 4
          %s1235 = smul.u32 2048, %s1234
          %p1236 = scmp.ne.s32.totalorder 0, %s1235
          %s1237 = smul.addr %s1231, 8
          %s1238 = scalar_lea.vmem %s3, %s1237
          %s1239 = smul.u32 %s1234, 8
          // Predicated region
          $region95: #{block8_forward.3} parent=93 // pred_check
            %p1240 = pneg %p1236
          $region96: #{block8_forward.3} parent=93 // pred_check_branch
            %1242 = sbr.rel (%p1240) target = $region98
          $region97: #{block8_forward.3} parent=93 // pred_region
            %p1243 = scmp.lt.u32.totalorder %s1239, 8
            %p1244 = pneg %p1243
            // Predicated region
            $region99: #{block8_forward.3} parent=97 // pred_check
              _
            $region100: #{block8_forward.3} parent=97 // pred_check_branch
              %1246 = sbr.rel (%p1243) target = $region102
            $region101: #{block8_forward.3} parent=97 // pred_region
              %s1291 = sand.u32 %s1239, 7
              %p1292 = scmp.eq.s32.totalorder %s1291, 0
              // Predicated region
              $region114: #{block8_forward.3} parent=101 // pred_check
                %p1293 = pneg %p1292
              $region115: #{block8_forward.3} parent=101 // pred_check_branch
                %1295 = sbr.rel (%p1293) target = $region117
              $region116: #{block8_forward.3} parent=101 // pred_region
                %s1296 = sshrl.u32 %s1239, 3
                %s1297 = sshrl.u32 %s1296, 2
                // While loop
                $region118: #{block8_forward.3} parent=116 // loop_pre_header
                  _
                $region119: #{block8_forward.3} parent=116 // loop_header
                  %s1301 = sphi 0, %s1303
                  %p1302 = scmp.ge.s32.totalorder %s1301, %s1297
                  %s1306 = sphi 0, %s1439
                  %s1307 = sphi %s1238, %s1442
                  %s1308 = sphi %s1230, %s1443
                $region120: #{block8_forward.3} parent=116 // loop_header_branch
                  %1305 = sbr.rel (%p1302) target = $region124
                $region121: #{block8_forward.3} parent=116 // loop_body
                  %v1309 = vld [vmem:[%s1307] sm:$0xff]
                  %1310 = vst [vmem:[%s1308] sm:$0xff] %v1309
                  %v1311 = vld [vmem:[%s1307 + $0x8] sm:$0xff]
                  %1312 = vst [vmem:[%s1308 + $0x8] sm:$0xff] %v1311
                  %v1313 = vld [vmem:[%s1307 + $0x10] sm:$0xff]
                  %1314 = vst [vmem:[%s1308 + $0x10] sm:$0xff] %v1313
                  %v1315 = vld [vmem:[%s1307 + $0x18] sm:$0xff]
                  %1316 = vst [vmem:[%s1308 + $0x18] sm:$0xff] %v1315
                  %v1317 = vld [vmem:[%s1307 + $0x88] sm:$0xff]
                  %1318 = vst [vmem:[%s1308 + $0x20] sm:$0xff] %v1317
                  %v1319 = vld [vmem:[%s1307 + $0x90] sm:$0xff]
                  %1320 = vst [vmem:[%s1308 + $0x28] sm:$0xff] %v1319
                  %v1321 = vld [vmem:[%s1307 + $0x98] sm:$0xff]
                  %1322 = vst [vmem:[%s1308 + $0x30] sm:$0xff] %v1321
                  %v1323 = vld [vmem:[%s1307 + $0xa0] sm:$0xff]
                  %1324 = vst [vmem:[%s1308 + $0x38] sm:$0xff] %v1323
                  %v1325 = vld [vmem:[%s1307 + $0x110] sm:$0xff]
                  %1326 = vst [vmem:[%s1308 + $0x40] sm:$0xff] %v1325
                  %v1327 = vld [vmem:[%s1307 + $0x118] sm:$0xff]
                  %1328 = vst [vmem:[%s1308 + $0x48] sm:$0xff] %v1327
                  %v1329 = vld [vmem:[%s1307 + $0x120] sm:$0xff]
                  %1330 = vst [vmem:[%s1308 + $0x50] sm:$0xff] %v1329
                  %v1331 = vld [vmem:[%s1307 + $0x128] sm:$0xff]
                  %1332 = vst [vmem:[%s1308 + $0x58] sm:$0xff] %v1331
                  %v1333 = vld [vmem:[%s1307 + $0x198] sm:$0xff]
                  %1334 = vst [vmem:[%s1308 + $0x60] sm:$0xff] %v1333
                  %v1335 = vld [vmem:[%s1307 + $0x1a0] sm:$0xff]
                  %1336 = vst [vmem:[%s1308 + $0x68] sm:$0xff] %v1335
                  %v1337 = vld [vmem:[%s1307 + $0x1a8] sm:$0xff]
                  %1338 = vst [vmem:[%s1308 + $0x70] sm:$0xff] %v1337
                  %v1339 = vld [vmem:[%s1307 + $0x1b0] sm:$0xff]
                  %1340 = vst [vmem:[%s1308 + $0x78] sm:$0xff] %v1339
                  %v1341 = vld [vmem:[%s1307 + $0x220] sm:$0xff]
                  %1342 = vst [vmem:[%s1308 + $0x80] sm:$0xff] %v1341
                  %v1343 = vld [vmem:[%s1307 + $0x228] sm:$0xff]
                  %1344 = vst [vmem:[%s1308 + $0x88] sm:$0xff] %v1343
                  %v1345 = vld [vmem:[%s1307 + $0x230] sm:$0xff]
                  %1346 = vst [vmem:[%s1308 + $0x90] sm:$0xff] %v1345
                  %v1347 = vld [vmem:[%s1307 + $0x238] sm:$0xff]
                  %1348 = vst [vmem:[%s1308 + $0x98] sm:$0xff] %v1347
                  %v1349 = vld [vmem:[%s1307 + $0x2a8] sm:$0xff]
                  %1350 = vst [vmem:[%s1308 + $0xa0] sm:$0xff] %v1349
                  %v1351 = vld [vmem:[%s1307 + $0x2b0] sm:$0xff]
                  %1352 = vst [vmem:[%s1308 + $0xa8] sm:$0xff] %v1351
                  %v1353 = vld [vmem:[%s1307 + $0x2b8] sm:$0xff]
                  %1354 = vst [vmem:[%s1308 + $0xb0] sm:$0xff] %v1353
                  %v1355 = vld [vmem:[%s1307 + $0x2c0] sm:$0xff]
                  %1356 = vst [vmem:[%s1308 + $0xb8] sm:$0xff] %v1355
                  %v1357 = vld [vmem:[%s1307 + $0x330] sm:$0xff]
                  %1358 = vst [vmem:[%s1308 + $0xc0] sm:$0xff] %v1357
                  %v1359 = vld [vmem:[%s1307 + $0x338] sm:$0xff]
                  %1360 = vst [vmem:[%s1308 + $0xc8] sm:$0xff] %v1359
                  %v1361 = vld [vmem:[%s1307 + $0x340] sm:$0xff]
                  %1362 = vst [vmem:[%s1308 + $0xd0] sm:$0xff] %v1361
                  %v1363 = vld [vmem:[%s1307 + $0x348] sm:$0xff]
                  %1364 = vst [vmem:[%s1308 + $0xd8] sm:$0xff] %v1363
                  %v1365 = vld [vmem:[%s1307 + $0x3b8] sm:$0xff]
                  %1366 = vst [vmem:[%s1308 + $0xe0] sm:$0xff] %v1365
                  %v1367 = vld [vmem:[%s1307 + $0x3c0] sm:$0xff]
                  %1368 = vst [vmem:[%s1308 + $0xe8] sm:$0xff] %v1367
                  %v1369 = vld [vmem:[%s1307 + $0x3c8] sm:$0xff]
                  %1370 = vst [vmem:[%s1308 + $0xf0] sm:$0xff] %v1369
                  %v1371 = vld [vmem:[%s1307 + $0x3d0] sm:$0xff]
                  %1372 = vst [vmem:[%s1308 + $0xf8] sm:$0xff] %v1371
                  %v1373 = vld [vmem:[%s1307 + $0x440] sm:$0xff]
                  %1374 = vst [vmem:[%s1308 + $0x100] sm:$0xff] %v1373
                  %v1375 = vld [vmem:[%s1307 + $0x448] sm:$0xff]
                  %1376 = vst [vmem:[%s1308 + $0x108] sm:$0xff] %v1375
                  %v1377 = vld [vmem:[%s1307 + $0x450] sm:$0xff]
                  %1378 = vst [vmem:[%s1308 + $0x110] sm:$0xff] %v1377
                  %v1379 = vld [vmem:[%s1307 + $0x458] sm:$0xff]
                  %1380 = vst [vmem:[%s1308 + $0x118] sm:$0xff] %v1379
                  %v1381 = vld [vmem:[%s1307 + $0x4c8] sm:$0xff]
                  %1382 = vst [vmem:[%s1308 + $0x120] sm:$0xff] %v1381
                  %v1383 = vld [vmem:[%s1307 + $0x4d0] sm:$0xff]
                  %1384 = vst [vmem:[%s1308 + $0x128] sm:$0xff] %v1383
                  %v1385 = vld [vmem:[%s1307 + $0x4d8] sm:$0xff]
                  %1386 = vst [vmem:[%s1308 + $0x130] sm:$0xff] %v1385
                  %v1387 = vld [vmem:[%s1307 + $0x4e0] sm:$0xff]
                  %1388 = vst [vmem:[%s1308 + $0x138] sm:$0xff] %v1387
                  %v1389 = vld [vmem:[%s1307 + $0x550] sm:$0xff]
                  %1390 = vst [vmem:[%s1308 + $0x140] sm:$0xff] %v1389
                  %v1391 = vld [vmem:[%s1307 + $0x558] sm:$0xff]
                  %1392 = vst [vmem:[%s1308 + $0x148] sm:$0xff] %v1391
                  %v1393 = vld [vmem:[%s1307 + $0x560] sm:$0xff]
                  %1394 = vst [vmem:[%s1308 + $0x150] sm:$0xff] %v1393
                  %v1395 = vld [vmem:[%s1307 + $0x568] sm:$0xff]
                  %1396 = vst [vmem:[%s1308 + $0x158] sm:$0xff] %v1395
                  %v1397 = vld [vmem:[%s1307 + $0x5d8] sm:$0xff]
                  %1398 = vst [vmem:[%s1308 + $0x160] sm:$0xff] %v1397
                  %v1399 = vld [vmem:[%s1307 + $0x5e0] sm:$0xff]
                  %1400 = vst [vmem:[%s1308 + $0x168] sm:$0xff] %v1399
                  %v1401 = vld [vmem:[%s1307 + $0x5e8] sm:$0xff]
                  %1402 = vst [vmem:[%s1308 + $0x170] sm:$0xff] %v1401
                  %v1403 = vld [vmem:[%s1307 + $0x5f0] sm:$0xff]
                  %1404 = vst [vmem:[%s1308 + $0x178] sm:$0xff] %v1403
                  %v1405 = vld [vmem:[%s1307 + $0x660] sm:$0xff]
                  %1406 = vst [vmem:[%s1308 + $0x180] sm:$0xff] %v1405
                  %v1407 = vld [vmem:[%s1307 + $0x668] sm:$0xff]
                  %1408 = vst [vmem:[%s1308 + $0x188] sm:$0xff] %v1407
                  %v1409 = vld [vmem:[%s1307 + $0x670] sm:$0xff]
                  %1410 = vst [vmem:[%s1308 + $0x190] sm:$0xff] %v1409
                  %v1411 = vld [vmem:[%s1307 + $0x678] sm:$0xff]
                  %1412 = vst [vmem:[%s1308 + $0x198] sm:$0xff] %v1411
                  %v1413 = vld [vmem:[%s1307 + $0x6e8] sm:$0xff]
                  %1414 = vst [vmem:[%s1308 + $0x1a0] sm:$0xff] %v1413
                  %v1415 = vld [vmem:[%s1307 + $0x6f0] sm:$0xff]
                  %1416 = vst [vmem:[%s1308 + $0x1a8] sm:$0xff] %v1415
                  %v1417 = vld [vmem:[%s1307 + $0x6f8] sm:$0xff]
                  %1418 = vst [vmem:[%s1308 + $0x1b0] sm:$0xff] %v1417
                  %v1419 = vld [vmem:[%s1307 + $0x700] sm:$0xff]
                  %1420 = vst [vmem:[%s1308 + $0x1b8] sm:$0xff] %v1419
                  %v1421 = vld [vmem:[%s1307 + $0x770] sm:$0xff]
                  %1422 = vst [vmem:[%s1308 + $0x1c0] sm:$0xff] %v1421
                  %v1423 = vld [vmem:[%s1307 + $0x778] sm:$0xff]
                  %1424 = vst [vmem:[%s1308 + $0x1c8] sm:$0xff] %v1423
                  %v1425 = vld [vmem:[%s1307 + $0x780] sm:$0xff]
                  %1426 = vst [vmem:[%s1308 + $0x1d0] sm:$0xff] %v1425
                  %v1427 = vld [vmem:[%s1307 + $0x788] sm:$0xff]
                  %1428 = vst [vmem:[%s1308 + $0x1d8] sm:$0xff] %v1427
                  %v1429 = vld [vmem:[%s1307 + $0x7f8] sm:$0xff]
                  %1430 = vst [vmem:[%s1308 + $0x1e0] sm:$0xff] %v1429
                  %v1431 = vld [vmem:[%s1307 + $0x800] sm:$0xff]
                  %1432 = vst [vmem:[%s1308 + $0x1e8] sm:$0xff] %v1431
                  %v1433 = vld [vmem:[%s1307 + $0x808] sm:$0xff]
                  %1434 = vst [vmem:[%s1308 + $0x1f0] sm:$0xff] %v1433
                  %v1435 = vld [vmem:[%s1307 + $0x810] sm:$0xff]
                  %1436 = vst [vmem:[%s1308 + $0x1f8] sm:$0xff] %v1435
                  %s1437 = sadd.s32 1, %s1306
                  %p1438 = scmp.ge.s32.totalorder %s1437, %s1297
                  %s1439 = scalar_select %p1438, 0, %s1437
                  %s1440 = smul.u32 %s1439, 32
                  %s1441 = smul.u32 %s1439, 32
                  %s1442 = scalar_lea.vmem %s1238, %s1440
                  %s1443 = scalar_lea.vmem %s1230, %s1441 [#allocation3]
                $region122: #{block8_forward.3} parent=116 // loop_footer
                  %s1303 = sadd.s32 %s1301, 1
                $region123: #{block8_forward.3} parent=116 // loop_footer_branch
                  %1300 = sbr.rel target = $region119
                $region124: #{block8_forward.3} parent=116 // loop_exit
                  _
                %s1444 = sshrl.u32 %s1296, 2
                %s1445 = sand.u32 %s1296, 3
                %s1446 = smul.u32 %s1444, 4
                %s1447 = smul.u32 128, %s1446
                %s1448 = sshra.s32 %s1447, 4
                %s1449 = scalar_lea.vmem %s1238, %s1448
                %s1450 = smul.u32 128, %s1446
                %s1451 = sshra.s32 %s1450, 4
                %s1452 = scalar_lea.vmem %s1230, %s1451 [#allocation3]
                // While loop
                $region125: #{block8_forward.3} parent=116 // loop_pre_header
                  _
                $region126: #{block8_forward.3} parent=116 // loop_header
                  %s1456 = sphi 0, %s1458
                  %p1457 = scmp.ge.s32.totalorder %s1456, %s1445
                  %s1461 = sphi 0, %s1498
                  %s1462 = sphi %s1449, %s1501
                  %s1463 = sphi %s1452, %s1502
                $region127: #{block8_forward.3} parent=116 // loop_header_branch
                  %1460 = sbr.rel (%p1457) target = $region131
                $region128: #{block8_forward.3} parent=116 // loop_body
                  %v1464 = vld [vmem:[%s1462] sm:$0xff]
                  %1465 = vst [vmem:[%s1463] sm:$0xff] %v1464
                  %v1466 = vld [vmem:[%s1462 + $0x88] sm:$0xff]
                  %1467 = vst [vmem:[%s1463 + $0x20] sm:$0xff] %v1466
                  %v1468 = vld [vmem:[%s1462 + $0x110] sm:$0xff]
                  %1469 = vst [vmem:[%s1463 + $0x40] sm:$0xff] %v1468
                  %v1470 = vld [vmem:[%s1462 + $0x198] sm:$0xff]
                  %1471 = vst [vmem:[%s1463 + $0x60] sm:$0xff] %v1470
                  %v1472 = vld [vmem:[%s1462 + $0x220] sm:$0xff]
                  %1473 = vst [vmem:[%s1463 + $0x80] sm:$0xff] %v1472
                  %v1474 = vld [vmem:[%s1462 + $0x2a8] sm:$0xff]
                  %1475 = vst [vmem:[%s1463 + $0xa0] sm:$0xff] %v1474
                  %v1476 = vld [vmem:[%s1462 + $0x330] sm:$0xff]
                  %1477 = vst [vmem:[%s1463 + $0xc0] sm:$0xff] %v1476
                  %v1478 = vld [vmem:[%s1462 + $0x3b8] sm:$0xff]
                  %1479 = vst [vmem:[%s1463 + $0xe0] sm:$0xff] %v1478
                  %v1480 = vld [vmem:[%s1462 + $0x440] sm:$0xff]
                  %1481 = vst [vmem:[%s1463 + $0x100] sm:$0xff] %v1480
                  %v1482 = vld [vmem:[%s1462 + $0x4c8] sm:$0xff]
                  %1483 = vst [vmem:[%s1463 + $0x120] sm:$0xff] %v1482
                  %v1484 = vld [vmem:[%s1462 + $0x550] sm:$0xff]
                  %1485 = vst [vmem:[%s1463 + $0x140] sm:$0xff] %v1484
                  %v1486 = vld [vmem:[%s1462 + $0x5d8] sm:$0xff]
                  %1487 = vst [vmem:[%s1463 + $0x160] sm:$0xff] %v1486
                  %v1488 = vld [vmem:[%s1462 + $0x660] sm:$0xff]
                  %1489 = vst [vmem:[%s1463 + $0x180] sm:$0xff] %v1488
                  %v1490 = vld [vmem:[%s1462 + $0x6e8] sm:$0xff]
                  %1491 = vst [vmem:[%s1463 + $0x1a0] sm:$0xff] %v1490
                  %v1492 = vld [vmem:[%s1462 + $0x770] sm:$0xff]
                  %1493 = vst [vmem:[%s1463 + $0x1c0] sm:$0xff] %v1492
                  %v1494 = vld [vmem:[%s1462 + $0x7f8] sm:$0xff]
                  %1495 = vst [vmem:[%s1463 + $0x1e0] sm:$0xff] %v1494
                  %s1496 = sadd.s32 1, %s1461
                  %p1497 = scmp.ge.s32.totalorder %s1496, %s1445
                  %s1498 = scalar_select %p1497, 0, %s1496
                  %s1499 = smul.u32 %s1498, 8
                  %s1500 = smul.u32 %s1498, 8
                  %s1501 = scalar_lea.vmem %s1449, %s1499
                  %s1502 = scalar_lea.vmem %s1452, %s1500 [#allocation3]
                $region129: #{block8_forward.3} parent=116 // loop_footer
                  %s1458 = sadd.s32 %s1456, 1
                $region130: #{block8_forward.3} parent=116 // loop_footer_branch
                  %1455 = sbr.rel target = $region126
                $region131: #{block8_forward.3} parent=116 // loop_exit
                  _
              $region117: #{block8_forward.3} parent=101 // pred_fallthru
                _
              %p1503 = pneg %p1292
              // Predicated region
              $region132: #{block8_forward.3} parent=101 // pred_check
                _
              $region133: #{block8_forward.3} parent=101 // pred_check_branch
                %1505 = sbr.rel (%p1292) target = $region135
              $region134: #{block8_forward.3} parent=101 // pred_region
                %s1506 = sand.u32 %s1239, 7
                %s1507 = ssub.s32 %s1239, %s1506
                %s1508 = scalar_lea.vmem %s1238, %s1507
                %s1509 = ssub.s32 %s1239, %s1506
                %s1510 = scalar_lea.vmem %s1230, %s1509 [#allocation3]
                %s1511 = sshrl.u32 %s1239, 3
                %s1512 = sshrl.u32 %s1511, 2
                // While loop
                $region136: #{block8_forward.3} parent=134 // loop_pre_header
                  _
                $region137: #{block8_forward.3} parent=134 // loop_header
                  %s1516 = sphi 0, %s1518
                  %p1517 = scmp.ge.s32.totalorder %s1516, %s1512
                  %s1521 = sphi 0, %s1654
                  %s1522 = sphi %s1238, %s1657
                  %s1523 = sphi %s1230, %s1658
                $region138: #{block8_forward.3} parent=134 // loop_header_branch
                  %1520 = sbr.rel (%p1517) target = $region142
                $region139: #{block8_forward.3} parent=134 // loop_body
                  %v1524 = vld [vmem:[%s1522] sm:$0xff]
                  %1525 = vst [vmem:[%s1523] sm:$0xff] %v1524
                  %v1526 = vld [vmem:[%s1522 + $0x8] sm:$0xff]
                  %1527 = vst [vmem:[%s1523 + $0x8] sm:$0xff] %v1526
                  %v1528 = vld [vmem:[%s1522 + $0x10] sm:$0xff]
                  %1529 = vst [vmem:[%s1523 + $0x10] sm:$0xff] %v1528
                  %v1530 = vld [vmem:[%s1522 + $0x18] sm:$0xff]
                  %1531 = vst [vmem:[%s1523 + $0x18] sm:$0xff] %v1530
                  %v1532 = vld [vmem:[%s1522 + $0x88] sm:$0xff]
                  %1533 = vst [vmem:[%s1523 + $0x20] sm:$0xff] %v1532
                  %v1534 = vld [vmem:[%s1522 + $0x90] sm:$0xff]
                  %1535 = vst [vmem:[%s1523 + $0x28] sm:$0xff] %v1534
                  %v1536 = vld [vmem:[%s1522 + $0x98] sm:$0xff]
                  %1537 = vst [vmem:[%s1523 + $0x30] sm:$0xff] %v1536
                  %v1538 = vld [vmem:[%s1522 + $0xa0] sm:$0xff]
                  %1539 = vst [vmem:[%s1523 + $0x38] sm:$0xff] %v1538
                  %v1540 = vld [vmem:[%s1522 + $0x110] sm:$0xff]
                  %1541 = vst [vmem:[%s1523 + $0x40] sm:$0xff] %v1540
                  %v1542 = vld [vmem:[%s1522 + $0x118] sm:$0xff]
                  %1543 = vst [vmem:[%s1523 + $0x48] sm:$0xff] %v1542
                  %v1544 = vld [vmem:[%s1522 + $0x120] sm:$0xff]
                  %1545 = vst [vmem:[%s1523 + $0x50] sm:$0xff] %v1544
                  %v1546 = vld [vmem:[%s1522 + $0x128] sm:$0xff]
                  %1547 = vst [vmem:[%s1523 + $0x58] sm:$0xff] %v1546
                  %v1548 = vld [vmem:[%s1522 + $0x198] sm:$0xff]
                  %1549 = vst [vmem:[%s1523 + $0x60] sm:$0xff] %v1548
                  %v1550 = vld [vmem:[%s1522 + $0x1a0] sm:$0xff]
                  %1551 = vst [vmem:[%s1523 + $0x68] sm:$0xff] %v1550
                  %v1552 = vld [vmem:[%s1522 + $0x1a8] sm:$0xff]
                  %1553 = vst [vmem:[%s1523 + $0x70] sm:$0xff] %v1552
                  %v1554 = vld [vmem:[%s1522 + $0x1b0] sm:$0xff]
                  %1555 = vst [vmem:[%s1523 + $0x78] sm:$0xff] %v1554
                  %v1556 = vld [vmem:[%s1522 + $0x220] sm:$0xff]
                  %1557 = vst [vmem:[%s1523 + $0x80] sm:$0xff] %v1556
                  %v1558 = vld [vmem:[%s1522 + $0x228] sm:$0xff]
                  %1559 = vst [vmem:[%s1523 + $0x88] sm:$0xff] %v1558
                  %v1560 = vld [vmem:[%s1522 + $0x230] sm:$0xff]
                  %1561 = vst [vmem:[%s1523 + $0x90] sm:$0xff] %v1560
                  %v1562 = vld [vmem:[%s1522 + $0x238] sm:$0xff]
                  %1563 = vst [vmem:[%s1523 + $0x98] sm:$0xff] %v1562
                  %v1564 = vld [vmem:[%s1522 + $0x2a8] sm:$0xff]
                  %1565 = vst [vmem:[%s1523 + $0xa0] sm:$0xff] %v1564
                  %v1566 = vld [vmem:[%s1522 + $0x2b0] sm:$0xff]
                  %1567 = vst [vmem:[%s1523 + $0xa8] sm:$0xff] %v1566
                  %v1568 = vld [vmem:[%s1522 + $0x2b8] sm:$0xff]
                  %1569 = vst [vmem:[%s1523 + $0xb0] sm:$0xff] %v1568
                  %v1570 = vld [vmem:[%s1522 + $0x2c0] sm:$0xff]
                  %1571 = vst [vmem:[%s1523 + $0xb8] sm:$0xff] %v1570
                  %v1572 = vld [vmem:[%s1522 + $0x330] sm:$0xff]
                  %1573 = vst [vmem:[%s1523 + $0xc0] sm:$0xff] %v1572
                  %v1574 = vld [vmem:[%s1522 + $0x338] sm:$0xff]
                  %1575 = vst [vmem:[%s1523 + $0xc8] sm:$0xff] %v1574
                  %v1576 = vld [vmem:[%s1522 + $0x340] sm:$0xff]
                  %1577 = vst [vmem:[%s1523 + $0xd0] sm:$0xff] %v1576
                  %v1578 = vld [vmem:[%s1522 + $0x348] sm:$0xff]
                  %1579 = vst [vmem:[%s1523 + $0xd8] sm:$0xff] %v1578
                  %v1580 = vld [vmem:[%s1522 + $0x3b8] sm:$0xff]
                  %1581 = vst [vmem:[%s1523 + $0xe0] sm:$0xff] %v1580
                  %v1582 = vld [vmem:[%s1522 + $0x3c0] sm:$0xff]
                  %1583 = vst [vmem:[%s1523 + $0xe8] sm:$0xff] %v1582
                  %v1584 = vld [vmem:[%s1522 + $0x3c8] sm:$0xff]
                  %1585 = vst [vmem:[%s1523 + $0xf0] sm:$0xff] %v1584
                  %v1586 = vld [vmem:[%s1522 + $0x3d0] sm:$0xff]
                  %1587 = vst [vmem:[%s1523 + $0xf8] sm:$0xff] %v1586
                  %v1588 = vld [vmem:[%s1522 + $0x440] sm:$0xff]
                  %1589 = vst [vmem:[%s1523 + $0x100] sm:$0xff] %v1588
                  %v1590 = vld [vmem:[%s1522 + $0x448] sm:$0xff]
                  %1591 = vst [vmem:[%s1523 + $0x108] sm:$0xff] %v1590
                  %v1592 = vld [vmem:[%s1522 + $0x450] sm:$0xff]
                  %1593 = vst [vmem:[%s1523 + $0x110] sm:$0xff] %v1592
                  %v1594 = vld [vmem:[%s1522 + $0x458] sm:$0xff]
                  %1595 = vst [vmem:[%s1523 + $0x118] sm:$0xff] %v1594
                  %v1596 = vld [vmem:[%s1522 + $0x4c8] sm:$0xff]
                  %1597 = vst [vmem:[%s1523 + $0x120] sm:$0xff] %v1596
                  %v1598 = vld [vmem:[%s1522 + $0x4d0] sm:$0xff]
                  %1599 = vst [vmem:[%s1523 + $0x128] sm:$0xff] %v1598
                  %v1600 = vld [vmem:[%s1522 + $0x4d8] sm:$0xff]
                  %1601 = vst [vmem:[%s1523 + $0x130] sm:$0xff] %v1600
                  %v1602 = vld [vmem:[%s1522 + $0x4e0] sm:$0xff]
                  %1603 = vst [vmem:[%s1523 + $0x138] sm:$0xff] %v1602
                  %v1604 = vld [vmem:[%s1522 + $0x550] sm:$0xff]
                  %1605 = vst [vmem:[%s1523 + $0x140] sm:$0xff] %v1604
                  %v1606 = vld [vmem:[%s1522 + $0x558] sm:$0xff]
                  %1607 = vst [vmem:[%s1523 + $0x148] sm:$0xff] %v1606
                  %v1608 = vld [vmem:[%s1522 + $0x560] sm:$0xff]
                  %1609 = vst [vmem:[%s1523 + $0x150] sm:$0xff] %v1608
                  %v1610 = vld [vmem:[%s1522 + $0x568] sm:$0xff]
                  %1611 = vst [vmem:[%s1523 + $0x158] sm:$0xff] %v1610
                  %v1612 = vld [vmem:[%s1522 + $0x5d8] sm:$0xff]
                  %1613 = vst [vmem:[%s1523 + $0x160] sm:$0xff] %v1612
                  %v1614 = vld [vmem:[%s1522 + $0x5e0] sm:$0xff]
                  %1615 = vst [vmem:[%s1523 + $0x168] sm:$0xff] %v1614
                  %v1616 = vld [vmem:[%s1522 + $0x5e8] sm:$0xff]
                  %1617 = vst [vmem:[%s1523 + $0x170] sm:$0xff] %v1616
                  %v1618 = vld [vmem:[%s1522 + $0x5f0] sm:$0xff]
                  %1619 = vst [vmem:[%s1523 + $0x178] sm:$0xff] %v1618
                  %v1620 = vld [vmem:[%s1522 + $0x660] sm:$0xff]
                  %1621 = vst [vmem:[%s1523 + $0x180] sm:$0xff] %v1620
                  %v1622 = vld [vmem:[%s1522 + $0x668] sm:$0xff]
                  %1623 = vst [vmem:[%s1523 + $0x188] sm:$0xff] %v1622
                  %v1624 = vld [vmem:[%s1522 + $0x670] sm:$0xff]
                  %1625 = vst [vmem:[%s1523 + $0x190] sm:$0xff] %v1624
                  %v1626 = vld [vmem:[%s1522 + $0x678] sm:$0xff]
                  %1627 = vst [vmem:[%s1523 + $0x198] sm:$0xff] %v1626
                  %v1628 = vld [vmem:[%s1522 + $0x6e8] sm:$0xff]
                  %1629 = vst [vmem:[%s1523 + $0x1a0] sm:$0xff] %v1628
                  %v1630 = vld [vmem:[%s1522 + $0x6f0] sm:$0xff]
                  %1631 = vst [vmem:[%s1523 + $0x1a8] sm:$0xff] %v1630
                  %v1632 = vld [vmem:[%s1522 + $0x6f8] sm:$0xff]
                  %1633 = vst [vmem:[%s1523 + $0x1b0] sm:$0xff] %v1632
                  %v1634 = vld [vmem:[%s1522 + $0x700] sm:$0xff]
                  %1635 = vst [vmem:[%s1523 + $0x1b8] sm:$0xff] %v1634
                  %v1636 = vld [vmem:[%s1522 + $0x770] sm:$0xff]
                  %1637 = vst [vmem:[%s1523 + $0x1c0] sm:$0xff] %v1636
                  %v1638 = vld [vmem:[%s1522 + $0x778] sm:$0xff]
                  %1639 = vst [vmem:[%s1523 + $0x1c8] sm:$0xff] %v1638
                  %v1640 = vld [vmem:[%s1522 + $0x780] sm:$0xff]
                  %1641 = vst [vmem:[%s1523 + $0x1d0] sm:$0xff] %v1640
                  %v1642 = vld [vmem:[%s1522 + $0x788] sm:$0xff]
                  %1643 = vst [vmem:[%s1523 + $0x1d8] sm:$0xff] %v1642
                  %v1644 = vld [vmem:[%s1522 + $0x7f8] sm:$0xff]
                  %1645 = vst [vmem:[%s1523 + $0x1e0] sm:$0xff] %v1644
                  %v1646 = vld [vmem:[%s1522 + $0x800] sm:$0xff]
                  %1647 = vst [vmem:[%s1523 + $0x1e8] sm:$0xff] %v1646
                  %v1648 = vld [vmem:[%s1522 + $0x808] sm:$0xff]
                  %1649 = vst [vmem:[%s1523 + $0x1f0] sm:$0xff] %v1648
                  %v1650 = vld [vmem:[%s1522 + $0x810] sm:$0xff]
                  %1651 = vst [vmem:[%s1523 + $0x1f8] sm:$0xff] %v1650
                  %s1652 = sadd.s32 1, %s1521
                  %p1653 = scmp.ge.s32.totalorder %s1652, %s1512
                  %s1654 = scalar_select %p1653, 0, %s1652
                  %s1655 = smul.u32 %s1654, 32
                  %s1656 = smul.u32 %s1654, 32
                  %s1657 = scalar_lea.vmem %s1238, %s1655
                  %s1658 = scalar_lea.vmem %s1230, %s1656 [#allocation3]
                $region140: #{block8_forward.3} parent=134 // loop_footer
                  %s1518 = sadd.s32 %s1516, 1
                $region141: #{block8_forward.3} parent=134 // loop_footer_branch
                  %1515 = sbr.rel target = $region137
                $region142: #{block8_forward.3} parent=134 // loop_exit
                  _
                %s1659 = sshrl.u32 %s1511, 2
                %s1660 = sand.u32 %s1511, 3
                %s1661 = smul.u32 %s1659, 4
                %s1662 = smul.u32 128, %s1661
                %s1663 = sshra.s32 %s1662, 4
                %s1664 = scalar_lea.vmem %s1238, %s1663
                %s1665 = smul.u32 128, %s1661
                %s1666 = sshra.s32 %s1665, 4
                %s1667 = scalar_lea.vmem %s1230, %s1666 [#allocation3]
                // While loop
                $region143: #{block8_forward.3} parent=134 // loop_pre_header
                  _
                $region144: #{block8_forward.3} parent=134 // loop_header
                  %s1671 = sphi 0, %s1673
                  %p1672 = scmp.ge.s32.totalorder %s1671, %s1660
                  %s1676 = sphi 0, %s1713
                  %s1677 = sphi %s1664, %s1716
                  %s1678 = sphi %s1667, %s1717
                $region145: #{block8_forward.3} parent=134 // loop_header_branch
                  %1675 = sbr.rel (%p1672) target = $region149
                $region146: #{block8_forward.3} parent=134 // loop_body
                  %v1679 = vld [vmem:[%s1677] sm:$0xff]
                  %1680 = vst [vmem:[%s1678] sm:$0xff] %v1679
                  %v1681 = vld [vmem:[%s1677 + $0x88] sm:$0xff]
                  %1682 = vst [vmem:[%s1678 + $0x20] sm:$0xff] %v1681
                  %v1683 = vld [vmem:[%s1677 + $0x110] sm:$0xff]
                  %1684 = vst [vmem:[%s1678 + $0x40] sm:$0xff] %v1683
                  %v1685 = vld [vmem:[%s1677 + $0x198] sm:$0xff]
                  %1686 = vst [vmem:[%s1678 + $0x60] sm:$0xff] %v1685
                  %v1687 = vld [vmem:[%s1677 + $0x220] sm:$0xff]
                  %1688 = vst [vmem:[%s1678 + $0x80] sm:$0xff] %v1687
                  %v1689 = vld [vmem:[%s1677 + $0x2a8] sm:$0xff]
                  %1690 = vst [vmem:[%s1678 + $0xa0] sm:$0xff] %v1689
                  %v1691 = vld [vmem:[%s1677 + $0x330] sm:$0xff]
                  %1692 = vst [vmem:[%s1678 + $0xc0] sm:$0xff] %v1691
                  %v1693 = vld [vmem:[%s1677 + $0x3b8] sm:$0xff]
                  %1694 = vst [vmem:[%s1678 + $0xe0] sm:$0xff] %v1693
                  %v1695 = vld [vmem:[%s1677 + $0x440] sm:$0xff]
                  %1696 = vst [vmem:[%s1678 + $0x100] sm:$0xff] %v1695
                  %v1697 = vld [vmem:[%s1677 + $0x4c8] sm:$0xff]
                  %1698 = vst [vmem:[%s1678 + $0x120] sm:$0xff] %v1697
                  %v1699 = vld [vmem:[%s1677 + $0x550] sm:$0xff]
                  %1700 = vst [vmem:[%s1678 + $0x140] sm:$0xff] %v1699
                  %v1701 = vld [vmem:[%s1677 + $0x5d8] sm:$0xff]
                  %1702 = vst [vmem:[%s1678 + $0x160] sm:$0xff] %v1701
                  %v1703 = vld [vmem:[%s1677 + $0x660] sm:$0xff]
                  %1704 = vst [vmem:[%s1678 + $0x180] sm:$0xff] %v1703
                  %v1705 = vld [vmem:[%s1677 + $0x6e8] sm:$0xff]
                  %1706 = vst [vmem:[%s1678 + $0x1a0] sm:$0xff] %v1705
                  %v1707 = vld [vmem:[%s1677 + $0x770] sm:$0xff]
                  %1708 = vst [vmem:[%s1678 + $0x1c0] sm:$0xff] %v1707
                  %v1709 = vld [vmem:[%s1677 + $0x7f8] sm:$0xff]
                  %1710 = vst [vmem:[%s1678 + $0x1e0] sm:$0xff] %v1709
                  %s1711 = sadd.s32 1, %s1676
                  %p1712 = scmp.ge.s32.totalorder %s1711, %s1660
                  %s1713 = scalar_select %p1712, 0, %s1711
                  %s1714 = smul.u32 %s1713, 8
                  %s1715 = smul.u32 %s1713, 8
                  %s1716 = scalar_lea.vmem %s1664, %s1714
                  %s1717 = scalar_lea.vmem %s1667, %s1715 [#allocation3]
                $region147: #{block8_forward.3} parent=134 // loop_footer
                  %s1673 = sadd.s32 %s1671, 1
                $region148: #{block8_forward.3} parent=134 // loop_footer_branch
                  %1670 = sbr.rel target = $region144
                $region149: #{block8_forward.3} parent=134 // loop_exit
                  _
                %s1718 = sshllo.u32 0, %s1506
                loop: start=0, step=1, limit=1
                $region150: #{block8_forward.3} parent=134 // loop_pre_header
                  _
                $region151: #{block8_forward.3} parent=134 // loop_header
                  %s1720 = sphi 0, %s1724
                  %p1721 = scmp.ge.s32.totalorder %s1720, 1
                  %s1725 = sphi %s1508, %s1508
                  %s1726 = sphi %s1510, %s1510
                $region152: #{block8_forward.3} parent=134 // loop_header_branch
                  %1723 = sbr.rel (%p1721) target = $region156
                $region153: #{block8_forward.3} parent=134 // loop_body
                  %v1727 = vld [vmem:[%s1725] sm:%s1718]
                  %1728 = vst [vmem:[%s1726] sm:%s1718] %v1727
                  %v1729 = vld [vmem:[%s1725 + $0x88] sm:%s1718]
                  %1730 = vst [vmem:[%s1726 + $0x20] sm:%s1718] %v1729
                  %v1731 = vld [vmem:[%s1725 + $0x110] sm:%s1718]
                  %1732 = vst [vmem:[%s1726 + $0x40] sm:%s1718] %v1731
                  %v1733 = vld [vmem:[%s1725 + $0x198] sm:%s1718]
                  %1734 = vst [vmem:[%s1726 + $0x60] sm:%s1718] %v1733
                  %v1735 = vld [vmem:[%s1725 + $0x220] sm:%s1718]
                  %1736 = vst [vmem:[%s1726 + $0x80] sm:%s1718] %v1735
                  %v1737 = vld [vmem:[%s1725 + $0x2a8] sm:%s1718]
                  %1738 = vst [vmem:[%s1726 + $0xa0] sm:%s1718] %v1737
                  %v1739 = vld [vmem:[%s1725 + $0x330] sm:%s1718]
                  %1740 = vst [vmem:[%s1726 + $0xc0] sm:%s1718] %v1739
                  %v1741 = vld [vmem:[%s1725 + $0x3b8] sm:%s1718]
                  %1742 = vst [vmem:[%s1726 + $0xe0] sm:%s1718] %v1741
                  %v1743 = vld [vmem:[%s1725 + $0x440] sm:%s1718]
                  %1744 = vst [vmem:[%s1726 + $0x100] sm:%s1718] %v1743
                  %v1745 = vld [vmem:[%s1725 + $0x4c8] sm:%s1718]
                  %1746 = vst [vmem:[%s1726 + $0x120] sm:%s1718] %v1745
                  %v1747 = vld [vmem:[%s1725 + $0x550] sm:%s1718]
                  %1748 = vst [vmem:[%s1726 + $0x140] sm:%s1718] %v1747
                  %v1749 = vld [vmem:[%s1725 + $0x5d8] sm:%s1718]
                  %1750 = vst [vmem:[%s1726 + $0x160] sm:%s1718] %v1749
                  %v1751 = vld [vmem:[%s1725 + $0x660] sm:%s1718]
                  %1752 = vst [vmem:[%s1726 + $0x180] sm:%s1718] %v1751
                  %v1753 = vld [vmem:[%s1725 + $0x6e8] sm:%s1718]
                  %1754 = vst [vmem:[%s1726 + $0x1a0] sm:%s1718] %v1753
                  %v1755 = vld [vmem:[%s1725 + $0x770] sm:%s1718]
                  %1756 = vst [vmem:[%s1726 + $0x1c0] sm:%s1718] %v1755
                  %v1757 = vld [vmem:[%s1725 + $0x7f8] sm:%s1718]
                  %1758 = vst [vmem:[%s1726 + $0x1e0] sm:%s1718] %v1757
                $region154: #{block8_forward.3} parent=134 // loop_footer
                  %s1724 = sadd.s32 1, %s1720
                $region155: #{block8_forward.3} parent=134 // loop_footer_branch
                  %1719 = sbr.rel target = $region151
                $region156: #{block8_forward.3} parent=134 // loop_exit
                  _
              $region135: #{block8_forward.3} parent=101 // pred_fallthru
                _
            $region102: #{block8_forward.3} parent=97 // pred_fallthru
              _
            // Predicated region
            $region103: #{block8_forward.3} parent=97 // pred_check
              %p1247 = pneg %p1243
            $region104: #{block8_forward.3} parent=97 // pred_check_branch
              %1249 = sbr.rel (%p1247) target = $region106
            $region105: #{block8_forward.3} parent=97 // pred_region
              %s1250 = sshllo.u32 0, %s1239
              loop: start=0, step=1, limit=1
              $region107: #{block8_forward.3} parent=105 // loop_pre_header
                _
              $region108: #{block8_forward.3} parent=105 // loop_header
                %s1252 = sphi 0, %s1256
                %p1253 = scmp.ge.s32.totalorder %s1252, 1
                %s1257 = sphi %s1238, %s1238
                %s1258 = sphi %s1230, %s1230
              $region109: #{block8_forward.3} parent=105 // loop_header_branch
                %1255 = sbr.rel (%p1253) target = $region113
              $region110: #{block8_forward.3} parent=105 // loop_body
                %v1259 = vld [vmem:[%s1257] sm:%s1250]
                %1260 = vst [vmem:[%s1258] sm:%s1250] %v1259
                %v1261 = vld [vmem:[%s1257 + $0x88] sm:%s1250]
                %1262 = vst [vmem:[%s1258 + $0x20] sm:%s1250] %v1261
                %v1263 = vld [vmem:[%s1257 + $0x110] sm:%s1250]
                %1264 = vst [vmem:[%s1258 + $0x40] sm:%s1250] %v1263
                %v1265 = vld [vmem:[%s1257 + $0x198] sm:%s1250]
                %1266 = vst [vmem:[%s1258 + $0x60] sm:%s1250] %v1265
                %v1267 = vld [vmem:[%s1257 + $0x220] sm:%s1250]
                %1268 = vst [vmem:[%s1258 + $0x80] sm:%s1250] %v1267
                %v1269 = vld [vmem:[%s1257 + $0x2a8] sm:%s1250]
                %1270 = vst [vmem:[%s1258 + $0xa0] sm:%s1250] %v1269
                %v1271 = vld [vmem:[%s1257 + $0x330] sm:%s1250]
                %1272 = vst [vmem:[%s1258 + $0xc0] sm:%s1250] %v1271
                %v1273 = vld [vmem:[%s1257 + $0x3b8] sm:%s1250]
                %1274 = vst [vmem:[%s1258 + $0xe0] sm:%s1250] %v1273
                %v1275 = vld [vmem:[%s1257 + $0x440] sm:%s1250]
                %1276 = vst [vmem:[%s1258 + $0x100] sm:%s1250] %v1275
                %v1277 = vld [vmem:[%s1257 + $0x4c8] sm:%s1250]
                %1278 = vst [vmem:[%s1258 + $0x120] sm:%s1250] %v1277
                %v1279 = vld [vmem:[%s1257 + $0x550] sm:%s1250]
                %1280 = vst [vmem:[%s1258 + $0x140] sm:%s1250] %v1279
                %v1281 = vld [vmem:[%s1257 + $0x5d8] sm:%s1250]
                %1282 = vst [vmem:[%s1258 + $0x160] sm:%s1250] %v1281
                %v1283 = vld [vmem:[%s1257 + $0x660] sm:%s1250]
                %1284 = vst [vmem:[%s1258 + $0x180] sm:%s1250] %v1283
                %v1285 = vld [vmem:[%s1257 + $0x6e8] sm:%s1250]
                %1286 = vst [vmem:[%s1258 + $0x1a0] sm:%s1250] %v1285
                %v1287 = vld [vmem:[%s1257 + $0x770] sm:%s1250]
                %1288 = vst [vmem:[%s1258 + $0x1c0] sm:%s1250] %v1287
                %v1289 = vld [vmem:[%s1257 + $0x7f8] sm:%s1250]
                %1290 = vst [vmem:[%s1258 + $0x1e0] sm:%s1250] %v1289
              $region111: #{block8_forward.3} parent=105 // loop_footer
                %s1256 = sadd.s32 1, %s1252
              $region112: #{block8_forward.3} parent=105 // loop_footer_branch
                %1251 = sbr.rel target = $region108
              $region113: #{block8_forward.3} parent=105 // loop_exit
                _
            $region106: #{block8_forward.3} parent=97 // pred_fallthru
              _
          $region98: #{block8_forward.3} parent=93 // pred_fallthru
            _
          %1759 = vnop
        $region94: #{block8_forward.3} parent=19 // pred_fallthru
          _
      $region20: #{block8_forward.3} parent=5 // pred_fallthru
        _
      %p1760 = scmp.le.s32.totalorder 1, %s13
      %p1761 = scmp.lt.s32.totalorder %s13, 6
      %p1762 = pnand %p1760, %p1761
      %p1763 = pneg %p1762
      // Predicated region
      $region157: #{block8_forward.3} parent=5 // pred_check
        _
      $region158: #{block8_forward.3} parent=5 // pred_check_branch
        %1765 = sbr.rel (%p1762) target = $region160
      $region159: #{block8_forward.3} parent=5 // pred_region
        %s1766 = ssub.s32 %s13, 1
        %s1767 = sand.u32 %s47, 1
        %s1768 = sand.u32 %s47, 1
        %s1769 = smul.addr %s1768, 896
        %s1770 = scalar_lea.vmem [#allocation2], %s1769
        // Predicated region
        $region161: #{block8_forward.3} parent=159 // pred_check
          %p1771 = pneg %p60
        $region162: #{block8_forward.3} parent=159 // pred_check_branch
          %1773 = sbr.rel (%p1771) target = $region164
        $region163: #{block8_forward.3} parent=159 // pred_region
          _
        $region164: #{block8_forward.3} parent=159 // pred_fallthru
          _
        %s1774 = sand.u32 %s99, 1
        %s1775 = sand.u32 %s99, 1
        %s1776 = smul.addr %s1775, 512
        %s1777 = scalar_lea.vmem [#allocation3], %s1776
        // Predicated region
        $region165: #{block8_forward.3} parent=159 // pred_check
          %p1778 = pneg %p112
        $region166: #{block8_forward.3} parent=159 // pred_check_branch
          %1780 = sbr.rel (%p1778) target = $region168
        $region167: #{block8_forward.3} parent=159 // pred_region
          _
        $region168: #{block8_forward.3} parent=159 // pred_fallthru
          _
        %p1781 = pneg %p34
        %p1782 = pneg %p31
        %s1783 = sand.u32 %s47, 1
        %s1784 = sand.u32 %s47, 1
        %s1785 = smul.addr %s1784, 896
        %s1786 = scalar_lea.vmem [#allocation2], %s1785
        %p1787 = pneg %p60
        %p1788 = pneg %p57
        %s1789 = smul.u32 4, %s18
        %s1790 = ssub.s32 17, %s1789
        %p1791 = scmp.lt.s32.totalorder %s1790, 4
        %s1792 = scalar_select %p1791, %s1790, 4
        %s1793 = smul.u32 16, %s1792
        %p1794 = scmp.lt.s32.totalorder %s1789, 16
        %s1795 = scalar_select %p1794, %s1789, 16
        %s1796 = scalar_lea.vmem %s2, %s1795
        %p1797 = pneg %p86
        %p1798 = pneg %p83
        %s1799 = sand.u32 %s99, 1
        %s1800 = sand.u32 %s99, 1
        %s1801 = smul.addr %s1800, 512
        %s1802 = scalar_lea.vmem [#allocation3], %s1801
        %p1803 = pneg %p112
        %p1804 = pneg %p109
        %p1805 = pneg %p138
        %p1806 = pneg %p135
        %s1807 = sand.u32 %s125, 1
        %s1808 = scalar_lea.sflag [#allocation5], %s1807
        %s1809 = sand.u32 %s125, 1
        %s1810 = smul.addr %s1809, 512
        %s1811 = scalar_lea.vmem [#allocation4], %s1810
        %s1812 = smul.u32 4, %s18
        %s1813 = ssub.s32 17, %s1812
        %p1814 = scmp.lt.s32.totalorder %s1813, 4
        %s1815 = scalar_select %p1814, %s1813, 4
        %s1816 = smul.u32 3584, %s1815
        %s1817 = smul.u32 4, %s18
        %s1818 = ssub.s32 17, %s1817
        %p1819 = scmp.lt.s32.totalorder %s1818, 4
        %s1820 = scalar_select %p1819, %s1818, 4
        %s1821 = smul.u32 16, %s1820
        %p1822 = scmp.lt.s32.totalorder %s1817, 16
        %s1823 = scalar_select %p1822, %s1817, 16
        %s1824 = scalar_lea.vmem %s2, %s1823
        %s1825 = smul.u32 4, %s18
        %s1826 = ssub.s32 17, %s1825
        %p1827 = scmp.lt.s32.totalorder %s1826, 4
        %s1828 = scalar_select %p1827, %s1826, 4
        %s1829 = smul.u32 16, %s1828
        %s1830 = smul.u32 4, %s18
        %s1831 = ssub.s32 17, %s1830
        %p1832 = scmp.lt.s32.totalorder %s1831, 4
        %s1833 = scalar_select %p1832, %s1831, 4
        %s1834 = smul.u32 2048, %s1833
        %s1835 = smul.u32 4, %s18
        %s1836 = ssub.s32 17, %s1835
        %p1837 = scmp.lt.s32.totalorder %s1836, 4
        %s1838 = scalar_select %p1837, %s1836, 4
        %s1839 = smul.u32 2048, %s1838
        %v1841 = vld [vmem:[%s0] sm:$0xff]
        %v1842 = vld [vmem:[%s0 + $0x8] sm:$0xff]
        %v1843 = vld [vmem:[%s0 + $0x10] sm:$0xff]
        %v1844 = vld [vmem:[%s0 + $0x18] sm:$0xff]
        %v1845 = vld [vmem:[%s0 + $0x20] sm:$0xff]
        %v1846 = vld [vmem:[%s0 + $0x28] sm:$0xff]
        %v1847 = vld [vmem:[%s0 + $0x30] sm:$0xff]
        %v1848 = vld [vmem:[%s0 + $0x38] sm:$0xff]
        %v1849 = vld [vmem:[%s0 + $0x40] sm:$0xff]
        %v1850 = vld [vmem:[%s0 + $0x48] sm:$0xff]
        %v1851 = vld [vmem:[%s0 + $0x50] sm:$0xff]
        %v1852 = vld [vmem:[%s0 + $0x58] sm:$0xff]
        %v1853 = vld [vmem:[%s0 + $0x60] sm:$0xff]
        %v1854 = vld [vmem:[%s0 + $0x68] sm:$0xff]
        %v1855 = vld [vmem:[%s0 + $0x70] sm:$0xff]
        %v1856 = vld [vmem:[%s0 + $0x78] sm:$0xff]
        %v1857 = vld [vmem:[%s0 + $0x80] sm:$0xff]
        %v1858 = vld [vmem:[%s0 + $0x88] sm:$0xff]
        %v1859 = vld [vmem:[%s0 + $0x90] sm:$0xff]
        %v1860 = vld [vmem:[%s0 + $0x98] sm:$0xff]
        %v1861 = vld [vmem:[%s0 + $0xa0] sm:$0xff]
        %v1862 = vld [vmem:[%s0 + $0xa8] sm:$0xff]
        %v1863 = vld [vmem:[%s0 + $0xb0] sm:$0xff]
        %v1864 = vld [vmem:[%s0 + $0xb8] sm:$0xff]
        %v1865 = vld [vmem:[%s0 + $0xc0] sm:$0xff]
        %v1866 = vld [vmem:[%s0 + $0xc8] sm:$0xff]
        %v1867 = vld [vmem:[%s0 + $0xd0] sm:$0xff]
        %v1868 = vld [vmem:[%s0 + $0xd8] sm:$0xff]
        %v1869 = vld [vmem:[%s0 + $0xe0] sm:$0xff]
        %v1870 = vld [vmem:[%s0 + $0xe8] sm:$0xff]
        %v1871 = vld [vmem:[%s0 + $0xf0] sm:$0xff]
        %v1872 = vld [vmem:[%s0 + $0xf8] sm:$0xff]
        %v1873 = vld [vmem:[%s1770] sm:$0xff]
        %v1874 = vld [vmem:[%s1770 + $0x8] sm:$0xff]
        %v1875 = vld [vmem:[%s1770 + $0x10] sm:$0xff]
        %v1876 = vld [vmem:[%s1770 + $0x18] sm:$0xff]
        %v1877 = vld [vmem:[%s1770 + $0x20] sm:$0xff]
        %v1878 = vld [vmem:[%s1770 + $0x28] sm:$0xff]
        %v1879 = vld [vmem:[%s1770 + $0x30] sm:$0xff]
        %v1880 = vld [vmem:[%s1770 + $0x38] sm:$0xff]
        %v1881 = vld [vmem:[%s1770 + $0x40] sm:$0xff]
        %v1882 = vld [vmem:[%s1770 + $0x48] sm:$0xff]
        %v1883 = vld [vmem:[%s1770 + $0x50] sm:$0xff]
        %v1884 = vld [vmem:[%s1770 + $0x58] sm:$0xff]
        %v1885 = vld [vmem:[%s1770 + $0x60] sm:$0xff]
        %v1886 = vld [vmem:[%s1770 + $0x68] sm:$0xff]
        %v1887 = vld [vmem:[%s1770 + $0x70] sm:$0xff]
        %v1888 = vld [vmem:[%s1770 + $0x78] sm:$0xff]
        %v1889 = vld [vmem:[%s1770 + $0x80] sm:$0xff]
        %v1890 = vld [vmem:[%s1770 + $0x88] sm:$0xff]
        %v1891 = vld [vmem:[%s1770 + $0x90] sm:$0xff]
        %v1892 = vld [vmem:[%s1770 + $0x98] sm:$0xff]
        %v1893 = vld [vmem:[%s1770 + $0xa0] sm:$0xff]
        %v1894 = vld [vmem:[%s1770 + $0xa8] sm:$0xff]
        %v1895 = vld [vmem:[%s1770 + $0xb0] sm:$0xff]
        %v1896 = vld [vmem:[%s1770 + $0xb8] sm:$0xff]
        %v1897 = vld [vmem:[%s1770 + $0xc0] sm:$0xff]
        %v1898 = vld [vmem:[%s1770 + $0xc8] sm:$0xff]
        %v1899 = vld [vmem:[%s1770 + $0xd0] sm:$0xff]
        %v1900 = vld [vmem:[%s1770 + $0xd8] sm:$0xff]
        %v1901 = vld [vmem:[%s1770 + $0xe0] sm:$0xff]
        %v1902 = vld [vmem:[%s1770 + $0xe8] sm:$0xff]
        %v1903 = vld [vmem:[%s1770 + $0xf0] sm:$0xff]
        %v1904 = vld [vmem:[%s1770 + $0xf8] sm:$0xff]
        %v1905 = vld [vmem:[%s1770 + $0x100] sm:$0xff]
        %v1906 = vld [vmem:[%s1770 + $0x108] sm:$0xff]
        %v1907 = vld [vmem:[%s1770 + $0x110] sm:$0xff]
        %v1908 = vld [vmem:[%s1770 + $0x118] sm:$0xff]
        %v1909 = vld [vmem:[%s1770 + $0x120] sm:$0xff]
        %v1910 = vld [vmem:[%s1770 + $0x128] sm:$0xff]
        %v1911 = vld [vmem:[%s1770 + $0x130] sm:$0xff]
        %v1912 = vld [vmem:[%s1770 + $0x138] sm:$0xff]
        %v1913 = vld [vmem:[%s1770 + $0x140] sm:$0xff]
        %v1914 = vld [vmem:[%s1770 + $0x148] sm:$0xff]
        %v1915 = vld [vmem:[%s1770 + $0x150] sm:$0xff]
        %v1916 = vld [vmem:[%s1770 + $0x158] sm:$0xff]
        %v1917 = vld [vmem:[%s1770 + $0x160] sm:$0xff]
        %v1918 = vld [vmem:[%s1770 + $0x168] sm:$0xff]
        %v1919 = vld [vmem:[%s1770 + $0x170] sm:$0xff]
        %v1920 = vld [vmem:[%s1770 + $0x178] sm:$0xff]
        %v1921 = vld [vmem:[%s1770 + $0x180] sm:$0xff]
        %v1922 = vld [vmem:[%s1770 + $0x188] sm:$0xff]
        %v1923 = vld [vmem:[%s1770 + $0x190] sm:$0xff]
        %v1924 = vld [vmem:[%s1770 + $0x198] sm:$0xff]
        %v1925 = vld [vmem:[%s1770 + $0x1a0] sm:$0xff]
        %v1926 = vld [vmem:[%s1770 + $0x1a8] sm:$0xff]
        %v1927 = vld [vmem:[%s1770 + $0x1b0] sm:$0xff]
        %v1928 = vld [vmem:[%s1770 + $0x1b8] sm:$0xff]
        %v1929 = vld [vmem:[%s1770 + $0x1c0] sm:$0xff]
        %v1930 = vld [vmem:[%s1770 + $0x1c8] sm:$0xff]
        %v1931 = vld [vmem:[%s1770 + $0x1d0] sm:$0xff]
        %v1932 = vld [vmem:[%s1770 + $0x1d8] sm:$0xff]
        %v1933 = vld [vmem:[%s1770 + $0x1e0] sm:$0xff]
        %v1934 = vld [vmem:[%s1770 + $0x1e8] sm:$0xff]
        %v1935 = vld [vmem:[%s1770 + $0x1f0] sm:$0xff]
        %v1936 = vld [vmem:[%s1770 + $0x1f8] sm:$0xff]
        %v1937 = vld [vmem:[%s1770 + $0x200] sm:$0xff]
        %v1938 = vld [vmem:[%s1770 + $0x208] sm:$0xff]
        %v1939 = vld [vmem:[%s1770 + $0x210] sm:$0xff]
        %v1940 = vld [vmem:[%s1770 + $0x218] sm:$0xff]
        %v1941 = vld [vmem:[%s1770 + $0x220] sm:$0xff]
        %v1942 = vld [vmem:[%s1770 + $0x228] sm:$0xff]
        %v1943 = vld [vmem:[%s1770 + $0x230] sm:$0xff]
        %v1944 = vld [vmem:[%s1770 + $0x238] sm:$0xff]
        %v1945 = vld [vmem:[%s1770 + $0x240] sm:$0xff]
        %v1946 = vld [vmem:[%s1770 + $0x248] sm:$0xff]
        %v1947 = vld [vmem:[%s1770 + $0x250] sm:$0xff]
        %v1948 = vld [vmem:[%s1770 + $0x258] sm:$0xff]
        %v1949 = vld [vmem:[%s1770 + $0x260] sm:$0xff]
        %v1950 = vld [vmem:[%s1770 + $0x268] sm:$0xff]
        %v1951 = vld [vmem:[%s1770 + $0x270] sm:$0xff]
        %v1952 = vld [vmem:[%s1770 + $0x278] sm:$0xff]
        %v1953 = vld [vmem:[%s1770 + $0x280] sm:$0xff]
        %v1954 = vld [vmem:[%s1770 + $0x288] sm:$0xff]
        %v1955 = vld [vmem:[%s1770 + $0x290] sm:$0xff]
        %v1956 = vld [vmem:[%s1770 + $0x298] sm:$0xff]
        %v1957 = vld [vmem:[%s1770 + $0x2a0] sm:$0xff]
        %v1958 = vld [vmem:[%s1770 + $0x2a8] sm:$0xff]
        %v1959 = vld [vmem:[%s1770 + $0x2b0] sm:$0xff]
        %v1960 = vld [vmem:[%s1770 + $0x2b8] sm:$0xff]
        %v1961 = vld [vmem:[%s1770 + $0x2c0] sm:$0xff]
        %v1962 = vld [vmem:[%s1770 + $0x2c8] sm:$0xff]
        %v1963 = vld [vmem:[%s1770 + $0x2d0] sm:$0xff]
        %v1964 = vld [vmem:[%s1770 + $0x2d8] sm:$0xff]
        %v1965 = vld [vmem:[%s1770 + $0x2e0] sm:$0xff]
        %v1966 = vld [vmem:[%s1770 + $0x2e8] sm:$0xff]
        %v1967 = vld [vmem:[%s1770 + $0x2f0] sm:$0xff]
        %v1968 = vld [vmem:[%s1770 + $0x2f8] sm:$0xff]
        %v1969 = vld [vmem:[%s1770 + $0x300] sm:$0xff]
        %v1970 = vld [vmem:[%s1770 + $0x308] sm:$0xff]
        %v1971 = vld [vmem:[%s1770 + $0x310] sm:$0xff]
        %v1972 = vld [vmem:[%s1770 + $0x318] sm:$0xff]
        %v1973 = vld [vmem:[%s1770 + $0x320] sm:$0xff]
        %v1974 = vld [vmem:[%s1770 + $0x328] sm:$0xff]
        %v1975 = vld [vmem:[%s1770 + $0x330] sm:$0xff]
        %v1976 = vld [vmem:[%s1770 + $0x338] sm:$0xff]
        %v1977 = vld [vmem:[%s1770 + $0x340] sm:$0xff]
        %v1978 = vld [vmem:[%s1770 + $0x348] sm:$0xff]
        %v1979 = vld [vmem:[%s1770 + $0x350] sm:$0xff]
        %v1980 = vld [vmem:[%s1770 + $0x358] sm:$0xff]
        %v1981 = vld [vmem:[%s1770 + $0x360] sm:$0xff]
        %v1982 = vld [vmem:[%s1770 + $0x368] sm:$0xff]
        %v1983 = vld [vmem:[%s1770 + $0x370] sm:$0xff]
        %v1984 = vld [vmem:[%s1770 + $0x378] sm:$0xff]
        %v1985 = vld [vmem:[%s1824] sm:$0xf]
        %v1987 = vlaneseq
        %v1988 = vshrl.u32 %v1987, 7
        %v1989 = vsub.s32 0, %v1988
        %v1990 = vrot.slane %v1985, %v1989
        %v1991 = vlaneseq
        %v1992 = vshrl.u32 %v1991, 7
        %v1993 = vsub.s32 1, %v1992
        %v1994 = vrot.slane %v1985, %v1993
        %v1995 = vlaneseq
        %v1996 = vshrl.u32 %v1995, 7
        %v1997 = vsub.s32 2, %v1996
        %v1998 = vrot.slane %v1985, %v1997
        %v1999 = vlaneseq
        %v2000 = vshrl.u32 %v1999, 7
        %v2001 = vsub.s32 3, %v2000
        %v2002 = vrot.slane %v1985, %v2001
        %v2039 = vunpack.c.l.b16 %v1841
        %v2040 = vunpack.c.h.b16 %v1841
        %v2041 = vunpack.c.l.b16 %v1842
        %v2042 = vunpack.c.h.b16 %v1842
        %v2043 = vunpack.c.l.b16 %v1843
        %v2044 = vunpack.c.h.b16 %v1843
        %v2045 = vunpack.c.l.b16 %v1844
        %v2046 = vunpack.c.h.b16 %v1844
        %v2047 = vunpack.c.l.b16 %v1845
        %v2048 = vunpack.c.h.b16 %v1845
        %v2049 = vunpack.c.l.b16 %v1846
        %v2050 = vunpack.c.h.b16 %v1846
        %v2051 = vunpack.c.l.b16 %v1847
        %v2052 = vunpack.c.h.b16 %v1847
        %v2053 = vunpack.c.l.b16 %v1848
        %v2054 = vunpack.c.h.b16 %v1848
        %v2055 = vunpack.c.l.b16 %v1849
        %v2056 = vunpack.c.h.b16 %v1849
        %v2057 = vunpack.c.l.b16 %v1850
        %v2058 = vunpack.c.h.b16 %v1850
        %v2059 = vunpack.c.l.b16 %v1851
        %v2060 = vunpack.c.h.b16 %v1851
        %v2061 = vunpack.c.l.b16 %v1852
        %v2062 = vunpack.c.h.b16 %v1852
        %v2063 = vunpack.c.l.b16 %v1853
        %v2064 = vunpack.c.h.b16 %v1853
        %v2065 = vunpack.c.l.b16 %v1854
        %v2066 = vunpack.c.h.b16 %v1854
        %v2067 = vunpack.c.l.b16 %v1855
        %v2068 = vunpack.c.h.b16 %v1855
        %v2069 = vunpack.c.l.b16 %v1856
        %v2070 = vunpack.c.h.b16 %v1856
        %v2071 = vunpack.c.l.b16 %v1857
        %v2072 = vunpack.c.h.b16 %v1857
        %v2073 = vunpack.c.l.b16 %v1858
        %v2074 = vunpack.c.h.b16 %v1858
        %v2075 = vunpack.c.l.b16 %v1859
        %v2076 = vunpack.c.h.b16 %v1859
        %v2077 = vunpack.c.l.b16 %v1860
        %v2078 = vunpack.c.h.b16 %v1860
        %v2079 = vunpack.c.l.b16 %v1861
        %v2080 = vunpack.c.h.b16 %v1861
        %v2081 = vunpack.c.l.b16 %v1862
        %v2082 = vunpack.c.h.b16 %v1862
        %v2083 = vunpack.c.l.b16 %v1863
        %v2084 = vunpack.c.h.b16 %v1863
        %v2085 = vunpack.c.l.b16 %v1864
        %v2086 = vunpack.c.h.b16 %v1864
        %v2087 = vunpack.c.l.b16 %v1865
        %v2088 = vunpack.c.h.b16 %v1865
        %v2089 = vunpack.c.l.b16 %v1866
        %v2090 = vunpack.c.h.b16 %v1866
        %v2091 = vunpack.c.l.b16 %v1867
        %v2092 = vunpack.c.h.b16 %v1867
        %v2093 = vunpack.c.l.b16 %v1868
        %v2094 = vunpack.c.h.b16 %v1868
        %v2095 = vunpack.c.l.b16 %v1869
        %v2096 = vunpack.c.h.b16 %v1869
        %v2097 = vunpack.c.l.b16 %v1870
        %v2098 = vunpack.c.h.b16 %v1870
        %v2099 = vunpack.c.l.b16 %v1871
        %v2100 = vunpack.c.h.b16 %v1871
        %v2101 = vunpack.c.l.b16 %v1872
        %v2102 = vunpack.c.h.b16 %v1872
        %v2103 = vpack.c.b16 %v2043, %v2039
        %v2104 = vpack.c.b16 %v2044, %v2040
        %v2105 = vpack.c.b16 %v2045, %v2041
        %v2106 = vpack.c.b16 %v2046, %v2042
        %v2107 = vpack.c.b16 %v2051, %v2047
        %v2108 = vpack.c.b16 %v2052, %v2048
        %v2109 = vpack.c.b16 %v2053, %v2049
        %v2110 = vpack.c.b16 %v2054, %v2050
        %v2111 = vpack.c.b16 %v2059, %v2055
        %v2112 = vpack.c.b16 %v2060, %v2056
        %v2113 = vpack.c.b16 %v2061, %v2057
        %v2114 = vpack.c.b16 %v2062, %v2058
        %v2115 = vpack.c.b16 %v2067, %v2063
        %v2116 = vpack.c.b16 %v2068, %v2064
        %v2117 = vpack.c.b16 %v2069, %v2065
        %v2118 = vpack.c.b16 %v2070, %v2066
        %v2119 = vpack.c.b16 %v2075, %v2071
        %v2120 = vpack.c.b16 %v2076, %v2072
        %v2121 = vpack.c.b16 %v2077, %v2073
        %v2122 = vpack.c.b16 %v2078, %v2074
        %v2123 = vpack.c.b16 %v2083, %v2079
        %v2124 = vpack.c.b16 %v2084, %v2080
        %v2125 = vpack.c.b16 %v2085, %v2081
        %v2126 = vpack.c.b16 %v2086, %v2082
        %v2127 = vpack.c.b16 %v2091, %v2087
        %v2128 = vpack.c.b16 %v2092, %v2088
        %v2129 = vpack.c.b16 %v2093, %v2089
        %v2130 = vpack.c.b16 %v2094, %v2090
        %v2131 = vpack.c.b16 %v2099, %v2095
        %v2132 = vpack.c.b16 %v2100, %v2096
        %v2133 = vpack.c.b16 %v2101, %v2097
        %v2134 = vpack.c.b16 %v2102, %v2098
        %v2271 = vunpack.c.l.b16 %v1873
        %v2272 = vunpack.c.h.b16 %v1873
        %v2273 = vunpack.c.l.b16 %v1874
        %v2274 = vunpack.c.h.b16 %v1874
        %v2275 = vunpack.c.l.b16 %v1875
        %v2276 = vunpack.c.h.b16 %v1875
        %v2277 = vunpack.c.l.b16 %v1876
        %v2278 = vunpack.c.h.b16 %v1876
        %v2279 = vunpack.c.l.b16 %v1877
        %v2280 = vunpack.c.h.b16 %v1877
        %v2281 = vunpack.c.l.b16 %v1878
        %v2282 = vunpack.c.h.b16 %v1878
        %v2283 = vunpack.c.l.b16 %v1879
        %v2284 = vunpack.c.h.b16 %v1879
        %v2285 = vunpack.c.l.b16 %v1880
        %v2286 = vunpack.c.h.b16 %v1880
        %v2287 = vunpack.c.l.b16 %v1881
        %v2288 = vunpack.c.h.b16 %v1881
        %v2289 = vunpack.c.l.b16 %v1882
        %v2290 = vunpack.c.h.b16 %v1882
        %v2291 = vunpack.c.l.b16 %v1883
        %v2292 = vunpack.c.h.b16 %v1883
        %v2293 = vunpack.c.l.b16 %v1884
        %v2294 = vunpack.c.h.b16 %v1884
        %v2295 = vunpack.c.l.b16 %v1885
        %v2296 = vunpack.c.h.b16 %v1885
        %v2297 = vunpack.c.l.b16 %v1886
        %v2298 = vunpack.c.h.b16 %v1886
        %v2299 = vunpack.c.l.b16 %v1887
        %v2300 = vunpack.c.h.b16 %v1887
        %v2301 = vunpack.c.l.b16 %v1888
        %v2302 = vunpack.c.h.b16 %v1888
        %v2303 = vunpack.c.l.b16 %v1889
        %v2304 = vunpack.c.h.b16 %v1889
        %v2305 = vunpack.c.l.b16 %v1890
        %v2306 = vunpack.c.h.b16 %v1890
        %v2307 = vunpack.c.l.b16 %v1891
        %v2308 = vunpack.c.h.b16 %v1891
        %v2309 = vunpack.c.l.b16 %v1892
        %v2310 = vunpack.c.h.b16 %v1892
        %v2311 = vunpack.c.l.b16 %v1893
        %v2312 = vunpack.c.h.b16 %v1893
        %v2313 = vunpack.c.l.b16 %v1894
        %v2314 = vunpack.c.h.b16 %v1894
        %v2315 = vunpack.c.l.b16 %v1895
        %v2316 = vunpack.c.h.b16 %v1895
        %v2317 = vunpack.c.l.b16 %v1896
        %v2318 = vunpack.c.h.b16 %v1896
        %v2319 = vunpack.c.l.b16 %v1897
        %v2320 = vunpack.c.h.b16 %v1897
        %v2321 = vunpack.c.l.b16 %v1898
        %v2322 = vunpack.c.h.b16 %v1898
        %v2323 = vunpack.c.l.b16 %v1899
        %v2324 = vunpack.c.h.b16 %v1899
        %v2325 = vunpack.c.l.b16 %v1900
        %v2326 = vunpack.c.h.b16 %v1900
        %v2327 = vunpack.c.l.b16 %v1901
        %v2328 = vunpack.c.h.b16 %v1901
        %v2329 = vunpack.c.l.b16 %v1902
        %v2330 = vunpack.c.h.b16 %v1902
        %v2331 = vunpack.c.l.b16 %v1903
        %v2332 = vunpack.c.h.b16 %v1903
        %v2333 = vunpack.c.l.b16 %v1904
        %v2334 = vunpack.c.h.b16 %v1904
        %v2335 = vunpack.c.l.b16 %v1905
        %v2336 = vunpack.c.h.b16 %v1905
        %v2337 = vunpack.c.l.b16 %v1906
        %v2338 = vunpack.c.h.b16 %v1906
        %v2339 = vunpack.c.l.b16 %v1907
        %v2340 = vunpack.c.h.b16 %v1907
        %v2341 = vunpack.c.l.b16 %v1908
        %v2342 = vunpack.c.h.b16 %v1908
        %v2343 = vunpack.c.l.b16 %v1909
        %v2344 = vunpack.c.h.b16 %v1909
        %v2345 = vunpack.c.l.b16 %v1910
        %v2346 = vunpack.c.h.b16 %v1910
        %v2347 = vunpack.c.l.b16 %v1911
        %v2348 = vunpack.c.h.b16 %v1911
        %v2349 = vunpack.c.l.b16 %v1912
        %v2350 = vunpack.c.h.b16 %v1912
        %v2351 = vunpack.c.l.b16 %v1913
        %v2352 = vunpack.c.h.b16 %v1913
        %v2353 = vunpack.c.l.b16 %v1914
        %v2354 = vunpack.c.h.b16 %v1914
        %v2355 = vunpack.c.l.b16 %v1915
        %v2356 = vunpack.c.h.b16 %v1915
        %v2357 = vunpack.c.l.b16 %v1916
        %v2358 = vunpack.c.h.b16 %v1916
        %v2359 = vunpack.c.l.b16 %v1917
        %v2360 = vunpack.c.h.b16 %v1917
        %v2361 = vunpack.c.l.b16 %v1918
        %v2362 = vunpack.c.h.b16 %v1918
        %v2363 = vunpack.c.l.b16 %v1919
        %v2364 = vunpack.c.h.b16 %v1919
        %v2365 = vunpack.c.l.b16 %v1920
        %v2366 = vunpack.c.h.b16 %v1920
        %v2367 = vunpack.c.l.b16 %v1921
        %v2368 = vunpack.c.h.b16 %v1921
        %v2369 = vunpack.c.l.b16 %v1922
        %v2370 = vunpack.c.h.b16 %v1922
        %v2371 = vunpack.c.l.b16 %v1923
        %v2372 = vunpack.c.h.b16 %v1923
        %v2373 = vunpack.c.l.b16 %v1924
        %v2374 = vunpack.c.h.b16 %v1924
        %v2375 = vunpack.c.l.b16 %v1925
        %v2376 = vunpack.c.h.b16 %v1925
        %v2377 = vunpack.c.l.b16 %v1926
        %v2378 = vunpack.c.h.b16 %v1926
        %v2379 = vunpack.c.l.b16 %v1927
        %v2380 = vunpack.c.h.b16 %v1927
        %v2381 = vunpack.c.l.b16 %v1928
        %v2382 = vunpack.c.h.b16 %v1928
        %v2383 = vunpack.c.l.b16 %v1929
        %v2384 = vunpack.c.h.b16 %v1929
        %v2385 = vunpack.c.l.b16 %v1930
        %v2386 = vunpack.c.h.b16 %v1930
        %v2387 = vunpack.c.l.b16 %v1931
        %v2388 = vunpack.c.h.b16 %v1931
        %v2389 = vunpack.c.l.b16 %v1932
        %v2390 = vunpack.c.h.b16 %v1932
        %v2391 = vunpack.c.l.b16 %v1933
        %v2392 = vunpack.c.h.b16 %v1933
        %v2393 = vunpack.c.l.b16 %v1934
        %v2394 = vunpack.c.h.b16 %v1934
        %v2395 = vunpack.c.l.b16 %v1935
        %v2396 = vunpack.c.h.b16 %v1935
        %v2397 = vunpack.c.l.b16 %v1936
        %v2398 = vunpack.c.h.b16 %v1936
        %v2399 = vunpack.c.l.b16 %v1937
        %v2400 = vunpack.c.h.b16 %v1937
        %v2401 = vunpack.c.l.b16 %v1938
        %v2402 = vunpack.c.h.b16 %v1938
        %v2403 = vunpack.c.l.b16 %v1939
        %v2404 = vunpack.c.h.b16 %v1939
        %v2405 = vunpack.c.l.b16 %v1940
        %v2406 = vunpack.c.h.b16 %v1940
        %v2407 = vunpack.c.l.b16 %v1941
        %v2408 = vunpack.c.h.b16 %v1941
        %v2409 = vunpack.c.l.b16 %v1942
        %v2410 = vunpack.c.h.b16 %v1942
        %v2411 = vunpack.c.l.b16 %v1943
        %v2412 = vunpack.c.h.b16 %v1943
        %v2413 = vunpack.c.l.b16 %v1944
        %v2414 = vunpack.c.h.b16 %v1944
        %v2415 = vunpack.c.l.b16 %v1945
        %v2416 = vunpack.c.h.b16 %v1945
        %v2417 = vunpack.c.l.b16 %v1946
        %v2418 = vunpack.c.h.b16 %v1946
        %v2419 = vunpack.c.l.b16 %v1947
        %v2420 = vunpack.c.h.b16 %v1947
        %v2421 = vunpack.c.l.b16 %v1948
        %v2422 = vunpack.c.h.b16 %v1948
        %v2423 = vunpack.c.l.b16 %v1949
        %v2424 = vunpack.c.h.b16 %v1949
        %v2425 = vunpack.c.l.b16 %v1950
        %v2426 = vunpack.c.h.b16 %v1950
        %v2427 = vunpack.c.l.b16 %v1951
        %v2428 = vunpack.c.h.b16 %v1951
        %v2429 = vunpack.c.l.b16 %v1952
        %v2430 = vunpack.c.h.b16 %v1952
        %v2431 = vunpack.c.l.b16 %v1953
        %v2432 = vunpack.c.h.b16 %v1953
        %v2433 = vunpack.c.l.b16 %v1954
        %v2434 = vunpack.c.h.b16 %v1954
        %v2435 = vunpack.c.l.b16 %v1955
        %v2436 = vunpack.c.h.b16 %v1955
        %v2437 = vunpack.c.l.b16 %v1956
        %v2438 = vunpack.c.h.b16 %v1956
        %v2439 = vunpack.c.l.b16 %v1957
        %v2440 = vunpack.c.h.b16 %v1957
        %v2441 = vunpack.c.l.b16 %v1958
        %v2442 = vunpack.c.h.b16 %v1958
        %v2443 = vunpack.c.l.b16 %v1959
        %v2444 = vunpack.c.h.b16 %v1959
        %v2445 = vunpack.c.l.b16 %v1960
        %v2446 = vunpack.c.h.b16 %v1960
        %v2447 = vunpack.c.l.b16 %v1961
        %v2448 = vunpack.c.h.b16 %v1961
        %v2449 = vunpack.c.l.b16 %v1962
        %v2450 = vunpack.c.h.b16 %v1962
        %v2451 = vunpack.c.l.b16 %v1963
        %v2452 = vunpack.c.h.b16 %v1963
        %v2453 = vunpack.c.l.b16 %v1964
        %v2454 = vunpack.c.h.b16 %v1964
        %v2455 = vunpack.c.l.b16 %v1965
        %v2456 = vunpack.c.h.b16 %v1965
        %v2457 = vunpack.c.l.b16 %v1966
        %v2458 = vunpack.c.h.b16 %v1966
        %v2459 = vunpack.c.l.b16 %v1967
        %v2460 = vunpack.c.h.b16 %v1967
        %v2461 = vunpack.c.l.b16 %v1968
        %v2462 = vunpack.c.h.b16 %v1968
        %v2463 = vunpack.c.l.b16 %v1969
        %v2464 = vunpack.c.h.b16 %v1969
        %v2465 = vunpack.c.l.b16 %v1970
        %v2466 = vunpack.c.h.b16 %v1970
        %v2467 = vunpack.c.l.b16 %v1971
        %v2468 = vunpack.c.h.b16 %v1971
        %v2469 = vunpack.c.l.b16 %v1972
        %v2470 = vunpack.c.h.b16 %v1972
        %v2471 = vunpack.c.l.b16 %v1973
        %v2472 = vunpack.c.h.b16 %v1973
        %v2473 = vunpack.c.l.b16 %v1974
        %v2474 = vunpack.c.h.b16 %v1974
        %v2475 = vunpack.c.l.b16 %v1975
        %v2476 = vunpack.c.h.b16 %v1975
        %v2477 = vunpack.c.l.b16 %v1976
        %v2478 = vunpack.c.h.b16 %v1976
        %v2479 = vunpack.c.l.b16 %v1977
        %v2480 = vunpack.c.h.b16 %v1977
        %v2481 = vunpack.c.l.b16 %v1978
        %v2482 = vunpack.c.h.b16 %v1978
        %v2483 = vunpack.c.l.b16 %v1979
        %v2484 = vunpack.c.h.b16 %v1979
        %v2485 = vunpack.c.l.b16 %v1980
        %v2486 = vunpack.c.h.b16 %v1980
        %v2487 = vunpack.c.l.b16 %v1981
        %v2488 = vunpack.c.h.b16 %v1981
        %v2489 = vunpack.c.l.b16 %v1982
        %v2490 = vunpack.c.h.b16 %v1982
        %v2491 = vunpack.c.l.b16 %v1983
        %v2492 = vunpack.c.h.b16 %v1983
        %v2493 = vunpack.c.l.b16 %v1984
        %v2494 = vunpack.c.h.b16 %v1984
        %v2495 = vpack.c.b16 %v2275, %v2271
        %v2496 = vpack.c.b16 %v2276, %v2272
        %v2497 = vpack.c.b16 %v2277, %v2273
        %v2498 = vpack.c.b16 %v2278, %v2274
        %v2499 = vpack.c.b16 %v2283, %v2279
        %v2500 = vpack.c.b16 %v2284, %v2280
        %v2501 = vpack.c.b16 %v2285, %v2281
        %v2502 = vpack.c.b16 %v2286, %v2282
        %v2503 = vpack.c.b16 %v2291, %v2287
        %v2504 = vpack.c.b16 %v2292, %v2288
        %v2505 = vpack.c.b16 %v2293, %v2289
        %v2506 = vpack.c.b16 %v2294, %v2290
        %v2507 = vpack.c.b16 %v2299, %v2295
        %v2508 = vpack.c.b16 %v2300, %v2296
        %v2509 = vpack.c.b16 %v2301, %v2297
        %v2510 = vpack.c.b16 %v2302, %v2298
        %v2511 = vpack.c.b16 %v2307, %v2303
        %v2512 = vpack.c.b16 %v2308, %v2304
        %v2513 = vpack.c.b16 %v2309, %v2305
        %v2514 = vpack.c.b16 %v2310, %v2306
        %v2515 = vpack.c.b16 %v2315, %v2311
        %v2516 = vpack.c.b16 %v2316, %v2312
        %v2517 = vpack.c.b16 %v2317, %v2313
        %v2518 = vpack.c.b16 %v2318, %v2314
        %v2519 = vpack.c.b16 %v2323, %v2319
        %v2520 = vpack.c.b16 %v2324, %v2320
        %v2521 = vpack.c.b16 %v2325, %v2321
        %v2522 = vpack.c.b16 %v2326, %v2322
        %v2523 = vpack.c.b16 %v2331, %v2327
        %v2524 = vpack.c.b16 %v2332, %v2328
        %v2525 = vpack.c.b16 %v2333, %v2329
        %v2526 = vpack.c.b16 %v2334, %v2330
        %v2527 = vpack.c.b16 %v2339, %v2335
        %v2528 = vpack.c.b16 %v2340, %v2336
        %v2529 = vpack.c.b16 %v2341, %v2337
        %v2530 = vpack.c.b16 %v2342, %v2338
        %v2531 = vpack.c.b16 %v2347, %v2343
        %v2532 = vpack.c.b16 %v2348, %v2344
        %v2533 = vpack.c.b16 %v2349, %v2345
        %v2534 = vpack.c.b16 %v2350, %v2346
        %v2535 = vpack.c.b16 %v2355, %v2351
        %v2536 = vpack.c.b16 %v2356, %v2352
        %v2537 = vpack.c.b16 %v2357, %v2353
        %v2538 = vpack.c.b16 %v2358, %v2354
        %v2539 = vpack.c.b16 %v2363, %v2359
        %v2540 = vpack.c.b16 %v2364, %v2360
        %v2541 = vpack.c.b16 %v2365, %v2361
        %v2542 = vpack.c.b16 %v2366, %v2362
        %v2543 = vpack.c.b16 %v2371, %v2367
        %v2544 = vpack.c.b16 %v2372, %v2368
        %v2545 = vpack.c.b16 %v2373, %v2369
        %v2546 = vpack.c.b16 %v2374, %v2370
        %v2547 = vpack.c.b16 %v2379, %v2375
        %v2548 = vpack.c.b16 %v2380, %v2376
        %v2549 = vpack.c.b16 %v2381, %v2377
        %v2550 = vpack.c.b16 %v2382, %v2378
        %v2551 = vpack.c.b16 %v2387, %v2383
        %v2552 = vpack.c.b16 %v2388, %v2384
        %v2553 = vpack.c.b16 %v2389, %v2385
        %v2554 = vpack.c.b16 %v2390, %v2386
        %v2555 = vpack.c.b16 %v2395, %v2391
        %v2556 = vpack.c.b16 %v2396, %v2392
        %v2557 = vpack.c.b16 %v2397, %v2393
        %v2558 = vpack.c.b16 %v2398, %v2394
        %v2559 = vpack.c.b16 %v2403, %v2399
        %v2560 = vpack.c.b16 %v2404, %v2400
        %v2561 = vpack.c.b16 %v2405, %v2401
        %v2562 = vpack.c.b16 %v2406, %v2402
        %v2563 = vpack.c.b16 %v2411, %v2407
        %v2564 = vpack.c.b16 %v2412, %v2408
        %v2565 = vpack.c.b16 %v2413, %v2409
        %v2566 = vpack.c.b16 %v2414, %v2410
        %v2567 = vpack.c.b16 %v2419, %v2415
        %v2568 = vpack.c.b16 %v2420, %v2416
        %v2569 = vpack.c.b16 %v2421, %v2417
        %v2570 = vpack.c.b16 %v2422, %v2418
        %v2571 = vpack.c.b16 %v2427, %v2423
        %v2572 = vpack.c.b16 %v2428, %v2424
        %v2573 = vpack.c.b16 %v2429, %v2425
        %v2574 = vpack.c.b16 %v2430, %v2426
        %v2575 = vpack.c.b16 %v2435, %v2431
        %v2576 = vpack.c.b16 %v2436, %v2432
        %v2577 = vpack.c.b16 %v2437, %v2433
        %v2578 = vpack.c.b16 %v2438, %v2434
        %v2579 = vpack.c.b16 %v2443, %v2439
        %v2580 = vpack.c.b16 %v2444, %v2440
        %v2581 = vpack.c.b16 %v2445, %v2441
        %v2582 = vpack.c.b16 %v2446, %v2442
        %v2583 = vpack.c.b16 %v2451, %v2447
        %v2584 = vpack.c.b16 %v2452, %v2448
        %v2585 = vpack.c.b16 %v2453, %v2449
        %v2586 = vpack.c.b16 %v2454, %v2450
        %v2587 = vpack.c.b16 %v2459, %v2455
        %v2588 = vpack.c.b16 %v2460, %v2456
        %v2589 = vpack.c.b16 %v2461, %v2457
        %v2590 = vpack.c.b16 %v2462, %v2458
        %v2591 = vpack.c.b16 %v2467, %v2463
        %v2592 = vpack.c.b16 %v2468, %v2464
        %v2593 = vpack.c.b16 %v2469, %v2465
        %v2594 = vpack.c.b16 %v2470, %v2466
        %v2595 = vpack.c.b16 %v2475, %v2471
        %v2596 = vpack.c.b16 %v2476, %v2472
        %v2597 = vpack.c.b16 %v2477, %v2473
        %v2598 = vpack.c.b16 %v2478, %v2474
        %v2599 = vpack.c.b16 %v2483, %v2479
        %v2600 = vpack.c.b16 %v2484, %v2480
        %v2601 = vpack.c.b16 %v2485, %v2481
        %v2602 = vpack.c.b16 %v2486, %v2482
        %v2603 = vpack.c.b16 %v2491, %v2487
        %v2604 = vpack.c.b16 %v2492, %v2488
        %v2605 = vpack.c.b16 %v2493, %v2489
        %v2606 = vpack.c.b16 %v2494, %v2490
        %vm2719 = vcmask 523264
        %v2721 = vsel %vm2719, %v2106, 0
        %v2724 = vsel %vm2719, %v2110, 0
        %v2727 = vsel %vm2719, %v2114, 0
        %v2730 = vsel %vm2719, %v2118, 0
        %v2733 = vsel %vm2719, %v2122, 0
        %v2736 = vsel %vm2719, %v2126, 0
        %v2739 = vsel %vm2719, %v2130, 0
        %v2742 = vsel %vm2719, %v2134, 0
        %2744 = vmatprep.subr.bf16.mxu0 %v2496
        %2745 = vmatpush1.bf16.msra.mxu0 %v2495
        %2746 = vmatprep.subr.bf16.mxu0 %v2500
        %2747 = vmatpush1.bf16.msra.mxu0 %v2499
        %2748 = vmatprep.subr.bf16.mxu0 %v2504
        %2749 = vmatpush1.bf16.msra.mxu0 %v2503
        %2750 = vmatprep.subr.bf16.mxu0 %v2508
        %2751 = vmatpush1.bf16.msra.mxu0 %v2507
        %2752 = vmatprep.subr.bf16.mxu0 %v2512
        %2753 = vmatpush1.bf16.msra.mxu0 %v2511
        %2754 = vmatprep.subr.bf16.mxu0 %v2516
        %2755 = vmatpush1.bf16.msra.mxu0 %v2515
        %2756 = vmatprep.subr.bf16.mxu0 %v2520
        %2757 = vmatpush1.bf16.msra.mxu0 %v2519
        %2758 = vmatprep.subr.bf16.mxu0 %v2524
        %2759 = vmatpush1.bf16.msra.mxu0 %v2523
        %2760 = vmatprep.subr.bf16.mxu0 %v2528
        %2761 = vmatpush1.bf16.msra.mxu0 %v2527
        %2762 = vmatprep.subr.bf16.mxu0 %v2532
        %2763 = vmatpush1.bf16.msra.mxu0 %v2531
        %2764 = vmatprep.subr.bf16.mxu0 %v2536
        %2765 = vmatpush1.bf16.msra.mxu0 %v2535
        %2766 = vmatprep.subr.bf16.mxu0 %v2540
        %2767 = vmatpush1.bf16.msra.mxu0 %v2539
        %2768 = vmatprep.subr.bf16.mxu0 %v2544
        %2769 = vmatpush1.bf16.msra.mxu0 %v2543
        %2770 = vmatprep.subr.bf16.mxu0 %v2548
        %2771 = vmatpush1.bf16.msra.mxu0 %v2547
        %2772 = vmatprep.subr.bf16.mxu0 %v2552
        %2773 = vmatpush1.bf16.msra.mxu0 %v2551
        %2774 = vmatprep.subr.bf16.mxu0 %v2556
        %2775 = vmatpush1.bf16.msra.mxu0 %v2555
        %2776 = vmatprep.mubr.bf16.mxu0 %v2104
        %2777 = vmatmul.mubr.bf16.gmra.mrb[0].mxu0 %v2103
        %v2778 = vpop.f32.mrb[0].mxu0
        %v2779 = vadd.f32 %v1990, %v2778
        %v2780 = vpop.f32.mrb[0].mxu0
        %v2781 = vadd.f32 %v1994, %v2780
        %v2782 = vpop.f32.mrb[0].mxu0
        %v2783 = vadd.f32 %v1990, %v2782
        %v2784 = vpop.f32.mrb[0].mxu0
        %v2785 = vadd.f32 %v1994, %v2784
        %2786 = vmatprep.mubr.bf16.mxu0 %v2108
        %2787 = vmatmul.mubr.bf16.gmra.mrb[0].mxu0 %v2107
        %v2788 = vpop.f32.mrb[0].mxu0
        %v2789 = vadd.f32 %v1990, %v2788
        %v2790 = vpop.f32.mrb[0].mxu0
        %v2791 = vadd.f32 %v1994, %v2790
        %v2792 = vpop.f32.mrb[0].mxu0
        %v2793 = vadd.f32 %v1990, %v2792
        %v2794 = vpop.f32.mrb[0].mxu0
        %v2795 = vadd.f32 %v1994, %v2794
        %2796 = vmatprep.mubr.bf16.mxu0 %v2112
        %2797 = vmatmul.mubr.bf16.gmra.mrb[0].mxu0 %v2111
        %v2798 = vpop.f32.mrb[0].mxu0
        %v2799 = vadd.f32 %v1990, %v2798
        %v2800 = vpop.f32.mrb[0].mxu0
        %v2801 = vadd.f32 %v1994, %v2800
        %v2802 = vpop.f32.mrb[0].mxu0
        %v2803 = vadd.f32 %v1990, %v2802
        %v2804 = vpop.f32.mrb[0].mxu0
        %v2805 = vadd.f32 %v1994, %v2804
        %2806 = vmatprep.mubr.bf16.mxu0 %v2116
        %2807 = vmatmul.mubr.bf16.gmra.mrb[0].mxu0 %v2115
        %v2808 = vpop.f32.mrb[0].mxu0
        %v2809 = vadd.f32 %v1990, %v2808
        %v2810 = vpop.f32.mrb[0].mxu0
        %v2811 = vadd.f32 %v1994, %v2810
        %v2812 = vpop.f32.mrb[0].mxu0
        %v2813 = vadd.f32 %v1990, %v2812
        %v2814 = vpop.f32.mrb[0].mxu0
        %v2815 = vadd.f32 %v1994, %v2814
        %2816 = vmatprep.mubr.bf16.mxu0 %v2120
        %2817 = vmatmul.mubr.bf16.gmra.mrb[0].mxu0 %v2119
        %v2818 = vpop.f32.mrb[0].mxu0
        %v2819 = vadd.f32 %v1990, %v2818
        %v2820 = vpop.f32.mrb[0].mxu0
        %v2821 = vadd.f32 %v1994, %v2820
        %v2822 = vpop.f32.mrb[0].mxu0
        %v2823 = vadd.f32 %v1990, %v2822
        %v2824 = vpop.f32.mrb[0].mxu0
        %v2825 = vadd.f32 %v1994, %v2824
        %2826 = vmatprep.mubr.bf16.mxu0 %v2124
        %2827 = vmatmul.mubr.bf16.gmra.mrb[0].mxu0 %v2123
        %v2828 = vpop.f32.mrb[0].mxu0
        %v2829 = vadd.f32 %v1990, %v2828
        %v2830 = vpop.f32.mrb[0].mxu0
        %v2831 = vadd.f32 %v1994, %v2830
        %v2832 = vpop.f32.mrb[0].mxu0
        %v2833 = vadd.f32 %v1990, %v2832
        %v2834 = vpop.f32.mrb[0].mxu0
        %v2835 = vadd.f32 %v1994, %v2834
        %2836 = vmatprep.mubr.bf16.mxu0 %v2128
        %2837 = vmatmul.mubr.bf16.gmra.mrb[0].mxu0 %v2127
        %v2838 = vpop.f32.mrb[0].mxu0
        %v2839 = vadd.f32 %v1990, %v2838
        %v2840 = vpop.f32.mrb[0].mxu0
        %v2841 = vadd.f32 %v1994, %v2840
        %v2842 = vpop.f32.mrb[0].mxu0
        %v2843 = vadd.f32 %v1990, %v2842
        %v2844 = vpop.f32.mrb[0].mxu0
        %v2845 = vadd.f32 %v1994, %v2844
        %2846 = vmatprep.mubr.bf16.mxu0 %v2132
        %2847 = vmatmul.mubr.bf16.gmra.mrb[0].mxu0 %v2131
        %v2848 = vpop.f32.mrb[0].mxu0
        %v2849 = vadd.f32 %v1990, %v2848
        %v2850 = vpop.f32.mrb[0].mxu0
        %v2851 = vadd.f32 %v1994, %v2850
        %v2852 = vpop.f32.mrb[0].mxu0
        %v2853 = vadd.f32 %v1990, %v2852
        %v2854 = vpop.f32.mrb[0].mxu0
        %v2855 = vadd.f32 %v1994, %v2854
        %2856 = vdwg.mxu0
        %2857 = vmatprep.subr.bf16.mxu0 %v2560
        %2858 = vmatpush1.bf16.msra.mxu0 %v2559
        %2859 = vmatprep.subr.bf16.mxu0 %v2564
        %2860 = vmatpush1.bf16.msra.mxu0 %v2563
        %2861 = vmatprep.subr.bf16.mxu0 %v2568
        %2862 = vmatpush1.bf16.msra.mxu0 %v2567
        %2863 = vmatprep.subr.bf16.mxu0 %v2572
        %2864 = vmatpush1.bf16.msra.mxu0 %v2571
        %2865 = vmatprep.subr.bf16.mxu0 %v2576
        %2866 = vmatpush1.bf16.msra.mxu0 %v2575
        %2867 = vmatprep.subr.bf16.mxu0 %v2580
        %2868 = vmatpush1.bf16.msra.mxu0 %v2579
        %2869 = vmatprep.subr.bf16.mxu0 %v2584
        %2870 = vmatpush1.bf16.msra.mxu0 %v2583
        %2871 = vmatprep.subr.bf16.mxu0 %v2588
        %2872 = vmatpush1.bf16.msra.mxu0 %v2587
        %2873 = vmatprep.subr.bf16.mxu0 %v2592
        %2874 = vmatpush1.bf16.msra.mxu0 %v2591
        %2875 = vmatprep.subr.bf16.mxu0 %v2596
        %2876 = vmatpush1.bf16.msra.mxu0 %v2595
        %2877 = vmatprep.subr.bf16.mxu0 %v2600
        %2878 = vmatpush1.bf16.msra.mxu0 %v2599
        %2879 = vmatprep.subr.bf16.mxu0 %v2604
        %2880 = vmatpush1.bf16.msra.mxu0 %v2603
        %2881 = vmatprep.subr.bf16.mxu0 0
        %2882 = vmatpush1.bf16.msra.mxu0 0
        %2883 = vmatprep.subr.bf16.mxu0 0
        %2884 = vmatpush1.bf16.msra.mxu0 0
        %2885 = vmatprep.subr.bf16.mxu0 0
        %2886 = vmatpush1.bf16.msra.mxu0 0
        %2887 = vmatprep.subr.bf16.mxu0 0
        %2888 = vmatpush1.bf16.msra.mxu0 0
        %2889 = vmatprep.mubr.bf16.mxu0 %v2721
        %2890 = vmatmul.mubr.bf16.gmra.mrb[0].mxu0 %v2105
        %v2891 = vpop.f32.mrb[0].mxu0
        %v2892 = vadd.f32 %v2779, %v2891
        %v2893 = vpop.f32.mrb[0].mxu0
        %v2894 = vadd.f32 %v2781, %v2893
        %v2895 = vpop.f32.mrb[0].mxu0
        %v2896 = vadd.f32 %v2783, %v2895
        %v2897 = vpop.f32.mrb[0].mxu0
        %v2898 = vadd.f32 %v2785, %v2897
        %2899 = vmatprep.mubr.bf16.mxu0 %v2724
        %2900 = vmatmul.mubr.bf16.gmra.mrb[0].mxu0 %v2109
        %v2901 = vpop.f32.mrb[0].mxu0
        %v2902 = vadd.f32 %v2789, %v2901
        %v2903 = vpop.f32.mrb[0].mxu0
        %v2904 = vadd.f32 %v2791, %v2903
        %v2905 = vpop.f32.mrb[0].mxu0
        %v2906 = vadd.f32 %v2793, %v2905
        %v2907 = vpop.f32.mrb[0].mxu0
        %v2908 = vadd.f32 %v2795, %v2907
        %2909 = vmatprep.mubr.bf16.mxu0 %v2727
        %2910 = vmatmul.mubr.bf16.gmra.mrb[0].mxu0 %v2113
        %v2911 = vpop.f32.mrb[0].mxu0
        %v2912 = vadd.f32 %v2799, %v2911
        %v2913 = vpop.f32.mrb[0].mxu0
        %v2914 = vadd.f32 %v2801, %v2913
        %v2915 = vpop.f32.mrb[0].mxu0
        %v2916 = vadd.f32 %v2803, %v2915
        %v2917 = vpop.f32.mrb[0].mxu0
        %v2918 = vadd.f32 %v2805, %v2917
        %2919 = vmatprep.mubr.bf16.mxu0 %v2730
        %2920 = vmatmul.mubr.bf16.gmra.mrb[0].mxu0 %v2117
        %v2921 = vpop.f32.mrb[0].mxu0
        %v2922 = vadd.f32 %v2809, %v2921
        %v2923 = vpop.f32.mrb[0].mxu0
        %v2924 = vadd.f32 %v2811, %v2923
        %v2925 = vpop.f32.mrb[0].mxu0
        %v2926 = vadd.f32 %v2813, %v2925
        %v2927 = vpop.f32.mrb[0].mxu0
        %v2928 = vadd.f32 %v2815, %v2927
        %2929 = vmatprep.mubr.bf16.mxu0 %v2733
        %2930 = vmatmul.mubr.bf16.gmra.mrb[0].mxu0 %v2121
        %v2931 = vpop.f32.mrb[0].mxu0
        %v2932 = vadd.f32 %v2819, %v2931
        %v2933 = vpop.f32.mrb[0].mxu0
        %v2934 = vadd.f32 %v2821, %v2933
        %v2935 = vpop.f32.mrb[0].mxu0
        %v2936 = vadd.f32 %v2823, %v2935
        %v2937 = vpop.f32.mrb[0].mxu0
        %v2938 = vadd.f32 %v2825, %v2937
        %2939 = vmatprep.mubr.bf16.mxu0 %v2736
        %2940 = vmatmul.mubr.bf16.gmra.mrb[0].mxu0 %v2125
        %v2941 = vpop.f32.mrb[0].mxu0
        %v2942 = vadd.f32 %v2829, %v2941
        %v2943 = vpop.f32.mrb[0].mxu0
        %v2944 = vadd.f32 %v2831, %v2943
        %v2945 = vpop.f32.mrb[0].mxu0
        %v2946 = vadd.f32 %v2833, %v2945
        %v2947 = vpop.f32.mrb[0].mxu0
        %v2948 = vadd.f32 %v2835, %v2947
        %2949 = vmatprep.mubr.bf16.mxu0 %v2739
        %2950 = vmatmul.mubr.bf16.gmra.mrb[0].mxu0 %v2129
        %v2951 = vpop.f32.mrb[0].mxu0
        %v2952 = vadd.f32 %v2839, %v2951
        %v2953 = vpop.f32.mrb[0].mxu0
        %v2954 = vadd.f32 %v2841, %v2953
        %v2955 = vpop.f32.mrb[0].mxu0
        %v2956 = vadd.f32 %v2843, %v2955
        %v2957 = vpop.f32.mrb[0].mxu0
        %v2958 = vadd.f32 %v2845, %v2957
        %2959 = vmatprep.mubr.bf16.mxu0 %v2742
        %2960 = vmatmul.mubr.bf16.gmra.mrb[0].mxu0 %v2133
        %v2961 = vpop.f32.mrb[0].mxu0
        %v2962 = vadd.f32 %v2849, %v2961
        %v2963 = vpop.f32.mrb[0].mxu0
        %v2964 = vadd.f32 %v2851, %v2963
        %v2965 = vpop.f32.mrb[0].mxu0
        %v2966 = vadd.f32 %v2853, %v2965
        %v2967 = vpop.f32.mrb[0].mxu0
        %v2968 = vadd.f32 %v2855, %v2967
        %2969 = vdwg.mxu0
        %2970 = vmatprep.subr.bf16.mxu0 %v2498
        %2971 = vmatpush1.bf16.msra.mxu0 %v2497
        %2972 = vmatprep.subr.bf16.mxu0 %v2502
        %2973 = vmatpush1.bf16.msra.mxu0 %v2501
        %2974 = vmatprep.subr.bf16.mxu0 %v2506
        %2975 = vmatpush1.bf16.msra.mxu0 %v2505
        %2976 = vmatprep.subr.bf16.mxu0 %v2510
        %2977 = vmatpush1.bf16.msra.mxu0 %v2509
        %2978 = vmatprep.subr.bf16.mxu0 %v2514
        %2979 = vmatpush1.bf16.msra.mxu0 %v2513
        %2980 = vmatprep.subr.bf16.mxu0 %v2518
        %2981 = vmatpush1.bf16.msra.mxu0 %v2517
        %2982 = vmatprep.subr.bf16.mxu0 %v2522
        %2983 = vmatpush1.bf16.msra.mxu0 %v2521
        %2984 = vmatprep.subr.bf16.mxu0 %v2526
        %2985 = vmatpush1.bf16.msra.mxu0 %v2525
        %2986 = vmatprep.subr.bf16.mxu0 %v2530
        %2987 = vmatpush1.bf16.msra.mxu0 %v2529
        %2988 = vmatprep.subr.bf16.mxu0 %v2534
        %2989 = vmatpush1.bf16.msra.mxu0 %v2533
        %2990 = vmatprep.subr.bf16.mxu0 %v2538
        %2991 = vmatpush1.bf16.msra.mxu0 %v2537
        %2992 = vmatprep.subr.bf16.mxu0 %v2542
        %2993 = vmatpush1.bf16.msra.mxu0 %v2541
        %2994 = vmatprep.subr.bf16.mxu0 %v2546
        %2995 = vmatpush1.bf16.msra.mxu0 %v2545
        %2996 = vmatprep.subr.bf16.mxu0 %v2550
        %2997 = vmatpush1.bf16.msra.mxu0 %v2549
        %2998 = vmatprep.subr.bf16.mxu0 %v2554
        %2999 = vmatpush1.bf16.msra.mxu0 %v2553
        %3000 = vmatprep.subr.bf16.mxu0 %v2558
        %3001 = vmatpush1.bf16.msra.mxu0 %v2557
        %3002 = vmatprep.mubr.bf16.mxu0 %v2104
        %3003 = vmatmul.mubr.bf16.gmra.mrb[0].mxu0 %v2103
        %v3004 = vpop.f32.mrb[0].mxu0
        %v3005 = vadd.f32 %v1998, %v3004
        %v3006 = vpop.f32.mrb[0].mxu0
        %v3007 = vadd.f32 %v2002, %v3006
        %v3008 = vpop.f32.mrb[0].mxu0
        %v3009 = vadd.f32 %v1998, %v3008
        %v3010 = vpop.f32.mrb[0].mxu0
        %v3011 = vadd.f32 %v2002, %v3010
        %3012 = vmatprep.mubr.bf16.mxu0 %v2108
        %3013 = vmatmul.mubr.bf16.gmra.mrb[0].mxu0 %v2107
        %v3014 = vpop.f32.mrb[0].mxu0
        %v3015 = vadd.f32 %v1998, %v3014
        %v3016 = vpop.f32.mrb[0].mxu0
        %v3017 = vadd.f32 %v2002, %v3016
        %v3018 = vpop.f32.mrb[0].mxu0
        %v3019 = vadd.f32 %v1998, %v3018
        %v3020 = vpop.f32.mrb[0].mxu0
        %v3021 = vadd.f32 %v2002, %v3020
        %3022 = vmatprep.mubr.bf16.mxu0 %v2112
        %3023 = vmatmul.mubr.bf16.gmra.mrb[0].mxu0 %v2111
        %v3024 = vpop.f32.mrb[0].mxu0
        %v3025 = vadd.f32 %v1998, %v3024
        %v3026 = vpop.f32.mrb[0].mxu0
        %v3027 = vadd.f32 %v2002, %v3026
        %v3028 = vpop.f32.mrb[0].mxu0
        %v3029 = vadd.f32 %v1998, %v3028
        %v3030 = vpop.f32.mrb[0].mxu0
        %v3031 = vadd.f32 %v2002, %v3030
        %3032 = vmatprep.mubr.bf16.mxu0 %v2116
        %3033 = vmatmul.mubr.bf16.gmra.mrb[0].mxu0 %v2115
        %v3034 = vpop.f32.mrb[0].mxu0
        %v3035 = vadd.f32 %v1998, %v3034
        %v3036 = vpop.f32.mrb[0].mxu0
        %v3037 = vadd.f32 %v2002, %v3036
        %v3038 = vpop.f32.mrb[0].mxu0
        %v3039 = vadd.f32 %v1998, %v3038
        %v3040 = vpop.f32.mrb[0].mxu0
        %v3041 = vadd.f32 %v2002, %v3040
        %3042 = vmatprep.mubr.bf16.mxu0 %v2120
        %3043 = vmatmul.mubr.bf16.gmra.mrb[0].mxu0 %v2119
        %v3044 = vpop.f32.mrb[0].mxu0
        %v3045 = vadd.f32 %v1998, %v3044
        %v3046 = vpop.f32.mrb[0].mxu0
        %v3047 = vadd.f32 %v2002, %v3046
        %v3048 = vpop.f32.mrb[0].mxu0
        %v3049 = vadd.f32 %v1998, %v3048
        %v3050 = vpop.f32.mrb[0].mxu0
        %v3051 = vadd.f32 %v2002, %v3050
        %3052 = vmatprep.mubr.bf16.mxu0 %v2124
        %3053 = vmatmul.mubr.bf16.gmra.mrb[0].mxu0 %v2123
        %v3054 = vpop.f32.mrb[0].mxu0
        %v3055 = vadd.f32 %v1998, %v3054
        %v3056 = vpop.f32.mrb[0].mxu0
        %v3057 = vadd.f32 %v2002, %v3056
        %v3058 = vpop.f32.mrb[0].mxu0
        %v3059 = vadd.f32 %v1998, %v3058
        %v3060 = vpop.f32.mrb[0].mxu0
        %v3061 = vadd.f32 %v2002, %v3060
        %3062 = vmatprep.mubr.bf16.mxu0 %v2128
        %3063 = vmatmul.mubr.bf16.gmra.mrb[0].mxu0 %v2127
        %v3064 = vpop.f32.mrb[0].mxu0
        %v3065 = vadd.f32 %v1998, %v3064
        %v3066 = vpop.f32.mrb[0].mxu0
        %v3067 = vadd.f32 %v2002, %v3066
        %v3068 = vpop.f32.mrb[0].mxu0
        %v3069 = vadd.f32 %v1998, %v3068
        %v3070 = vpop.f32.mrb[0].mxu0
        %v3071 = vadd.f32 %v2002, %v3070
        %3072 = vmatprep.mubr.bf16.mxu0 %v2132
        %3073 = vmatmul.mubr.bf16.gmra.mrb[0].mxu0 %v2131
        %v3074 = vpop.f32.mrb[0].mxu0
        %v3075 = vadd.f32 %v1998, %v3074
        %v3076 = vpop.f32.mrb[0].mxu0
        %v3077 = vadd.f32 %v2002, %v3076
        %v3078 = vpop.f32.mrb[0].mxu0
        %v3079 = vadd.f32 %v1998, %v3078
        %v3080 = vpop.f32.mrb[0].mxu0
        %v3081 = vadd.f32 %v2002, %v3080
        %3082 = vdwg.mxu0
        %3083 = vmatprep.subr.bf16.mxu0 %v2562
        %3084 = vmatpush1.bf16.msra.mxu0 %v2561
        %3085 = vmatprep.subr.bf16.mxu0 %v2566
        %3086 = vmatpush1.bf16.msra.mxu0 %v2565
        %3087 = vmatprep.subr.bf16.mxu0 %v2570
        %3088 = vmatpush1.bf16.msra.mxu0 %v2569
        %3089 = vmatprep.subr.bf16.mxu0 %v2574
        %3090 = vmatpush1.bf16.msra.mxu0 %v2573
        %3091 = vmatprep.subr.bf16.mxu0 %v2578
        %3092 = vmatpush1.bf16.msra.mxu0 %v2577
        %3093 = vmatprep.subr.bf16.mxu0 %v2582
        %3094 = vmatpush1.bf16.msra.mxu0 %v2581
        %3095 = vmatprep.subr.bf16.mxu0 %v2586
        %3096 = vmatpush1.bf16.msra.mxu0 %v2585
        %3097 = vmatprep.subr.bf16.mxu0 %v2590
        %3098 = vmatpush1.bf16.msra.mxu0 %v2589
        %3099 = vmatprep.subr.bf16.mxu0 %v2594
        %3100 = vmatpush1.bf16.msra.mxu0 %v2593
        %3101 = vmatprep.subr.bf16.mxu0 %v2598
        %3102 = vmatpush1.bf16.msra.mxu0 %v2597
        %3103 = vmatprep.subr.bf16.mxu0 %v2602
        %3104 = vmatpush1.bf16.msra.mxu0 %v2601
        %3105 = vmatprep.subr.bf16.mxu0 %v2606
        %3106 = vmatpush1.bf16.msra.mxu0 %v2605
        %3107 = vmatprep.subr.bf16.mxu0 0
        %3108 = vmatpush1.bf16.msra.mxu0 0
        %3109 = vmatprep.subr.bf16.mxu0 0
        %3110 = vmatpush1.bf16.msra.mxu0 0
        %3111 = vmatprep.subr.bf16.mxu0 0
        %3112 = vmatpush1.bf16.msra.mxu0 0
        %3113 = vmatprep.subr.bf16.mxu0 0
        %3114 = vmatpush1.bf16.msra.mxu0 0
        %3115 = vmatprep.mubr.bf16.mxu0 %v2721
        %3116 = vmatmul.mubr.bf16.gmra.mrb[0].mxu0 %v2105
        %v3117 = vpop.f32.mrb[0].mxu0
        %v3118 = vadd.f32 %v3005, %v3117
        %v3119 = vpop.f32.mrb[0].mxu0
        %v3120 = vadd.f32 %v3007, %v3119
        %v3121 = vpop.f32.mrb[0].mxu0
        %v3122 = vadd.f32 %v3009, %v3121
        %v3123 = vpop.f32.mrb[0].mxu0
        %v3124 = vadd.f32 %v3011, %v3123
        %3125 = vmatprep.mubr.bf16.mxu0 %v2724
        %3126 = vmatmul.mubr.bf16.gmra.mrb[0].mxu0 %v2109
        %v3127 = vpop.f32.mrb[0].mxu0
        %v3128 = vadd.f32 %v3015, %v3127
        %v3129 = vpop.f32.mrb[0].mxu0
        %v3130 = vadd.f32 %v3017, %v3129
        %v3131 = vpop.f32.mrb[0].mxu0
        %v3132 = vadd.f32 %v3019, %v3131
        %v3133 = vpop.f32.mrb[0].mxu0
        %v3134 = vadd.f32 %v3021, %v3133
        %3135 = vmatprep.mubr.bf16.mxu0 %v2727
        %3136 = vmatmul.mubr.bf16.gmra.mrb[0].mxu0 %v2113
        %v3137 = vpop.f32.mrb[0].mxu0
        %v3138 = vadd.f32 %v3025, %v3137
        %v3139 = vpop.f32.mrb[0].mxu0
        %v3140 = vadd.f32 %v3027, %v3139
        %v3141 = vpop.f32.mrb[0].mxu0
        %v3142 = vadd.f32 %v3029, %v3141
        %v3143 = vpop.f32.mrb[0].mxu0
        %v3144 = vadd.f32 %v3031, %v3143
        %3145 = vmatprep.mubr.bf16.mxu0 %v2730
        %3146 = vmatmul.mubr.bf16.gmra.mrb[0].mxu0 %v2117
        %v3147 = vpop.f32.mrb[0].mxu0
        %v3148 = vadd.f32 %v3035, %v3147
        %v3149 = vpop.f32.mrb[0].mxu0
        %v3150 = vadd.f32 %v3037, %v3149
        %v3151 = vpop.f32.mrb[0].mxu0
        %v3152 = vadd.f32 %v3039, %v3151
        %v3153 = vpop.f32.mrb[0].mxu0
        %v3154 = vadd.f32 %v3041, %v3153
        %3155 = vmatprep.mubr.bf16.mxu0 %v2733
        %3156 = vmatmul.mubr.bf16.gmra.mrb[0].mxu0 %v2121
        %v3157 = vpop.f32.mrb[0].mxu0
        %v3158 = vadd.f32 %v3045, %v3157
        %v3159 = vpop.f32.mrb[0].mxu0
        %v3160 = vadd.f32 %v3047, %v3159
        %v3161 = vpop.f32.mrb[0].mxu0
        %v3162 = vadd.f32 %v3049, %v3161
        %v3163 = vpop.f32.mrb[0].mxu0
        %v3164 = vadd.f32 %v3051, %v3163
        %3165 = vmatprep.mubr.bf16.mxu0 %v2736
        %3166 = vmatmul.mubr.bf16.gmra.mrb[0].mxu0 %v2125
        %v3167 = vpop.f32.mrb[0].mxu0
        %v3168 = vadd.f32 %v3055, %v3167
        %v3169 = vpop.f32.mrb[0].mxu0
        %v3170 = vadd.f32 %v3057, %v3169
        %v3171 = vpop.f32.mrb[0].mxu0
        %v3172 = vadd.f32 %v3059, %v3171
        %v3173 = vpop.f32.mrb[0].mxu0
        %v3174 = vadd.f32 %v3061, %v3173
        %3175 = vmatprep.mubr.bf16.mxu0 %v2739
        %3176 = vmatmul.mubr.bf16.gmra.mrb[0].mxu0 %v2129
        %v3177 = vpop.f32.mrb[0].mxu0
        %v3178 = vadd.f32 %v3065, %v3177
        %v3179 = vpop.f32.mrb[0].mxu0
        %v3180 = vadd.f32 %v3067, %v3179
        %v3181 = vpop.f32.mrb[0].mxu0
        %v3182 = vadd.f32 %v3069, %v3181
        %v3183 = vpop.f32.mrb[0].mxu0
        %v3184 = vadd.f32 %v3071, %v3183
        %3185 = vmatprep.mubr.bf16.mxu0 %v2742
        %3186 = vmatmul.mubr.bf16.gmra.mrb[0].mxu0 %v2133
        %v3187 = vpop.f32.mrb[0].mxu0
        %v3188 = vadd.f32 %v3075, %v3187
        %v3189 = vpop.f32.mrb[0].mxu0
        %v3190 = vadd.f32 %v3077, %v3189
        %v3191 = vpop.f32.mrb[0].mxu0
        %v3192 = vadd.f32 %v3079, %v3191
        %v3193 = vpop.f32.mrb[0].mxu0
        %v3194 = vadd.f32 %v3081, %v3193
        %3195 = vdwg.mxu0
        %v3196 = vld [vmem:[%s1777] sm:$0xff]
        %v3197 = vld [vmem:[%s1777 + $0x8] sm:$0xff]
        %v3198 = vld [vmem:[%s1777 + $0x10] sm:$0xff]
        %v3199 = vld [vmem:[%s1777 + $0x18] sm:$0xff]
        %v3200 = vld [vmem:[%s1777 + $0x20] sm:$0xff]
        %v3201 = vld [vmem:[%s1777 + $0x28] sm:$0xff]
        %v3202 = vld [vmem:[%s1777 + $0x30] sm:$0xff]
        %v3203 = vld [vmem:[%s1777 + $0x38] sm:$0xff]
        %v3204 = vld [vmem:[%s1777 + $0x40] sm:$0xff]
        %v3205 = vld [vmem:[%s1777 + $0x48] sm:$0xff]
        %v3206 = vld [vmem:[%s1777 + $0x50] sm:$0xff]
        %v3207 = vld [vmem:[%s1777 + $0x58] sm:$0xff]
        %v3208 = vld [vmem:[%s1777 + $0x60] sm:$0xff]
        %v3209 = vld [vmem:[%s1777 + $0x68] sm:$0xff]
        %v3210 = vld [vmem:[%s1777 + $0x70] sm:$0xff]
        %v3211 = vld [vmem:[%s1777 + $0x78] sm:$0xff]
        %v3212 = vld [vmem:[%s1777 + $0x80] sm:$0xff]
        %v3213 = vld [vmem:[%s1777 + $0x88] sm:$0xff]
        %v3214 = vld [vmem:[%s1777 + $0x90] sm:$0xff]
        %v3215 = vld [vmem:[%s1777 + $0x98] sm:$0xff]
        %v3216 = vld [vmem:[%s1777 + $0xa0] sm:$0xff]
        %v3217 = vld [vmem:[%s1777 + $0xa8] sm:$0xff]
        %v3218 = vld [vmem:[%s1777 + $0xb0] sm:$0xff]
        %v3219 = vld [vmem:[%s1777 + $0xb8] sm:$0xff]
        %v3220 = vld [vmem:[%s1777 + $0xc0] sm:$0xff]
        %v3221 = vld [vmem:[%s1777 + $0xc8] sm:$0xff]
        %v3222 = vld [vmem:[%s1777 + $0xd0] sm:$0xff]
        %v3223 = vld [vmem:[%s1777 + $0xd8] sm:$0xff]
        %v3224 = vld [vmem:[%s1777 + $0xe0] sm:$0xff]
        %v3225 = vld [vmem:[%s1777 + $0xe8] sm:$0xff]
        %v3226 = vld [vmem:[%s1777 + $0xf0] sm:$0xff]
        %v3227 = vld [vmem:[%s1777 + $0xf8] sm:$0xff]
        %v3228 = vld [vmem:[%s1777 + $0x100] sm:$0xff]
        %v3229 = vld [vmem:[%s1777 + $0x108] sm:$0xff]
        %v3230 = vld [vmem:[%s1777 + $0x110] sm:$0xff]
        %v3231 = vld [vmem:[%s1777 + $0x118] sm:$0xff]
        %v3232 = vld [vmem:[%s1777 + $0x120] sm:$0xff]
        %v3233 = vld [vmem:[%s1777 + $0x128] sm:$0xff]
        %v3234 = vld [vmem:[%s1777 + $0x130] sm:$0xff]
        %v3235 = vld [vmem:[%s1777 + $0x138] sm:$0xff]
        %v3236 = vld [vmem:[%s1777 + $0x140] sm:$0xff]
        %v3237 = vld [vmem:[%s1777 + $0x148] sm:$0xff]
        %v3238 = vld [vmem:[%s1777 + $0x150] sm:$0xff]
        %v3239 = vld [vmem:[%s1777 + $0x158] sm:$0xff]
        %v3240 = vld [vmem:[%s1777 + $0x160] sm:$0xff]
        %v3241 = vld [vmem:[%s1777 + $0x168] sm:$0xff]
        %v3242 = vld [vmem:[%s1777 + $0x170] sm:$0xff]
        %v3243 = vld [vmem:[%s1777 + $0x178] sm:$0xff]
        %v3244 = vld [vmem:[%s1777 + $0x180] sm:$0xff]
        %v3245 = vld [vmem:[%s1777 + $0x188] sm:$0xff]
        %v3246 = vld [vmem:[%s1777 + $0x190] sm:$0xff]
        %v3247 = vld [vmem:[%s1777 + $0x198] sm:$0xff]
        %v3248 = vld [vmem:[%s1777 + $0x1a0] sm:$0xff]
        %v3249 = vld [vmem:[%s1777 + $0x1a8] sm:$0xff]
        %v3250 = vld [vmem:[%s1777 + $0x1b0] sm:$0xff]
        %v3251 = vld [vmem:[%s1777 + $0x1b8] sm:$0xff]
        %v3252 = vld [vmem:[%s1777 + $0x1c0] sm:$0xff]
        %v3253 = vld [vmem:[%s1777 + $0x1c8] sm:$0xff]
        %v3254 = vld [vmem:[%s1777 + $0x1d0] sm:$0xff]
        %v3255 = vld [vmem:[%s1777 + $0x1d8] sm:$0xff]
        %v3256 = vld [vmem:[%s1777 + $0x1e0] sm:$0xff]
        %v3257 = vld [vmem:[%s1777 + $0x1e8] sm:$0xff]
        %v3258 = vld [vmem:[%s1777 + $0x1f0] sm:$0xff]
        %v3259 = vld [vmem:[%s1777 + $0x1f8] sm:$0xff]
        %v3260 = vadd.f32 %v2892, %v3196
        %v3261 = vadd.f32 %v2894, %v3197
        %v3262 = vadd.f32 %v3118, %v3198
        %v3263 = vadd.f32 %v3120, %v3199
        %v3264 = vadd.f32 %v2896, %v3200
        %v3265 = vadd.f32 %v2898, %v3201
        %v3266 = vadd.f32 %v3122, %v3202
        %v3267 = vadd.f32 %v3124, %v3203
        %v3268 = vadd.f32 %v2902, %v3204
        %v3269 = vadd.f32 %v2904, %v3205
        %v3270 = vadd.f32 %v3128, %v3206
        %v3271 = vadd.f32 %v3130, %v3207
        %v3272 = vadd.f32 %v2906, %v3208
        %v3273 = vadd.f32 %v2908, %v3209
        %v3274 = vadd.f32 %v3132, %v3210
        %v3275 = vadd.f32 %v3134, %v3211
        %v3276 = vadd.f32 %v2912, %v3212
        %v3277 = vadd.f32 %v2914, %v3213
        %v3278 = vadd.f32 %v3138, %v3214
        %v3279 = vadd.f32 %v3140, %v3215
        %v3280 = vadd.f32 %v2916, %v3216
        %v3281 = vadd.f32 %v2918, %v3217
        %v3282 = vadd.f32 %v3142, %v3218
        %v3283 = vadd.f32 %v3144, %v3219
        %v3284 = vadd.f32 %v2922, %v3220
        %v3285 = vadd.f32 %v2924, %v3221
        %v3286 = vadd.f32 %v3148, %v3222
        %v3287 = vadd.f32 %v3150, %v3223
        %v3288 = vadd.f32 %v2926, %v3224
        %v3289 = vadd.f32 %v2928, %v3225
        %v3290 = vadd.f32 %v3152, %v3226
        %v3291 = vadd.f32 %v3154, %v3227
        %v3292 = vadd.f32 %v2932, %v3228
        %v3293 = vadd.f32 %v2934, %v3229
        %v3294 = vadd.f32 %v3158, %v3230
        %v3295 = vadd.f32 %v3160, %v3231
        %v3296 = vadd.f32 %v2936, %v3232
        %v3297 = vadd.f32 %v2938, %v3233
        %v3298 = vadd.f32 %v3162, %v3234
        %v3299 = vadd.f32 %v3164, %v3235
        %v3300 = vadd.f32 %v2942, %v3236
        %v3301 = vadd.f32 %v2944, %v3237
        %v3302 = vadd.f32 %v3168, %v3238
        %v3303 = vadd.f32 %v3170, %v3239
        %v3304 = vadd.f32 %v2946, %v3240
        %v3305 = vadd.f32 %v2948, %v3241
        %v3306 = vadd.f32 %v3172, %v3242
        %v3307 = vadd.f32 %v3174, %v3243
        %v3308 = vadd.f32 %v2952, %v3244
        %v3309 = vadd.f32 %v2954, %v3245
        %v3310 = vadd.f32 %v3178, %v3246
        %v3311 = vadd.f32 %v3180, %v3247
        %v3312 = vadd.f32 %v2956, %v3248
        %v3313 = vadd.f32 %v2958, %v3249
        %v3314 = vadd.f32 %v3182, %v3250
        %v3315 = vadd.f32 %v3184, %v3251
        %v3316 = vadd.f32 %v2962, %v3252
        %v3317 = vadd.f32 %v2964, %v3253
        %v3318 = vadd.f32 %v3188, %v3254
        %v3319 = vadd.f32 %v3190, %v3255
        %v3320 = vadd.f32 %v2966, %v3256
        %v3321 = vadd.f32 %v2968, %v3257
        %v3322 = vadd.f32 %v3192, %v3258
        %v3323 = vadd.f32 %v3194, %v3259
        %v3324 = vmax.f32 %v3260, 0.0
        %v3325 = vmax.f32 %v3261, 0.0
        %v3326 = vmax.f32 %v3262, 0.0
        %v3327 = vmax.f32 %v3263, 0.0
        %v3328 = vmax.f32 %v3264, 0.0
        %v3329 = vmax.f32 %v3265, 0.0
        %v3330 = vmax.f32 %v3266, 0.0
        %v3331 = vmax.f32 %v3267, 0.0
        %v3332 = vmax.f32 %v3268, 0.0
        %v3333 = vmax.f32 %v3269, 0.0
        %v3334 = vmax.f32 %v3270, 0.0
        %v3335 = vmax.f32 %v3271, 0.0
        %v3336 = vmax.f32 %v3272, 0.0
        %v3337 = vmax.f32 %v3273, 0.0
        %v3338 = vmax.f32 %v3274, 0.0
        %v3339 = vmax.f32 %v3275, 0.0
        %v3340 = vmax.f32 %v3276, 0.0
        %v3341 = vmax.f32 %v3277, 0.0
        %v3342 = vmax.f32 %v3278, 0.0
        %v3343 = vmax.f32 %v3279, 0.0
        %v3344 = vmax.f32 %v3280, 0.0
        %v3345 = vmax.f32 %v3281, 0.0
        %v3346 = vmax.f32 %v3282, 0.0
        %v3347 = vmax.f32 %v3283, 0.0
        %v3348 = vmax.f32 %v3284, 0.0
        %v3349 = vmax.f32 %v3285, 0.0
        %v3350 = vmax.f32 %v3286, 0.0
        %v3351 = vmax.f32 %v3287, 0.0
        %v3352 = vmax.f32 %v3288, 0.0
        %v3353 = vmax.f32 %v3289, 0.0
        %v3354 = vmax.f32 %v3290, 0.0
        %v3355 = vmax.f32 %v3291, 0.0
        %v3356 = vmax.f32 %v3292, 0.0
        %v3357 = vmax.f32 %v3293, 0.0
        %v3358 = vmax.f32 %v3294, 0.0
        %v3359 = vmax.f32 %v3295, 0.0
        %v3360 = vmax.f32 %v3296, 0.0
        %v3361 = vmax.f32 %v3297, 0.0
        %v3362 = vmax.f32 %v3298, 0.0
        %v3363 = vmax.f32 %v3299, 0.0
        %v3364 = vmax.f32 %v3300, 0.0
        %v3365 = vmax.f32 %v3301, 0.0
        %v3366 = vmax.f32 %v3302, 0.0
        %v3367 = vmax.f32 %v3303, 0.0
        %v3368 = vmax.f32 %v3304, 0.0
        %v3369 = vmax.f32 %v3305, 0.0
        %v3370 = vmax.f32 %v3306, 0.0
        %v3371 = vmax.f32 %v3307, 0.0
        %v3372 = vmax.f32 %v3308, 0.0
        %v3373 = vmax.f32 %v3309, 0.0
        %v3374 = vmax.f32 %v3310, 0.0
        %v3375 = vmax.f32 %v3311, 0.0
        %v3376 = vmax.f32 %v3312, 0.0
        %v3377 = vmax.f32 %v3313, 0.0
        %v3378 = vmax.f32 %v3314, 0.0
        %v3379 = vmax.f32 %v3315, 0.0
        %v3380 = vmax.f32 %v3316, 0.0
        %v3381 = vmax.f32 %v3317, 0.0
        %v3382 = vmax.f32 %v3318, 0.0
        %v3383 = vmax.f32 %v3319, 0.0
        %v3384 = vmax.f32 %v3320, 0.0
        %v3385 = vmax.f32 %v3321, 0.0
        %v3386 = vmax.f32 %v3322, 0.0
        %v3387 = vmax.f32 %v3323, 0.0
        %3388 = vst [vmem:[%s1811] sm:$0xff] %v3324
        %3389 = vst [vmem:[%s1811 + $0x8] sm:$0xff] %v3325
        %3390 = vst [vmem:[%s1811 + $0x10] sm:$0xff] %v3326
        %3391 = vst [vmem:[%s1811 + $0x18] sm:$0xff] %v3327
        %3392 = vst [vmem:[%s1811 + $0x20] sm:$0xff] %v3328
        %3393 = vst [vmem:[%s1811 + $0x28] sm:$0xff] %v3329
        %3394 = vst [vmem:[%s1811 + $0x30] sm:$0xff] %v3330
        %3395 = vst [vmem:[%s1811 + $0x38] sm:$0xff] %v3331
        %3396 = vst [vmem:[%s1811 + $0x40] sm:$0xff] %v3332
        %3397 = vst [vmem:[%s1811 + $0x48] sm:$0xff] %v3333
        %3398 = vst [vmem:[%s1811 + $0x50] sm:$0xff] %v3334
        %3399 = vst [vmem:[%s1811 + $0x58] sm:$0xff] %v3335
        %3400 = vst [vmem:[%s1811 + $0x60] sm:$0xff] %v3336
        %3401 = vst [vmem:[%s1811 + $0x68] sm:$0xff] %v3337
        %3402 = vst [vmem:[%s1811 + $0x70] sm:$0xff] %v3338
        %3403 = vst [vmem:[%s1811 + $0x78] sm:$0xff] %v3339
        %3404 = vst [vmem:[%s1811 + $0x80] sm:$0xff] %v3340
        %3405 = vst [vmem:[%s1811 + $0x88] sm:$0xff] %v3341
        %3406 = vst [vmem:[%s1811 + $0x90] sm:$0xff] %v3342
        %3407 = vst [vmem:[%s1811 + $0x98] sm:$0xff] %v3343
        %3408 = vst [vmem:[%s1811 + $0xa0] sm:$0xff] %v3344
        %3409 = vst [vmem:[%s1811 + $0xa8] sm:$0xff] %v3345
        %3410 = vst [vmem:[%s1811 + $0xb0] sm:$0xff] %v3346
        %3411 = vst [vmem:[%s1811 + $0xb8] sm:$0xff] %v3347
        %3412 = vst [vmem:[%s1811 + $0xc0] sm:$0xff] %v3348
        %3413 = vst [vmem:[%s1811 + $0xc8] sm:$0xff] %v3349
        %3414 = vst [vmem:[%s1811 + $0xd0] sm:$0xff] %v3350
        %3415 = vst [vmem:[%s1811 + $0xd8] sm:$0xff] %v3351
        %3416 = vst [vmem:[%s1811 + $0xe0] sm:$0xff] %v3352
        %3417 = vst [vmem:[%s1811 + $0xe8] sm:$0xff] %v3353
        %3418 = vst [vmem:[%s1811 + $0xf0] sm:$0xff] %v3354
        %3419 = vst [vmem:[%s1811 + $0xf8] sm:$0xff] %v3355
        %3420 = vst [vmem:[%s1811 + $0x100] sm:$0xff] %v3356
        %3421 = vst [vmem:[%s1811 + $0x108] sm:$0xff] %v3357
        %3422 = vst [vmem:[%s1811 + $0x110] sm:$0xff] %v3358
        %3423 = vst [vmem:[%s1811 + $0x118] sm:$0xff] %v3359
        %3424 = vst [vmem:[%s1811 + $0x120] sm:$0xff] %v3360
        %3425 = vst [vmem:[%s1811 + $0x128] sm:$0xff] %v3361
        %3426 = vst [vmem:[%s1811 + $0x130] sm:$0xff] %v3362
        %3427 = vst [vmem:[%s1811 + $0x138] sm:$0xff] %v3363
        %3428 = vst [vmem:[%s1811 + $0x140] sm:$0xff] %v3364
        %3429 = vst [vmem:[%s1811 + $0x148] sm:$0xff] %v3365
        %3430 = vst [vmem:[%s1811 + $0x150] sm:$0xff] %v3366
        %3431 = vst [vmem:[%s1811 + $0x158] sm:$0xff] %v3367
        %3432 = vst [vmem:[%s1811 + $0x160] sm:$0xff] %v3368
        %3433 = vst [vmem:[%s1811 + $0x168] sm:$0xff] %v3369
        %3434 = vst [vmem:[%s1811 + $0x170] sm:$0xff] %v3370
        %3435 = vst [vmem:[%s1811 + $0x178] sm:$0xff] %v3371
        %3436 = vst [vmem:[%s1811 + $0x180] sm:$0xff] %v3372
        %3437 = vst [vmem:[%s1811 + $0x188] sm:$0xff] %v3373
        %3438 = vst [vmem:[%s1811 + $0x190] sm:$0xff] %v3374
        %3439 = vst [vmem:[%s1811 + $0x198] sm:$0xff] %v3375
        %3440 = vst [vmem:[%s1811 + $0x1a0] sm:$0xff] %v3376
        %3441 = vst [vmem:[%s1811 + $0x1a8] sm:$0xff] %v3377
        %3442 = vst [vmem:[%s1811 + $0x1b0] sm:$0xff] %v3378
        %3443 = vst [vmem:[%s1811 + $0x1b8] sm:$0xff] %v3379
        %3444 = vst [vmem:[%s1811 + $0x1c0] sm:$0xff] %v3380
        %3445 = vst [vmem:[%s1811 + $0x1c8] sm:$0xff] %v3381
        %3446 = vst [vmem:[%s1811 + $0x1d0] sm:$0xff] %v3382
        %3447 = vst [vmem:[%s1811 + $0x1d8] sm:$0xff] %v3383
        %3448 = vst [vmem:[%s1811 + $0x1e0] sm:$0xff] %v3384
        %3449 = vst [vmem:[%s1811 + $0x1e8] sm:$0xff] %v3385
        %3450 = vst [vmem:[%s1811 + $0x1f0] sm:$0xff] %v3386
        %3451 = vst [vmem:[%s1811 + $0x1f8] sm:$0xff] %v3387
        %s3452 = sand.u32 %s125, 1
        %s3453 = scalar_lea.sflag [#allocation5], %s3452
        %s3454 = sand.u32 %s125, 1
        %s3455 = smul.addr %s3454, 512
        %s3456 = scalar_lea.vmem [#allocation4], %s3455
        // Predicated region
        $region169: #{block8_forward.3} parent=159 // pred_check
          %p3457 = pneg %p135
        $region170: #{block8_forward.3} parent=159 // pred_check_branch
          %3459 = sbr.rel (%p3457) target = $region172
        $region171: #{block8_forward.3} parent=159 // pred_region
          %s3460 = smul.u32 4, %s18
          %s3461 = ssub.s32 17, %s3460
          %p3462 = scmp.lt.s32.totalorder %s3461, 4
          %s3463 = scalar_select %p3462, %s3461, 4
          %s3464 = smul.u32 2048, %s3463
          %s3466 = ssub.s32 8192, %s3464
          %3467 = vsyncadd %s3453, %s3466
          %p3468 = scmp.ne.s32.totalorder 0, %s3464
          %s3469 = smul.addr %s3460, 128
          %s3470 = scalar_lea.hbm %s4, %s3469
          %s3471 = smul.u32 %s3463, 8
          %s3472 = smul.u32 %s3471, 16
          %s3473 = sshll.u32 %s3456, 4
          %s3474 = int_to_ptr.vmem [resolvable:$true] %s3473
          %s3475 = sshll.u32 %s3472, 4
          %3479 = dma.vmem_to_hbm [thread:$0]  (%p3468), %s3474, %s3475, %s3470, %s3453, 512, 2176, %s3471
        $region172: #{block8_forward.3} parent=159 // pred_fallthru
          _
      $region160: #{block8_forward.3} parent=5 // pred_fallthru
        _
      %p3480 = scmp.le.s32.totalorder 2, %s13
      // Predicated region
      $region173: #{block8_forward.3} parent=5 // pred_check
        %p3481 = pneg %p3480
      $region174: #{block8_forward.3} parent=5 // pred_check_branch
        %3483 = sbr.rel (%p3481) target = $region176
      $region175: #{block8_forward.3} parent=5 // pred_region
        %s3484 = ssub.s32 %s13, 2
        // Predicated region
        $region177: #{block8_forward.3} parent=175 // pred_check
          %p3485 = pneg %p141
        $region178: #{block8_forward.3} parent=175 // pred_check_branch
          %3487 = sbr.rel (%p3485) target = $region180
        $region179: #{block8_forward.3} parent=175 // pred_region
          %s3488 = sand.u32 %s126, 1
          %s3489 = scalar_lea.sflag [#allocation5], %s3488
          %s3490 = sand.u32 %s126, 1
          %s3491 = smul.addr %s3490, 512
          %s3492 = scalar_lea.vmem [#allocation4], %s3491
          %3493 = dma.done %s3489, 8192
        $region180: #{block8_forward.3} parent=175 // pred_fallthru
          _
      $region176: #{block8_forward.3} parent=5 // pred_fallthru
        _
    $region6: #{block8_forward.3} parent=1 // loop_footer
      %s17 = sadd.s32 1, %s13
    $region7: #{block8_forward.3} parent=1 // loop_footer_branch
      %12 = sbr.rel target = $region3
    $region8: #{block8_forward.3} parent=1 // loop_exit
      _
    %3494 = vsyncpa [#allocation5], 1
    %s3495 = scalar_lea.sflag [#allocation5], 1
    %3496 = vsyncpa %s3495, 1

// kernel: block8_forward.2
$region0: #{block8_forward.2}
  #allocation0 [shape = 'u32[]', space=smem, size = 0x4, offset = 0x4, fixed_abs, tag = 'smem constant byte address 0x4 - core index']
  #allocation1 [shape = 'u32[144,128]{1,0:T(1,128)}', space=vmem, size = 0x12000, scoped, tag = 'internal scratch']
  %s0 = inlined_call_operand.hbm [shape: f32[128,2080], index: 0, kind: input, shape index: {}]
  %s1 = inlined_call_operand.hbm [shape: bf16[2080,384], index: 1, kind: input, shape index: {}]
  %s2 = inlined_call_operand.hbm [shape: f32[1,384], index: 2, kind: input, shape index: {}]
  %s3 = inlined_call_operand.hbm [shape: f32[1,384], index: 3, kind: input, shape index: {}]
  %s4 = inlined_call_operand.hbm [shape: bf16[3,192,224], index: 4, kind: input, shape index: {}]
  %s5 = inlined_call_operand.hbm [shape: f32[1,224], index: 5, kind: input, shape index: {}]
  %s6 = inlined_call_operand.hbm [shape: f32[1,224], index: 6, kind: input, shape index: {}]
  %s7 = inlined_call_operand.hbm [shape: bf16[3,224,256], index: 7, kind: input, shape index: {}]
  %s8 = inlined_call_operand.hbm [shape: f32[1,256], index: 8, kind: input, shape index: {}]
  %s9 = inlined_call_operand.hbm [shape: f32[1,256], index: 9, kind: input, shape index: {}]
  %s10 = inlined_call_operand.vmem [shape: bf16[128,448], index: 10, kind: output, shape index: {}]
  %s11 = sld [smem:[#allocation0]]
  $region113: #{block8_forward.2} parent=0
    _
  %s13 = ssub.s32 1, %s11
  %s14 = scalar_select 0, %s13, %s11
  $region1: #{block8_forward.2} parent=0
    #allocation2 [shape = 'u8[1114112]{0}', space=vmem, size = 0x110000, scoped, tag = 'input window, operand 0']
    #allocation3 [shape = 's32[2]{0}', space=sflag, size = 0x8, scoped, tag = 'scoped memory for block8_forward.2']
    #allocation4 [shape = 'u8[1597440]{0}', space=vmem, size = 0x186000, scoped, tag = 'input window, operand 1, single buffered']
    #allocation5 [shape = 's32[1]{0}', space=sflag, size = 0x4, scoped, tag = 'scoped memory for block8_forward.2']
    #allocation6 [shape = 'u8[1536]{0}', space=vmem, size = 0x800, scoped, tag = 'input window, operand 2, single buffered']
    #allocation7 [shape = 'u8[1536]{0}', space=vmem, size = 0x800, scoped, tag = 'input window, operand 3, single buffered']
    #allocation8 [shape = 's32[1]{0}', space=sflag, size = 0x4, scoped, tag = 'scoped memory for block8_forward.2']
    #allocation9 [shape = 'u8[294912]{0}', space=vmem, size = 0x48000, scoped, tag = 'input window, operand 4, single buffered']
    #allocation10 [shape = 'u8[1024]{0}', space=vmem, size = 0x400, scoped, tag = 'input window, operand 5, single buffered']
    #allocation11 [shape = 's32[1]{0}', space=sflag, size = 0x4, scoped, tag = 'scoped memory for block8_forward.2']
    #allocation12 [shape = 'u8[1024]{0}', space=vmem, size = 0x400, scoped, tag = 'input window, operand 6, single buffered']
    #allocation13 [shape = 'u8[344064]{0}', space=vmem, size = 0x54000, scoped, tag = 'input window, operand 7, single buffered']
    #allocation14 [shape = 's32[1]{0}', space=sflag, size = 0x4, scoped, tag = 'scoped memory for block8_forward.2']
    #allocation15 [shape = 'u8[1024]{0}', space=vmem, size = 0x400, scoped, tag = 'input window, operand 8, single buffered']
    #allocation16 [shape = 'u8[1024]{0}', space=vmem, size = 0x400, scoped, tag = 'input window, operand 9, single buffered']
    #allocation17 [shape = 's32[1]{0}', space=sflag, size = 0x4, scoped, tag = 'scoped memory for block8_forward.2']
    %15 = vsyncpa [#allocation3], 0
    %s16 = scalar_lea.sflag [#allocation3], 1
    %17 = vsyncpa %s16, 0
    %18 = vsyncpa [#allocation5], 0
    %19 = vsyncpa [#allocation8], 0
    %20 = vsyncpa [#allocation11], 0
    %21 = vsyncpa [#allocation14], 0
    %22 = vsyncpa [#allocation17], 0
    loop: start=0, step=1, limit=4
    $region2: #{block8_forward.2} parent=1 // loop_pre_header
      _
    $region3: #{block8_forward.2} parent=1 // loop_header
      %s24 = sphi 0, %s28
      %p25 = scmp.ge.s32.totalorder %s24, 4
      %s34 = sphi 0, %s36
      %s37 = sphi 0, %s34
      %s38 = sphi 0, %s37
      %s54 = sphi 0, %s38
      %s58 = sphi 0, %s58
      %s60 = sphi 0, %s58
      %s61 = sphi 0, %s60
      %s75 = sphi 0, %s61
      %s79 = sphi 0, %s79
      %s81 = sphi 0, %s79
      %s82 = sphi 0, %s81
      %s96 = sphi 0, %s82
      %s100 = sphi 0, %s100
      %s102 = sphi 0, %s100
      %s103 = sphi 0, %s102
      %s117 = sphi 0, %s103
      %s121 = sphi 0, %s121
      %s123 = sphi 0, %s121
      %s124 = sphi 0, %s123
      %s138 = sphi 0, %s124
      %s142 = sphi 0, %s142
      %s144 = sphi 0, %s142
      %s145 = sphi 0, %s144
      %s159 = sphi 0, %s145
      %s163 = sphi 0, %s163
      %s165 = sphi 0, %s163
      %s166 = sphi 0, %s165
      %s180 = sphi 0, %s166
      %s184 = sphi 0, %s184
      %s186 = sphi 0, %s184
      %s187 = sphi 0, %s186
      %s201 = sphi 0, %s187
      %s205 = sphi 0, %s205
      %s207 = sphi 0, %s205
      %s208 = sphi 0, %s207
      %s222 = sphi 0, %s208
      %s226 = sphi 0, %s226
      %s228 = sphi 0, %s226
      %s229 = sphi 0, %s228
      %s243 = sphi 0, %s229
      %s249 = sphi 0, %s251
      %s252 = sphi 0, %s249
      %s253 = sphi 0, %s252
      %s269 = sphi 0, %s253
    $region4: #{block8_forward.2} parent=1 // loop_header_branch
      %27 = sbr.rel (%p25) target = $region8
    $region5: #{block8_forward.2} parent=1 // loop_body
      %s29 = ssub.s32 %s24, 1
      %s30 = ssub.s32 %s24, 2
      %s31 = sadd.s32 %s24, 1
      %s32 = ssub.s32 %s24, %s31
      %p33 = scmp.eq.s32.totalorder %s32, 0
      %s35 = sadd.s32 %s34, 1
      %s36 = scalar_select %p33, %s34, %s35
      %p39 = pneg %p33
      %p40 = scmp.eq.s32.totalorder %s24, 1
      %p41 = por %p39, %p40
      %p42 = scmp.ne.s32.totalorder %s34, %s37
      %p43 = scmp.eq.s32.totalorder %s24, 0
      %p44 = por %p42, %p43
      %p45 = scmp.ne.s32.totalorder %s34, %s37
      %p46 = scmp.eq.s32.totalorder %s29, 1
      %p47 = por %p45, %p46
      %p48 = scmp.ne.s32.totalorder %s37, %s38
      %p49 = scmp.eq.s32.totalorder %s29, 0
      %p50 = por %p48, %p49
      %p51 = scmp.ne.s32.totalorder %s37, %s38
      %p52 = scmp.eq.s32.totalorder %s30, 1
      %p53 = por %p51, %p52
      %p55 = scmp.ne.s32.totalorder %s38, %s54
      %p56 = scmp.eq.s32.totalorder %s30, 0
      %p57 = por %p55, %p56
      %s59 = sadd.s32 %s58, 1
      %p62 = scmp.eq.s32.totalorder %s24, 1
      %p63 = scmp.ne.s32.totalorder %s58, %s60
      %p64 = scmp.eq.s32.totalorder %s24, 0
      %p65 = por %p63, %p64
      %p66 = scmp.ne.s32.totalorder %s58, %s60
      %p67 = scmp.eq.s32.totalorder %s29, 1
      %p68 = por %p66, %p67
      %p69 = scmp.ne.s32.totalorder %s60, %s61
      %p70 = scmp.eq.s32.totalorder %s29, 0
      %p71 = por %p69, %p70
      %p72 = scmp.ne.s32.totalorder %s60, %s61
      %p73 = scmp.eq.s32.totalorder %s30, 1
      %p74 = por %p72, %p73
      %p76 = scmp.ne.s32.totalorder %s61, %s75
      %p77 = scmp.eq.s32.totalorder %s30, 0
      %p78 = por %p76, %p77
      %s80 = sadd.s32 %s79, 1
      %p83 = scmp.eq.s32.totalorder %s24, 1
      %p84 = scmp.ne.s32.totalorder %s79, %s81
      %p85 = scmp.eq.s32.totalorder %s24, 0
      %p86 = por %p84, %p85
      %p87 = scmp.ne.s32.totalorder %s79, %s81
      %p88 = scmp.eq.s32.totalorder %s29, 1
      %p89 = por %p87, %p88
      %p90 = scmp.ne.s32.totalorder %s81, %s82
      %p91 = scmp.eq.s32.totalorder %s29, 0
      %p92 = por %p90, %p91
      %p93 = scmp.ne.s32.totalorder %s81, %s82
      %p94 = scmp.eq.s32.totalorder %s30, 1
      %p95 = por %p93, %p94
      %p97 = scmp.ne.s32.totalorder %s82, %s96
      %p98 = scmp.eq.s32.totalorder %s30, 0
      %p99 = por %p97, %p98
      %s101 = sadd.s32 %s100, 1
      %p104 = scmp.eq.s32.totalorder %s24, 1
      %p105 = scmp.ne.s32.totalorder %s100, %s102
      %p106 = scmp.eq.s32.totalorder %s24, 0
      %p107 = por %p105, %p106
      %p108 = scmp.ne.s32.totalorder %s100, %s102
      %p109 = scmp.eq.s32.totalorder %s29, 1
      %p110 = por %p108, %p109
      %p111 = scmp.ne.s32.totalorder %s102, %s103
      %p112 = scmp.eq.s32.totalorder %s29, 0
      %p113 = por %p111, %p112
      %p114 = scmp.ne.s32.totalorder %s102, %s103
      %p115 = scmp.eq.s32.totalorder %s30, 1
      %p116 = por %p114, %p115
      %p118 = scmp.ne.s32.totalorder %s103, %s117
      %p119 = scmp.eq.s32.totalorder %s30, 0
      %p120 = por %p118, %p119
      %s122 = sadd.s32 %s121, 1
      %p125 = scmp.eq.s32.totalorder %s24, 1
      %p126 = scmp.ne.s32.totalorder %s121, %s123
      %p127 = scmp.eq.s32.totalorder %s24, 0
      %p128 = por %p126, %p127
      %p129 = scmp.ne.s32.totalorder %s121, %s123
      %p130 = scmp.eq.s32.totalorder %s29, 1
      %p131 = por %p129, %p130
      %p132 = scmp.ne.s32.totalorder %s123, %s124
      %p133 = scmp.eq.s32.totalorder %s29, 0
      %p134 = por %p132, %p133
      %p135 = scmp.ne.s32.totalorder %s123, %s124
      %p136 = scmp.eq.s32.totalorder %s30, 1
      %p137 = por %p135, %p136
      %p139 = scmp.ne.s32.totalorder %s124, %s138
      %p140 = scmp.eq.s32.totalorder %s30, 0
      %p141 = por %p139, %p140
      %s143 = sadd.s32 %s142, 1
      %p146 = scmp.eq.s32.totalorder %s24, 1
      %p147 = scmp.ne.s32.totalorder %s142, %s144
      %p148 = scmp.eq.s32.totalorder %s24, 0
      %p149 = por %p147, %p148
      %p150 = scmp.ne.s32.totalorder %s142, %s144
      %p151 = scmp.eq.s32.totalorder %s29, 1
      %p152 = por %p150, %p151
      %p153 = scmp.ne.s32.totalorder %s144, %s145
      %p154 = scmp.eq.s32.totalorder %s29, 0
      %p155 = por %p153, %p154
      %p156 = scmp.ne.s32.totalorder %s144, %s145
      %p157 = scmp.eq.s32.totalorder %s30, 1
      %p158 = por %p156, %p157
      %p160 = scmp.ne.s32.totalorder %s145, %s159
      %p161 = scmp.eq.s32.totalorder %s30, 0
      %p162 = por %p160, %p161
      %s164 = sadd.s32 %s163, 1
      %p167 = scmp.eq.s32.totalorder %s24, 1
      %p168 = scmp.ne.s32.totalorder %s163, %s165
      %p169 = scmp.eq.s32.totalorder %s24, 0
      %p170 = por %p168, %p169
      %p171 = scmp.ne.s32.totalorder %s163, %s165
      %p172 = scmp.eq.s32.totalorder %s29, 1
      %p173 = por %p171, %p172
      %p174 = scmp.ne.s32.totalorder %s165, %s166
      %p175 = scmp.eq.s32.totalorder %s29, 0
      %p176 = por %p174, %p175
      %p177 = scmp.ne.s32.totalorder %s165, %s166
      %p178 = scmp.eq.s32.totalorder %s30, 1
      %p179 = por %p177, %p178
      %p181 = scmp.ne.s32.totalorder %s166, %s180
      %p182 = scmp.eq.s32.totalorder %s30, 0
      %p183 = por %p181, %p182
      %s185 = sadd.s32 %s184, 1
      %p188 = scmp.eq.s32.totalorder %s24, 1
      %p189 = scmp.ne.s32.totalorder %s184, %s186
      %p190 = scmp.eq.s32.totalorder %s24, 0
      %p191 = por %p189, %p190
      %p192 = scmp.ne.s32.totalorder %s184, %s186
      %p193 = scmp.eq.s32.totalorder %s29, 1
      %p194 = por %p192, %p193
      %p195 = scmp.ne.s32.totalorder %s186, %s187
      %p196 = scmp.eq.s32.totalorder %s29, 0
      %p197 = por %p195, %p196
      %p198 = scmp.ne.s32.totalorder %s186, %s187
      %p199 = scmp.eq.s32.totalorder %s30, 1
      %p200 = por %p198, %p199
      %p202 = scmp.ne.s32.totalorder %s187, %s201
      %p203 = scmp.eq.s32.totalorder %s30, 0
      %p204 = por %p202, %p203
      %s206 = sadd.s32 %s205, 1
      %p209 = scmp.eq.s32.totalorder %s24, 1
      %p210 = scmp.ne.s32.totalorder %s205, %s207
      %p211 = scmp.eq.s32.totalorder %s24, 0
      %p212 = por %p210, %p211
      %p213 = scmp.ne.s32.totalorder %s205, %s207
      %p214 = scmp.eq.s32.totalorder %s29, 1
      %p215 = por %p213, %p214
      %p216 = scmp.ne.s32.totalorder %s207, %s208
      %p217 = scmp.eq.s32.totalorder %s29, 0
      %p218 = por %p216, %p217
      %p219 = scmp.ne.s32.totalorder %s207, %s208
      %p220 = scmp.eq.s32.totalorder %s30, 1
      %p221 = por %p219, %p220
      %p223 = scmp.ne.s32.totalorder %s208, %s222
      %p224 = scmp.eq.s32.totalorder %s30, 0
      %p225 = por %p223, %p224
      %s227 = sadd.s32 %s226, 1
      %p230 = scmp.eq.s32.totalorder %s24, 1
      %p231 = scmp.ne.s32.totalorder %s226, %s228
      %p232 = scmp.eq.s32.totalorder %s24, 0
      %p233 = por %p231, %p232
      %p234 = scmp.ne.s32.totalorder %s226, %s228
      %p235 = scmp.eq.s32.totalorder %s29, 1
      %p236 = por %p234, %p235
      %p237 = scmp.ne.s32.totalorder %s228, %s229
      %p238 = scmp.eq.s32.totalorder %s29, 0
      %p239 = por %p237, %p238
      %p240 = scmp.ne.s32.totalorder %s228, %s229
      %p241 = scmp.eq.s32.totalorder %s30, 1
      %p242 = por %p240, %p241
      %p244 = scmp.ne.s32.totalorder %s229, %s243
      %p245 = scmp.eq.s32.totalorder %s30, 0
      %p246 = por %p244, %p245
      %s247 = ssub.s32 %s24, %s31
      %p248 = scmp.eq.s32.totalorder %s247, 0
      %s250 = sadd.s32 %s249, 1
      %s251 = scalar_select %p248, %s249, %s250
      %p254 = pneg %p248
      %p255 = scmp.eq.s32.totalorder %s24, 1
      %p256 = por %p254, %p255
      %p257 = scmp.ne.s32.totalorder %s249, %s252
      %p258 = scmp.eq.s32.totalorder %s24, 0
      %p259 = por %p257, %p258
      %p260 = scmp.ne.s32.totalorder %s249, %s252
      %p261 = scmp.eq.s32.totalorder %s29, 1
      %p262 = por %p260, %p261
      %p263 = scmp.ne.s32.totalorder %s252, %s253
      %p264 = scmp.eq.s32.totalorder %s29, 0
      %p265 = por %p263, %p264
      %p266 = scmp.ne.s32.totalorder %s252, %s253
      %p267 = scmp.eq.s32.totalorder %s30, 1
      %p268 = por %p266, %p267
      %p270 = scmp.ne.s32.totalorder %s253, %s269
      %p271 = scmp.eq.s32.totalorder %s30, 0
      %p272 = por %p270, %p271
      %p273 = scmp.le.s32.totalorder 1, %s24
      %p274 = scmp.lt.s32.totalorder %s24, 3
      %p275 = pnand %p273, %p274
      %p276 = pneg %p275
      // Predicated region
      $region9: #{block8_forward.2} parent=5 // pred_check
        _
      $region10: #{block8_forward.2} parent=5 // pred_check_branch
        %278 = sbr.rel (%p275) target = $region12
      $region11: #{block8_forward.2} parent=5 // pred_region
        %s279 = ssub.s32 %s24, 1
        // Predicated region
        $region13: #{block8_forward.2} parent=11 // pred_check
          %p280 = pneg %p71
        $region14: #{block8_forward.2} parent=11 // pred_check_branch
          %282 = sbr.rel (%p280) target = $region16
        $region15: #{block8_forward.2} parent=11 // pred_region
          %s284 = ssub.s32 49920, 49920
          %285 = vsyncadd [#allocation5], %s284
          %s286 = sshll.u32 [#allocation4], 4
          %s287 = int_to_ptr.vmem [resolvable:$true] %s286
          %292 = dma.hbm_to_vmem [thread:$0]  %s1, 49920, %s287, [#allocation5], 192, 192, 12
        $region16: #{block8_forward.2} parent=11 // pred_fallthru
          _
        // Predicated region
        $region17: #{block8_forward.2} parent=11 // pred_check
          %p293 = pneg %p92
        $region18: #{block8_forward.2} parent=11 // pred_check_branch
          %295 = sbr.rel (%p293) target = $region20
        $region19: #{block8_forward.2} parent=11 // pred_region
          %s297 = ssub.s32 48, 48
          %298 = vsyncadd [#allocation5], %s297
          %s300 = sshll.u32 [#allocation6], 4
          %s301 = int_to_ptr.vmem [resolvable:$true] %s300
          %303 = dma.hbm_to_vmem [thread:$0]  %s2, 48, %s301, [#allocation5]
        $region20: #{block8_forward.2} parent=11 // pred_fallthru
          _
        // Predicated region
        $region21: #{block8_forward.2} parent=11 // pred_check
          %p304 = pneg %p113
        $region22: #{block8_forward.2} parent=11 // pred_check_branch
          %306 = sbr.rel (%p304) target = $region24
        $region23: #{block8_forward.2} parent=11 // pred_region
          %s308 = ssub.s32 48, 48
          %309 = vsyncadd [#allocation8], %s308
          %s311 = sshll.u32 [#allocation7], 4
          %s312 = int_to_ptr.vmem [resolvable:$true] %s311
          %314 = dma.hbm_to_vmem [thread:$0]  %s3, 48, %s312, [#allocation8]
        $region24: #{block8_forward.2} parent=11 // pred_fallthru
          _
        // Predicated region
        $region25: #{block8_forward.2} parent=11 // pred_check
          %p315 = pneg %p134
        $region26: #{block8_forward.2} parent=11 // pred_check_branch
          %317 = sbr.rel (%p315) target = $region28
        $region27: #{block8_forward.2} parent=11 // pred_region
          %s319 = ssub.s32 9216, 9216
          %320 = vsyncadd [#allocation8], %s319
          %s321 = sshll.u32 [#allocation9], 4
          %s322 = int_to_ptr.vmem [resolvable:$true] %s321
          %327 = dma.hbm_to_vmem [thread:$0]  %s4, 9216, %s322, [#allocation8], 128, 128, 8
        $region28: #{block8_forward.2} parent=11 // pred_fallthru
          _
        // Predicated region
        $region29: #{block8_forward.2} parent=11 // pred_check
          %p328 = pneg %p155
        $region30: #{block8_forward.2} parent=11 // pred_check_branch
          %330 = sbr.rel (%p328) target = $region32
        $region31: #{block8_forward.2} parent=11 // pred_region
          %s332 = ssub.s32 32, 32
          %333 = vsyncadd [#allocation11], %s332
          %s335 = sshll.u32 [#allocation10], 4
          %s336 = int_to_ptr.vmem [resolvable:$true] %s335
          %338 = dma.hbm_to_vmem [thread:$0]  %s5, 32, %s336, [#allocation11]
        $region32: #{block8_forward.2} parent=11 // pred_fallthru
          _
        // Predicated region
        $region33: #{block8_forward.2} parent=11 // pred_check
          %p339 = pneg %p176
        $region34: #{block8_forward.2} parent=11 // pred_check_branch
          %341 = sbr.rel (%p339) target = $region36
        $region35: #{block8_forward.2} parent=11 // pred_region
          %s343 = ssub.s32 32, 32
          %344 = vsyncadd [#allocation11], %s343
          %s346 = sshll.u32 [#allocation12], 4
          %s347 = int_to_ptr.vmem [resolvable:$true] %s346
          %349 = dma.hbm_to_vmem [thread:$0]  %s6, 32, %s347, [#allocation11]
        $region36: #{block8_forward.2} parent=11 // pred_fallthru
          _
        // Predicated region
        $region37: #{block8_forward.2} parent=11 // pred_check
          %p350 = pneg %p197
        $region38: #{block8_forward.2} parent=11 // pred_check_branch
          %352 = sbr.rel (%p350) target = $region40
        $region39: #{block8_forward.2} parent=11 // pred_region
          %s354 = ssub.s32 10752, 10752
          %355 = vsyncadd [#allocation14], %s354
          %s356 = sshll.u32 [#allocation13], 4
          %s357 = int_to_ptr.vmem [resolvable:$true] %s356
          %362 = dma.hbm_to_vmem [thread:$0]  %s7, 10752, %s357, [#allocation14], 128, 128, 8
        $region40: #{block8_forward.2} parent=11 // pred_fallthru
          _
        // Predicated region
        $region41: #{block8_forward.2} parent=11 // pred_check
          %p363 = pneg %p218
        $region42: #{block8_forward.2} parent=11 // pred_check_branch
          %365 = sbr.rel (%p363) target = $region44
        $region43: #{block8_forward.2} parent=11 // pred_region
          %s367 = ssub.s32 32, 32
          %368 = vsyncadd [#allocation14], %s367
          %s370 = sshll.u32 [#allocation15], 4
          %s371 = int_to_ptr.vmem [resolvable:$true] %s370
          %373 = dma.hbm_to_vmem [thread:$0]  %s8, 32, %s371, [#allocation14]
        $region44: #{block8_forward.2} parent=11 // pred_fallthru
          _
        // Predicated region
        $region45: #{block8_forward.2} parent=11 // pred_check
          %p374 = pneg %p239
        $region46: #{block8_forward.2} parent=11 // pred_check_branch
          %376 = sbr.rel (%p374) target = $region48
        $region47: #{block8_forward.2} parent=11 // pred_region
          %s378 = ssub.s32 32, 32
          %379 = vsyncadd [#allocation17], %s378
          %s381 = sshll.u32 [#allocation16], 4
          %s382 = int_to_ptr.vmem [resolvable:$true] %s381
          %384 = dma.hbm_to_vmem [thread:$0]  %s9, 32, %s382, [#allocation17]
        $region48: #{block8_forward.2} parent=11 // pred_fallthru
          _
      $region12: #{block8_forward.2} parent=5 // pred_fallthru
        _
      %p385 = scmp.lt.s32.totalorder %s24, 2
      // Predicated region
      $region49: #{block8_forward.2} parent=5 // pred_check
        %p386 = pneg %p385
      $region50: #{block8_forward.2} parent=5 // pred_check_branch
        %388 = sbr.rel (%p386) target = $region52
      $region51: #{block8_forward.2} parent=5 // pred_region
        // Predicated region
        $region53: #{block8_forward.2} parent=51 // pred_check
          %p389 = pneg %p44
        $region54: #{block8_forward.2} parent=51 // pred_check_branch
          %391 = sbr.rel (%p389) target = $region56
        $region55: #{block8_forward.2} parent=51 // pred_region
          %s392 = sand.u32 %s34, 1
          %s393 = scalar_lea.sflag [#allocation3], %s392
          %s394 = sand.u32 %s34, 1
          %s395 = smul.addr %s394, 1088
          %s396 = scalar_lea.vmem [#allocation2], %s395
          %s397 = smul.u32 8, %s24
          %s399 = ssub.s32 17408, 17408
          %400 = vsyncadd %s393, %s399
          %s401 = smul.addr %s397, 17
          %s402 = smul.addr %s401, 128
          %s403 = scalar_lea.hbm %s0, %s402
          %s404 = sshll.u32 %s396, 4
          %s405 = int_to_ptr.vmem [resolvable:$true] %s404
          %410 = dma.hbm_to_vmem [thread:$0]  %s403, 17408, %s405, %s393, 2176, 2176, 136
        $region56: #{block8_forward.2} parent=51 // pred_fallthru
          _
      $region52: #{block8_forward.2} parent=5 // pred_fallthru
        _
      %p411 = scmp.le.s32.totalorder 1, %s24
      %p412 = scmp.lt.s32.totalorder %s24, 3
      %p413 = pnand %p411, %p412
      %p414 = pneg %p413
      // Predicated region
      $region57: #{block8_forward.2} parent=5 // pred_check
        _
      $region58: #{block8_forward.2} parent=5 // pred_check_branch
        %416 = sbr.rel (%p413) target = $region60
      $region59: #{block8_forward.2} parent=5 // pred_region
        %s417 = ssub.s32 %s24, 1
        %s418 = sand.u32 %s37, 1
        %s419 = scalar_lea.sflag [#allocation3], %s418
        %s420 = sand.u32 %s37, 1
        %s421 = smul.addr %s420, 1088
        %s422 = scalar_lea.vmem [#allocation2], %s421
        // Predicated region
        $region61: #{block8_forward.2} parent=59 // pred_check
          %p423 = pneg %p50
        $region62: #{block8_forward.2} parent=59 // pred_check_branch
          %425 = sbr.rel (%p423) target = $region64
        $region63: #{block8_forward.2} parent=59 // pred_region
          %426 = dma.done %s419, 17408
        $region64: #{block8_forward.2} parent=59 // pred_fallthru
          _
        // Predicated region
        $region65: #{block8_forward.2} parent=59 // pred_check
          %p427 = pneg %p71
        $region66: #{block8_forward.2} parent=59 // pred_check_branch
          %429 = sbr.rel (%p427) target = $region68
        $region67: #{block8_forward.2} parent=59 // pred_region
          %430 = dma.done [#allocation5], 49920
        $region68: #{block8_forward.2} parent=59 // pred_fallthru
          _
        // Predicated region
        $region69: #{block8_forward.2} parent=59 // pred_check
          %p431 = pneg %p92
        $region70: #{block8_forward.2} parent=59 // pred_check_branch
          %433 = sbr.rel (%p431) target = $region72
        $region71: #{block8_forward.2} parent=59 // pred_region
          %434 = dma.done [#allocation5], 48
        $region72: #{block8_forward.2} parent=59 // pred_fallthru
          _
        // Predicated region
        $region73: #{block8_forward.2} parent=59 // pred_check
          %p435 = pneg %p113
        $region74: #{block8_forward.2} parent=59 // pred_check_branch
          %437 = sbr.rel (%p435) target = $region76
        $region75: #{block8_forward.2} parent=59 // pred_region
          %438 = dma.done [#allocation8], 48
        $region76: #{block8_forward.2} parent=59 // pred_fallthru
          _
        // Predicated region
        $region77: #{block8_forward.2} parent=59 // pred_check
          %p439 = pneg %p134
        $region78: #{block8_forward.2} parent=59 // pred_check_branch
          %441 = sbr.rel (%p439) target = $region80
        $region79: #{block8_forward.2} parent=59 // pred_region
          %442 = dma.done [#allocation8], 9216
        $region80: #{block8_forward.2} parent=59 // pred_fallthru
          _
        // Predicated region
        $region81: #{block8_forward.2} parent=59 // pred_check
          %p443 = pneg %p155
        $region82: #{block8_forward.2} parent=59 // pred_check_branch
          %445 = sbr.rel (%p443) target = $region84
        $region83: #{block8_forward.2} parent=59 // pred_region
          %446 = dma.done [#allocation11], 32
        $region84: #{block8_forward.2} parent=59 // pred_fallthru
          _
        // Predicated region
        $region85: #{block8_forward.2} parent=59 // pred_check
          %p447 = pneg %p176
        $region86: #{block8_forward.2} parent=59 // pred_check_branch
          %449 = sbr.rel (%p447) target = $region88
        $region87: #{block8_forward.2} parent=59 // pred_region
          %450 = dma.done [#allocation11], 32
        $region88: #{block8_forward.2} parent=59 // pred_fallthru
          _
        // Predicated region
        $region89: #{block8_forward.2} parent=59 // pred_check
          %p451 = pneg %p197
        $region90: #{block8_forward.2} parent=59 // pred_check_branch
          %453 = sbr.rel (%p451) target = $region92
        $region91: #{block8_forward.2} parent=59 // pred_region
          %454 = dma.done [#allocation14], 10752
        $region92: #{block8_forward.2} parent=59 // pred_fallthru
          _
        // Predicated region
        $region93: #{block8_forward.2} parent=59 // pred_check
          %p455 = pneg %p218
        $region94: #{block8_forward.2} parent=59 // pred_check_branch
          %457 = sbr.rel (%p455) target = $region96
        $region95: #{block8_forward.2} parent=59 // pred_region
          %458 = dma.done [#allocation14], 32
        $region96: #{block8_forward.2} parent=59 // pred_fallthru
          _
        // Predicated region
        $region97: #{block8_forward.2} parent=59 // pred_check
          %p459 = pneg %p239
        $region98: #{block8_forward.2} parent=59 // pred_check_branch
          %461 = sbr.rel (%p459) target = $region100
        $region99: #{block8_forward.2} parent=59 // pred_region
          %462 = dma.done [#allocation17], 32
        $region100: #{block8_forward.2} parent=59 // pred_fallthru
          _
        %s463 = sand.u32 %s37, 1
        %s464 = scalar_lea.sflag [#allocation3], %s463
        %s465 = sand.u32 %s37, 1
        %s466 = smul.addr %s465, 1088
        %s467 = scalar_lea.vmem [#allocation2], %s466
        %p468 = pneg %p50
        %p469 = pneg %p47
        %p470 = pneg %p71
        %p471 = pneg %p68
        %p472 = pneg %p92
        %p473 = pneg %p89
        %p474 = pneg %p113
        %p475 = pneg %p110
        %p476 = pneg %p134
        %p477 = pneg %p131
        %p478 = pneg %p155
        %p479 = pneg %p152
        %p480 = pneg %p176
        %p481 = pneg %p173
        %p482 = pneg %p197
        %p483 = pneg %p194
        %p484 = pneg %p218
        %p485 = pneg %p215
        %p486 = pneg %p239
        %p487 = pneg %p236
        %p488 = pneg %p265
        %p489 = pneg %p262
        %s490 = smul.u32 8, %s29
        %p491 = scmp.lt.s32.totalorder %s490, 15
        %s492 = scalar_select %p491, %s490, 15
        %s493 = smul.addr %s492, 4
        %s494 = smul.addr %s493, 4
        %s495 = scalar_lea.vmem %s10, %s494
        %s496 = smul.u32 8, %s29
        %s497 = smul.u32 8, %s29
        %p498 = scmp.lt.s32.totalorder %s497, 15
        %s499 = scalar_select %p498, %s497, 15
        %s500 = smul.addr %s499, 4
        %s501 = smul.addr %s500, 4
        %s502 = scalar_lea.vmem %s10, %s501
        %s503 = smul.u32 8, %s29
        %v505 = vld [vmem:[%s422] sm:$0xff]
        %v506 = vld [vmem:[%s422 + $0x8] sm:$0xff]
        %v507 = vld [vmem:[%s422 + $0x10] sm:$0xff]
        %v508 = vld [vmem:[%s422 + $0x18] sm:$0xff]
        %v509 = vld [vmem:[%s422 + $0x20] sm:$0xff]
        %v510 = vld [vmem:[%s422 + $0x28] sm:$0xff]
        %v511 = vld [vmem:[%s422 + $0x30] sm:$0xff]
        %v512 = vld [vmem:[%s422 + $0x38] sm:$0xff]
        %v513 = vld [vmem:[%s422 + $0x40] sm:$0xff]
        %v514 = vld [vmem:[%s422 + $0x48] sm:$0xff]
        %v515 = vld [vmem:[%s422 + $0x50] sm:$0xff]
        %v516 = vld [vmem:[%s422 + $0x58] sm:$0xff]
        %v517 = vld [vmem:[%s422 + $0x60] sm:$0xff]
        %v518 = vld [vmem:[%s422 + $0x68] sm:$0xff]
        %v519 = vld [vmem:[%s422 + $0x70] sm:$0xff]
        %v520 = vld [vmem:[%s422 + $0x78] sm:$0xff]
        %v521 = vld [vmem:[%s422 + $0x80] sm:$0xff]
        %v522 = vld [vmem:[%s422 + $0x88] sm:$0xff]
        %v523 = vld [vmem:[%s422 + $0x90] sm:$0xff]
        %v524 = vld [vmem:[%s422 + $0x98] sm:$0xff]
        %v525 = vld [vmem:[%s422 + $0xa0] sm:$0xff]
        %v526 = vld [vmem:[%s422 + $0xa8] sm:$0xff]
        %v527 = vld [vmem:[%s422 + $0xb0] sm:$0xff]
        %v528 = vld [vmem:[%s422 + $0xb8] sm:$0xff]
        %v529 = vld [vmem:[%s422 + $0xc0] sm:$0xff]
        %v530 = vld [vmem:[%s422 + $0xc8] sm:$0xff]
        %v531 = vld [vmem:[%s422 + $0xd0] sm:$0xff]
        %v532 = vld [vmem:[%s422 + $0xd8] sm:$0xff]
        %v533 = vld [vmem:[%s422 + $0xe0] sm:$0xff]
        %v534 = vld [vmem:[%s422 + $0xe8] sm:$0xff]
        %v535 = vld [vmem:[%s422 + $0xf0] sm:$0xff]
        %v536 = vld [vmem:[%s422 + $0xf8] sm:$0xff]
        %v537 = vld [vmem:[%s422 + $0x100] sm:$0xff]
        %v538 = vld [vmem:[%s422 + $0x108] sm:$0xff]
        %v539 = vld [vmem:[%s422 + $0x110] sm:$0xff]
        %v540 = vld [vmem:[%s422 + $0x118] sm:$0xff]
        %v541 = vld [vmem:[%s422 + $0x120] sm:$0xff]
        %v542 = vld [vmem:[%s422 + $0x128] sm:$0xff]
        %v543 = vld [vmem:[%s422 + $0x130] sm:$0xff]
        %v544 = vld [vmem:[%s422 + $0x138] sm:$0xff]
        %v545 = vld [vmem:[%s422 + $0x140] sm:$0xff]
        %v546 = vld [vmem:[%s422 + $0x148] sm:$0xff]
        %v547 = vld [vmem:[%s422 + $0x150] sm:$0xff]
        %v548 = vld [vmem:[%s422 + $0x158] sm:$0xff]
        %v549 = vld [vmem:[%s422 + $0x160] sm:$0xff]
        %v550 = vld [vmem:[%s422 + $0x168] sm:$0xff]
        %v551 = vld [vmem:[%s422 + $0x170] sm:$0xff]
        %v552 = vld [vmem:[%s422 + $0x178] sm:$0xff]
        %v553 = vld [vmem:[%s422 + $0x180] sm:$0xff]
        %v554 = vld [vmem:[%s422 + $0x188] sm:$0xff]
        %v555 = vld [vmem:[%s422 + $0x190] sm:$0xff]
        %v556 = vld [vmem:[%s422 + $0x198] sm:$0xff]
        %v557 = vld [vmem:[%s422 + $0x1a0] sm:$0xff]
        %v558 = vld [vmem:[%s422 + $0x1a8] sm:$0xff]
        %v559 = vld [vmem:[%s422 + $0x1b0] sm:$0xff]
        %v560 = vld [vmem:[%s422 + $0x1b8] sm:$0xff]
        %v561 = vld [vmem:[%s422 + $0x1c0] sm:$0xff]
        %v562 = vld [vmem:[%s422 + $0x1c8] sm:$0xff]
        %v563 = vld [vmem:[%s422 + $0x1d0] sm:$0xff]
        %v564 = vld [vmem:[%s422 + $0x1d8] sm:$0xff]
        %v565 = vld [vmem:[%s422 + $0x1e0] sm:$0xff]
        %v566 = vld [vmem:[%s422 + $0x1e8] sm:$0xff]
        %v567 = vld [vmem:[%s422 + $0x1f0] sm:$0xff]
        %v568 = vld [vmem:[%s422 + $0x1f8] sm:$0xff]
        %v569 = vld [vmem:[%s422 + $0x200] sm:$0xff]
        %v570 = vld [vmem:[%s422 + $0x208] sm:$0xff]
        %v571 = vld [vmem:[%s422 + $0x210] sm:$0xff]
        %v572 = vld [vmem:[%s422 + $0x218] sm:$0xff]
        %v573 = vld [vmem:[%s422 + $0x220] sm:$0xff]
        %v574 = vld [vmem:[%s422 + $0x228] sm:$0xff]
        %v575 = vld [vmem:[%s422 + $0x230] sm:$0xff]
        %v576 = vld [vmem:[%s422 + $0x238] sm:$0xff]
        %v577 = vld [vmem:[%s422 + $0x240] sm:$0xff]
        %v578 = vld [vmem:[%s422 + $0x248] sm:$0xff]
        %v579 = vld [vmem:[%s422 + $0x250] sm:$0xff]
        %v580 = vld [vmem:[%s422 + $0x258] sm:$0xff]
        %v581 = vld [vmem:[%s422 + $0x260] sm:$0xff]
        %v582 = vld [vmem:[%s422 + $0x268] sm:$0xff]
        %v583 = vld [vmem:[%s422 + $0x270] sm:$0xff]
        %v584 = vld [vmem:[%s422 + $0x278] sm:$0xff]
        %v585 = vld [vmem:[%s422 + $0x280] sm:$0xff]
        %v586 = vld [vmem:[%s422 + $0x288] sm:$0xff]
        %v587 = vld [vmem:[%s422 + $0x290] sm:$0xff]
        %v588 = vld [vmem:[%s422 + $0x298] sm:$0xff]
        %v589 = vld [vmem:[%s422 + $0x2a0] sm:$0xff]
        %v590 = vld [vmem:[%s422 + $0x2a8] sm:$0xff]
        %v591 = vld [vmem:[%s422 + $0x2b0] sm:$0xff]
        %v592 = vld [vmem:[%s422 + $0x2b8] sm:$0xff]
        %v593 = vld [vmem:[%s422 + $0x2c0] sm:$0xff]
        %v594 = vld [vmem:[%s422 + $0x2c8] sm:$0xff]
        %v595 = vld [vmem:[%s422 + $0x2d0] sm:$0xff]
        %v596 = vld [vmem:[%s422 + $0x2d8] sm:$0xff]
        %v597 = vld [vmem:[%s422 + $0x2e0] sm:$0xff]
        %v598 = vld [vmem:[%s422 + $0x2e8] sm:$0xff]
        %v599 = vld [vmem:[%s422 + $0x2f0] sm:$0xff]
        %v600 = vld [vmem:[%s422 + $0x2f8] sm:$0xff]
        %v601 = vld [vmem:[%s422 + $0x300] sm:$0xff]
        %v602 = vld [vmem:[%s422 + $0x308] sm:$0xff]
        %v603 = vld [vmem:[%s422 + $0x310] sm:$0xff]
        %v604 = vld [vmem:[%s422 + $0x318] sm:$0xff]
        %v605 = vld [vmem:[%s422 + $0x320] sm:$0xff]
        %v606 = vld [vmem:[%s422 + $0x328] sm:$0xff]
        %v607 = vld [vmem:[%s422 + $0x330] sm:$0xff]
        %v608 = vld [vmem:[%s422 + $0x338] sm:$0xff]
        %v609 = vld [vmem:[%s422 + $0x340] sm:$0xff]
        %v610 = vld [vmem:[%s422 + $0x348] sm:$0xff]
        %v611 = vld [vmem:[%s422 + $0x350] sm:$0xff]
        %v612 = vld [vmem:[%s422 + $0x358] sm:$0xff]
        %v613 = vld [vmem:[%s422 + $0x360] sm:$0xff]
        %v614 = vld [vmem:[%s422 + $0x368] sm:$0xff]
        %v615 = vld [vmem:[%s422 + $0x370] sm:$0xff]
        %v616 = vld [vmem:[%s422 + $0x378] sm:$0xff]
        %v617 = vld [vmem:[%s422 + $0x380] sm:$0xff]
        %v618 = vld [vmem:[%s422 + $0x388] sm:$0xff]
        %v619 = vld [vmem:[%s422 + $0x390] sm:$0xff]
        %v620 = vld [vmem:[%s422 + $0x398] sm:$0xff]
        %v621 = vld [vmem:[%s422 + $0x3a0] sm:$0xff]
        %v622 = vld [vmem:[%s422 + $0x3a8] sm:$0xff]
        %v623 = vld [vmem:[%s422 + $0x3b0] sm:$0xff]
        %v624 = vld [vmem:[%s422 + $0x3b8] sm:$0xff]
        %v625 = vld [vmem:[%s422 + $0x3c0] sm:$0xff]
        %v626 = vld [vmem:[%s422 + $0x3c8] sm:$0xff]
        %v627 = vld [vmem:[%s422 + $0x3d0] sm:$0xff]
        %v628 = vld [vmem:[%s422 + $0x3d8] sm:$0xff]
        %v629 = vld [vmem:[%s422 + $0x3e0] sm:$0xff]
        %v630 = vld [vmem:[%s422 + $0x3e8] sm:$0xff]
        %v631 = vld [vmem:[%s422 + $0x3f0] sm:$0xff]
        %v632 = vld [vmem:[%s422 + $0x3f8] sm:$0xff]
        %v633 = vld [vmem:[%s422 + $0x400] sm:$0xff]
        %v634 = vld [vmem:[%s422 + $0x408] sm:$0xff]
        %v635 = vld [vmem:[%s422 + $0x410] sm:$0xff]
        %v636 = vld [vmem:[%s422 + $0x418] sm:$0xff]
        %v637 = vld [vmem:[%s422 + $0x420] sm:$0xff]
        %v638 = vld [vmem:[%s422 + $0x428] sm:$0xff]
        %v639 = vld [vmem:[%s422 + $0x430] sm:$0xff]
        %v640 = vld [vmem:[%s422 + $0x438] sm:$0xff]
        %v641 = vpack.c.bf16 %v522, %v505
        %v642 = vpack.c.bf16 %v523, %v506
        %v643 = vpack.c.bf16 %v524, %v507
        %v644 = vpack.c.bf16 %v525, %v508
        %v645 = vpack.c.bf16 %v526, %v509
        %v646 = vpack.c.bf16 %v527, %v510
        %v647 = vpack.c.bf16 %v528, %v511
        %v648 = vpack.c.bf16 %v529, %v512
        %v649 = vpack.c.bf16 %v530, %v513
        %v650 = vpack.c.bf16 %v531, %v514
        %v651 = vpack.c.bf16 %v532, %v515
        %v652 = vpack.c.bf16 %v533, %v516
        %v653 = vpack.c.bf16 %v534, %v517
        %v654 = vpack.c.bf16 %v535, %v518
        %v655 = vpack.c.bf16 %v536, %v519
        %v656 = vpack.c.bf16 %v537, %v520
        %v657 = vpack.c.bf16 %v538, %v521
        %v658 = vpack.c.bf16 %v556, %v539
        %v659 = vpack.c.bf16 %v557, %v540
        %v660 = vpack.c.bf16 %v558, %v541
        %v661 = vpack.c.bf16 %v559, %v542
        %v662 = vpack.c.bf16 %v560, %v543
        %v663 = vpack.c.bf16 %v561, %v544
        %v664 = vpack.c.bf16 %v562, %v545
        %v665 = vpack.c.bf16 %v563, %v546
        %v666 = vpack.c.bf16 %v564, %v547
        %v667 = vpack.c.bf16 %v565, %v548
        %v668 = vpack.c.bf16 %v566, %v549
        %v669 = vpack.c.bf16 %v567, %v550
        %v670 = vpack.c.bf16 %v568, %v551
        %v671 = vpack.c.bf16 %v569, %v552
        %v672 = vpack.c.bf16 %v570, %v553
        %v673 = vpack.c.bf16 %v571, %v554
        %v674 = vpack.c.bf16 %v572, %v555
        %v675 = vpack.c.bf16 %v590, %v573
        %v676 = vpack.c.bf16 %v591, %v574
        %v677 = vpack.c.bf16 %v592, %v575
        %v678 = vpack.c.bf16 %v593, %v576
        %v679 = vpack.c.bf16 %v594, %v577
        %v680 = vpack.c.bf16 %v595, %v578
        %v681 = vpack.c.bf16 %v596, %v579
        %v682 = vpack.c.bf16 %v597, %v580
        %v683 = vpack.c.bf16 %v598, %v581
        %v684 = vpack.c.bf16 %v599, %v582
        %v685 = vpack.c.bf16 %v600, %v583
        %v686 = vpack.c.bf16 %v601, %v584
        %v687 = vpack.c.bf16 %v602, %v585
        %v688 = vpack.c.bf16 %v603, %v586
        %v689 = vpack.c.bf16 %v604, %v587
        %v690 = vpack.c.bf16 %v605, %v588
        %v691 = vpack.c.bf16 %v606, %v589
        %v692 = vpack.c.bf16 %v624, %v607
        %v693 = vpack.c.bf16 %v625, %v608
        %v694 = vpack.c.bf16 %v626, %v609
        %v695 = vpack.c.bf16 %v627, %v610
        %v696 = vpack.c.bf16 %v628, %v611
        %v697 = vpack.c.bf16 %v629, %v612
        %v698 = vpack.c.bf16 %v630, %v613
        %v699 = vpack.c.bf16 %v631, %v614
        %v700 = vpack.c.bf16 %v632, %v615
        %v701 = vpack.c.bf16 %v633, %v616
        %v702 = vpack.c.bf16 %v634, %v617
        %v703 = vpack.c.bf16 %v635, %v618
        %v704 = vpack.c.bf16 %v636, %v619
        %v705 = vpack.c.bf16 %v637, %v620
        %v706 = vpack.c.bf16 %v638, %v621
        %v707 = vpack.c.bf16 %v639, %v622
        %v708 = vpack.c.bf16 %v640, %v623
        %v709 = vld [vmem:[#allocation4] sm:$0xff]
        %v710 = vld [vmem:[#allocation4 + $0x8] sm:$0xf]
        %v711 = vld [vmem:[#allocation4 + $0xc] sm:$0xff]
        %v712 = vld [vmem:[#allocation4 + $0x14] sm:$0xf]
        %v713 = vld [vmem:[#allocation4 + $0x18] sm:$0xff]
        %v714 = vld [vmem:[#allocation4 + $0x20] sm:$0xf]
        %v715 = vld [vmem:[#allocation4 + $0x24] sm:$0xff]
        %v716 = vld [vmem:[#allocation4 + $0x2c] sm:$0xf]
        %v717 = vld [vmem:[#allocation4 + $0x30] sm:$0xff]
        %v718 = vld [vmem:[#allocation4 + $0x38] sm:$0xf]
        %v719 = vld [vmem:[#allocation4 + $0x3c] sm:$0xff]
        %v720 = vld [vmem:[#allocation4 + $0x44] sm:$0xf]
        %v721 = vld [vmem:[#allocation4 + $0x48] sm:$0xff]
        %v722 = vld [vmem:[#allocation4 + $0x50] sm:$0xf]
        %v723 = vld [vmem:[#allocation4 + $0x54] sm:$0xff]
        %v724 = vld [vmem:[#allocation4 + $0x5c] sm:$0xf]
        %v725 = vld [vmem:[#allocation4 + $0x60] sm:$0xff]
        %v726 = vld [vmem:[#allocation4 + $0x68] sm:$0xf]
        %v727 = vld [vmem:[#allocation4 + $0x6c] sm:$0xff]
        %v728 = vld [vmem:[#allocation4 + $0x74] sm:$0xf]
        %v729 = vld [vmem:[#allocation4 + $0x78] sm:$0xff]
        %v730 = vld [vmem:[#allocation4 + $0x80] sm:$0xf]
        %v731 = vld [vmem:[#allocation4 + $0x84] sm:$0xff]
        %v732 = vld [vmem:[#allocation4 + $0x8c] sm:$0xf]
        %v733 = vld [vmem:[#allocation4 + $0x90] sm:$0xff]
        %v734 = vld [vmem:[#allocation4 + $0x98] sm:$0xf]
        %v735 = vld [vmem:[#allocation4 + $0x9c] sm:$0xff]
        %v736 = vld [vmem:[#allocation4 + $0xa4] sm:$0xf]
        %v737 = vld [vmem:[#allocation4 + $0xa8] sm:$0xff]
        %v738 = vld [vmem:[#allocation4 + $0xb0] sm:$0xf]
        %v739 = vld [vmem:[#allocation4 + $0xb4] sm:$0xff]
        %v740 = vld [vmem:[#allocation4 + $0xbc] sm:$0xf]
        %v741 = vld [vmem:[#allocation4 + $0xc0] sm:$0xff]
        %v742 = vld [vmem:[#allocation4 + $0xc8] sm:$0xf]
        %v743 = vld [vmem:[#allocation4 + $0xcc] sm:$0xff]
        %v744 = vld [vmem:[#allocation4 + $0xd4] sm:$0xf]
        %v745 = vld [vmem:[#allocation4 + $0xd8] sm:$0xff]
        %v746 = vld [vmem:[#allocation4 + $0xe0] sm:$0xf]
        %v747 = vld [vmem:[#allocation4 + $0xe4] sm:$0xff]
        %v748 = vld [vmem:[#allocation4 + $0xec] sm:$0xf]
        %v749 = vld [vmem:[#allocation4 + $0xf0] sm:$0xff]
        %v750 = vld [vmem:[#allocation4 + $0xf8] sm:$0xf]
        %v751 = vld [vmem:[#allocation4 + $0xfc] sm:$0xff]
        %v752 = vld [vmem:[#allocation4 + $0x104] sm:$0xf]
        %v753 = vld [vmem:[#allocation4 + $0x108] sm:$0xff]
        %v754 = vld [vmem:[#allocation4 + $0x110] sm:$0xf]
        %v755 = vld [vmem:[#allocation4 + $0x114] sm:$0xff]
        %v756 = vld [vmem:[#allocation4 + $0x11c] sm:$0xf]
        %v757 = vld [vmem:[#allocation4 + $0x120] sm:$0xff]
        %v758 = vld [vmem:[#allocation4 + $0x128] sm:$0xf]
        %v759 = vld [vmem:[#allocation4 + $0x12c] sm:$0xff]
        %v760 = vld [vmem:[#allocation4 + $0x134] sm:$0xf]
        %v761 = vld [vmem:[#allocation4 + $0x138] sm:$0xff]
        %v762 = vld [vmem:[#allocation4 + $0x140] sm:$0xf]
        %v763 = vld [vmem:[#allocation4 + $0x144] sm:$0xff]
        %v764 = vld [vmem:[#allocation4 + $0x14c] sm:$0xf]
        %v765 = vld [vmem:[#allocation4 + $0x150] sm:$0xff]
        %v766 = vld [vmem:[#allocation4 + $0x158] sm:$0xf]
        %v767 = vld [vmem:[#allocation4 + $0x15c] sm:$0xff]
        %v768 = vld [vmem:[#allocation4 + $0x164] sm:$0xf]
        %v769 = vld [vmem:[#allocation4 + $0x168] sm:$0xff]
        %v770 = vld [vmem:[#allocation4 + $0x170] sm:$0xf]
        %v771 = vld [vmem:[#allocation4 + $0x174] sm:$0xff]
        %v772 = vld [vmem:[#allocation4 + $0x17c] sm:$0xf]
        %v773 = vld [vmem:[#allocation4 + $0x180] sm:$0xff]
        %v774 = vld [vmem:[#allocation4 + $0x188] sm:$0xf]
        %v775 = vld [vmem:[#allocation4 + $0x18c] sm:$0xff]
        %v776 = vld [vmem:[#allocation4 + $0x194] sm:$0xf]
        %v777 = vld [vmem:[#allocation4 + $0x198] sm:$0xff]
        %v778 = vld [vmem:[#allocation4 + $0x1a0] sm:$0xf]
        %v779 = vld [vmem:[#allocation4 + $0x1a4] sm:$0xff]
        %v780 = vld [vmem:[#allocation4 + $0x1ac] sm:$0xf]
        %v781 = vld [vmem:[#allocation4 + $0x1b0] sm:$0xff]
        %v782 = vld [vmem:[#allocation4 + $0x1b8] sm:$0xf]
        %v783 = vld [vmem:[#allocation4 + $0x1bc] sm:$0xff]
        %v784 = vld [vmem:[#allocation4 + $0x1c4] sm:$0xf]
        %v785 = vld [vmem:[#allocation4 + $0x1c8] sm:$0xff]
        %v786 = vld [vmem:[#allocation4 + $0x1d0] sm:$0xf]
        %v787 = vld [vmem:[#allocation4 + $0x1d4] sm:$0xff]
        %v788 = vld [vmem:[#allocation4 + $0x1dc] sm:$0xf]
        %v789 = vld [vmem:[#allocation4 + $0x1e0] sm:$0xff]
        %v790 = vld [vmem:[#allocation4 + $0x1e8] sm:$0xf]
        %v791 = vld [vmem:[#allocation4 + $0x1ec] sm:$0xff]
        %v792 = vld [vmem:[#allocation4 + $0x1f4] sm:$0xf]
        %v793 = vld [vmem:[#allocation4 + $0x1f8] sm:$0xff]
        %v794 = vld [vmem:[#allocation4 + $0x200] sm:$0xf]
        %v795 = vld [vmem:[#allocation4 + $0x204] sm:$0xff]
        %v796 = vld [vmem:[#allocation4 + $0x20c] sm:$0xf]
        %v797 = vld [vmem:[#allocation4 + $0x210] sm:$0xff]
        %v798 = vld [vmem:[#allocation4 + $0x218] sm:$0xf]
        %v799 = vld [vmem:[#allocation4 + $0x21c] sm:$0xff]
        %v800 = vld [vmem:[#allocation4 + $0x224] sm:$0xf]
        %v801 = vld [vmem:[#allocation4 + $0x228] sm:$0xff]
        %v802 = vld [vmem:[#allocation4 + $0x230] sm:$0xf]
        %v803 = vld [vmem:[#allocation4 + $0x234] sm:$0xff]
        %v804 = vld [vmem:[#allocation4 + $0x23c] sm:$0xf]
        %v805 = vld [vmem:[#allocation4 + $0x240] sm:$0xff]
        %v806 = vld [vmem:[#allocation4 + $0x248] sm:$0xf]
        %v807 = vld [vmem:[#allocation4 + $0x24c] sm:$0xff]
        %v808 = vld [vmem:[#allocation4 + $0x254] sm:$0xf]
        %v809 = vld [vmem:[#allocation4 + $0x258] sm:$0xff]
        %v810 = vld [vmem:[#allocation4 + $0x260] sm:$0xf]
        %v811 = vld [vmem:[#allocation4 + $0x264] sm:$0xff]
        %v812 = vld [vmem:[#allocation4 + $0x26c] sm:$0xf]
        %v813 = vld [vmem:[#allocation4 + $0x270] sm:$0xff]
        %v814 = vld [vmem:[#allocation4 + $0x278] sm:$0xf]
        %v815 = vld [vmem:[#allocation4 + $0x27c] sm:$0xff]
        %v816 = vld [vmem:[#allocation4 + $0x284] sm:$0xf]
        %v817 = vld [vmem:[#allocation4 + $0x288] sm:$0xff]
        %v818 = vld [vmem:[#allocation4 + $0x290] sm:$0xf]
        %v819 = vld [vmem:[#allocation4 + $0x294] sm:$0xff]
        %v820 = vld [vmem:[#allocation4 + $0x29c] sm:$0xf]
        %v821 = vld [vmem:[#allocation4 + $0x2a0] sm:$0xff]
        %v822 = vld [vmem:[#allocation4 + $0x2a8] sm:$0xf]
        %v823 = vld [vmem:[#allocation4 + $0x2ac] sm:$0xff]
        %v824 = vld [vmem:[#allocation4 + $0x2b4] sm:$0xf]
        %v825 = vld [vmem:[#allocation4 + $0x2b8] sm:$0xff]
        %v826 = vld [vmem:[#allocation4 + $0x2c0] sm:$0xf]
        %v827 = vld [vmem:[#allocation4 + $0x2c4] sm:$0xff]
        %v828 = vld [vmem:[#allocation4 + $0x2cc] sm:$0xf]
        %v829 = vld [vmem:[#allocation4 + $0x2d0] sm:$0xff]
        %v830 = vld [vmem:[#allocation4 + $0x2d8] sm:$0xf]
        %v831 = vld [vmem:[#allocation4 + $0x2dc] sm:$0xff]
        %v832 = vld [vmem:[#allocation4 + $0x2e4] sm:$0xf]
        %v833 = vld [vmem:[#allocation4 + $0x2e8] sm:$0xff]
        %v834 = vld [vmem:[#allocation4 + $0x2f0] sm:$0xf]
        %v835 = vld [vmem:[#allocation4 + $0x2f4] sm:$0xff]
        %v836 = vld [vmem:[#allocation4 + $0x2fc] sm:$0xf]
        %v837 = vld [vmem:[#allocation4 + $0x300] sm:$0xff]
        %v838 = vld [vmem:[#allocation4 + $0x308] sm:$0xf]
        %v839 = vld [vmem:[#allocation4 + $0x30c] sm:$0xff]
        %v840 = vld [vmem:[#allocation4 + $0x314] sm:$0xf]
        %v841 = vld [vmem:[#allocation4 + $0x318] sm:$0xff]
        %v842 = vld [vmem:[#allocation4 + $0x320] sm:$0xf]
        %v843 = vld [vmem:[#allocation4 + $0x324] sm:$0xff]
        %v844 = vld [vmem:[#allocation4 + $0x32c] sm:$0xf]
        %v845 = vld [vmem:[#allocation4 + $0x330] sm:$0xff]
        %v846 = vld [vmem:[#allocation4 + $0x338] sm:$0xf]
        %v847 = vld [vmem:[#allocation4 + $0x33c] sm:$0xff]
        %v848 = vld [vmem:[#allocation4 + $0x344] sm:$0xf]
        %v849 = vld [vmem:[#allocation4 + $0x348] sm:$0xff]
        %v850 = vld [vmem:[#allocation4 + $0x350] sm:$0xf]
        %v851 = vld [vmem:[#allocation4 + $0x354] sm:$0xff]
        %v852 = vld [vmem:[#allocation4 + $0x35c] sm:$0xf]
        %v853 = vld [vmem:[#allocation4 + $0x360] sm:$0xff]
        %v854 = vld [vmem:[#allocation4 + $0x368] sm:$0xf]
        %v855 = vld [vmem:[#allocation4 + $0x36c] sm:$0xff]
        %v856 = vld [vmem:[#allocation4 + $0x374] sm:$0xf]
        %v857 = vld [vmem:[#allocation4 + $0x378] sm:$0xff]
        %v858 = vld [vmem:[#allocation4 + $0x380] sm:$0xf]
        %v859 = vld [vmem:[#allocation4 + $0x384] sm:$0xff]
        %v860 = vld [vmem:[#allocation4 + $0x38c] sm:$0xf]
        %v861 = vld [vmem:[#allocation4 + $0x390] sm:$0xff]
        %v862 = vld [vmem:[#allocation4 + $0x398] sm:$0xf]
        %v863 = vld [vmem:[#allocation4 + $0x39c] sm:$0xff]
        %v864 = vld [vmem:[#allocation4 + $0x3a4] sm:$0xf]
        %v865 = vld [vmem:[#allocation4 + $0x3a8] sm:$0xff]
        %v866 = vld [vmem:[#allocation4 + $0x3b0] sm:$0xf]
        %v867 = vld [vmem:[#allocation4 + $0x3b4] sm:$0xff]
        %v868 = vld [vmem:[#allocation4 + $0x3bc] sm:$0xf]
        %v869 = vld [vmem:[#allocation4 + $0x3c0] sm:$0xff]
        %v870 = vld [vmem:[#allocation4 + $0x3c8] sm:$0xf]
        %v871 = vld [vmem:[#allocation4 + $0x3cc] sm:$0xff]
        %v872 = vld [vmem:[#allocation4 + $0x3d4] sm:$0xf]
        %v873 = vld [vmem:[#allocation4 + $0x3d8] sm:$0xff]
        %v874 = vld [vmem:[#allocation4 + $0x3e0] sm:$0xf]
        %v875 = vld [vmem:[#allocation4 + $0x3e4] sm:$0xff]
        %v876 = vld [vmem:[#allocation4 + $0x3ec] sm:$0xf]
        %v877 = vld [vmem:[#allocation4 + $0x3f0] sm:$0xff]
        %v878 = vld [vmem:[#allocation4 + $0x3f8] sm:$0xf]
        %v879 = vld [vmem:[#allocation4 + $0x3fc] sm:$0xff]
        %v880 = vld [vmem:[#allocation4 + $0x404] sm:$0xf]
        %v881 = vld [vmem:[#allocation4 + $0x408] sm:$0xff]
        %v882 = vld [vmem:[#allocation4 + $0x410] sm:$0xf]
        %v883 = vld [vmem:[#allocation4 + $0x414] sm:$0xff]
        %v884 = vld [vmem:[#allocation4 + $0x41c] sm:$0xf]
        %v885 = vld [vmem:[#allocation4 + $0x420] sm:$0xff]
        %v886 = vld [vmem:[#allocation4 + $0x428] sm:$0xf]
        %v887 = vld [vmem:[#allocation4 + $0x42c] sm:$0xff]
        %v888 = vld [vmem:[#allocation4 + $0x434] sm:$0xf]
        %v889 = vld [vmem:[#allocation4 + $0x438] sm:$0xff]
        %v890 = vld [vmem:[#allocation4 + $0x440] sm:$0xf]
        %v891 = vld [vmem:[#allocation4 + $0x444] sm:$0xff]
        %v892 = vld [vmem:[#allocation4 + $0x44c] sm:$0xf]
        %v893 = vld [vmem:[#allocation4 + $0x450] sm:$0xff]
        %v894 = vld [vmem:[#allocation4 + $0x458] sm:$0xf]
        %v895 = vld [vmem:[#allocation4 + $0x45c] sm:$0xff]
        %v896 = vld [vmem:[#allocation4 + $0x464] sm:$0xf]
        %v897 = vld [vmem:[#allocation4 + $0x468] sm:$0xff]
        %v898 = vld [vmem:[#allocation4 + $0x470] sm:$0xf]
        %v899 = vld [vmem:[#allocation4 + $0x474] sm:$0xff]
        %v900 = vld [vmem:[#allocation4 + $0x47c] sm:$0xf]
        %v901 = vld [vmem:[#allocation4 + $0x480] sm:$0xff]
        %v902 = vld [vmem:[#allocation4 + $0x488] sm:$0xf]
        %v903 = vld [vmem:[#allocation4 + $0x48c] sm:$0xff]
        %v904 = vld [vmem:[#allocation4 + $0x494] sm:$0xf]
        %v905 = vld [vmem:[#allocation4 + $0x498] sm:$0xff]
        %v906 = vld [vmem:[#allocation4 + $0x4a0] sm:$0xf]
        %v907 = vld [vmem:[#allocation4 + $0x4a4] sm:$0xff]
        %v908 = vld [vmem:[#allocation4 + $0x4ac] sm:$0xf]
        %v909 = vld [vmem:[#allocation4 + $0x4b0] sm:$0xff]
        %v910 = vld [vmem:[#allocation4 + $0x4b8] sm:$0xf]
        %v911 = vld [vmem:[#allocation4 + $0x4bc] sm:$0xff]
        %v912 = vld [vmem:[#allocation4 + $0x4c4] sm:$0xf]
        %v913 = vld [vmem:[#allocation4 + $0x4c8] sm:$0xff]
        %v914 = vld [vmem:[#allocation4 + $0x4d0] sm:$0xf]
        %v915 = vld [vmem:[#allocation4 + $0x4d4] sm:$0xff]
        %v916 = vld [vmem:[#allocation4 + $0x4dc] sm:$0xf]
        %v917 = vld [vmem:[#allocation4 + $0x4e0] sm:$0xff]
        %v918 = vld [vmem:[#allocation4 + $0x4e8] sm:$0xf]
        %v919 = vld [vmem:[#allocation4 + $0x4ec] sm:$0xff]
        %v920 = vld [vmem:[#allocation4 + $0x4f4] sm:$0xf]
        %v921 = vld [vmem:[#allocation4 + $0x4f8] sm:$0xff]
        %v922 = vld [vmem:[#allocation4 + $0x500] sm:$0xf]
        %v923 = vld [vmem:[#allocation4 + $0x504] sm:$0xff]
        %v924 = vld [vmem:[#allocation4 + $0x50c] sm:$0xf]
        %v925 = vld [vmem:[#allocation4 + $0x510] sm:$0xff]
        %v926 = vld [vmem:[#allocation4 + $0x518] sm:$0xf]
        %v927 = vld [vmem:[#allocation4 + $0x51c] sm:$0xff]
        %v928 = vld [vmem:[#allocation4 + $0x524] sm:$0xf]
        %v929 = vld [vmem:[#allocation4 + $0x528] sm:$0xff]
        %v930 = vld [vmem:[#allocation4 + $0x530] sm:$0xf]
        %v931 = vld [vmem:[#allocation4 + $0x534] sm:$0xff]
        %v932 = vld [vmem:[#allocation4 + $0x53c] sm:$0xf]
        %v933 = vld [vmem:[#allocation4 + $0x540] sm:$0xff]
        %v934 = vld [vmem:[#allocation4 + $0x548] sm:$0xf]
        %v935 = vld [vmem:[#allocation4 + $0x54c] sm:$0xff]
        %v936 = vld [vmem:[#allocation4 + $0x554] sm:$0xf]
        %v937 = vld [vmem:[#allocation4 + $0x558] sm:$0xff]
        %v938 = vld [vmem:[#allocation4 + $0x560] sm:$0xf]
        %v939 = vld [vmem:[#allocation4 + $0x564] sm:$0xff]
        %v940 = vld [vmem:[#allocation4 + $0x56c] sm:$0xf]
        %v941 = vld [vmem:[#allocation4 + $0x570] sm:$0xff]
        %v942 = vld [vmem:[#allocation4 + $0x578] sm:$0xf]
        %v943 = vld [vmem:[#allocation4 + $0x57c] sm:$0xff]
        %v944 = vld [vmem:[#allocation4 + $0x584] sm:$0xf]
        %v945 = vld [vmem:[#allocation4 + $0x588] sm:$0xff]
        %v946 = vld [vmem:[#allocation4 + $0x590] sm:$0xf]
        %v947 = vld [vmem:[#allocation4 + $0x594] sm:$0xff]
        %v948 = vld [vmem:[#allocation4 + $0x59c] sm:$0xf]
        %v949 = vld [vmem:[#allocation4 + $0x5a0] sm:$0xff]
        %v950 = vld [vmem:[#allocation4 + $0x5a8] sm:$0xf]
        %v951 = vld [vmem:[#allocation4 + $0x5ac] sm:$0xff]
        %v952 = vld [vmem:[#allocation4 + $0x5b4] sm:$0xf]
        %v953 = vld [vmem:[#allocation4 + $0x5b8] sm:$0xff]
        %v954 = vld [vmem:[#allocation4 + $0x5c0] sm:$0xf]
        %v955 = vld [vmem:[#allocation4 + $0x5c4] sm:$0xff]
        %v956 = vld [vmem:[#allocation4 + $0x5cc] sm:$0xf]
        %v957 = vld [vmem:[#allocation4 + $0x5d0] sm:$0xff]
        %v958 = vld [vmem:[#allocation4 + $0x5d8] sm:$0xf]
        %v959 = vld [vmem:[#allocation4 + $0x5dc] sm:$0xff]
        %v960 = vld [vmem:[#allocation4 + $0x5e4] sm:$0xf]
        %v961 = vld [vmem:[#allocation4 + $0x5e8] sm:$0xff]
        %v962 = vld [vmem:[#allocation4 + $0x5f0] sm:$0xf]
        %v963 = vld [vmem:[#allocation4 + $0x5f4] sm:$0xff]
        %v964 = vld [vmem:[#allocation4 + $0x5fc] sm:$0xf]
        %v965 = vld [vmem:[#allocation4 + $0x600] sm:$0xff]
        %v966 = vld [vmem:[#allocation4 + $0x608] sm:$0xf]
        %v967 = vld [vmem:[#allocation4 + $0x60c] sm:$0xff]
        %v968 = vld [vmem:[#allocation4 + $0x614] sm:$0xf]
        %v969 = vld [vmem:[#allocation4 + $0x618] sm:$0xff]
        %v970 = vld [vmem:[#allocation4 + $0x620] sm:$0xf]
        %v971 = vld [vmem:[#allocation4 + $0x624] sm:$0xff]
        %v972 = vld [vmem:[#allocation4 + $0x62c] sm:$0xf]
        %v973 = vld [vmem:[#allocation4 + $0x630] sm:$0xff]
        %v974 = vld [vmem:[#allocation4 + $0x638] sm:$0xf]
        %v975 = vld [vmem:[#allocation4 + $0x63c] sm:$0xff]
        %v976 = vld [vmem:[#allocation4 + $0x644] sm:$0xf]
        %v977 = vld [vmem:[#allocation4 + $0x648] sm:$0xff]
        %v978 = vld [vmem:[#allocation4 + $0x650] sm:$0xf]
        %v979 = vld [vmem:[#allocation4 + $0x654] sm:$0xff]
        %v980 = vld [vmem:[#allocation4 + $0x65c] sm:$0xf]
        %v981 = vld [vmem:[#allocation4 + $0x660] sm:$0xff]
        %v982 = vld [vmem:[#allocation4 + $0x668] sm:$0xf]
        %v983 = vld [vmem:[#allocation4 + $0x66c] sm:$0xff]
        %v984 = vld [vmem:[#allocation4 + $0x674] sm:$0xf]
        %v985 = vld [vmem:[#allocation4 + $0x678] sm:$0xff]
        %v986 = vld [vmem:[#allocation4 + $0x680] sm:$0xf]
        %v987 = vld [vmem:[#allocation4 + $0x684] sm:$0xff]
        %v988 = vld [vmem:[#allocation4 + $0x68c] sm:$0xf]
        %v989 = vld [vmem:[#allocation4 + $0x690] sm:$0xff]
        %v990 = vld [vmem:[#allocation4 + $0x698] sm:$0xf]
        %v991 = vld [vmem:[#allocation4 + $0x69c] sm:$0xff]
        %v992 = vld [vmem:[#allocation4 + $0x6a4] sm:$0xf]
        %v993 = vld [vmem:[#allocation4 + $0x6a8] sm:$0xff]
        %v994 = vld [vmem:[#allocation4 + $0x6b0] sm:$0xf]
        %v995 = vld [vmem:[#allocation4 + $0x6b4] sm:$0xff]
        %v996 = vld [vmem:[#allocation4 + $0x6bc] sm:$0xf]
        %v997 = vld [vmem:[#allocation4 + $0x6c0] sm:$0xff]
        %v998 = vld [vmem:[#allocation4 + $0x6c8] sm:$0xf]
        %v999 = vld [vmem:[#allocation4 + $0x6cc] sm:$0xff]
        %v1000 = vld [vmem:[#allocation4 + $0x6d4] sm:$0xf]
        %v1001 = vld [vmem:[#allocation4 + $0x6d8] sm:$0xff]
        %v1002 = vld [vmem:[#allocation4 + $0x6e0] sm:$0xf]
        %v1003 = vld [vmem:[#allocation4 + $0x6e4] sm:$0xff]
        %v1004 = vld [vmem:[#allocation4 + $0x6ec] sm:$0xf]
        %v1005 = vld [vmem:[#allocation4 + $0x6f0] sm:$0xff]
        %v1006 = vld [vmem:[#allocation4 + $0x6f8] sm:$0xf]
        %v1007 = vld [vmem:[#allocation4 + $0x6fc] sm:$0xff]
        %v1008 = vld [vmem:[#allocation4 + $0x704] sm:$0xf]
        %v1009 = vld [vmem:[#allocation4 + $0x708] sm:$0xff]
        %v1010 = vld [vmem:[#allocation4 + $0x710] sm:$0xf]
        %v1011 = vld [vmem:[#allocation4 + $0x714] sm:$0xff]
        %v1012 = vld [vmem:[#allocation4 + $0x71c] sm:$0xf]
        %v1013 = vld [vmem:[#allocation4 + $0x720] sm:$0xff]
        %v1014 = vld [vmem:[#allocation4 + $0x728] sm:$0xf]
        %v1015 = vld [vmem:[#allocation4 + $0x72c] sm:$0xff]
        %v1016 = vld [vmem:[#allocation4 + $0x734] sm:$0xf]
        %v1017 = vld [vmem:[#allocation4 + $0x738] sm:$0xff]
        %v1018 = vld [vmem:[#allocation4 + $0x740] sm:$0xf]
        %v1019 = vld [vmem:[#allocation4 + $0x744] sm:$0xff]
        %v1020 = vld [vmem:[#allocation4 + $0x74c] sm:$0xf]
        %v1021 = vld [vmem:[#allocation4 + $0x750] sm:$0xff]
        %v1022 = vld [vmem:[#allocation4 + $0x758] sm:$0xf]
        %v1023 = vld [vmem:[#allocation4 + $0x75c] sm:$0xff]
        %v1024 = vld [vmem:[#allocation4 + $0x764] sm:$0xf]
        %v1025 = vld [vmem:[#allocation4 + $0x768] sm:$0xff]
        %v1026 = vld [vmem:[#allocation4 + $0x770] sm:$0xf]
        %v1027 = vld [vmem:[#allocation4 + $0x774] sm:$0xff]
        %v1028 = vld [vmem:[#allocation4 + $0x77c] sm:$0xf]
        %v1029 = vld [vmem:[#allocation4 + $0x780] sm:$0xff]
        %v1030 = vld [vmem:[#allocation4 + $0x788] sm:$0xf]
        %v1031 = vld [vmem:[#allocation4 + $0x78c] sm:$0xff]
        %v1032 = vld [vmem:[#allocation4 + $0x794] sm:$0xf]
        %v1033 = vld [vmem:[#allocation4 + $0x798] sm:$0xff]
        %v1034 = vld [vmem:[#allocation4 + $0x7a0] sm:$0xf]
        %v1035 = vld [vmem:[#allocation4 + $0x7a4] sm:$0xff]
        %v1036 = vld [vmem:[#allocation4 + $0x7ac] sm:$0xf]
        %v1037 = vld [vmem:[#allocation4 + $0x7b0] sm:$0xff]
        %v1038 = vld [vmem:[#allocation4 + $0x7b8] sm:$0xf]
        %v1039 = vld [vmem:[#allocation4 + $0x7bc] sm:$0xff]
        %v1040 = vld [vmem:[#allocation4 + $0x7c4] sm:$0xf]
        %v1041 = vld [vmem:[#allocation4 + $0x7c8] sm:$0xff]
        %v1042 = vld [vmem:[#allocation4 + $0x7d0] sm:$0xf]
        %v1043 = vld [vmem:[#allocation4 + $0x7d4] sm:$0xff]
        %v1044 = vld [vmem:[#allocation4 + $0x7dc] sm:$0xf]
        %v1045 = vld [vmem:[#allocation4 + $0x7e0] sm:$0xff]
        %v1046 = vld [vmem:[#allocation4 + $0x7e8] sm:$0xf]
        %v1047 = vld [vmem:[#allocation4 + $0x7ec] sm:$0xff]
        %v1048 = vld [vmem:[#allocation4 + $0x7f4] sm:$0xf]
        %v1049 = vld [vmem:[#allocation4 + $0x7f8] sm:$0xff]
        %v1050 = vld [vmem:[#allocation4 + $0x800] sm:$0xf]
        %v1051 = vld [vmem:[#allocation4 + $0x804] sm:$0xff]
        %v1052 = vld [vmem:[#allocation4 + $0x80c] sm:$0xf]
        %v1053 = vld [vmem:[#allocation4 + $0x810] sm:$0xff]
        %v1054 = vld [vmem:[#allocation4 + $0x818] sm:$0xf]
        %v1055 = vld [vmem:[#allocation4 + $0x81c] sm:$0xff]
        %v1056 = vld [vmem:[#allocation4 + $0x824] sm:$0xf]
        %v1057 = vld [vmem:[#allocation4 + $0x828] sm:$0xff]
        %v1058 = vld [vmem:[#allocation4 + $0x830] sm:$0xf]
        %v1059 = vld [vmem:[#allocation4 + $0x834] sm:$0xff]
        %v1060 = vld [vmem:[#allocation4 + $0x83c] sm:$0xf]
        %v1061 = vld [vmem:[#allocation4 + $0x840] sm:$0xff]
        %v1062 = vld [vmem:[#allocation4 + $0x848] sm:$0xf]
        %v1063 = vld [vmem:[#allocation4 + $0x84c] sm:$0xff]
        %v1064 = vld [vmem:[#allocation4 + $0x854] sm:$0xf]
        %v1065 = vld [vmem:[#allocation4 + $0x858] sm:$0xff]
        %v1066 = vld [vmem:[#allocation4 + $0x860] sm:$0xf]
        %v1067 = vld [vmem:[#allocation4 + $0x864] sm:$0xff]
        %v1068 = vld [vmem:[#allocation4 + $0x86c] sm:$0xf]
        %v1069 = vld [vmem:[#allocation4 + $0x870] sm:$0xff]
        %v1070 = vld [vmem:[#allocation4 + $0x878] sm:$0xf]
        %v1071 = vld [vmem:[#allocation4 + $0x87c] sm:$0xff]
        %v1072 = vld [vmem:[#allocation4 + $0x884] sm:$0xf]
        %v1073 = vld [vmem:[#allocation4 + $0x888] sm:$0xff]
        %v1074 = vld [vmem:[#allocation4 + $0x890] sm:$0xf]
        %v1075 = vld [vmem:[#allocation4 + $0x894] sm:$0xff]
        %v1076 = vld [vmem:[#allocation4 + $0x89c] sm:$0xf]
        %v1077 = vld [vmem:[#allocation4 + $0x8a0] sm:$0xff]
        %v1078 = vld [vmem:[#allocation4 + $0x8a8] sm:$0xf]
        %v1079 = vld [vmem:[#allocation4 + $0x8ac] sm:$0xff]
        %v1080 = vld [vmem:[#allocation4 + $0x8b4] sm:$0xf]
        %v1081 = vld [vmem:[#allocation4 + $0x8b8] sm:$0xff]
        %v1082 = vld [vmem:[#allocation4 + $0x8c0] sm:$0xf]
        %v1083 = vld [vmem:[#allocation4 + $0x8c4] sm:$0xff]
        %v1084 = vld [vmem:[#allocation4 + $0x8cc] sm:$0xf]
        %v1085 = vld [vmem:[#allocation4 + $0x8d0] sm:$0xff]
        %v1086 = vld [vmem:[#allocation4 + $0x8d8] sm:$0xf]
        %v1087 = vld [vmem:[#allocation4 + $0x8dc] sm:$0xff]
        %v1088 = vld [vmem:[#allocation4 + $0x8e4] sm:$0xf]
        %v1089 = vld [vmem:[#allocation4 + $0x8e8] sm:$0xff]
        %v1090 = vld [vmem:[#allocation4 + $0x8f0] sm:$0xf]
        %v1091 = vld [vmem:[#allocation4 + $0x8f4] sm:$0xff]
        %v1092 = vld [vmem:[#allocation4 + $0x8fc] sm:$0xf]
        %v1093 = vld [vmem:[#allocation4 + $0x900] sm:$0xff]
        %v1094 = vld [vmem:[#allocation4 + $0x908] sm:$0xf]
        %v1095 = vld [vmem:[#allocation4 + $0x90c] sm:$0xff]
        %v1096 = vld [vmem:[#allocation4 + $0x914] sm:$0xf]
        %v1097 = vld [vmem:[#allocation4 + $0x918] sm:$0xff]
        %v1098 = vld [vmem:[#allocation4 + $0x920] sm:$0xf]
        %v1099 = vld [vmem:[#allocation4 + $0x924] sm:$0xff]
        %v1100 = vld [vmem:[#allocation4 + $0x92c] sm:$0xf]
        %v1101 = vld [vmem:[#allocation4 + $0x930] sm:$0xff]
        %v1102 = vld [vmem:[#allocation4 + $0x938] sm:$0xf]
        %v1103 = vld [vmem:[#allocation4 + $0x93c] sm:$0xff]
        %v1104 = vld [vmem:[#allocation4 + $0x944] sm:$0xf]
        %v1105 = vld [vmem:[#allocation4 + $0x948] sm:$0xff]
        %v1106 = vld [vmem:[#allocation4 + $0x950] sm:$0xf]
        %v1107 = vld [vmem:[#allocation4 + $0x954] sm:$0xff]
        %v1108 = vld [vmem:[#allocation4 + $0x95c] sm:$0xf]
        %v1109 = vld [vmem:[#allocation4 + $0x960] sm:$0xff]
        %v1110 = vld [vmem:[#allocation4 + $0x968] sm:$0xf]
        %v1111 = vld [vmem:[#allocation4 + $0x96c] sm:$0xff]
        %v1112 = vld [vmem:[#allocation4 + $0x974] sm:$0xf]
        %v1113 = vld [vmem:[#allocation4 + $0x978] sm:$0xff]
        %v1114 = vld [vmem:[#allocation4 + $0x980] sm:$0xf]
        %v1115 = vld [vmem:[#allocation4 + $0x984] sm:$0xff]
        %v1116 = vld [vmem:[#allocation4 + $0x98c] sm:$0xf]
        %v1117 = vld [vmem:[#allocation4 + $0x990] sm:$0xff]
        %v1118 = vld [vmem:[#allocation4 + $0x998] sm:$0xf]
        %v1119 = vld [vmem:[#allocation4 + $0x99c] sm:$0xff]
        %v1120 = vld [vmem:[#allocation4 + $0x9a4] sm:$0xf]
        %v1121 = vld [vmem:[#allocation4 + $0x9a8] sm:$0xff]
        %v1122 = vld [vmem:[#allocation4 + $0x9b0] sm:$0xf]
        %v1123 = vld [vmem:[#allocation4 + $0x9b4] sm:$0xff]
        %v1124 = vld [vmem:[#allocation4 + $0x9bc] sm:$0xf]
        %v1125 = vld [vmem:[#allocation4 + $0x9c0] sm:$0xff]
        %v1126 = vld [vmem:[#allocation4 + $0x9c8] sm:$0xf]
        %v1127 = vld [vmem:[#allocation4 + $0x9cc] sm:$0xff]
        %v1128 = vld [vmem:[#allocation4 + $0x9d4] sm:$0xf]
        %v1129 = vld [vmem:[#allocation4 + $0x9d8] sm:$0xff]
        %v1130 = vld [vmem:[#allocation4 + $0x9e0] sm:$0xf]
        %v1131 = vld [vmem:[#allocation4 + $0x9e4] sm:$0xff]
        %v1132 = vld [vmem:[#allocation4 + $0x9ec] sm:$0xf]
        %v1133 = vld [vmem:[#allocation4 + $0x9f0] sm:$0xff]
        %v1134 = vld [vmem:[#allocation4 + $0x9f8] sm:$0xf]
        %v1135 = vld [vmem:[#allocation4 + $0x9fc] sm:$0xff]
        %v1136 = vld [vmem:[#allocation4 + $0xa04] sm:$0xf]
        %v1137 = vld [vmem:[#allocation4 + $0xa08] sm:$0xff]
        %v1138 = vld [vmem:[#allocation4 + $0xa10] sm:$0xf]
        %v1139 = vld [vmem:[#allocation4 + $0xa14] sm:$0xff]
        %v1140 = vld [vmem:[#allocation4 + $0xa1c] sm:$0xf]
        %v1141 = vld [vmem:[#allocation4 + $0xa20] sm:$0xff]
        %v1142 = vld [vmem:[#allocation4 + $0xa28] sm:$0xf]
        %v1143 = vld [vmem:[#allocation4 + $0xa2c] sm:$0xff]
        %v1144 = vld [vmem:[#allocation4 + $0xa34] sm:$0xf]
        %v1145 = vld [vmem:[#allocation4 + $0xa38] sm:$0xff]
        %v1146 = vld [vmem:[#allocation4 + $0xa40] sm:$0xf]
        %v1147 = vld [vmem:[#allocation4 + $0xa44] sm:$0xff]
        %v1148 = vld [vmem:[#allocation4 + $0xa4c] sm:$0xf]
        %v1149 = vld [vmem:[#allocation4 + $0xa50] sm:$0xff]
        %v1150 = vld [vmem:[#allocation4 + $0xa58] sm:$0xf]
        %v1151 = vld [vmem:[#allocation4 + $0xa5c] sm:$0xff]
        %v1152 = vld [vmem:[#allocation4 + $0xa64] sm:$0xf]
        %v1153 = vld [vmem:[#allocation4 + $0xa68] sm:$0xff]
        %v1154 = vld [vmem:[#allocation4 + $0xa70] sm:$0xf]
        %v1155 = vld [vmem:[#allocation4 + $0xa74] sm:$0xff]
        %v1156 = vld [vmem:[#allocation4 + $0xa7c] sm:$0xf]
        %v1157 = vld [vmem:[#allocation4 + $0xa80] sm:$0xff]
        %v1158 = vld [vmem:[#allocation4 + $0xa88] sm:$0xf]
        %v1159 = vld [vmem:[#allocation4 + $0xa8c] sm:$0xff]
        %v1160 = vld [vmem:[#allocation4 + $0xa94] sm:$0xf]
        %v1161 = vld [vmem:[#allocation4 + $0xa98] sm:$0xff]
        %v1162 = vld [vmem:[#allocation4 + $0xaa0] sm:$0xf]
        %v1163 = vld [vmem:[#allocation4 + $0xaa4] sm:$0xff]
        %v1164 = vld [vmem:[#allocation4 + $0xaac] sm:$0xf]
        %v1165 = vld [vmem:[#allocation4 + $0xab0] sm:$0xff]
        %v1166 = vld [vmem:[#allocation4 + $0xab8] sm:$0xf]
        %v1167 = vld [vmem:[#allocation4 + $0xabc] sm:$0xff]
        %v1168 = vld [vmem:[#allocation4 + $0xac4] sm:$0xf]
        %v1169 = vld [vmem:[#allocation4 + $0xac8] sm:$0xff]
        %v1170 = vld [vmem:[#allocation4 + $0xad0] sm:$0xf]
        %v1171 = vld [vmem:[#allocation4 + $0xad4] sm:$0xff]
        %v1172 = vld [vmem:[#allocation4 + $0xadc] sm:$0xf]
        %v1173 = vld [vmem:[#allocation4 + $0xae0] sm:$0xff]
        %v1174 = vld [vmem:[#allocation4 + $0xae8] sm:$0xf]
        %v1175 = vld [vmem:[#allocation4 + $0xaec] sm:$0xff]
        %v1176 = vld [vmem:[#allocation4 + $0xaf4] sm:$0xf]
        %v1177 = vld [vmem:[#allocation4 + $0xaf8] sm:$0xff]
        %v1178 = vld [vmem:[#allocation4 + $0xb00] sm:$0xf]
        %v1179 = vld [vmem:[#allocation4 + $0xb04] sm:$0xff]
        %v1180 = vld [vmem:[#allocation4 + $0xb0c] sm:$0xf]
        %v1181 = vld [vmem:[#allocation4 + $0xb10] sm:$0xff]
        %v1182 = vld [vmem:[#allocation4 + $0xb18] sm:$0xf]
        %v1183 = vld [vmem:[#allocation4 + $0xb1c] sm:$0xff]
        %v1184 = vld [vmem:[#allocation4 + $0xb24] sm:$0xf]
        %v1185 = vld [vmem:[#allocation4 + $0xb28] sm:$0xff]
        %v1186 = vld [vmem:[#allocation4 + $0xb30] sm:$0xf]
        %v1187 = vld [vmem:[#allocation4 + $0xb34] sm:$0xff]
        %v1188 = vld [vmem:[#allocation4 + $0xb3c] sm:$0xf]
        %v1189 = vld [vmem:[#allocation4 + $0xb40] sm:$0xff]
        %v1190 = vld [vmem:[#allocation4 + $0xb48] sm:$0xf]
        %v1191 = vld [vmem:[#allocation4 + $0xb4c] sm:$0xff]
        %v1192 = vld [vmem:[#allocation4 + $0xb54] sm:$0xf]
        %v1193 = vld [vmem:[#allocation4 + $0xb58] sm:$0xff]
        %v1194 = vld [vmem:[#allocation4 + $0xb60] sm:$0xf]
        %v1195 = vld [vmem:[#allocation4 + $0xb64] sm:$0xff]
        %v1196 = vld [vmem:[#allocation4 + $0xb6c] sm:$0xf]
        %v1197 = vld [vmem:[#allocation4 + $0xb70] sm:$0xff]
        %v1198 = vld [vmem:[#allocation4 + $0xb78] sm:$0xf]
        %v1199 = vld [vmem:[#allocation4 + $0xb7c] sm:$0xff]
        %v1200 = vld [vmem:[#allocation4 + $0xb84] sm:$0xf]
        %v1201 = vld [vmem:[#allocation4 + $0xb88] sm:$0xff]
        %v1202 = vld [vmem:[#allocation4 + $0xb90] sm:$0xf]
        %v1203 = vld [vmem:[#allocation4 + $0xb94] sm:$0xff]
        %v1204 = vld [vmem:[#allocation4 + $0xb9c] sm:$0xf]
        %v1205 = vld [vmem:[#allocation4 + $0xba0] sm:$0xff]
        %v1206 = vld [vmem:[#allocation4 + $0xba8] sm:$0xf]
        %v1207 = vld [vmem:[#allocation4 + $0xbac] sm:$0xff]
        %v1208 = vld [vmem:[#allocation4 + $0xbb4] sm:$0xf]
        %v1209 = vld [vmem:[#allocation4 + $0xbb8] sm:$0xff]
        %v1210 = vld [vmem:[#allocation4 + $0xbc0] sm:$0xf]
        %v1211 = vld [vmem:[#allocation4 + $0xbc4] sm:$0xff]
        %v1212 = vld [vmem:[#allocation4 + $0xbcc] sm:$0xf]
        %v1213 = vld [vmem:[#allocation4 + $0xbd0] sm:$0xff]
        %v1214 = vld [vmem:[#allocation4 + $0xbd8] sm:$0xf]
        %v1215 = vld [vmem:[#allocation4 + $0xbdc] sm:$0xff]
        %v1216 = vld [vmem:[#allocation4 + $0xbe4] sm:$0xf]
        %v1217 = vld [vmem:[#allocation4 + $0xbe8] sm:$0xff]
        %v1218 = vld [vmem:[#allocation4 + $0xbf0] sm:$0xf]
        %v1219 = vld [vmem:[#allocation4 + $0xbf4] sm:$0xff]
        %v1220 = vld [vmem:[#allocation4 + $0xbfc] sm:$0xf]
        %v1221 = vld [vmem:[#allocation4 + $0xc00] sm:$0xff]
        %v1222 = vld [vmem:[#allocation4 + $0xc08] sm:$0xf]
        %v1223 = vld [vmem:[#allocation4 + $0xc0c] sm:$0xff]
        %v1224 = vld [vmem:[#allocation4 + $0xc14] sm:$0xf]
        %v1225 = vld [vmem:[#allocation4 + $0xc18] sm:$0xff]
        %v1226 = vld [vmem:[#allocation4 + $0xc20] sm:$0xf]
        %v1227 = vld [vmem:[#allocation4 + $0xc24] sm:$0xff]
        %v1228 = vld [vmem:[#allocation4 + $0xc2c] sm:$0xf]
        %v1749 = vunpack.c.l.b16 %v709
        %v1750 = vunpack.c.h.b16 %v709
        %v1751 = vunpack.c.l.b16 %v710
        %v1752 = vunpack.c.l.b16 %v711
        %v1753 = vunpack.c.h.b16 %v711
        %v1754 = vunpack.c.l.b16 %v712
        %v1755 = vunpack.c.l.b16 %v713
        %v1756 = vunpack.c.h.b16 %v713
        %v1757 = vunpack.c.l.b16 %v714
        %v1758 = vunpack.c.l.b16 %v715
        %v1759 = vunpack.c.h.b16 %v715
        %v1760 = vunpack.c.l.b16 %v716
        %v1761 = vunpack.c.l.b16 %v717
        %v1762 = vunpack.c.h.b16 %v717
        %v1763 = vunpack.c.l.b16 %v718
        %v1764 = vunpack.c.l.b16 %v719
        %v1765 = vunpack.c.h.b16 %v719
        %v1766 = vunpack.c.l.b16 %v720
        %v1767 = vunpack.c.l.b16 %v721
        %v1768 = vunpack.c.h.b16 %v721
        %v1769 = vunpack.c.l.b16 %v722
        %v1770 = vunpack.c.l.b16 %v723
        %v1771 = vunpack.c.h.b16 %v723
        %v1772 = vunpack.c.l.b16 %v724
        %v1773 = vunpack.c.l.b16 %v725
        %v1774 = vunpack.c.h.b16 %v725
        %v1775 = vunpack.c.l.b16 %v726
        %v1776 = vunpack.c.l.b16 %v727
        %v1777 = vunpack.c.h.b16 %v727
        %v1778 = vunpack.c.l.b16 %v728
        %v1779 = vunpack.c.l.b16 %v729
        %v1780 = vunpack.c.h.b16 %v729
        %v1781 = vunpack.c.l.b16 %v730
        %v1782 = vunpack.c.l.b16 %v731
        %v1783 = vunpack.c.h.b16 %v731
        %v1784 = vunpack.c.l.b16 %v732
        %v1785 = vunpack.c.l.b16 %v733
        %v1786 = vunpack.c.h.b16 %v733
        %v1787 = vunpack.c.l.b16 %v734
        %v1788 = vunpack.c.l.b16 %v735
        %v1789 = vunpack.c.h.b16 %v735
        %v1790 = vunpack.c.l.b16 %v736
        %v1791 = vunpack.c.l.b16 %v737
        %v1792 = vunpack.c.h.b16 %v737
        %v1793 = vunpack.c.l.b16 %v738
        %v1794 = vunpack.c.l.b16 %v739
        %v1795 = vunpack.c.h.b16 %v739
        %v1796 = vunpack.c.l.b16 %v740
        %v1797 = vunpack.c.l.b16 %v741
        %v1798 = vunpack.c.h.b16 %v741
        %v1799 = vunpack.c.l.b16 %v742
        %v1800 = vunpack.c.l.b16 %v743
        %v1801 = vunpack.c.h.b16 %v743
        %v1802 = vunpack.c.l.b16 %v744
        %v1803 = vunpack.c.l.b16 %v745
        %v1804 = vunpack.c.h.b16 %v745
        %v1805 = vunpack.c.l.b16 %v746
        %v1806 = vunpack.c.l.b16 %v747
        %v1807 = vunpack.c.h.b16 %v747
        %v1808 = vunpack.c.l.b16 %v748
        %v1809 = vunpack.c.l.b16 %v749
        %v1810 = vunpack.c.h.b16 %v749
        %v1811 = vunpack.c.l.b16 %v750
        %v1812 = vunpack.c.l.b16 %v751
        %v1813 = vunpack.c.h.b16 %v751
        %v1814 = vunpack.c.l.b16 %v752
        %v1815 = vunpack.c.l.b16 %v753
        %v1816 = vunpack.c.h.b16 %v753
        %v1817 = vunpack.c.l.b16 %v754
        %v1818 = vunpack.c.l.b16 %v755
        %v1819 = vunpack.c.h.b16 %v755
        %v1820 = vunpack.c.l.b16 %v756
        %v1821 = vunpack.c.l.b16 %v757
        %v1822 = vunpack.c.h.b16 %v757
        %v1823 = vunpack.c.l.b16 %v758
        %v1824 = vunpack.c.l.b16 %v759
        %v1825 = vunpack.c.h.b16 %v759
        %v1826 = vunpack.c.l.b16 %v760
        %v1827 = vunpack.c.l.b16 %v761
        %v1828 = vunpack.c.h.b16 %v761
        %v1829 = vunpack.c.l.b16 %v762
        %v1830 = vunpack.c.l.b16 %v763
        %v1831 = vunpack.c.h.b16 %v763
        %v1832 = vunpack.c.l.b16 %v764
        %v1833 = vunpack.c.l.b16 %v765
        %v1834 = vunpack.c.h.b16 %v765
        %v1835 = vunpack.c.l.b16 %v766
        %v1836 = vunpack.c.l.b16 %v767
        %v1837 = vunpack.c.h.b16 %v767
        %v1838 = vunpack.c.l.b16 %v768
        %v1839 = vunpack.c.l.b16 %v769
        %v1840 = vunpack.c.h.b16 %v769
        %v1841 = vunpack.c.l.b16 %v770
        %v1842 = vunpack.c.l.b16 %v771
        %v1843 = vunpack.c.h.b16 %v771
        %v1844 = vunpack.c.l.b16 %v772
        %v1845 = vunpack.c.l.b16 %v773
        %v1846 = vunpack.c.h.b16 %v773
        %v1847 = vunpack.c.l.b16 %v774
        %v1848 = vunpack.c.l.b16 %v775
        %v1849 = vunpack.c.h.b16 %v775
        %v1850 = vunpack.c.l.b16 %v776
        %v1851 = vunpack.c.l.b16 %v777
        %v1852 = vunpack.c.h.b16 %v777
        %v1853 = vunpack.c.l.b16 %v778
        %v1854 = vunpack.c.l.b16 %v779
        %v1855 = vunpack.c.h.b16 %v779
        %v1856 = vunpack.c.l.b16 %v780
        %v1857 = vunpack.c.l.b16 %v781
        %v1858 = vunpack.c.h.b16 %v781
        %v1859 = vunpack.c.l.b16 %v782
        %v1860 = vunpack.c.l.b16 %v783
        %v1861 = vunpack.c.h.b16 %v783
        %v1862 = vunpack.c.l.b16 %v784
        %v1863 = vunpack.c.l.b16 %v785
        %v1864 = vunpack.c.h.b16 %v785
        %v1865 = vunpack.c.l.b16 %v786
        %v1866 = vunpack.c.l.b16 %v787
        %v1867 = vunpack.c.h.b16 %v787
        %v1868 = vunpack.c.l.b16 %v788
        %v1869 = vunpack.c.l.b16 %v789
        %v1870 = vunpack.c.h.b16 %v789
        %v1871 = vunpack.c.l.b16 %v790
        %v1872 = vunpack.c.l.b16 %v791
        %v1873 = vunpack.c.h.b16 %v791
        %v1874 = vunpack.c.l.b16 %v792
        %v1875 = vunpack.c.l.b16 %v793
        %v1876 = vunpack.c.h.b16 %v793
        %v1877 = vunpack.c.l.b16 %v794
        %v1878 = vunpack.c.l.b16 %v795
        %v1879 = vunpack.c.h.b16 %v795
        %v1880 = vunpack.c.l.b16 %v796
        %v1881 = vunpack.c.l.b16 %v797
        %v1882 = vunpack.c.h.b16 %v797
        %v1883 = vunpack.c.l.b16 %v798
        %v1884 = vunpack.c.l.b16 %v799
        %v1885 = vunpack.c.h.b16 %v799
        %v1886 = vunpack.c.l.b16 %v800
        %v1887 = vunpack.c.l.b16 %v801
        %v1888 = vunpack.c.h.b16 %v801
        %v1889 = vunpack.c.l.b16 %v802
        %v1890 = vunpack.c.l.b16 %v803
        %v1891 = vunpack.c.h.b16 %v803
        %v1892 = vunpack.c.l.b16 %v804
        %v1893 = vunpack.c.l.b16 %v805
        %v1894 = vunpack.c.h.b16 %v805
        %v1895 = vunpack.c.l.b16 %v806
        %v1896 = vunpack.c.l.b16 %v807
        %v1897 = vunpack.c.h.b16 %v807
        %v1898 = vunpack.c.l.b16 %v808
        %v1899 = vunpack.c.l.b16 %v809
        %v1900 = vunpack.c.h.b16 %v809
        %v1901 = vunpack.c.l.b16 %v810
        %v1902 = vunpack.c.l.b16 %v811
        %v1903 = vunpack.c.h.b16 %v811
        %v1904 = vunpack.c.l.b16 %v812
        %v1905 = vunpack.c.l.b16 %v813
        %v1906 = vunpack.c.h.b16 %v813
        %v1907 = vunpack.c.l.b16 %v814
        %v1908 = vunpack.c.l.b16 %v815
        %v1909 = vunpack.c.h.b16 %v815
        %v1910 = vunpack.c.l.b16 %v816
        %v1911 = vunpack.c.l.b16 %v817
        %v1912 = vunpack.c.h.b16 %v817
        %v1913 = vunpack.c.l.b16 %v818
        %v1914 = vunpack.c.l.b16 %v819
        %v1915 = vunpack.c.h.b16 %v819
        %v1916 = vunpack.c.l.b16 %v820
        %v1917 = vunpack.c.l.b16 %v821
        %v1918 = vunpack.c.h.b16 %v821
        %v1919 = vunpack.c.l.b16 %v822
        %v1920 = vunpack.c.l.b16 %v823
        %v1921 = vunpack.c.h.b16 %v823
        %v1922 = vunpack.c.l.b16 %v824
        %v1923 = vunpack.c.l.b16 %v825
        %v1924 = vunpack.c.h.b16 %v825
        %v1925 = vunpack.c.l.b16 %v826
        %v1926 = vunpack.c.l.b16 %v827
        %v1927 = vunpack.c.h.b16 %v827
        %v1928 = vunpack.c.l.b16 %v828
        %v1929 = vunpack.c.l.b16 %v829
        %v1930 = vunpack.c.h.b16 %v829
        %v1931 = vunpack.c.l.b16 %v830
        %v1932 = vunpack.c.l.b16 %v831
        %v1933 = vunpack.c.h.b16 %v831
        %v1934 = vunpack.c.l.b16 %v832
        %v1935 = vunpack.c.l.b16 %v833
        %v1936 = vunpack.c.h.b16 %v833
        %v1937 = vunpack.c.l.b16 %v834
        %v1938 = vunpack.c.l.b16 %v835
        %v1939 = vunpack.c.h.b16 %v835
        %v1940 = vunpack.c.l.b16 %v836
        %v1941 = vunpack.c.l.b16 %v837
        %v1942 = vunpack.c.h.b16 %v837
        %v1943 = vunpack.c.l.b16 %v838
        %v1944 = vunpack.c.l.b16 %v839
        %v1945 = vunpack.c.h.b16 %v839
        %v1946 = vunpack.c.l.b16 %v840
        %v1947 = vunpack.c.l.b16 %v841
        %v1948 = vunpack.c.h.b16 %v841
        %v1949 = vunpack.c.l.b16 %v842
        %v1950 = vunpack.c.l.b16 %v843
        %v1951 = vunpack.c.h.b16 %v843
        %v1952 = vunpack.c.l.b16 %v844
        %v1953 = vunpack.c.l.b16 %v845
        %v1954 = vunpack.c.h.b16 %v845
        %v1955 = vunpack.c.l.b16 %v846
        %v1956 = vunpack.c.l.b16 %v847
        %v1957 = vunpack.c.h.b16 %v847
        %v1958 = vunpack.c.l.b16 %v848
        %v1959 = vunpack.c.l.b16 %v849
        %v1960 = vunpack.c.h.b16 %v849
        %v1961 = vunpack.c.l.b16 %v850
        %v1962 = vunpack.c.l.b16 %v851
        %v1963 = vunpack.c.h.b16 %v851
        %v1964 = vunpack.c.l.b16 %v852
        %v1965 = vunpack.c.l.b16 %v853
        %v1966 = vunpack.c.h.b16 %v853
        %v1967 = vunpack.c.l.b16 %v854
        %v1968 = vunpack.c.l.b16 %v855
        %v1969 = vunpack.c.h.b16 %v855
        %v1970 = vunpack.c.l.b16 %v856
        %v1971 = vunpack.c.l.b16 %v857
        %v1972 = vunpack.c.h.b16 %v857
        %v1973 = vunpack.c.l.b16 %v858
        %v1974 = vunpack.c.l.b16 %v859
        %v1975 = vunpack.c.h.b16 %v859
        %v1976 = vunpack.c.l.b16 %v860
        %v1977 = vunpack.c.l.b16 %v861
        %v1978 = vunpack.c.h.b16 %v861
        %v1979 = vunpack.c.l.b16 %v862
        %v1980 = vunpack.c.l.b16 %v863
        %v1981 = vunpack.c.h.b16 %v863
        %v1982 = vunpack.c.l.b16 %v864
        %v1983 = vunpack.c.l.b16 %v865
        %v1984 = vunpack.c.h.b16 %v865
        %v1985 = vunpack.c.l.b16 %v866
        %v1986 = vunpack.c.l.b16 %v867
        %v1987 = vunpack.c.h.b16 %v867
        %v1988 = vunpack.c.l.b16 %v868
        %v1989 = vunpack.c.l.b16 %v869
        %v1990 = vunpack.c.h.b16 %v869
        %v1991 = vunpack.c.l.b16 %v870
        %v1992 = vunpack.c.l.b16 %v871
        %v1993 = vunpack.c.h.b16 %v871
        %v1994 = vunpack.c.l.b16 %v872
        %v1995 = vunpack.c.l.b16 %v873
        %v1996 = vunpack.c.h.b16 %v873
        %v1997 = vunpack.c.l.b16 %v874
        %v1998 = vunpack.c.l.b16 %v875
        %v1999 = vunpack.c.h.b16 %v875
        %v2000 = vunpack.c.l.b16 %v876
        %v2001 = vunpack.c.l.b16 %v877
        %v2002 = vunpack.c.h.b16 %v877
        %v2003 = vunpack.c.l.b16 %v878
        %v2004 = vunpack.c.l.b16 %v879
        %v2005 = vunpack.c.h.b16 %v879
        %v2006 = vunpack.c.l.b16 %v880
        %v2007 = vunpack.c.l.b16 %v881
        %v2008 = vunpack.c.h.b16 %v881
        %v2009 = vunpack.c.l.b16 %v882
        %v2010 = vunpack.c.l.b16 %v883
        %v2011 = vunpack.c.h.b16 %v883
        %v2012 = vunpack.c.l.b16 %v884
        %v2013 = vunpack.c.l.b16 %v885
        %v2014 = vunpack.c.h.b16 %v885
        %v2015 = vunpack.c.l.b16 %v886
        %v2016 = vunpack.c.l.b16 %v887
        %v2017 = vunpack.c.h.b16 %v887
        %v2018 = vunpack.c.l.b16 %v888
        %v2019 = vunpack.c.l.b16 %v889
        %v2020 = vunpack.c.h.b16 %v889
        %v2021 = vunpack.c.l.b16 %v890
        %v2022 = vunpack.c.l.b16 %v891
        %v2023 = vunpack.c.h.b16 %v891
        %v2024 = vunpack.c.l.b16 %v892
        %v2025 = vunpack.c.l.b16 %v893
        %v2026 = vunpack.c.h.b16 %v893
        %v2027 = vunpack.c.l.b16 %v894
        %v2028 = vunpack.c.l.b16 %v895
        %v2029 = vunpack.c.h.b16 %v895
        %v2030 = vunpack.c.l.b16 %v896
        %v2031 = vunpack.c.l.b16 %v897
        %v2032 = vunpack.c.h.b16 %v897
        %v2033 = vunpack.c.l.b16 %v898
        %v2034 = vunpack.c.l.b16 %v899
        %v2035 = vunpack.c.h.b16 %v899
        %v2036 = vunpack.c.l.b16 %v900
        %v2037 = vunpack.c.l.b16 %v901
        %v2038 = vunpack.c.h.b16 %v901
        %v2039 = vunpack.c.l.b16 %v902
        %v2040 = vunpack.c.l.b16 %v903
        %v2041 = vunpack.c.h.b16 %v903
        %v2042 = vunpack.c.l.b16 %v904
        %v2043 = vunpack.c.l.b16 %v905
        %v2044 = vunpack.c.h.b16 %v905
        %v2045 = vunpack.c.l.b16 %v906
        %v2046 = vunpack.c.l.b16 %v907
        %v2047 = vunpack.c.h.b16 %v907
        %v2048 = vunpack.c.l.b16 %v908
        %v2049 = vunpack.c.l.b16 %v909
        %v2050 = vunpack.c.h.b16 %v909
        %v2051 = vunpack.c.l.b16 %v910
        %v2052 = vunpack.c.l.b16 %v911
        %v2053 = vunpack.c.h.b16 %v911
        %v2054 = vunpack.c.l.b16 %v912
        %v2055 = vunpack.c.l.b16 %v913
        %v2056 = vunpack.c.h.b16 %v913
        %v2057 = vunpack.c.l.b16 %v914
        %v2058 = vunpack.c.l.b16 %v915
        %v2059 = vunpack.c.h.b16 %v915
        %v2060 = vunpack.c.l.b16 %v916
        %v2061 = vunpack.c.l.b16 %v917
        %v2062 = vunpack.c.h.b16 %v917
        %v2063 = vunpack.c.l.b16 %v918
        %v2064 = vunpack.c.l.b16 %v919
        %v2065 = vunpack.c.h.b16 %v919
        %v2066 = vunpack.c.l.b16 %v920
        %v2067 = vunpack.c.l.b16 %v921
        %v2068 = vunpack.c.h.b16 %v921
        %v2069 = vunpack.c.l.b16 %v922
        %v2070 = vunpack.c.l.b16 %v923
        %v2071 = vunpack.c.h.b16 %v923
        %v2072 = vunpack.c.l.b16 %v924
        %v2073 = vunpack.c.l.b16 %v925
        %v2074 = vunpack.c.h.b16 %v925
        %v2075 = vunpack.c.l.b16 %v926
        %v2076 = vunpack.c.l.b16 %v927
        %v2077 = vunpack.c.h.b16 %v927
        %v2078 = vunpack.c.l.b16 %v928
        %v2079 = vunpack.c.l.b16 %v929
        %v2080 = vunpack.c.h.b16 %v929
        %v2081 = vunpack.c.l.b16 %v930
        %v2082 = vunpack.c.l.b16 %v931
        %v2083 = vunpack.c.h.b16 %v931
        %v2084 = vunpack.c.l.b16 %v932
        %v2085 = vunpack.c.l.b16 %v933
        %v2086 = vunpack.c.h.b16 %v933
        %v2087 = vunpack.c.l.b16 %v934
        %v2088 = vunpack.c.l.b16 %v935
        %v2089 = vunpack.c.h.b16 %v935
        %v2090 = vunpack.c.l.b16 %v936
        %v2091 = vunpack.c.l.b16 %v937
        %v2092 = vunpack.c.h.b16 %v937
        %v2093 = vunpack.c.l.b16 %v938
        %v2094 = vunpack.c.l.b16 %v939
        %v2095 = vunpack.c.h.b16 %v939
        %v2096 = vunpack.c.l.b16 %v940
        %v2097 = vunpack.c.l.b16 %v941
        %v2098 = vunpack.c.h.b16 %v941
        %v2099 = vunpack.c.l.b16 %v942
        %v2100 = vunpack.c.l.b16 %v943
        %v2101 = vunpack.c.h.b16 %v943
        %v2102 = vunpack.c.l.b16 %v944
        %v2103 = vunpack.c.l.b16 %v945
        %v2104 = vunpack.c.h.b16 %v945
        %v2105 = vunpack.c.l.b16 %v946
        %v2106 = vunpack.c.l.b16 %v947
        %v2107 = vunpack.c.h.b16 %v947
        %v2108 = vunpack.c.l.b16 %v948
        %v2109 = vunpack.c.l.b16 %v949
        %v2110 = vunpack.c.h.b16 %v949
        %v2111 = vunpack.c.l.b16 %v950
        %v2112 = vunpack.c.l.b16 %v951
        %v2113 = vunpack.c.h.b16 %v951
        %v2114 = vunpack.c.l.b16 %v952
        %v2115 = vunpack.c.l.b16 %v953
        %v2116 = vunpack.c.h.b16 %v953
        %v2117 = vunpack.c.l.b16 %v954
        %v2118 = vunpack.c.l.b16 %v955
        %v2119 = vunpack.c.h.b16 %v955
        %v2120 = vunpack.c.l.b16 %v956
        %v2121 = vunpack.c.l.b16 %v957
        %v2122 = vunpack.c.h.b16 %v957
        %v2123 = vunpack.c.l.b16 %v958
        %v2124 = vunpack.c.l.b16 %v959
        %v2125 = vunpack.c.h.b16 %v959
        %v2126 = vunpack.c.l.b16 %v960
        %v2127 = vunpack.c.l.b16 %v961
        %v2128 = vunpack.c.h.b16 %v961
        %v2129 = vunpack.c.l.b16 %v962
        %v2130 = vunpack.c.l.b16 %v963
        %v2131 = vunpack.c.h.b16 %v963
        %v2132 = vunpack.c.l.b16 %v964
        %v2133 = vunpack.c.l.b16 %v965
        %v2134 = vunpack.c.h.b16 %v965
        %v2135 = vunpack.c.l.b16 %v966
        %v2136 = vunpack.c.l.b16 %v967
        %v2137 = vunpack.c.h.b16 %v967
        %v2138 = vunpack.c.l.b16 %v968
        %v2139 = vunpack.c.l.b16 %v969
        %v2140 = vunpack.c.h.b16 %v969
        %v2141 = vunpack.c.l.b16 %v970
        %v2142 = vunpack.c.l.b16 %v971
        %v2143 = vunpack.c.h.b16 %v971
        %v2144 = vunpack.c.l.b16 %v972
        %v2145 = vunpack.c.l.b16 %v973
        %v2146 = vunpack.c.h.b16 %v973
        %v2147 = vunpack.c.l.b16 %v974
        %v2148 = vunpack.c.l.b16 %v975
        %v2149 = vunpack.c.h.b16 %v975
        %v2150 = vunpack.c.l.b16 %v976
        %v2151 = vunpack.c.l.b16 %v977
        %v2152 = vunpack.c.h.b16 %v977
        %v2153 = vunpack.c.l.b16 %v978
        %v2154 = vunpack.c.l.b16 %v979
        %v2155 = vunpack.c.h.b16 %v979
        %v2156 = vunpack.c.l.b16 %v980
        %v2157 = vunpack.c.l.b16 %v981
        %v2158 = vunpack.c.h.b16 %v981
        %v2159 = vunpack.c.l.b16 %v982
        %v2160 = vunpack.c.l.b16 %v983
        %v2161 = vunpack.c.h.b16 %v983
        %v2162 = vunpack.c.l.b16 %v984
        %v2163 = vunpack.c.l.b16 %v985
        %v2164 = vunpack.c.h.b16 %v985
        %v2165 = vunpack.c.l.b16 %v986
        %v2166 = vunpack.c.l.b16 %v987
        %v2167 = vunpack.c.h.b16 %v987
        %v2168 = vunpack.c.l.b16 %v988
        %v2169 = vunpack.c.l.b16 %v989
        %v2170 = vunpack.c.h.b16 %v989
        %v2171 = vunpack.c.l.b16 %v990
        %v2172 = vunpack.c.l.b16 %v991
        %v2173 = vunpack.c.h.b16 %v991
        %v2174 = vunpack.c.l.b16 %v992
        %v2175 = vunpack.c.l.b16 %v993
        %v2176 = vunpack.c.h.b16 %v993
        %v2177 = vunpack.c.l.b16 %v994
        %v2178 = vunpack.c.l.b16 %v995
        %v2179 = vunpack.c.h.b16 %v995
        %v2180 = vunpack.c.l.b16 %v996
        %v2181 = vunpack.c.l.b16 %v997
        %v2182 = vunpack.c.h.b16 %v997
        %v2183 = vunpack.c.l.b16 %v998
        %v2184 = vunpack.c.l.b16 %v999
        %v2185 = vunpack.c.h.b16 %v999
        %v2186 = vunpack.c.l.b16 %v1000
        %v2187 = vunpack.c.l.b16 %v1001
        %v2188 = vunpack.c.h.b16 %v1001
        %v2189 = vunpack.c.l.b16 %v1002
        %v2190 = vunpack.c.l.b16 %v1003
        %v2191 = vunpack.c.h.b16 %v1003
        %v2192 = vunpack.c.l.b16 %v1004
        %v2193 = vunpack.c.l.b16 %v1005
        %v2194 = vunpack.c.h.b16 %v1005
        %v2195 = vunpack.c.l.b16 %v1006
        %v2196 = vunpack.c.l.b16 %v1007
        %v2197 = vunpack.c.h.b16 %v1007
        %v2198 = vunpack.c.l.b16 %v1008
        %v2199 = vunpack.c.l.b16 %v1009
        %v2200 = vunpack.c.h.b16 %v1009
        %v2201 = vunpack.c.l.b16 %v1010
        %v2202 = vunpack.c.l.b16 %v1011
        %v2203 = vunpack.c.h.b16 %v1011
        %v2204 = vunpack.c.l.b16 %v1012
        %v2205 = vunpack.c.l.b16 %v1013
        %v2206 = vunpack.c.h.b16 %v1013
        %v2207 = vunpack.c.l.b16 %v1014
        %v2208 = vunpack.c.l.b16 %v1015
        %v2209 = vunpack.c.h.b16 %v1015
        %v2210 = vunpack.c.l.b16 %v1016
        %v2211 = vunpack.c.l.b16 %v1017
        %v2212 = vunpack.c.h.b16 %v1017
        %v2213 = vunpack.c.l.b16 %v1018
        %v2214 = vunpack.c.l.b16 %v1019
        %v2215 = vunpack.c.h.b16 %v1019
        %v2216 = vunpack.c.l.b16 %v1020
        %v2217 = vunpack.c.l.b16 %v1021
        %v2218 = vunpack.c.h.b16 %v1021
        %v2219 = vunpack.c.l.b16 %v1022
        %v2220 = vunpack.c.l.b16 %v1023
        %v2221 = vunpack.c.h.b16 %v1023
        %v2222 = vunpack.c.l.b16 %v1024
        %v2223 = vunpack.c.l.b16 %v1025
        %v2224 = vunpack.c.h.b16 %v1025
        %v2225 = vunpack.c.l.b16 %v1026
        %v2226 = vunpack.c.l.b16 %v1027
        %v2227 = vunpack.c.h.b16 %v1027
        %v2228 = vunpack.c.l.b16 %v1028
        %v2229 = vunpack.c.l.b16 %v1029
        %v2230 = vunpack.c.h.b16 %v1029
        %v2231 = vunpack.c.l.b16 %v1030
        %v2232 = vunpack.c.l.b16 %v1031
        %v2233 = vunpack.c.h.b16 %v1031
        %v2234 = vunpack.c.l.b16 %v1032
        %v2235 = vunpack.c.l.b16 %v1033
        %v2236 = vunpack.c.h.b16 %v1033
        %v2237 = vunpack.c.l.b16 %v1034
        %v2238 = vunpack.c.l.b16 %v1035
        %v2239 = vunpack.c.h.b16 %v1035
        %v2240 = vunpack.c.l.b16 %v1036
        %v2241 = vunpack.c.l.b16 %v1037
        %v2242 = vunpack.c.h.b16 %v1037
        %v2243 = vunpack.c.l.b16 %v1038
        %v2244 = vunpack.c.l.b16 %v1039
        %v2245 = vunpack.c.h.b16 %v1039
        %v2246 = vunpack.c.l.b16 %v1040
        %v2247 = vunpack.c.l.b16 %v1041
        %v2248 = vunpack.c.h.b16 %v1041
        %v2249 = vunpack.c.l.b16 %v1042
        %v2250 = vunpack.c.l.b16 %v1043
        %v2251 = vunpack.c.h.b16 %v1043
        %v2252 = vunpack.c.l.b16 %v1044
        %v2253 = vunpack.c.l.b16 %v1045
        %v2254 = vunpack.c.h.b16 %v1045
        %v2255 = vunpack.c.l.b16 %v1046
        %v2256 = vunpack.c.l.b16 %v1047
        %v2257 = vunpack.c.h.b16 %v1047
        %v2258 = vunpack.c.l.b16 %v1048
        %v2259 = vunpack.c.l.b16 %v1049
        %v2260 = vunpack.c.h.b16 %v1049
        %v2261 = vunpack.c.l.b16 %v1050
        %v2262 = vunpack.c.l.b16 %v1051
        %v2263 = vunpack.c.h.b16 %v1051
        %v2264 = vunpack.c.l.b16 %v1052
        %v2265 = vunpack.c.l.b16 %v1053
        %v2266 = vunpack.c.h.b16 %v1053
        %v2267 = vunpack.c.l.b16 %v1054
        %v2268 = vunpack.c.l.b16 %v1055
        %v2269 = vunpack.c.h.b16 %v1055
        %v2270 = vunpack.c.l.b16 %v1056
        %v2271 = vunpack.c.l.b16 %v1057
        %v2272 = vunpack.c.h.b16 %v1057
        %v2273 = vunpack.c.l.b16 %v1058
        %v2274 = vunpack.c.l.b16 %v1059
        %v2275 = vunpack.c.h.b16 %v1059
        %v2276 = vunpack.c.l.b16 %v1060
        %v2277 = vunpack.c.l.b16 %v1061
        %v2278 = vunpack.c.h.b16 %v1061
        %v2279 = vunpack.c.l.b16 %v1062
        %v2280 = vunpack.c.l.b16 %v1063
        %v2281 = vunpack.c.h.b16 %v1063
        %v2282 = vunpack.c.l.b16 %v1064
        %v2283 = vunpack.c.l.b16 %v1065
        %v2284 = vunpack.c.h.b16 %v1065
        %v2285 = vunpack.c.l.b16 %v1066
        %v2286 = vunpack.c.l.b16 %v1067
        %v2287 = vunpack.c.h.b16 %v1067
        %v2288 = vunpack.c.l.b16 %v1068
        %v2289 = vunpack.c.l.b16 %v1069
        %v2290 = vunpack.c.h.b16 %v1069
        %v2291 = vunpack.c.l.b16 %v1070
        %v2292 = vunpack.c.l.b16 %v1071
        %v2293 = vunpack.c.h.b16 %v1071
        %v2294 = vunpack.c.l.b16 %v1072
        %v2295 = vunpack.c.l.b16 %v1073
        %v2296 = vunpack.c.h.b16 %v1073
        %v2297 = vunpack.c.l.b16 %v1074
        %v2298 = vunpack.c.l.b16 %v1075
        %v2299 = vunpack.c.h.b16 %v1075
        %v2300 = vunpack.c.l.b16 %v1076
        %v2301 = vunpack.c.l.b16 %v1077
        %v2302 = vunpack.c.h.b16 %v1077
        %v2303 = vunpack.c.l.b16 %v1078
        %v2304 = vunpack.c.l.b16 %v1079
        %v2305 = vunpack.c.h.b16 %v1079
        %v2306 = vunpack.c.l.b16 %v1080
        %v2307 = vunpack.c.l.b16 %v1081
        %v2308 = vunpack.c.h.b16 %v1081
        %v2309 = vunpack.c.l.b16 %v1082
        %v2310 = vunpack.c.l.b16 %v1083
        %v2311 = vunpack.c.h.b16 %v1083
        %v2312 = vunpack.c.l.b16 %v1084
        %v2313 = vunpack.c.l.b16 %v1085
        %v2314 = vunpack.c.h.b16 %v1085
        %v2315 = vunpack.c.l.b16 %v1086
        %v2316 = vunpack.c.l.b16 %v1087
        %v2317 = vunpack.c.h.b16 %v1087
        %v2318 = vunpack.c.l.b16 %v1088
        %v2319 = vunpack.c.l.b16 %v1089
        %v2320 = vunpack.c.h.b16 %v1089
        %v2321 = vunpack.c.l.b16 %v1090
        %v2322 = vunpack.c.l.b16 %v1091
        %v2323 = vunpack.c.h.b16 %v1091
        %v2324 = vunpack.c.l.b16 %v1092
        %v2325 = vunpack.c.l.b16 %v1093
        %v2326 = vunpack.c.h.b16 %v1093
        %v2327 = vunpack.c.l.b16 %v1094
        %v2328 = vunpack.c.l.b16 %v1095
        %v2329 = vunpack.c.h.b16 %v1095
        %v2330 = vunpack.c.l.b16 %v1096
        %v2331 = vunpack.c.l.b16 %v1097
        %v2332 = vunpack.c.h.b16 %v1097
        %v2333 = vunpack.c.l.b16 %v1098
        %v2334 = vunpack.c.l.b16 %v1099
        %v2335 = vunpack.c.h.b16 %v1099
        %v2336 = vunpack.c.l.b16 %v1100
        %v2337 = vunpack.c.l.b16 %v1101
        %v2338 = vunpack.c.h.b16 %v1101
        %v2339 = vunpack.c.l.b16 %v1102
        %v2340 = vunpack.c.l.b16 %v1103
        %v2341 = vunpack.c.h.b16 %v1103
        %v2342 = vunpack.c.l.b16 %v1104
        %v2343 = vunpack.c.l.b16 %v1105
        %v2344 = vunpack.c.h.b16 %v1105
        %v2345 = vunpack.c.l.b16 %v1106
        %v2346 = vunpack.c.l.b16 %v1107
        %v2347 = vunpack.c.h.b16 %v1107
        %v2348 = vunpack.c.l.b16 %v1108
        %v2349 = vunpack.c.l.b16 %v1109
        %v2350 = vunpack.c.h.b16 %v1109
        %v2351 = vunpack.c.l.b16 %v1110
        %v2352 = vunpack.c.l.b16 %v1111
        %v2353 = vunpack.c.h.b16 %v1111
        %v2354 = vunpack.c.l.b16 %v1112
        %v2355 = vunpack.c.l.b16 %v1113
        %v2356 = vunpack.c.h.b16 %v1113
        %v2357 = vunpack.c.l.b16 %v1114
        %v2358 = vunpack.c.l.b16 %v1115
        %v2359 = vunpack.c.h.b16 %v1115
        %v2360 = vunpack.c.l.b16 %v1116
        %v2361 = vunpack.c.l.b16 %v1117
        %v2362 = vunpack.c.h.b16 %v1117
        %v2363 = vunpack.c.l.b16 %v1118
        %v2364 = vunpack.c.l.b16 %v1119
        %v2365 = vunpack.c.h.b16 %v1119
        %v2366 = vunpack.c.l.b16 %v1120
        %v2367 = vunpack.c.l.b16 %v1121
        %v2368 = vunpack.c.h.b16 %v1121
        %v2369 = vunpack.c.l.b16 %v1122
        %v2370 = vunpack.c.l.b16 %v1123
        %v2371 = vunpack.c.h.b16 %v1123
        %v2372 = vunpack.c.l.b16 %v1124
        %v2373 = vunpack.c.l.b16 %v1125
        %v2374 = vunpack.c.h.b16 %v1125
        %v2375 = vunpack.c.l.b16 %v1126
        %v2376 = vunpack.c.l.b16 %v1127
        %v2377 = vunpack.c.h.b16 %v1127
        %v2378 = vunpack.c.l.b16 %v1128
        %v2379 = vunpack.c.l.b16 %v1129
        %v2380 = vunpack.c.h.b16 %v1129
        %v2381 = vunpack.c.l.b16 %v1130
        %v2382 = vunpack.c.l.b16 %v1131
        %v2383 = vunpack.c.h.b16 %v1131
        %v2384 = vunpack.c.l.b16 %v1132
        %v2385 = vunpack.c.l.b16 %v1133
        %v2386 = vunpack.c.h.b16 %v1133
        %v2387 = vunpack.c.l.b16 %v1134
        %v2388 = vunpack.c.l.b16 %v1135
        %v2389 = vunpack.c.h.b16 %v1135
        %v2390 = vunpack.c.l.b16 %v1136
        %v2391 = vunpack.c.l.b16 %v1137
        %v2392 = vunpack.c.h.b16 %v1137
        %v2393 = vunpack.c.l.b16 %v1138
        %v2394 = vunpack.c.l.b16 %v1139
        %v2395 = vunpack.c.h.b16 %v1139
        %v2396 = vunpack.c.l.b16 %v1140
        %v2397 = vunpack.c.l.b16 %v1141
        %v2398 = vunpack.c.h.b16 %v1141
        %v2399 = vunpack.c.l.b16 %v1142
        %v2400 = vunpack.c.l.b16 %v1143
        %v2401 = vunpack.c.h.b16 %v1143
        %v2402 = vunpack.c.l.b16 %v1144
        %v2403 = vunpack.c.l.b16 %v1145
        %v2404 = vunpack.c.h.b16 %v1145
        %v2405 = vunpack.c.l.b16 %v1146
        %v2406 = vunpack.c.l.b16 %v1147
        %v2407 = vunpack.c.h.b16 %v1147
        %v2408 = vunpack.c.l.b16 %v1148
        %v2409 = vunpack.c.l.b16 %v1149
        %v2410 = vunpack.c.h.b16 %v1149
        %v2411 = vunpack.c.l.b16 %v1150
        %v2412 = vunpack.c.l.b16 %v1151
        %v2413 = vunpack.c.h.b16 %v1151
        %v2414 = vunpack.c.l.b16 %v1152
        %v2415 = vunpack.c.l.b16 %v1153
        %v2416 = vunpack.c.h.b16 %v1153
        %v2417 = vunpack.c.l.b16 %v1154
        %v2418 = vunpack.c.l.b16 %v1155
        %v2419 = vunpack.c.h.b16 %v1155
        %v2420 = vunpack.c.l.b16 %v1156
        %v2421 = vunpack.c.l.b16 %v1157
        %v2422 = vunpack.c.h.b16 %v1157
        %v2423 = vunpack.c.l.b16 %v1158
        %v2424 = vunpack.c.l.b16 %v1159
        %v2425 = vunpack.c.h.b16 %v1159
        %v2426 = vunpack.c.l.b16 %v1160
        %v2427 = vunpack.c.l.b16 %v1161
        %v2428 = vunpack.c.h.b16 %v1161
        %v2429 = vunpack.c.l.b16 %v1162
        %v2430 = vunpack.c.l.b16 %v1163
        %v2431 = vunpack.c.h.b16 %v1163
        %v2432 = vunpack.c.l.b16 %v1164
        %v2433 = vunpack.c.l.b16 %v1165
        %v2434 = vunpack.c.h.b16 %v1165
        %v2435 = vunpack.c.l.b16 %v1166
        %v2436 = vunpack.c.l.b16 %v1167
        %v2437 = vunpack.c.h.b16 %v1167
        %v2438 = vunpack.c.l.b16 %v1168
        %v2439 = vunpack.c.l.b16 %v1169
        %v2440 = vunpack.c.h.b16 %v1169
        %v2441 = vunpack.c.l.b16 %v1170
        %v2442 = vunpack.c.l.b16 %v1171
        %v2443 = vunpack.c.h.b16 %v1171
        %v2444 = vunpack.c.l.b16 %v1172
        %v2445 = vunpack.c.l.b16 %v1173
        %v2446 = vunpack.c.h.b16 %v1173
        %v2447 = vunpack.c.l.b16 %v1174
        %v2448 = vunpack.c.l.b16 %v1175
        %v2449 = vunpack.c.h.b16 %v1175
        %v2450 = vunpack.c.l.b16 %v1176
        %v2451 = vunpack.c.l.b16 %v1177
        %v2452 = vunpack.c.h.b16 %v1177
        %v2453 = vunpack.c.l.b16 %v1178
        %v2454 = vunpack.c.l.b16 %v1179
        %v2455 = vunpack.c.h.b16 %v1179
        %v2456 = vunpack.c.l.b16 %v1180
        %v2457 = vunpack.c.l.b16 %v1181
        %v2458 = vunpack.c.h.b16 %v1181
        %v2459 = vunpack.c.l.b16 %v1182
        %v2460 = vunpack.c.l.b16 %v1183
        %v2461 = vunpack.c.h.b16 %v1183
        %v2462 = vunpack.c.l.b16 %v1184
        %v2463 = vunpack.c.l.b16 %v1185
        %v2464 = vunpack.c.h.b16 %v1185
        %v2465 = vunpack.c.l.b16 %v1186
        %v2466 = vunpack.c.l.b16 %v1187
        %v2467 = vunpack.c.h.b16 %v1187
        %v2468 = vunpack.c.l.b16 %v1188
        %v2469 = vunpack.c.l.b16 %v1189
        %v2470 = vunpack.c.h.b16 %v1189
        %v2471 = vunpack.c.l.b16 %v1190
        %v2472 = vunpack.c.l.b16 %v1191
        %v2473 = vunpack.c.h.b16 %v1191
        %v2474 = vunpack.c.l.b16 %v1192
        %v2475 = vunpack.c.l.b16 %v1193
        %v2476 = vunpack.c.h.b16 %v1193
        %v2477 = vunpack.c.l.b16 %v1194
        %v2478 = vunpack.c.l.b16 %v1195
        %v2479 = vunpack.c.h.b16 %v1195
        %v2480 = vunpack.c.l.b16 %v1196
        %v2481 = vunpack.c.l.b16 %v1197
        %v2482 = vunpack.c.h.b16 %v1197
        %v2483 = vunpack.c.l.b16 %v1198
        %v2484 = vunpack.c.l.b16 %v1199
        %v2485 = vunpack.c.h.b16 %v1199
        %v2486 = vunpack.c.l.b16 %v1200
        %v2487 = vunpack.c.l.b16 %v1201
        %v2488 = vunpack.c.h.b16 %v1201
        %v2489 = vunpack.c.l.b16 %v1202
        %v2490 = vunpack.c.l.b16 %v1203
        %v2491 = vunpack.c.h.b16 %v1203
        %v2492 = vunpack.c.l.b16 %v1204
        %v2493 = vunpack.c.l.b16 %v1205
        %v2494 = vunpack.c.h.b16 %v1205
        %v2495 = vunpack.c.l.b16 %v1206
        %v2496 = vunpack.c.l.b16 %v1207
        %v2497 = vunpack.c.h.b16 %v1207
        %v2498 = vunpack.c.l.b16 %v1208
        %v2499 = vunpack.c.l.b16 %v1209
        %v2500 = vunpack.c.h.b16 %v1209
        %v2501 = vunpack.c.l.b16 %v1210
        %v2502 = vunpack.c.l.b16 %v1211
        %v2503 = vunpack.c.h.b16 %v1211
        %v2504 = vunpack.c.l.b16 %v1212
        %v2505 = vunpack.c.l.b16 %v1213
        %v2506 = vunpack.c.h.b16 %v1213
        %v2507 = vunpack.c.l.b16 %v1214
        %v2508 = vunpack.c.l.b16 %v1215
        %v2509 = vunpack.c.h.b16 %v1215
        %v2510 = vunpack.c.l.b16 %v1216
        %v2511 = vunpack.c.l.b16 %v1217
        %v2512 = vunpack.c.h.b16 %v1217
        %v2513 = vunpack.c.l.b16 %v1218
        %v2514 = vunpack.c.l.b16 %v1219
        %v2515 = vunpack.c.h.b16 %v1219
        %v2516 = vunpack.c.l.b16 %v1220
        %v2517 = vunpack.c.l.b16 %v1221
        %v2518 = vunpack.c.h.b16 %v1221
        %v2519 = vunpack.c.l.b16 %v1222
        %v2520 = vunpack.c.l.b16 %v1223
        %v2521 = vunpack.c.h.b16 %v1223
        %v2522 = vunpack.c.l.b16 %v1224
        %v2523 = vunpack.c.l.b16 %v1225
        %v2524 = vunpack.c.h.b16 %v1225
        %v2525 = vunpack.c.l.b16 %v1226
        %v2526 = vunpack.c.l.b16 %v1227
        %v2527 = vunpack.c.h.b16 %v1227
        %v2528 = vunpack.c.l.b16 %v1228
        %v2529 = vpack.c.b16 %v1752, %v1749
        %v2530 = vpack.c.b16 %v1753, %v1750
        %v2531 = vpack.c.b16 %v1754, %v1751
        %v2532 = vpack.c.b16 %v1758, %v1755
        %v2533 = vpack.c.b16 %v1759, %v1756
        %v2534 = vpack.c.b16 %v1760, %v1757
        %v2535 = vpack.c.b16 %v1764, %v1761
        %v2536 = vpack.c.b16 %v1765, %v1762
        %v2537 = vpack.c.b16 %v1766, %v1763
        %v2538 = vpack.c.b16 %v1770, %v1767
        %v2539 = vpack.c.b16 %v1771, %v1768
        %v2540 = vpack.c.b16 %v1772, %v1769
        %v2541 = vpack.c.b16 %v1776, %v1773
        %v2542 = vpack.c.b16 %v1777, %v1774
        %v2543 = vpack.c.b16 %v1778, %v1775
        %v2544 = vpack.c.b16 %v1782, %v1779
        %v2545 = vpack.c.b16 %v1783, %v1780
        %v2546 = vpack.c.b16 %v1784, %v1781
        %v2547 = vpack.c.b16 %v1788, %v1785
        %v2548 = vpack.c.b16 %v1789, %v1786
        %v2549 = vpack.c.b16 %v1790, %v1787
        %v2550 = vpack.c.b16 %v1794, %v1791
        %v2551 = vpack.c.b16 %v1795, %v1792
        %v2552 = vpack.c.b16 %v1796, %v1793
        %v2553 = vpack.c.b16 %v1800, %v1797
        %v2554 = vpack.c.b16 %v1801, %v1798
        %v2555 = vpack.c.b16 %v1802, %v1799
        %v2556 = vpack.c.b16 %v1806, %v1803
        %v2557 = vpack.c.b16 %v1807, %v1804
        %v2558 = vpack.c.b16 %v1808, %v1805
        %v2559 = vpack.c.b16 %v1812, %v1809
        %v2560 = vpack.c.b16 %v1813, %v1810
        %v2561 = vpack.c.b16 %v1814, %v1811
        %v2562 = vpack.c.b16 %v1818, %v1815
        %v2563 = vpack.c.b16 %v1819, %v1816
        %v2564 = vpack.c.b16 %v1820, %v1817
        %v2565 = vpack.c.b16 %v1824, %v1821
        %v2566 = vpack.c.b16 %v1825, %v1822
        %v2567 = vpack.c.b16 %v1826, %v1823
        %v2568 = vpack.c.b16 %v1830, %v1827
        %v2569 = vpack.c.b16 %v1831, %v1828
        %v2570 = vpack.c.b16 %v1832, %v1829
        %v2571 = vpack.c.b16 %v1836, %v1833
        %v2572 = vpack.c.b16 %v1837, %v1834
        %v2573 = vpack.c.b16 %v1838, %v1835
        %v2574 = vpack.c.b16 %v1842, %v1839
        %v2575 = vpack.c.b16 %v1843, %v1840
        %v2576 = vpack.c.b16 %v1844, %v1841
        %v2577 = vpack.c.b16 %v1848, %v1845
        %v2578 = vpack.c.b16 %v1849, %v1846
        %v2579 = vpack.c.b16 %v1850, %v1847
        %v2580 = vpack.c.b16 %v1854, %v1851
        %v2581 = vpack.c.b16 %v1855, %v1852
        %v2582 = vpack.c.b16 %v1856, %v1853
        %v2583 = vpack.c.b16 %v1860, %v1857
        %v2584 = vpack.c.b16 %v1861, %v1858
        %v2585 = vpack.c.b16 %v1862, %v1859
        %v2586 = vpack.c.b16 %v1866, %v1863
        %v2587 = vpack.c.b16 %v1867, %v1864
        %v2588 = vpack.c.b16 %v1868, %v1865
        %v2589 = vpack.c.b16 %v1872, %v1869
        %v2590 = vpack.c.b16 %v1873, %v1870
        %v2591 = vpack.c.b16 %v1874, %v1871
        %v2592 = vpack.c.b16 %v1878, %v1875
        %v2593 = vpack.c.b16 %v1879, %v1876
        %v2594 = vpack.c.b16 %v1880, %v1877
        %v2595 = vpack.c.b16 %v1884, %v1881
        %v2596 = vpack.c.b16 %v1885, %v1882
        %v2597 = vpack.c.b16 %v1886, %v1883
        %v2598 = vpack.c.b16 %v1890, %v1887
        %v2599 = vpack.c.b16 %v1891, %v1888
        %v2600 = vpack.c.b16 %v1892, %v1889
        %v2601 = vpack.c.b16 %v1896, %v1893
        %v2602 = vpack.c.b16 %v1897, %v1894
        %v2603 = vpack.c.b16 %v1898, %v1895
        %v2604 = vpack.c.b16 %v1902, %v1899
        %v2605 = vpack.c.b16 %v1903, %v1900
        %v2606 = vpack.c.b16 %v1904, %v1901
        %v2607 = vpack.c.b16 %v1908, %v1905
        %v2608 = vpack.c.b16 %v1909, %v1906
        %v2609 = vpack.c.b16 %v1910, %v1907
        %v2610 = vpack.c.b16 %v1914, %v1911
        %v2611 = vpack.c.b16 %v1915, %v1912
        %v2612 = vpack.c.b16 %v1916, %v1913
        %v2613 = vpack.c.b16 %v1920, %v1917
        %v2614 = vpack.c.b16 %v1921, %v1918
        %v2615 = vpack.c.b16 %v1922, %v1919
        %v2616 = vpack.c.b16 %v1926, %v1923
        %v2617 = vpack.c.b16 %v1927, %v1924
        %v2618 = vpack.c.b16 %v1928, %v1925
        %v2619 = vpack.c.b16 %v1932, %v1929
        %v2620 = vpack.c.b16 %v1933, %v1930
        %v2621 = vpack.c.b16 %v1934, %v1931
        %v2622 = vpack.c.b16 %v1938, %v1935
        %v2623 = vpack.c.b16 %v1939, %v1936
        %v2624 = vpack.c.b16 %v1940, %v1937
        %v2625 = vpack.c.b16 %v1944, %v1941
        %v2626 = vpack.c.b16 %v1945, %v1942
        %v2627 = vpack.c.b16 %v1946, %v1943
        %v2628 = vpack.c.b16 %v1950, %v1947
        %v2629 = vpack.c.b16 %v1951, %v1948
        %v2630 = vpack.c.b16 %v1952, %v1949
        %v2631 = vpack.c.b16 %v1956, %v1953
        %v2632 = vpack.c.b16 %v1957, %v1954
        %v2633 = vpack.c.b16 %v1958, %v1955
        %v2634 = vpack.c.b16 %v1962, %v1959
        %v2635 = vpack.c.b16 %v1963, %v1960
        %v2636 = vpack.c.b16 %v1964, %v1961
        %v2637 = vpack.c.b16 %v1968, %v1965
        %v2638 = vpack.c.b16 %v1969, %v1966
        %v2639 = vpack.c.b16 %v1970, %v1967
        %v2640 = vpack.c.b16 %v1974, %v1971
        %v2641 = vpack.c.b16 %v1975, %v1972
        %v2642 = vpack.c.b16 %v1976, %v1973
        %v2643 = vpack.c.b16 %v1980, %v1977
        %v2644 = vpack.c.b16 %v1981, %v1978
        %v2645 = vpack.c.b16 %v1982, %v1979
        %v2646 = vpack.c.b16 %v1986, %v1983
        %v2647 = vpack.c.b16 %v1987, %v1984
        %v2648 = vpack.c.b16 %v1988, %v1985
        %v2649 = vpack.c.b16 %v1992, %v1989
        %v2650 = vpack.c.b16 %v1993, %v1990
        %v2651 = vpack.c.b16 %v1994, %v1991
        %v2652 = vpack.c.b16 %v1998, %v1995
        %v2653 = vpack.c.b16 %v1999, %v1996
        %v2654 = vpack.c.b16 %v2000, %v1997
        %v2655 = vpack.c.b16 %v2004, %v2001
        %v2656 = vpack.c.b16 %v2005, %v2002
        %v2657 = vpack.c.b16 %v2006, %v2003
        %v2658 = vpack.c.b16 %v2010, %v2007
        %v2659 = vpack.c.b16 %v2011, %v2008
        %v2660 = vpack.c.b16 %v2012, %v2009
        %v2661 = vpack.c.b16 %v2016, %v2013
        %v2662 = vpack.c.b16 %v2017, %v2014
        %v2663 = vpack.c.b16 %v2018, %v2015
        %v2664 = vpack.c.b16 %v2022, %v2019
        %v2665 = vpack.c.b16 %v2023, %v2020
        %v2666 = vpack.c.b16 %v2024, %v2021
        %v2667 = vpack.c.b16 %v2028, %v2025
        %v2668 = vpack.c.b16 %v2029, %v2026
        %v2669 = vpack.c.b16 %v2030, %v2027
        %v2670 = vpack.c.b16 %v2034, %v2031
        %v2671 = vpack.c.b16 %v2035, %v2032
        %v2672 = vpack.c.b16 %v2036, %v2033
        %v2673 = vpack.c.b16 %v2040, %v2037
        %v2674 = vpack.c.b16 %v2041, %v2038
        %v2675 = vpack.c.b16 %v2042, %v2039
        %v2676 = vpack.c.b16 %v2046, %v2043
        %v2677 = vpack.c.b16 %v2047, %v2044
        %v2678 = vpack.c.b16 %v2048, %v2045
        %v2679 = vpack.c.b16 %v2052, %v2049
        %v2680 = vpack.c.b16 %v2053, %v2050
        %v2681 = vpack.c.b16 %v2054, %v2051
        %v2682 = vpack.c.b16 %v2058, %v2055
        %v2683 = vpack.c.b16 %v2059, %v2056
        %v2684 = vpack.c.b16 %v2060, %v2057
        %v2685 = vpack.c.b16 %v2064, %v2061
        %v2686 = vpack.c.b16 %v2065, %v2062
        %v2687 = vpack.c.b16 %v2066, %v2063
        %v2688 = vpack.c.b16 %v2070, %v2067
        %v2689 = vpack.c.b16 %v2071, %v2068
        %v2690 = vpack.c.b16 %v2072, %v2069
        %v2691 = vpack.c.b16 %v2076, %v2073
        %v2692 = vpack.c.b16 %v2077, %v2074
        %v2693 = vpack.c.b16 %v2078, %v2075
        %v2694 = vpack.c.b16 %v2082, %v2079
        %v2695 = vpack.c.b16 %v2083, %v2080
        %v2696 = vpack.c.b16 %v2084, %v2081
        %v2697 = vpack.c.b16 %v2088, %v2085
        %v2698 = vpack.c.b16 %v2089, %v2086
        %v2699 = vpack.c.b16 %v2090, %v2087
        %v2700 = vpack.c.b16 %v2094, %v2091
        %v2701 = vpack.c.b16 %v2095, %v2092
        %v2702 = vpack.c.b16 %v2096, %v2093
        %v2703 = vpack.c.b16 %v2100, %v2097
        %v2704 = vpack.c.b16 %v2101, %v2098
        %v2705 = vpack.c.b16 %v2102, %v2099
        %v2706 = vpack.c.b16 %v2106, %v2103
        %v2707 = vpack.c.b16 %v2107, %v2104
        %v2708 = vpack.c.b16 %v2108, %v2105
        %v2709 = vpack.c.b16 %v2112, %v2109
        %v2710 = vpack.c.b16 %v2113, %v2110
        %v2711 = vpack.c.b16 %v2114, %v2111
        %v2712 = vpack.c.b16 %v2118, %v2115
        %v2713 = vpack.c.b16 %v2119, %v2116
        %v2714 = vpack.c.b16 %v2120, %v2117
        %v2715 = vpack.c.b16 %v2124, %v2121
        %v2716 = vpack.c.b16 %v2125, %v2122
        %v2717 = vpack.c.b16 %v2126, %v2123
        %v2718 = vpack.c.b16 %v2130, %v2127
        %v2719 = vpack.c.b16 %v2131, %v2128
        %v2720 = vpack.c.b16 %v2132, %v2129
        %v2721 = vpack.c.b16 %v2136, %v2133
        %v2722 = vpack.c.b16 %v2137, %v2134
        %v2723 = vpack.c.b16 %v2138, %v2135
        %v2724 = vpack.c.b16 %v2142, %v2139
        %v2725 = vpack.c.b16 %v2143, %v2140
        %v2726 = vpack.c.b16 %v2144, %v2141
        %v2727 = vpack.c.b16 %v2148, %v2145
        %v2728 = vpack.c.b16 %v2149, %v2146
        %v2729 = vpack.c.b16 %v2150, %v2147
        %v2730 = vpack.c.b16 %v2154, %v2151
        %v2731 = vpack.c.b16 %v2155, %v2152
        %v2732 = vpack.c.b16 %v2156, %v2153
        %v2733 = vpack.c.b16 %v2160, %v2157
        %v2734 = vpack.c.b16 %v2161, %v2158
        %v2735 = vpack.c.b16 %v2162, %v2159
        %v2736 = vpack.c.b16 %v2166, %v2163
        %v2737 = vpack.c.b16 %v2167, %v2164
        %v2738 = vpack.c.b16 %v2168, %v2165
        %v2739 = vpack.c.b16 %v2172, %v2169
        %v2740 = vpack.c.b16 %v2173, %v2170
        %v2741 = vpack.c.b16 %v2174, %v2171
        %v2742 = vpack.c.b16 %v2178, %v2175
        %v2743 = vpack.c.b16 %v2179, %v2176
        %v2744 = vpack.c.b16 %v2180, %v2177
        %v2745 = vpack.c.b16 %v2184, %v2181
        %v2746 = vpack.c.b16 %v2185, %v2182
        %v2747 = vpack.c.b16 %v2186, %v2183
        %v2748 = vpack.c.b16 %v2190, %v2187
        %v2749 = vpack.c.b16 %v2191, %v2188
        %v2750 = vpack.c.b16 %v2192, %v2189
        %v2751 = vpack.c.b16 %v2196, %v2193
        %v2752 = vpack.c.b16 %v2197, %v2194
        %v2753 = vpack.c.b16 %v2198, %v2195
        %v2754 = vpack.c.b16 %v2202, %v2199
        %v2755 = vpack.c.b16 %v2203, %v2200
        %v2756 = vpack.c.b16 %v2204, %v2201
        %v2757 = vpack.c.b16 %v2208, %v2205
        %v2758 = vpack.c.b16 %v2209, %v2206
        %v2759 = vpack.c.b16 %v2210, %v2207
        %v2760 = vpack.c.b16 %v2214, %v2211
        %v2761 = vpack.c.b16 %v2215, %v2212
        %v2762 = vpack.c.b16 %v2216, %v2213
        %v2763 = vpack.c.b16 %v2220, %v2217
        %v2764 = vpack.c.b16 %v2221, %v2218
        %v2765 = vpack.c.b16 %v2222, %v2219
        %v2766 = vpack.c.b16 %v2226, %v2223
        %v2767 = vpack.c.b16 %v2227, %v2224
        %v2768 = vpack.c.b16 %v2228, %v2225
        %v2769 = vpack.c.b16 %v2232, %v2229
        %v2770 = vpack.c.b16 %v2233, %v2230
        %v2771 = vpack.c.b16 %v2234, %v2231
        %v2772 = vpack.c.b16 %v2238, %v2235
        %v2773 = vpack.c.b16 %v2239, %v2236
        %v2774 = vpack.c.b16 %v2240, %v2237
        %v2775 = vpack.c.b16 %v2244, %v2241
        %v2776 = vpack.c.b16 %v2245, %v2242
        %v2777 = vpack.c.b16 %v2246, %v2243
        %v2778 = vpack.c.b16 %v2250, %v2247
        %v2779 = vpack.c.b16 %v2251, %v2248
        %v2780 = vpack.c.b16 %v2252, %v2249
        %v2781 = vpack.c.b16 %v2256, %v2253
        %v2782 = vpack.c.b16 %v2257, %v2254
        %v2783 = vpack.c.b16 %v2258, %v2255
        %v2784 = vpack.c.b16 %v2262, %v2259
        %v2785 = vpack.c.b16 %v2263, %v2260
        %v2786 = vpack.c.b16 %v2264, %v2261
        %v2787 = vpack.c.b16 %v2268, %v2265
        %v2788 = vpack.c.b16 %v2269, %v2266
        %v2789 = vpack.c.b16 %v2270, %v2267
        %v2790 = vpack.c.b16 %v2274, %v2271
        %v2791 = vpack.c.b16 %v2275, %v2272
        %v2792 = vpack.c.b16 %v2276, %v2273
        %v2793 = vpack.c.b16 %v2280, %v2277
        %v2794 = vpack.c.b16 %v2281, %v2278
        %v2795 = vpack.c.b16 %v2282, %v2279
        %v2796 = vpack.c.b16 %v2286, %v2283
        %v2797 = vpack.c.b16 %v2287, %v2284
        %v2798 = vpack.c.b16 %v2288, %v2285
        %v2799 = vpack.c.b16 %v2292, %v2289
        %v2800 = vpack.c.b16 %v2293, %v2290
        %v2801 = vpack.c.b16 %v2294, %v2291
        %v2802 = vpack.c.b16 %v2298, %v2295
        %v2803 = vpack.c.b16 %v2299, %v2296
        %v2804 = vpack.c.b16 %v2300, %v2297
        %v2805 = vpack.c.b16 %v2304, %v2301
        %v2806 = vpack.c.b16 %v2305, %v2302
        %v2807 = vpack.c.b16 %v2306, %v2303
        %v2808 = vpack.c.b16 %v2310, %v2307
        %v2809 = vpack.c.b16 %v2311, %v2308
        %v2810 = vpack.c.b16 %v2312, %v2309
        %v2811 = vpack.c.b16 %v2316, %v2313
        %v2812 = vpack.c.b16 %v2317, %v2314
        %v2813 = vpack.c.b16 %v2318, %v2315
        %v2814 = vpack.c.b16 %v2322, %v2319
        %v2815 = vpack.c.b16 %v2323, %v2320
        %v2816 = vpack.c.b16 %v2324, %v2321
        %v2817 = vpack.c.b16 %v2328, %v2325
        %v2818 = vpack.c.b16 %v2329, %v2326
        %v2819 = vpack.c.b16 %v2330, %v2327
        %v2820 = vpack.c.b16 %v2334, %v2331
        %v2821 = vpack.c.b16 %v2335, %v2332
        %v2822 = vpack.c.b16 %v2336, %v2333
        %v2823 = vpack.c.b16 %v2340, %v2337
        %v2824 = vpack.c.b16 %v2341, %v2338
        %v2825 = vpack.c.b16 %v2342, %v2339
        %v2826 = vpack.c.b16 %v2346, %v2343
        %v2827 = vpack.c.b16 %v2347, %v2344
        %v2828 = vpack.c.b16 %v2348, %v2345
        %v2829 = vpack.c.b16 %v2352, %v2349
        %v2830 = vpack.c.b16 %v2353, %v2350
        %v2831 = vpack.c.b16 %v2354, %v2351
        %v2832 = vpack.c.b16 %v2358, %v2355
        %v2833 = vpack.c.b16 %v2359, %v2356
        %v2834 = vpack.c.b16 %v2360, %v2357
        %v2835 = vpack.c.b16 %v2364, %v2361
        %v2836 = vpack.c.b16 %v2365, %v2362
        %v2837 = vpack.c.b16 %v2366, %v2363
        %v2838 = vpack.c.b16 %v2370, %v2367
        %v2839 = vpack.c.b16 %v2371, %v2368
        %v2840 = vpack.c.b16 %v2372, %v2369
        %v2841 = vpack.c.b16 %v2376, %v2373
        %v2842 = vpack.c.b16 %v2377, %v2374
        %v2843 = vpack.c.b16 %v2378, %v2375
        %v2844 = vpack.c.b16 %v2382, %v2379
        %v2845 = vpack.c.b16 %v2383, %v2380
        %v2846 = vpack.c.b16 %v2384, %v2381
        %v2847 = vpack.c.b16 %v2388, %v2385
        %v2848 = vpack.c.b16 %v2389, %v2386
        %v2849 = vpack.c.b16 %v2390, %v2387
        %v2850 = vpack.c.b16 %v2394, %v2391
        %v2851 = vpack.c.b16 %v2395, %v2392
        %v2852 = vpack.c.b16 %v2396, %v2393
        %v2853 = vpack.c.b16 %v2400, %v2397
        %v2854 = vpack.c.b16 %v2401, %v2398
        %v2855 = vpack.c.b16 %v2402, %v2399
        %v2856 = vpack.c.b16 %v2406, %v2403
        %v2857 = vpack.c.b16 %v2407, %v2404
        %v2858 = vpack.c.b16 %v2408, %v2405
        %v2859 = vpack.c.b16 %v2412, %v2409
        %v2860 = vpack.c.b16 %v2413, %v2410
        %v2861 = vpack.c.b16 %v2414, %v2411
        %v2862 = vpack.c.b16 %v2418, %v2415
        %v2863 = vpack.c.b16 %v2419, %v2416
        %v2864 = vpack.c.b16 %v2420, %v2417
        %v2865 = vpack.c.b16 %v2424, %v2421
        %v2866 = vpack.c.b16 %v2425, %v2422
        %v2867 = vpack.c.b16 %v2426, %v2423
        %v2868 = vpack.c.b16 %v2430, %v2427
        %v2869 = vpack.c.b16 %v2431, %v2428
        %v2870 = vpack.c.b16 %v2432, %v2429
        %v2871 = vpack.c.b16 %v2436, %v2433
        %v2872 = vpack.c.b16 %v2437, %v2434
        %v2873 = vpack.c.b16 %v2438, %v2435
        %v2874 = vpack.c.b16 %v2442, %v2439
        %v2875 = vpack.c.b16 %v2443, %v2440
        %v2876 = vpack.c.b16 %v2444, %v2441
        %v2877 = vpack.c.b16 %v2448, %v2445
        %v2878 = vpack.c.b16 %v2449, %v2446
        %v2879 = vpack.c.b16 %v2450, %v2447
        %v2880 = vpack.c.b16 %v2454, %v2451
        %v2881 = vpack.c.b16 %v2455, %v2452
        %v2882 = vpack.c.b16 %v2456, %v2453
        %v2883 = vpack.c.b16 %v2460, %v2457
        %v2884 = vpack.c.b16 %v2461, %v2458
        %v2885 = vpack.c.b16 %v2462, %v2459
        %v2886 = vpack.c.b16 %v2466, %v2463
        %v2887 = vpack.c.b16 %v2467, %v2464
        %v2888 = vpack.c.b16 %v2468, %v2465
        %v2889 = vpack.c.b16 %v2472, %v2469
        %v2890 = vpack.c.b16 %v2473, %v2470
        %v2891 = vpack.c.b16 %v2474, %v2471
        %v2892 = vpack.c.b16 %v2478, %v2475
        %v2893 = vpack.c.b16 %v2479, %v2476
        %v2894 = vpack.c.b16 %v2480, %v2477
        %v2895 = vpack.c.b16 %v2484, %v2481
        %v2896 = vpack.c.b16 %v2485, %v2482
        %v2897 = vpack.c.b16 %v2486, %v2483
        %v2898 = vpack.c.b16 %v2490, %v2487
        %v2899 = vpack.c.b16 %v2491, %v2488
        %v2900 = vpack.c.b16 %v2492, %v2489
        %v2901 = vpack.c.b16 %v2496, %v2493
        %v2902 = vpack.c.b16 %v2497, %v2494
        %v2903 = vpack.c.b16 %v2498, %v2495
        %v2904 = vpack.c.b16 %v2502, %v2499
        %v2905 = vpack.c.b16 %v2503, %v2500
        %v2906 = vpack.c.b16 %v2504, %v2501
        %v2907 = vpack.c.b16 %v2508, %v2505
        %v2908 = vpack.c.b16 %v2509, %v2506
        %v2909 = vpack.c.b16 %v2510, %v2507
        %v2910 = vpack.c.b16 %v2514, %v2511
        %v2911 = vpack.c.b16 %v2515, %v2512
        %v2912 = vpack.c.b16 %v2516, %v2513
        %v2913 = vpack.c.b16 %v2520, %v2517
        %v2914 = vpack.c.b16 %v2521, %v2518
        %v2915 = vpack.c.b16 %v2522, %v2519
        %v2916 = vpack.c.b16 %v2526, %v2523
        %v2917 = vpack.c.b16 %v2527, %v2524
        %v2918 = vpack.c.b16 %v2528, %v2525
        %vm3309 = vcmask 261120
        %v3311 = vsel %vm3309, %v657, 0
        %v3314 = vsel %vm3309, %v674, 0
        %v3317 = vsel %vm3309, %v691, 0
        %v3320 = vsel %vm3309, %v708, 0
        %3322 = vmatprep.subr.bf16.mxu0 %v2530
        %3323 = vmatpush1.bf16.msra.mxu0 %v2529
        %3324 = vmatprep.subr.bf16.mxu0 %v2533
        %3325 = vmatpush1.bf16.msra.mxu0 %v2532
        %3326 = vmatprep.subr.bf16.mxu0 %v2536
        %3327 = vmatpush1.bf16.msra.mxu0 %v2535
        %3328 = vmatprep.subr.bf16.mxu0 %v2539
        %3329 = vmatpush1.bf16.msra.mxu0 %v2538
        %3330 = vmatprep.subr.bf16.mxu0 %v2542
        %3331 = vmatpush1.bf16.msra.mxu0 %v2541
        %3332 = vmatprep.subr.bf16.mxu0 %v2545
        %3333 = vmatpush1.bf16.msra.mxu0 %v2544
        %3334 = vmatprep.subr.bf16.mxu0 %v2548
        %3335 = vmatpush1.bf16.msra.mxu0 %v2547
        %3336 = vmatprep.subr.bf16.mxu0 %v2551
        %3337 = vmatpush1.bf16.msra.mxu0 %v2550
        %3338 = vmatprep.subr.bf16.mxu0 %v2554
        %3339 = vmatpush1.bf16.msra.mxu0 %v2553
        %3340 = vmatprep.subr.bf16.mxu0 %v2557
        %3341 = vmatpush1.bf16.msra.mxu0 %v2556
        %3342 = vmatprep.subr.bf16.mxu0 %v2560
        %3343 = vmatpush1.bf16.msra.mxu0 %v2559
        %3344 = vmatprep.subr.bf16.mxu0 %v2563
        %3345 = vmatpush1.bf16.msra.mxu0 %v2562
        %3346 = vmatprep.subr.bf16.mxu0 %v2566
        %3347 = vmatpush1.bf16.msra.mxu0 %v2565
        %3348 = vmatprep.subr.bf16.mxu0 %v2569
        %3349 = vmatpush1.bf16.msra.mxu0 %v2568
        %3350 = vmatprep.subr.bf16.mxu0 %v2572
        %3351 = vmatpush1.bf16.msra.mxu0 %v2571
        %3352 = vmatprep.subr.bf16.mxu0 %v2575
        %3353 = vmatpush1.bf16.msra.mxu0 %v2574
        %3354 = vmatprep.mubr.bf16.mxu0 %v642
        %3355 = vmatmul.mubr.bf16.gmra.mrb[0].mxu0 %v641
        %v3356 = vpop.f32.mrb[0].mxu0
        %v3357 = vadd.f32 0.0, %v3356
        %v3358 = vpop.f32.mrb[0].mxu0
        %v3359 = vadd.f32 0.0, %v3358
        %v3360 = vpop.f32.mrb[0].mxu0
        %v3361 = vadd.f32 0.0, %v3360
        %v3362 = vpop.f32.mrb[0].mxu0
        %v3363 = vadd.f32 0.0, %v3362
        %3364 = vmatprep.mubr.bf16.mxu0 %v659
        %3365 = vmatmul.mubr.bf16.gmra.mrb[0].mxu0 %v658
        %v3366 = vpop.f32.mrb[0].mxu0
        %v3367 = vadd.f32 0.0, %v3366
        %v3368 = vpop.f32.mrb[0].mxu0
        %v3369 = vadd.f32 0.0, %v3368
        %v3370 = vpop.f32.mrb[0].mxu0
        %v3371 = vadd.f32 0.0, %v3370
        %v3372 = vpop.f32.mrb[0].mxu0
        %v3373 = vadd.f32 0.0, %v3372
        %3374 = vmatprep.mubr.bf16.mxu0 %v676
        %3375 = vmatmul.mubr.bf16.gmra.mrb[0].mxu0 %v675
        %v3376 = vpop.f32.mrb[0].mxu0
        %v3377 = vadd.f32 0.0, %v3376
        %v3378 = vpop.f32.mrb[0].mxu0
        %v3379 = vadd.f32 0.0, %v3378
        %v3380 = vpop.f32.mrb[0].mxu0
        %v3381 = vadd.f32 0.0, %v3380
        %v3382 = vpop.f32.mrb[0].mxu0
        %v3383 = vadd.f32 0.0, %v3382
        %3384 = vmatprep.mubr.bf16.mxu0 %v693
        %3385 = vmatmul.mubr.bf16.gmra.mrb[0].mxu0 %v692
        %v3386 = vpop.f32.mrb[0].mxu0
        %v3387 = vadd.f32 0.0, %v3386
        %v3388 = vpop.f32.mrb[0].mxu0
        %v3389 = vadd.f32 0.0, %v3388
        %v3390 = vpop.f32.mrb[0].mxu0
        %v3391 = vadd.f32 0.0, %v3390
        %v3392 = vpop.f32.mrb[0].mxu0
        %v3393 = vadd.f32 0.0, %v3392
        %3394 = vdwg.mxu0
        %3395 = vmatprep.subr.bf16.mxu0 %v2578
        %3396 = vmatpush1.bf16.msra.mxu0 %v2577
        %3397 = vmatprep.subr.bf16.mxu0 %v2581
        %3398 = vmatpush1.bf16.msra.mxu0 %v2580
        %3399 = vmatprep.subr.bf16.mxu0 %v2584
        %3400 = vmatpush1.bf16.msra.mxu0 %v2583
        %3401 = vmatprep.subr.bf16.mxu0 %v2587
        %3402 = vmatpush1.bf16.msra.mxu0 %v2586
        %3403 = vmatprep.subr.bf16.mxu0 %v2590
        %3404 = vmatpush1.bf16.msra.mxu0 %v2589
        %3405 = vmatprep.subr.bf16.mxu0 %v2593
        %3406 = vmatpush1.bf16.msra.mxu0 %v2592
        %3407 = vmatprep.subr.bf16.mxu0 %v2596
        %3408 = vmatpush1.bf16.msra.mxu0 %v2595
        %3409 = vmatprep.subr.bf16.mxu0 %v2599
        %3410 = vmatpush1.bf16.msra.mxu0 %v2598
        %3411 = vmatprep.subr.bf16.mxu0 %v2602
        %3412 = vmatpush1.bf16.msra.mxu0 %v2601
        %3413 = vmatprep.subr.bf16.mxu0 %v2605
        %3414 = vmatpush1.bf16.msra.mxu0 %v2604
        %3415 = vmatprep.subr.bf16.mxu0 %v2608
        %3416 = vmatpush1.bf16.msra.mxu0 %v2607
        %3417 = vmatprep.subr.bf16.mxu0 %v2611
        %3418 = vmatpush1.bf16.msra.mxu0 %v2610
        %3419 = vmatprep.subr.bf16.mxu0 %v2614
        %3420 = vmatpush1.bf16.msra.mxu0 %v2613
        %3421 = vmatprep.subr.bf16.mxu0 %v2617
        %3422 = vmatpush1.bf16.msra.mxu0 %v2616
        %3423 = vmatprep.subr.bf16.mxu0 %v2620
        %3424 = vmatpush1.bf16.msra.mxu0 %v2619
        %3425 = vmatprep.subr.bf16.mxu0 %v2623
        %3426 = vmatpush1.bf16.msra.mxu0 %v2622
        %3427 = vmatprep.mubr.bf16.mxu0 %v644
        %3428 = vmatmul.mubr.bf16.gmra.mrb[0].mxu0 %v643
        %v3429 = vpop.f32.mrb[0].mxu0
        %v3430 = vadd.f32 %v3357, %v3429
        %v3431 = vpop.f32.mrb[0].mxu0
        %v3432 = vadd.f32 %v3359, %v3431
        %v3433 = vpop.f32.mrb[0].mxu0
        %v3434 = vadd.f32 %v3361, %v3433
        %v3435 = vpop.f32.mrb[0].mxu0
        %v3436 = vadd.f32 %v3363, %v3435
        %3437 = vmatprep.mubr.bf16.mxu0 %v661
        %3438 = vmatmul.mubr.bf16.gmra.mrb[0].mxu0 %v660
        %v3439 = vpop.f32.mrb[0].mxu0
        %v3440 = vadd.f32 %v3367, %v3439
        %v3441 = vpop.f32.mrb[0].mxu0
        %v3442 = vadd.f32 %v3369, %v3441
        %v3443 = vpop.f32.mrb[0].mxu0
        %v3444 = vadd.f32 %v3371, %v3443
        %v3445 = vpop.f32.mrb[0].mxu0
        %v3446 = vadd.f32 %v3373, %v3445
        %3447 = vmatprep.mubr.bf16.mxu0 %v678
        %3448 = vmatmul.mubr.bf16.gmra.mrb[0].mxu0 %v677
        %v3449 = vpop.f32.mrb[0].mxu0
        %v3450 = vadd.f32 %v3377, %v3449
        %v3451 = vpop.f32.mrb[0].mxu0
        %v3452 = vadd.f32 %v3379, %v3451
        %v3453 = vpop.f32.mrb[0].mxu0
        %v3454 = vadd.f32 %v3381, %v3453
        %v3455 = vpop.f32.mrb[0].mxu0
        %v3456 = vadd.f32 %v3383, %v3455
        %3457 = vmatprep.mubr.bf16.mxu0 %v695
        %3458 = vmatmul.mubr.bf16.gmra.mrb[0].mxu0 %v694
        %v3459 = vpop.f32.mrb[0].mxu0
        %v3460 = vadd.f32 %v3387, %v3459
        %v3461 = vpop.f32.mrb[0].mxu0
        %v3462 = vadd.f32 %v3389, %v3461
        %v3463 = vpop.f32.mrb[0].mxu0
        %v3464 = vadd.f32 %v3391, %v3463
        %v3465 = vpop.f32.mrb[0].mxu0
        %v3466 = vadd.f32 %v3393, %v3465
        %3467 = vdwg.mxu0
        %3468 = vmatprep.subr.bf16.mxu0 %v2626
        %3469 = vmatpush1.bf16.msra.mxu0 %v2625
        %3470 = vmatprep.subr.bf16.mxu0 %v2629
        %3471 = vmatpush1.bf16.msra.mxu0 %v2628
        %3472 = vmatprep.subr.bf16.mxu0 %v2632
        %3473 = vmatpush1.bf16.msra.mxu0 %v2631
        %3474 = vmatprep.subr.bf16.mxu0 %v2635
        %3475 = vmatpush1.bf16.msra.mxu0 %v2634
        %3476 = vmatprep.subr.bf16.mxu0 %v2638
        %3477 = vmatpush1.bf16.msra.mxu0 %v2637
        %3478 = vmatprep.subr.bf16.mxu0 %v2641
        %3479 = vmatpush1.bf16.msra.mxu0 %v2640
        %3480 = vmatprep.subr.bf16.mxu0 %v2644
        %3481 = vmatpush1.bf16.msra.mxu0 %v2643
        %3482 = vmatprep.subr.bf16.mxu0 %v2647
        %3483 = vmatpush1.bf16.msra.mxu0 %v2646
        %3484 = vmatprep.subr.bf16.mxu0 %v2650
        %3485 = vmatpush1.bf16.msra.mxu0 %v2649
        %3486 = vmatprep.subr.bf16.mxu0 %v2653
        %3487 = vmatpush1.bf16.msra.mxu0 %v2652
        %3488 = vmatprep.subr.bf16.mxu0 %v2656
        %3489 = vmatpush1.bf16.msra.mxu0 %v2655
        %3490 = vmatprep.subr.bf16.mxu0 %v2659
        %3491 = vmatpush1.bf16.msra.mxu0 %v2658
        %3492 = vmatprep.subr.bf16.mxu0 %v2662
        %3493 = vmatpush1.bf16.msra.mxu0 %v2661
        %3494 = vmatprep.subr.bf16.mxu0 %v2665
        %3495 = vmatpush1.bf16.msra.mxu0 %v2664
        %3496 = vmatprep.subr.bf16.mxu0 %v2668
        %3497 = vmatpush1.bf16.msra.mxu0 %v2667
        %3498 = vmatprep.subr.bf16.mxu0 %v2671
        %3499 = vmatpush1.bf16.msra.mxu0 %v2670
        %3500 = vmatprep.mubr.bf16.mxu0 %v646
        %3501 = vmatmul.mubr.bf16.gmra.mrb[0].mxu0 %v645
        %v3502 = vpop.f32.mrb[0].mxu0
        %v3503 = vadd.f32 %v3430, %v3502
        %v3504 = vpop.f32.mrb[0].mxu0
        %v3505 = vadd.f32 %v3432, %v3504
        %v3506 = vpop.f32.mrb[0].mxu0
        %v3507 = vadd.f32 %v3434, %v3506
        %v3508 = vpop.f32.mrb[0].mxu0
        %v3509 = vadd.f32 %v3436, %v3508
        %3510 = vmatprep.mubr.bf16.mxu0 %v663
        %3511 = vmatmul.mubr.bf16.gmra.mrb[0].mxu0 %v662
        %v3512 = vpop.f32.mrb[0].mxu0
        %v3513 = vadd.f32 %v3440, %v3512
        %v3514 = vpop.f32.mrb[0].mxu0
        %v3515 = vadd.f32 %v3442, %v3514
        %v3516 = vpop.f32.mrb[0].mxu0
        %v3517 = vadd.f32 %v3444, %v3516
        %v3518 = vpop.f32.mrb[0].mxu0
        %v3519 = vadd.f32 %v3446, %v3518
        %3520 = vmatprep.mubr.bf16.mxu0 %v680
        %3521 = vmatmul.mubr.bf16.gmra.mrb[0].mxu0 %v679
        %v3522 = vpop.f32.mrb[0].mxu0
        %v3523 = vadd.f32 %v3450, %v3522
        %v3524 = vpop.f32.mrb[0].mxu0
        %v3525 = vadd.f32 %v3452, %v3524
        %v3526 = vpop.f32.mrb[0].mxu0
        %v3527 = vadd.f32 %v3454, %v3526
        %v3528 = vpop.f32.mrb[0].mxu0
        %v3529 = vadd.f32 %v3456, %v3528
        %3530 = vmatprep.mubr.bf16.mxu0 %v697
        %3531 = vmatmul.mubr.bf16.gmra.mrb[0].mxu0 %v696
        %v3532 = vpop.f32.mrb[0].mxu0
        %v3533 = vadd.f32 %v3460, %v3532
        %v3534 = vpop.f32.mrb[0].mxu0
        %v3535 = vadd.f32 %v3462, %v3534
        %v3536 = vpop.f32.mrb[0].mxu0
        %v3537 = vadd.f32 %v3464, %v3536
        %v3538 = vpop.f32.mrb[0].mxu0
        %v3539 = vadd.f32 %v3466, %v3538
        %3540 = vdwg.mxu0
        %3541 = vmatprep.subr.bf16.mxu0 %v2674
        %3542 = vmatpush1.bf16.msra.mxu0 %v2673
        %3543 = vmatprep.subr.bf16.mxu0 %v2677
        %3544 = vmatpush1.bf16.msra.mxu0 %v2676
        %3545 = vmatprep.subr.bf16.mxu0 %v2680
        %3546 = vmatpush1.bf16.msra.mxu0 %v2679
        %3547 = vmatprep.subr.bf16.mxu0 %v2683
        %3548 = vmatpush1.bf16.msra.mxu0 %v2682
        %3549 = vmatprep.subr.bf16.mxu0 %v2686
        %3550 = vmatpush1.bf16.msra.mxu0 %v2685
        %3551 = vmatprep.subr.bf16.mxu0 %v2689
        %3552 = vmatpush1.bf16.msra.mxu0 %v2688
        %3553 = vmatprep.subr.bf16.mxu0 %v2692
        %3554 = vmatpush1.bf16.msra.mxu0 %v2691
        %3555 = vmatprep.subr.bf16.mxu0 %v2695
        %3556 = vmatpush1.bf16.msra.mxu0 %v2694
        %3557 = vmatprep.subr.bf16.mxu0 %v2698
        %3558 = vmatpush1.bf16.msra.mxu0 %v2697
        %3559 = vmatprep.subr.bf16.mxu0 %v2701
        %3560 = vmatpush1.bf16.msra.mxu0 %v2700
        %3561 = vmatprep.subr.bf16.mxu0 %v2704
        %3562 = vmatpush1.bf16.msra.mxu0 %v2703
        %3563 = vmatprep.subr.bf16.mxu0 %v2707
        %3564 = vmatpush1.bf16.msra.mxu0 %v2706
        %3565 = vmatprep.subr.bf16.mxu0 %v2710
        %3566 = vmatpush1.bf16.msra.mxu0 %v2709
        %3567 = vmatprep.subr.bf16.mxu0 %v2713
        %3568 = vmatpush1.bf16.msra.mxu0 %v2712
        %3569 = vmatprep.subr.bf16.mxu0 %v2716
        %3570 = vmatpush1.bf16.msra.mxu0 %v2715
        %3571 = vmatprep.subr.bf16.mxu0 %v2719
        %3572 = vmatpush1.bf16.msra.mxu0 %v2718
        %3573 = vmatprep.mubr.bf16.mxu0 %v648
        %3574 = vmatmul.mubr.bf16.gmra.mrb[0].mxu0 %v647
        %v3575 = vpop.f32.mrb[0].mxu0
        %v3576 = vadd.f32 %v3503, %v3575
        %v3577 = vpop.f32.mrb[0].mxu0
        %v3578 = vadd.f32 %v3505, %v3577
        %v3579 = vpop.f32.mrb[0].mxu0
        %v3580 = vadd.f32 %v3507, %v3579
        %v3581 = vpop.f32.mrb[0].mxu0
        %v3582 = vadd.f32 %v3509, %v3581
        %3583 = vmatprep.mubr.bf16.mxu0 %v665
        %3584 = vmatmul.mubr.bf16.gmra.mrb[0].mxu0 %v664
        %v3585 = vpop.f32.mrb[0].mxu0
        %v3586 = vadd.f32 %v3513, %v3585
        %v3587 = vpop.f32.mrb[0].mxu0
        %v3588 = vadd.f32 %v3515, %v3587
        %v3589 = vpop.f32.mrb[0].mxu0
        %v3590 = vadd.f32 %v3517, %v3589
        %v3591 = vpop.f32.mrb[0].mxu0
        %v3592 = vadd.f32 %v3519, %v3591
        %3593 = vmatprep.mubr.bf16.mxu0 %v682
        %3594 = vmatmul.mubr.bf16.gmra.mrb[0].mxu0 %v681
        %v3595 = vpop.f32.mrb[0].mxu0
        %v3596 = vadd.f32 %v3523, %v3595
        %v3597 = vpop.f32.mrb[0].mxu0
        %v3598 = vadd.f32 %v3525, %v3597
        %v3599 = vpop.f32.mrb[0].mxu0
        %v3600 = vadd.f32 %v3527, %v3599
        %v3601 = vpop.f32.mrb[0].mxu0
        %v3602 = vadd.f32 %v3529, %v3601
        %3603 = vmatprep.mubr.bf16.mxu0 %v699
        %3604 = vmatmul.mubr.bf16.gmra.mrb[0].mxu0 %v698
        %v3605 = vpop.f32.mrb[0].mxu0
        %v3606 = vadd.f32 %v3533, %v3605
        %v3607 = vpop.f32.mrb[0].mxu0
        %v3608 = vadd.f32 %v3535, %v3607
        %v3609 = vpop.f32.mrb[0].mxu0
        %v3610 = vadd.f32 %v3537, %v3609
        %v3611 = vpop.f32.mrb[0].mxu0
        %v3612 = vadd.f32 %v3539, %v3611
        %3613 = vdwg.mxu0
        %3614 = vmatprep.subr.bf16.mxu0 %v2722
        %3615 = vmatpush1.bf16.msra.mxu0 %v2721
        %3616 = vmatprep.subr.bf16.mxu0 %v2725
        %3617 = vmatpush1.bf16.msra.mxu0 %v2724
        %3618 = vmatprep.subr.bf16.mxu0 %v2728
        %3619 = vmatpush1.bf16.msra.mxu0 %v2727
        %3620 = vmatprep.subr.bf16.mxu0 %v2731
        %3621 = vmatpush1.bf16.msra.mxu0 %v2730
        %3622 = vmatprep.subr.bf16.mxu0 %v2734
        %3623 = vmatpush1.bf16.msra.mxu0 %v2733
        %3624 = vmatprep.subr.bf16.mxu0 %v2737
        %3625 = vmatpush1.bf16.msra.mxu0 %v2736
        %3626 = vmatprep.subr.bf16.mxu0 %v2740
        %3627 = vmatpush1.bf16.msra.mxu0 %v2739
        %3628 = vmatprep.subr.bf16.mxu0 %v2743
        %3629 = vmatpush1.bf16.msra.mxu0 %v2742
        %3630 = vmatprep.subr.bf16.mxu0 %v2746
        %3631 = vmatpush1.bf16.msra.mxu0 %v2745
        %3632 = vmatprep.subr.bf16.mxu0 %v2749
        %3633 = vmatpush1.bf16.msra.mxu0 %v2748
        %3634 = vmatprep.subr.bf16.mxu0 %v2752
        %3635 = vmatpush1.bf16.msra.mxu0 %v2751
        %3636 = vmatprep.subr.bf16.mxu0 %v2755
        %3637 = vmatpush1.bf16.msra.mxu0 %v2754
        %3638 = vmatprep.subr.bf16.mxu0 %v2758
        %3639 = vmatpush1.bf16.msra.mxu0 %v2757
        %3640 = vmatprep.subr.bf16.mxu0 %v2761
        %3641 = vmatpush1.bf16.msra.mxu0 %v2760
        %3642 = vmatprep.subr.bf16.mxu0 %v2764
        %3643 = vmatpush1.bf16.msra.mxu0 %v2763
        %3644 = vmatprep.subr.bf16.mxu0 %v2767
        %3645 = vmatpush1.bf16.msra.mxu0 %v2766
        %3646 = vmatprep.mubr.bf16.mxu0 %v650
        %3647 = vmatmul.mubr.bf16.gmra.mrb[0].mxu0 %v649
        %v3648 = vpop.f32.mrb[0].mxu0
        %v3649 = vadd.f32 %v3576, %v3648
        %v3650 = vpop.f32.mrb[0].mxu0
        %v3651 = vadd.f32 %v3578, %v3650
        %v3652 = vpop.f32.mrb[0].mxu0
        %v3653 = vadd.f32 %v3580, %v3652
        %v3654 = vpop.f32.mrb[0].mxu0
        %v3655 = vadd.f32 %v3582, %v3654
        %3656 = vmatprep.mubr.bf16.mxu0 %v667
        %3657 = vmatmul.mubr.bf16.gmra.mrb[0].mxu0 %v666
        %v3658 = vpop.f32.mrb[0].mxu0
        %v3659 = vadd.f32 %v3586, %v3658
        %v3660 = vpop.f32.mrb[0].mxu0
        %v3661 = vadd.f32 %v3588, %v3660
        %v3662 = vpop.f32.mrb[0].mxu0
        %v3663 = vadd.f32 %v3590, %v3662
        %v3664 = vpop.f32.mrb[0].mxu0
        %v3665 = vadd.f32 %v3592, %v3664
        %3666 = vmatprep.mubr.bf16.mxu0 %v684
        %3667 = vmatmul.mubr.bf16.gmra.mrb[0].mxu0 %v683
        %v3668 = vpop.f32.mrb[0].mxu0
        %v3669 = vadd.f32 %v3596, %v3668
        %v3670 = vpop.f32.mrb[0].mxu0
        %v3671 = vadd.f32 %v3598, %v3670
        %v3672 = vpop.f32.mrb[0].mxu0
        %v3673 = vadd.f32 %v3600, %v3672
        %v3674 = vpop.f32.mrb[0].mxu0
        %v3675 = vadd.f32 %v3602, %v3674
        %3676 = vmatprep.mubr.bf16.mxu0 %v701
        %3677 = vmatmul.mubr.bf16.gmra.mrb[0].mxu0 %v700
        %v3678 = vpop.f32.mrb[0].mxu0
        %v3679 = vadd.f32 %v3606, %v3678
        %v3680 = vpop.f32.mrb[0].mxu0
        %v3681 = vadd.f32 %v3608, %v3680
        %v3682 = vpop.f32.mrb[0].mxu0
        %v3683 = vadd.f32 %v3610, %v3682
        %v3684 = vpop.f32.mrb[0].mxu0
        %v3685 = vadd.f32 %v3612, %v3684
        %3686 = vdwg.mxu0
        %3687 = vmatprep.subr.bf16.mxu0 %v2770
        %3688 = vmatpush1.bf16.msra.mxu0 %v2769
        %3689 = vmatprep.subr.bf16.mxu0 %v2773
        %3690 = vmatpush1.bf16.msra.mxu0 %v2772
        %3691 = vmatprep.subr.bf16.mxu0 %v2776
        %3692 = vmatpush1.bf16.msra.mxu0 %v2775
        %3693 = vmatprep.subr.bf16.mxu0 %v2779
        %3694 = vmatpush1.bf16.msra.mxu0 %v2778
        %3695 = vmatprep.subr.bf16.mxu0 %v2782
        %3696 = vmatpush1.bf16.msra.mxu0 %v2781
        %3697 = vmatprep.subr.bf16.mxu0 %v2785
        %3698 = vmatpush1.bf16.msra.mxu0 %v2784
        %3699 = vmatprep.subr.bf16.mxu0 %v2788
        %3700 = vmatpush1.bf16.msra.mxu0 %v2787
        %3701 = vmatprep.subr.bf16.mxu0 %v2791
        %3702 = vmatpush1.bf16.msra.mxu0 %v2790
        %3703 = vmatprep.subr.bf16.mxu0 %v2794
        %3704 = vmatpush1.bf16.msra.mxu0 %v2793
        %3705 = vmatprep.subr.bf16.mxu0 %v2797
        %3706 = vmatpush1.bf16.msra.mxu0 %v2796
        %3707 = vmatprep.subr.bf16.mxu0 %v2800
        %3708 = vmatpush1.bf16.msra.mxu0 %v2799
        %3709 = vmatprep.subr.bf16.mxu0 %v2803
        %3710 = vmatpush1.bf16.msra.mxu0 %v2802
        %3711 = vmatprep.subr.bf16.mxu0 %v2806
        %3712 = vmatpush1.bf16.msra.mxu0 %v2805
        %3713 = vmatprep.subr.bf16.mxu0 %v2809
        %3714 = vmatpush1.bf16.msra.mxu0 %v2808
        %3715 = vmatprep.subr.bf16.mxu0 %v2812
        %3716 = vmatpush1.bf16.msra.mxu0 %v2811
        %3717 = vmatprep.subr.bf16.mxu0 %v2815
        %3718 = vmatpush1.bf16.msra.mxu0 %v2814
        %3719 = vmatprep.mubr.bf16.mxu0 %v652
        %3720 = vmatmul.mubr.bf16.gmra.mrb[0].mxu0 %v651
        %v3721 = vpop.f32.mrb[0].mxu0
        %v3722 = vadd.f32 %v3649, %v3721
        %v3723 = vpop.f32.mrb[0].mxu0
        %v3724 = vadd.f32 %v3651, %v3723
        %v3725 = vpop.f32.mrb[0].mxu0
        %v3726 = vadd.f32 %v3653, %v3725
        %v3727 = vpop.f32.mrb[0].mxu0
        %v3728 = vadd.f32 %v3655, %v3727
        %3729 = vmatprep.mubr.bf16.mxu0 %v669
        %3730 = vmatmul.mubr.bf16.gmra.mrb[0].mxu0 %v668
        %v3731 = vpop.f32.mrb[0].mxu0
        %v3732 = vadd.f32 %v3659, %v3731
        %v3733 = vpop.f32.mrb[0].mxu0
        %v3734 = vadd.f32 %v3661, %v3733
        %v3735 = vpop.f32.mrb[0].mxu0
        %v3736 = vadd.f32 %v3663, %v3735
        %v3737 = vpop.f32.mrb[0].mxu0
        %v3738 = vadd.f32 %v3665, %v3737
        %3739 = vmatprep.mubr.bf16.mxu0 %v686
        %3740 = vmatmul.mubr.bf16.gmra.mrb[0].mxu0 %v685
        %v3741 = vpop.f32.mrb[0].mxu0
        %v3742 = vadd.f32 %v3669, %v3741
        %v3743 = vpop.f32.mrb[0].mxu0
        %v3744 = vadd.f32 %v3671, %v3743
        %v3745 = vpop.f32.mrb[0].mxu0
        %v3746 = vadd.f32 %v3673, %v3745
        %v3747 = vpop.f32.mrb[0].mxu0
        %v3748 = vadd.f32 %v3675, %v3747
        %3749 = vmatprep.mubr.bf16.mxu0 %v703
        %3750 = vmatmul.mubr.bf16.gmra.mrb[0].mxu0 %v702
        %v3751 = vpop.f32.mrb[0].mxu0
        %v3752 = vadd.f32 %v3679, %v3751
        %v3753 = vpop.f32.mrb[0].mxu0
        %v3754 = vadd.f32 %v3681, %v3753
        %v3755 = vpop.f32.mrb[0].mxu0
        %v3756 = vadd.f32 %v3683, %v3755
        %v3757 = vpop.f32.mrb[0].mxu0
        %v3758 = vadd.f32 %v3685, %v3757
        %3759 = vdwg.mxu0
        %3760 = vmatprep.subr.bf16.mxu0 %v2818
        %3761 = vmatpush1.bf16.msra.mxu0 %v2817
        %3762 = vmatprep.subr.bf16.mxu0 %v2821
        %3763 = vmatpush1.bf16.msra.mxu0 %v2820
        %3764 = vmatprep.subr.bf16.mxu0 %v2824
        %3765 = vmatpush1.bf16.msra.mxu0 %v2823
        %3766 = vmatprep.subr.bf16.mxu0 %v2827
        %3767 = vmatpush1.bf16.msra.mxu0 %v2826
        %3768 = vmatprep.subr.bf16.mxu0 %v2830
        %3769 = vmatpush1.bf16.msra.mxu0 %v2829
        %3770 = vmatprep.subr.bf16.mxu0 %v2833
        %3771 = vmatpush1.bf16.msra.mxu0 %v2832
        %3772 = vmatprep.subr.bf16.mxu0 %v2836
        %3773 = vmatpush1.bf16.msra.mxu0 %v2835
        %3774 = vmatprep.subr.bf16.mxu0 %v2839
        %3775 = vmatpush1.bf16.msra.mxu0 %v2838
        %3776 = vmatprep.subr.bf16.mxu0 %v2842
        %3777 = vmatpush1.bf16.msra.mxu0 %v2841
        %3778 = vmatprep.subr.bf16.mxu0 %v2845
        %3779 = vmatpush1.bf16.msra.mxu0 %v2844
        %3780 = vmatprep.subr.bf16.mxu0 %v2848
        %3781 = vmatpush1.bf16.msra.mxu0 %v2847
        %3782 = vmatprep.subr.bf16.mxu0 %v2851
        %3783 = vmatpush1.bf16.msra.mxu0 %v2850
        %3784 = vmatprep.subr.bf16.mxu0 %v2854
        %3785 = vmatpush1.bf16.msra.mxu0 %v2853
        %3786 = vmatprep.subr.bf16.mxu0 %v2857
        %3787 = vmatpush1.bf16.msra.mxu0 %v2856
        %3788 = vmatprep.subr.bf16.mxu0 %v2860
        %3789 = vmatpush1.bf16.msra.mxu0 %v2859
        %3790 = vmatprep.subr.bf16.mxu0 %v2863
        %3791 = vmatpush1.bf16.msra.mxu0 %v2862
        %3792 = vmatprep.mubr.bf16.mxu0 %v654
        %3793 = vmatmul.mubr.bf16.gmra.mrb[0].mxu0 %v653
        %v3794 = vpop.f32.mrb[0].mxu0
        %v3795 = vadd.f32 %v3722, %v3794
        %v3796 = vpop.f32.mrb[0].mxu0
        %v3797 = vadd.f32 %v3724, %v3796
        %v3798 = vpop.f32.mrb[0].mxu0
        %v3799 = vadd.f32 %v3726, %v3798
        %v3800 = vpop.f32.mrb[0].mxu0
        %v3801 = vadd.f32 %v3728, %v3800
        %3802 = vmatprep.mubr.bf16.mxu0 %v671
        %3803 = vmatmul.mubr.bf16.gmra.mrb[0].mxu0 %v670
        %v3804 = vpop.f32.mrb[0].mxu0
        %v3805 = vadd.f32 %v3732, %v3804
        %v3806 = vpop.f32.mrb[0].mxu0
        %v3807 = vadd.f32 %v3734, %v3806
        %v3808 = vpop.f32.mrb[0].mxu0
        %v3809 = vadd.f32 %v3736, %v3808
        %v3810 = vpop.f32.mrb[0].mxu0
        %v3811 = vadd.f32 %v3738, %v3810
        %3812 = vmatprep.mubr.bf16.mxu0 %v688
        %3813 = vmatmul.mubr.bf16.gmra.mrb[0].mxu0 %v687
        %v3814 = vpop.f32.mrb[0].mxu0
        %v3815 = vadd.f32 %v3742, %v3814
        %v3816 = vpop.f32.mrb[0].mxu0
        %v3817 = vadd.f32 %v3744, %v3816
        %v3818 = vpop.f32.mrb[0].mxu0
        %v3819 = vadd.f32 %v3746, %v3818
        %v3820 = vpop.f32.mrb[0].mxu0
        %v3821 = vadd.f32 %v3748, %v3820
        %3822 = vmatprep.mubr.bf16.mxu0 %v705
        %3823 = vmatmul.mubr.bf16.gmra.mrb[0].mxu0 %v704
        %v3824 = vpop.f32.mrb[0].mxu0
        %v3825 = vadd.f32 %v3752, %v3824
        %v3826 = vpop.f32.mrb[0].mxu0
        %v3827 = vadd.f32 %v3754, %v3826
        %v3828 = vpop.f32.mrb[0].mxu0
        %v3829 = vadd.f32 %v3756, %v3828
        %v3830 = vpop.f32.mrb[0].mxu0
        %v3831 = vadd.f32 %v3758, %v3830
        %3832 = vdwg.mxu0
        %3833 = vmatprep.subr.bf16.mxu0 %v2866
        %3834 = vmatpush1.bf16.msra.mxu0 %v2865
        %3835 = vmatprep.subr.bf16.mxu0 %v2869
        %3836 = vmatpush1.bf16.msra.mxu0 %v2868
        %3837 = vmatprep.subr.bf16.mxu0 %v2872
        %3838 = vmatpush1.bf16.msra.mxu0 %v2871
        %3839 = vmatprep.subr.bf16.mxu0 %v2875
        %3840 = vmatpush1.bf16.msra.mxu0 %v2874
        %3841 = vmatprep.subr.bf16.mxu0 %v2878
        %3842 = vmatpush1.bf16.msra.mxu0 %v2877
        %3843 = vmatprep.subr.bf16.mxu0 %v2881
        %3844 = vmatpush1.bf16.msra.mxu0 %v2880
        %3845 = vmatprep.subr.bf16.mxu0 %v2884
        %3846 = vmatpush1.bf16.msra.mxu0 %v2883
        %3847 = vmatprep.subr.bf16.mxu0 %v2887
        %3848 = vmatpush1.bf16.msra.mxu0 %v2886
        %3849 = vmatprep.subr.bf16.mxu0 %v2890
        %3850 = vmatpush1.bf16.msra.mxu0 %v2889
        %3851 = vmatprep.subr.bf16.mxu0 %v2893
        %3852 = vmatpush1.bf16.msra.mxu0 %v2892
        %3853 = vmatprep.subr.bf16.mxu0 %v2896
        %3854 = vmatpush1.bf16.msra.mxu0 %v2895
        %3855 = vmatprep.subr.bf16.mxu0 %v2899
        %3856 = vmatpush1.bf16.msra.mxu0 %v2898
        %3857 = vmatprep.subr.bf16.mxu0 %v2902
        %3858 = vmatpush1.bf16.msra.mxu0 %v2901
        %3859 = vmatprep.subr.bf16.mxu0 %v2905
        %3860 = vmatpush1.bf16.msra.mxu0 %v2904
        %3861 = vmatprep.subr.bf16.mxu0 %v2908
        %3862 = vmatpush1.bf16.msra.mxu0 %v2907
        %3863 = vmatprep.subr.bf16.mxu0 %v2911
        %3864 = vmatpush1.bf16.msra.mxu0 %v2910
        %3865 = vmatprep.mubr.bf16.mxu0 %v656
        %3866 = vmatmul.mubr.bf16.gmra.mrb[0].mxu0 %v655
        %v3867 = vpop.f32.mrb[0].mxu0
        %v3868 = vadd.f32 %v3795, %v3867
        %v3869 = vpop.f32.mrb[0].mxu0
        %v3870 = vadd.f32 %v3797, %v3869
        %v3871 = vpop.f32.mrb[0].mxu0
        %v3872 = vadd.f32 %v3799, %v3871
        %v3873 = vpop.f32.mrb[0].mxu0
        %v3874 = vadd.f32 %v3801, %v3873
        %3875 = vmatprep.mubr.bf16.mxu0 %v673
        %3876 = vmatmul.mubr.bf16.gmra.mrb[0].mxu0 %v672
        %v3877 = vpop.f32.mrb[0].mxu0
        %v3878 = vadd.f32 %v3805, %v3877
        %v3879 = vpop.f32.mrb[0].mxu0
        %v3880 = vadd.f32 %v3807, %v3879
        %v3881 = vpop.f32.mrb[0].mxu0
        %v3882 = vadd.f32 %v3809, %v3881
        %v3883 = vpop.f32.mrb[0].mxu0
        %v3884 = vadd.f32 %v3811, %v3883
        %3885 = vmatprep.mubr.bf16.mxu0 %v690
        %3886 = vmatmul.mubr.bf16.gmra.mrb[0].mxu0 %v689
        %v3887 = vpop.f32.mrb[0].mxu0
        %v3888 = vadd.f32 %v3815, %v3887
        %v3889 = vpop.f32.mrb[0].mxu0
        %v3890 = vadd.f32 %v3817, %v3889
        %v3891 = vpop.f32.mrb[0].mxu0
        %v3892 = vadd.f32 %v3819, %v3891
        %v3893 = vpop.f32.mrb[0].mxu0
        %v3894 = vadd.f32 %v3821, %v3893
        %3895 = vmatprep.mubr.bf16.mxu0 %v707
        %3896 = vmatmul.mubr.bf16.gmra.mrb[0].mxu0 %v706
        %v3897 = vpop.f32.mrb[0].mxu0
        %v3898 = vadd.f32 %v3825, %v3897
        %v3899 = vpop.f32.mrb[0].mxu0
        %v3900 = vadd.f32 %v3827, %v3899
        %v3901 = vpop.f32.mrb[0].mxu0
        %v3902 = vadd.f32 %v3829, %v3901
        %v3903 = vpop.f32.mrb[0].mxu0
        %v3904 = vadd.f32 %v3831, %v3903
        %3905 = vdwg.mxu0
        %3906 = vmatprep.subr.bf16.mxu0 %v2914
        %3907 = vmatpush1.bf16.msra.mxu0 %v2913
        %3908 = vmatprep.subr.bf16.mxu0 %v2917
        %3909 = vmatpush1.bf16.msra.mxu0 %v2916
        %3910 = vmatprep.subr.bf16.mxu0 0
        %3911 = vmatpush1.bf16.msra.mxu0 0
        %3912 = vmatprep.subr.bf16.mxu0 0
        %3913 = vmatpush1.bf16.msra.mxu0 0
        %3914 = vmatprep.subr.bf16.mxu0 0
        %3915 = vmatpush1.bf16.msra.mxu0 0
        %3916 = vmatprep.subr.bf16.mxu0 0
        %3917 = vmatpush1.bf16.msra.mxu0 0
        %3918 = vmatprep.subr.bf16.mxu0 0
        %3919 = vmatpush1.bf16.msra.mxu0 0
        %3920 = vmatprep.subr.bf16.mxu0 0
        %3921 = vmatpush1.bf16.msra.mxu0 0
        %3922 = vmatprep.subr.bf16.mxu0 0
        %3923 = vmatpush1.bf16.msra.mxu0 0
        %3924 = vmatprep.subr.bf16.mxu0 0
        %3925 = vmatpush1.bf16.msra.mxu0 0
        %3926 = vmatprep.subr.bf16.mxu0 0
        %3927 = vmatpush1.bf16.msra.mxu0 0
        %3928 = vmatprep.subr.bf16.mxu0 0
        %3929 = vmatpush1.bf16.msra.mxu0 0
        %3930 = vmatprep.subr.bf16.mxu0 0
        %3931 = vmatpush1.bf16.msra.mxu0 0
        %3932 = vmatprep.subr.bf16.mxu0 0
        %3933 = vmatpush1.bf16.msra.mxu0 0
        %3934 = vmatprep.subr.bf16.mxu0 0
        %3935 = vmatpush1.bf16.msra.mxu0 0
        %3936 = vmatprep.subr.bf16.mxu0 0
        %3937 = vmatpush1.bf16.msra.mxu0 0
        %3938 = vmatprep.mubr.bf16.mxu0 0
        %3939 = vmatmul.mubr.bf16.gmra.mrb[0].mxu0 %v3311
        %v3940 = vpop.f32.mrb[0].mxu0
        %v3941 = vadd.f32 %v3868, %v3940
        %v3942 = vpop.f32.mrb[0].mxu0
        %v3943 = vadd.f32 %v3870, %v3942
        %v3944 = vpop.f32.mrb[0].mxu0
        %v3945 = vadd.f32 %v3872, %v3944
        %v3946 = vpop.f32.mrb[0].mxu0
        %v3947 = vadd.f32 %v3874, %v3946
        %3948 = vmatprep.mubr.bf16.mxu0 0
        %3949 = vmatmul.mubr.bf16.gmra.mrb[0].mxu0 %v3314
        %v3950 = vpop.f32.mrb[0].mxu0
        %v3951 = vadd.f32 %v3878, %v3950
        %v3952 = vpop.f32.mrb[0].mxu0
        %v3953 = vadd.f32 %v3880, %v3952
        %v3954 = vpop.f32.mrb[0].mxu0
        %v3955 = vadd.f32 %v3882, %v3954
        %v3956 = vpop.f32.mrb[0].mxu0
        %v3957 = vadd.f32 %v3884, %v3956
        %3958 = vmatprep.mubr.bf16.mxu0 0
        %3959 = vmatmul.mubr.bf16.gmra.mrb[0].mxu0 %v3317
        %v3960 = vpop.f32.mrb[0].mxu0
        %v3961 = vadd.f32 %v3888, %v3960
        %v3962 = vpop.f32.mrb[0].mxu0
        %v3963 = vadd.f32 %v3890, %v3962
        %v3964 = vpop.f32.mrb[0].mxu0
        %v3965 = vadd.f32 %v3892, %v3964
        %v3966 = vpop.f32.mrb[0].mxu0
        %v3967 = vadd.f32 %v3894, %v3966
        %3968 = vmatprep.mubr.bf16.mxu0 0
        %3969 = vmatmul.mubr.bf16.gmra.mrb[0].mxu0 %v3320
        %v3970 = vpop.f32.mrb[0].mxu0
        %v3971 = vadd.f32 %v3898, %v3970
        %v3972 = vpop.f32.mrb[0].mxu0
        %v3973 = vadd.f32 %v3900, %v3972
        %v3974 = vpop.f32.mrb[0].mxu0
        %v3975 = vadd.f32 %v3902, %v3974
        %v3976 = vpop.f32.mrb[0].mxu0
        %v3977 = vadd.f32 %v3904, %v3976
        %3978 = vdwg.mxu0
        %3979 = vmatprep.subr.bf16.mxu0 0
        %3980 = vmatpush1.bf16.msra.mxu0 %v2531
        %3981 = vmatprep.subr.bf16.mxu0 0
        %3982 = vmatpush1.bf16.msra.mxu0 %v2534
        %3983 = vmatprep.subr.bf16.mxu0 0
        %3984 = vmatpush1.bf16.msra.mxu0 %v2537
        %3985 = vmatprep.subr.bf16.mxu0 0
        %3986 = vmatpush1.bf16.msra.mxu0 %v2540
        %3987 = vmatprep.subr.bf16.mxu0 0
        %3988 = vmatpush1.bf16.msra.mxu0 %v2543
        %3989 = vmatprep.subr.bf16.mxu0 0
        %3990 = vmatpush1.bf16.msra.mxu0 %v2546
        %3991 = vmatprep.subr.bf16.mxu0 0
        %3992 = vmatpush1.bf16.msra.mxu0 %v2549
        %3993 = vmatprep.subr.bf16.mxu0 0
        %3994 = vmatpush1.bf16.msra.mxu0 %v2552
        %3995 = vmatprep.subr.bf16.mxu0 0
        %3996 = vmatpush1.bf16.msra.mxu0 %v2555
        %3997 = vmatprep.subr.bf16.mxu0 0
        %3998 = vmatpush1.bf16.msra.mxu0 %v2558
        %3999 = vmatprep.subr.bf16.mxu0 0
        %4000 = vmatpush1.bf16.msra.mxu0 %v2561
        %4001 = vmatprep.subr.bf16.mxu0 0
        %4002 = vmatpush1.bf16.msra.mxu0 %v2564
        %4003 = vmatprep.subr.bf16.mxu0 0
        %4004 = vmatpush1.bf16.msra.mxu0 %v2567
        %4005 = vmatprep.subr.bf16.mxu0 0
        %4006 = vmatpush1.bf16.msra.mxu0 %v2570
        %4007 = vmatprep.subr.bf16.mxu0 0
        %4008 = vmatpush1.bf16.msra.mxu0 %v2573
        %4009 = vmatprep.subr.bf16.mxu0 0
        %4010 = vmatpush1.bf16.msra.mxu0 %v2576
        %4011 = vmatprep.mubr.bf16.mxu0 %v642
        %4012 = vmatmul.mubr.bf16.gmra.mrb[0].mxu0 %v641
        %v4013 = vpop.f32.mrb[0].mxu0
        %v4014 = vadd.f32 0.0, %v4013
        %v4015 = vpop.f32.mrb[0].mxu0
        %v4016 = vpop.f32.mrb[0].mxu0
        %v4017 = vadd.f32 0.0, %v4016
        %v4018 = vpop.f32.mrb[0].mxu0
        %4019 = vmatprep.mubr.bf16.mxu0 %v659
        %4020 = vmatmul.mubr.bf16.gmra.mrb[0].mxu0 %v658
        %v4021 = vpop.f32.mrb[0].mxu0
        %v4022 = vadd.f32 0.0, %v4021
        %v4023 = vpop.f32.mrb[0].mxu0
        %v4024 = vpop.f32.mrb[0].mxu0
        %v4025 = vadd.f32 0.0, %v4024
        %v4026 = vpop.f32.mrb[0].mxu0
        %4027 = vmatprep.mubr.bf16.mxu0 %v676
        %4028 = vmatmul.mubr.bf16.gmra.mrb[0].mxu0 %v675
        %v4029 = vpop.f32.mrb[0].mxu0
        %v4030 = vadd.f32 0.0, %v4029
        %v4031 = vpop.f32.mrb[0].mxu0
        %v4032 = vpop.f32.mrb[0].mxu0
        %v4033 = vadd.f32 0.0, %v4032
        %v4034 = vpop.f32.mrb[0].mxu0
        %4035 = vmatprep.mubr.bf16.mxu0 %v693
        %4036 = vmatmul.mubr.bf16.gmra.mrb[0].mxu0 %v692
        %v4037 = vpop.f32.mrb[0].mxu0
        %v4038 = vadd.f32 0.0, %v4037
        %v4039 = vpop.f32.mrb[0].mxu0
        %v4040 = vpop.f32.mrb[0].mxu0
        %v4041 = vadd.f32 0.0, %v4040
        %v4042 = vpop.f32.mrb[0].mxu0
        %4043 = vdwg.mxu0
        %4044 = vmatprep.subr.bf16.mxu0 0
        %4045 = vmatpush1.bf16.msra.mxu0 %v2579
        %4046 = vmatprep.subr.bf16.mxu0 0
        %4047 = vmatpush1.bf16.msra.mxu0 %v2582
        %4048 = vmatprep.subr.bf16.mxu0 0
        %4049 = vmatpush1.bf16.msra.mxu0 %v2585
        %4050 = vmatprep.subr.bf16.mxu0 0
        %4051 = vmatpush1.bf16.msra.mxu0 %v2588
        %4052 = vmatprep.subr.bf16.mxu0 0
        %4053 = vmatpush1.bf16.msra.mxu0 %v2591
        %4054 = vmatprep.subr.bf16.mxu0 0
        %4055 = vmatpush1.bf16.msra.mxu0 %v2594
        %4056 = vmatprep.subr.bf16.mxu0 0
        %4057 = vmatpush1.bf16.msra.mxu0 %v2597
        %4058 = vmatprep.subr.bf16.mxu0 0
        %4059 = vmatpush1.bf16.msra.mxu0 %v2600
        %4060 = vmatprep.subr.bf16.mxu0 0
        %4061 = vmatpush1.bf16.msra.mxu0 %v2603
        %4062 = vmatprep.subr.bf16.mxu0 0
        %4063 = vmatpush1.bf16.msra.mxu0 %v2606
        %4064 = vmatprep.subr.bf16.mxu0 0
        %4065 = vmatpush1.bf16.msra.mxu0 %v2609
        %4066 = vmatprep.subr.bf16.mxu0 0
        %4067 = vmatpush1.bf16.msra.mxu0 %v2612
        %4068 = vmatprep.subr.bf16.mxu0 0
        %4069 = vmatpush1.bf16.msra.mxu0 %v2615
        %4070 = vmatprep.subr.bf16.mxu0 0
        %4071 = vmatpush1.bf16.msra.mxu0 %v2618
        %4072 = vmatprep.subr.bf16.mxu0 0
        %4073 = vmatpush1.bf16.msra.mxu0 %v2621
        %4074 = vmatprep.subr.bf16.mxu0 0
        %4075 = vmatpush1.bf16.msra.mxu0 %v2624
        %4076 = vmatprep.mubr.bf16.mxu0 %v644
        %4077 = vmatmul.mubr.bf16.gmra.mrb[0].mxu0 %v643
        %v4078 = vpop.f32.mrb[0].mxu0
        %v4079 = vadd.f32 %v4014, %v4078
        %v4080 = vpop.f32.mrb[0].mxu0
        %v4081 = vpop.f32.mrb[0].mxu0
        %v4082 = vadd.f32 %v4017, %v4081
        %v4083 = vpop.f32.mrb[0].mxu0
        %4084 = vmatprep.mubr.bf16.mxu0 %v661
        %4085 = vmatmul.mubr.bf16.gmra.mrb[0].mxu0 %v660
        %v4086 = vpop.f32.mrb[0].mxu0
        %v4087 = vadd.f32 %v4022, %v4086
        %v4088 = vpop.f32.mrb[0].mxu0
        %v4089 = vpop.f32.mrb[0].mxu0
        %v4090 = vadd.f32 %v4025, %v4089
        %v4091 = vpop.f32.mrb[0].mxu0
        %4092 = vmatprep.mubr.bf16.mxu0 %v678
        %4093 = vmatmul.mubr.bf16.gmra.mrb[0].mxu0 %v677
        %v4094 = vpop.f32.mrb[0].mxu0
        %v4095 = vadd.f32 %v4030, %v4094
        %v4096 = vpop.f32.mrb[0].mxu0
        %v4097 = vpop.f32.mrb[0].mxu0
        %v4098 = vadd.f32 %v4033, %v4097
        %v4099 = vpop.f32.mrb[0].mxu0
        %4100 = vmatprep.mubr.bf16.mxu0 %v695
        %4101 = vmatmul.mubr.bf16.gmra.mrb[0].mxu0 %v694
        %v4102 = vpop.f32.mrb[0].mxu0
        %v4103 = vadd.f32 %v4038, %v4102
        %v4104 = vpop.f32.mrb[0].mxu0
        %v4105 = vpop.f32.mrb[0].mxu0
        %v4106 = vadd.f32 %v4041, %v4105
        %v4107 = vpop.f32.mrb[0].mxu0
        %4108 = vdwg.mxu0
        %4109 = vmatprep.subr.bf16.mxu0 0
        %4110 = vmatpush1.bf16.msra.mxu0 %v2627
        %4111 = vmatprep.subr.bf16.mxu0 0
        %4112 = vmatpush1.bf16.msra.mxu0 %v2630
        %4113 = vmatprep.subr.bf16.mxu0 0
        %4114 = vmatpush1.bf16.msra.mxu0 %v2633
        %4115 = vmatprep.subr.bf16.mxu0 0
        %4116 = vmatpush1.bf16.msra.mxu0 %v2636
        %4117 = vmatprep.subr.bf16.mxu0 0
        %4118 = vmatpush1.bf16.msra.mxu0 %v2639
        %4119 = vmatprep.subr.bf16.mxu0 0
        %4120 = vmatpush1.bf16.msra.mxu0 %v2642
        %4121 = vmatprep.subr.bf16.mxu0 0
        %4122 = vmatpush1.bf16.msra.mxu0 %v2645
        %4123 = vmatprep.subr.bf16.mxu0 0
        %4124 = vmatpush1.bf16.msra.mxu0 %v2648
        %4125 = vmatprep.subr.bf16.mxu0 0
        %4126 = vmatpush1.bf16.msra.mxu0 %v2651
        %4127 = vmatprep.subr.bf16.mxu0 0
        %4128 = vmatpush1.bf16.msra.mxu0 %v2654
        %4129 = vmatprep.subr.bf16.mxu0 0
        %4130 = vmatpush1.bf16.msra.mxu0 %v2657
        %4131 = vmatprep.subr.bf16.mxu0 0
        %4132 = vmatpush1.bf16.msra.mxu0 %v2660
        %4133 = vmatprep.subr.bf16.mxu0 0
        %4134 = vmatpush1.bf16.msra.mxu0 %v2663
        %4135 = vmatprep.subr.bf16.mxu0 0
        %4136 = vmatpush1.bf16.msra.mxu0 %v2666
        %4137 = vmatprep.subr.bf16.mxu0 0
        %4138 = vmatpush1.bf16.msra.mxu0 %v2669
        %4139 = vmatprep.subr.bf16.mxu0 0
        %4140 = vmatpush1.bf16.msra.mxu0 %v2672
        %4141 = vmatprep.mubr.bf16.mxu0 %v646
        %4142 = vmatmul.mubr.bf16.gmra.mrb[0].mxu0 %v645
        %v4143 = vpop.f32.mrb[0].mxu0
        %v4144 = vadd.f32 %v4079, %v4143
        %v4145 = vpop.f32.mrb[0].mxu0
        %v4146 = vpop.f32.mrb[0].mxu0
        %v4147 = vadd.f32 %v4082, %v4146
        %v4148 = vpop.f32.mrb[0].mxu0
        %4149 = vmatprep.mubr.bf16.mxu0 %v663
        %4150 = vmatmul.mubr.bf16.gmra.mrb[0].mxu0 %v662
        %v4151 = vpop.f32.mrb[0].mxu0
        %v4152 = vadd.f32 %v4087, %v4151
        %v4153 = vpop.f32.mrb[0].mxu0
        %v4154 = vpop.f32.mrb[0].mxu0
        %v4155 = vadd.f32 %v4090, %v4154
        %v4156 = vpop.f32.mrb[0].mxu0
        %4157 = vmatprep.mubr.bf16.mxu0 %v680
        %4158 = vmatmul.mubr.bf16.gmra.mrb[0].mxu0 %v679
        %v4159 = vpop.f32.mrb[0].mxu0
        %v4160 = vadd.f32 %v4095, %v4159
        %v4161 = vpop.f32.mrb[0].mxu0
        %v4162 = vpop.f32.mrb[0].mxu0
        %v4163 = vadd.f32 %v4098, %v4162
        %v4164 = vpop.f32.mrb[0].mxu0
        %4165 = vmatprep.mubr.bf16.mxu0 %v697
        %4166 = vmatmul.mubr.bf16.gmra.mrb[0].mxu0 %v696
        %v4167 = vpop.f32.mrb[0].mxu0
        %v4168 = vadd.f32 %v4103, %v4167
        %v4169 = vpop.f32.mrb[0].mxu0
        %v4170 = vpop.f32.mrb[0].mxu0
        %v4171 = vadd.f32 %v4106, %v4170
        %v4172 = vpop.f32.mrb[0].mxu0
        %4173 = vdwg.mxu0
        %4174 = vmatprep.subr.bf16.mxu0 0
        %4175 = vmatpush1.bf16.msra.mxu0 %v2675
        %4176 = vmatprep.subr.bf16.mxu0 0
        %4177 = vmatpush1.bf16.msra.mxu0 %v2678
        %4178 = vmatprep.subr.bf16.mxu0 0
        %4179 = vmatpush1.bf16.msra.mxu0 %v2681
        %4180 = vmatprep.subr.bf16.mxu0 0
        %4181 = vmatpush1.bf16.msra.mxu0 %v2684
        %4182 = vmatprep.subr.bf16.mxu0 0
        %4183 = vmatpush1.bf16.msra.mxu0 %v2687
        %4184 = vmatprep.subr.bf16.mxu0 0
        %4185 = vmatpush1.bf16.msra.mxu0 %v2690
        %4186 = vmatprep.subr.bf16.mxu0 0
        %4187 = vmatpush1.bf16.msra.mxu0 %v2693
        %4188 = vmatprep.subr.bf16.mxu0 0
        %4189 = vmatpush1.bf16.msra.mxu0 %v2696
        %4190 = vmatprep.subr.bf16.mxu0 0
        %4191 = vmatpush1.bf16.msra.mxu0 %v2699
        %4192 = vmatprep.subr.bf16.mxu0 0
        %4193 = vmatpush1.bf16.msra.mxu0 %v2702
        %4194 = vmatprep.subr.bf16.mxu0 0
        %4195 = vmatpush1.bf16.msra.mxu0 %v2705
        %4196 = vmatprep.subr.bf16.mxu0 0
        %4197 = vmatpush1.bf16.msra.mxu0 %v2708
        %4198 = vmatprep.subr.bf16.mxu0 0
        %4199 = vmatpush1.bf16.msra.mxu0 %v2711
        %4200 = vmatprep.subr.bf16.mxu0 0
        %4201 = vmatpush1.bf16.msra.mxu0 %v2714
        %4202 = vmatprep.subr.bf16.mxu0 0
        %4203 = vmatpush1.bf16.msra.mxu0 %v2717
        %4204 = vmatprep.subr.bf16.mxu0 0
        %4205 = vmatpush1.bf16.msra.mxu0 %v2720
        %4206 = vmatprep.mubr.bf16.mxu0 %v648
        %4207 = vmatmul.mubr.bf16.gmra.mrb[0].mxu0 %v647
        %v4208 = vpop.f32.mrb[0].mxu0
        %v4209 = vadd.f32 %v4144, %v4208
        %v4210 = vpop.f32.mrb[0].mxu0
        %v4211 = vpop.f32.mrb[0].mxu0
        %v4212 = vadd.f32 %v4147, %v4211
        %v4213 = vpop.f32.mrb[0].mxu0
        %4214 = vmatprep.mubr.bf16.mxu0 %v665
        %4215 = vmatmul.mubr.bf16.gmra.mrb[0].mxu0 %v664
        %v4216 = vpop.f32.mrb[0].mxu0
        %v4217 = vadd.f32 %v4152, %v4216
        %v4218 = vpop.f32.mrb[0].mxu0
        %v4219 = vpop.f32.mrb[0].mxu0
        %v4220 = vadd.f32 %v4155, %v4219
        %v4221 = vpop.f32.mrb[0].mxu0
        %4222 = vmatprep.mubr.bf16.mxu0 %v682
        %4223 = vmatmul.mubr.bf16.gmra.mrb[0].mxu0 %v681
        %v4224 = vpop.f32.mrb[0].mxu0
        %v4225 = vadd.f32 %v4160, %v4224
        %v4226 = vpop.f32.mrb[0].mxu0
        %v4227 = vpop.f32.mrb[0].mxu0
        %v4228 = vadd.f32 %v4163, %v4227
        %v4229 = vpop.f32.mrb[0].mxu0
        %4230 = vmatprep.mubr.bf16.mxu0 %v699
        %4231 = vmatmul.mubr.bf16.gmra.mrb[0].mxu0 %v698
        %v4232 = vpop.f32.mrb[0].mxu0
        %v4233 = vadd.f32 %v4168, %v4232
        %v4234 = vpop.f32.mrb[0].mxu0
        %v4235 = vpop.f32.mrb[0].mxu0
        %v4236 = vadd.f32 %v4171, %v4235
        %v4237 = vpop.f32.mrb[0].mxu0
        %4238 = vdwg.mxu0
        %4239 = vmatprep.subr.bf16.mxu0 0
        %4240 = vmatpush1.bf16.msra.mxu0 %v2723
        %4241 = vmatprep.subr.bf16.mxu0 0
        %4242 = vmatpush1.bf16.msra.mxu0 %v2726
        %4243 = vmatprep.subr.bf16.mxu0 0
        %4244 = vmatpush1.bf16.msra.mxu0 %v2729
        %4245 = vmatprep.subr.bf16.mxu0 0
        %4246 = vmatpush1.bf16.msra.mxu0 %v2732
        %4247 = vmatprep.subr.bf16.mxu0 0
        %4248 = vmatpush1.bf16.msra.mxu0 %v2735
        %4249 = vmatprep.subr.bf16.mxu0 0
        %4250 = vmatpush1.bf16.msra.mxu0 %v2738
        %4251 = vmatprep.subr.bf16.mxu0 0
        %4252 = vmatpush1.bf16.msra.mxu0 %v2741
        %4253 = vmatprep.subr.bf16.mxu0 0
        %4254 = vmatpush1.bf16.msra.mxu0 %v2744
        %4255 = vmatprep.subr.bf16.mxu0 0
        %4256 = vmatpush1.bf16.msra.mxu0 %v2747
        %4257 = vmatprep.subr.bf16.mxu0 0
        %4258 = vmatpush1.bf16.msra.mxu0 %v2750
        %4259 = vmatprep.subr.bf16.mxu0 0
        %4260 = vmatpush1.bf16.msra.mxu0 %v2753
        %4261 = vmatprep.subr.bf16.mxu0 0
        %4262 = vmatpush1.bf16.msra.mxu0 %v2756
        %4263 = vmatprep.subr.bf16.mxu0 0
        %4264 = vmatpush1.bf16.msra.mxu0 %v2759
        %4265 = vmatprep.subr.bf16.mxu0 0
        %4266 = vmatpush1.bf16.msra.mxu0 %v2762
        %4267 = vmatprep.subr.bf16.mxu0 0
        %4268 = vmatpush1.bf16.msra.mxu0 %v2765
        %4269 = vmatprep.subr.bf16.mxu0 0
        %4270 = vmatpush1.bf16.msra.mxu0 %v2768
        %4271 = vmatprep.mubr.bf16.mxu0 %v650
        %4272 = vmatmul.mubr.bf16.gmra.mrb[0].mxu0 %v649
        %v4273 = vpop.f32.mrb[0].mxu0
        %v4274 = vadd.f32 %v4209, %v4273
        %v4275 = vpop.f32.mrb[0].mxu0
        %v4276 = vpop.f32.mrb[0].mxu0
        %v4277 = vadd.f32 %v4212, %v4276
        %v4278 = vpop.f32.mrb[0].mxu0
        %4279 = vmatprep.mubr.bf16.mxu0 %v667
        %4280 = vmatmul.mubr.bf16.gmra.mrb[0].mxu0 %v666
        %v4281 = vpop.f32.mrb[0].mxu0
        %v4282 = vadd.f32 %v4217, %v4281
        %v4283 = vpop.f32.mrb[0].mxu0
        %v4284 = vpop.f32.mrb[0].mxu0
        %v4285 = vadd.f32 %v4220, %v4284
        %v4286 = vpop.f32.mrb[0].mxu0
        %4287 = vmatprep.mubr.bf16.mxu0 %v684
        %4288 = vmatmul.mubr.bf16.gmra.mrb[0].mxu0 %v683
        %v4289 = vpop.f32.mrb[0].mxu0
        %v4290 = vadd.f32 %v4225, %v4289
        %v4291 = vpop.f32.mrb[0].mxu0
        %v4292 = vpop.f32.mrb[0].mxu0
        %v4293 = vadd.f32 %v4228, %v4292
        %v4294 = vpop.f32.mrb[0].mxu0
        %4295 = vmatprep.mubr.bf16.mxu0 %v701
        %4296 = vmatmul.mubr.bf16.gmra.mrb[0].mxu0 %v700
        %v4297 = vpop.f32.mrb[0].mxu0
        %v4298 = vadd.f32 %v4233, %v4297
        %v4299 = vpop.f32.mrb[0].mxu0
        %v4300 = vpop.f32.mrb[0].mxu0
        %v4301 = vadd.f32 %v4236, %v4300
        %v4302 = vpop.f32.mrb[0].mxu0
        %4303 = vdwg.mxu0
        %4304 = vmatprep.subr.bf16.mxu0 0
        %4305 = vmatpush1.bf16.msra.mxu0 %v2771
        %4306 = vmatprep.subr.bf16.mxu0 0
        %4307 = vmatpush1.bf16.msra.mxu0 %v2774
        %4308 = vmatprep.subr.bf16.mxu0 0
        %4309 = vmatpush1.bf16.msra.mxu0 %v2777
        %4310 = vmatprep.subr.bf16.mxu0 0
        %4311 = vmatpush1.bf16.msra.mxu0 %v2780
        %4312 = vmatprep.subr.bf16.mxu0 0
        %4313 = vmatpush1.bf16.msra.mxu0 %v2783
        %4314 = vmatprep.subr.bf16.mxu0 0
        %4315 = vmatpush1.bf16.msra.mxu0 %v2786
        %4316 = vmatprep.subr.bf16.mxu0 0
        %4317 = vmatpush1.bf16.msra.mxu0 %v2789
        %4318 = vmatprep.subr.bf16.mxu0 0
        %4319 = vmatpush1.bf16.msra.mxu0 %v2792
        %4320 = vmatprep.subr.bf16.mxu0 0
        %4321 = vmatpush1.bf16.msra.mxu0 %v2795
        %4322 = vmatprep.subr.bf16.mxu0 0
        %4323 = vmatpush1.bf16.msra.mxu0 %v2798
        %4324 = vmatprep.subr.bf16.mxu0 0
        %4325 = vmatpush1.bf16.msra.mxu0 %v2801
        %4326 = vmatprep.subr.bf16.mxu0 0
        %4327 = vmatpush1.bf16.msra.mxu0 %v2804
        %4328 = vmatprep.subr.bf16.mxu0 0
        %4329 = vmatpush1.bf16.msra.mxu0 %v2807
        %4330 = vmatprep.subr.bf16.mxu0 0
        %4331 = vmatpush1.bf16.msra.mxu0 %v2810
        %4332 = vmatprep.subr.bf16.mxu0 0
        %4333 = vmatpush1.bf16.msra.mxu0 %v2813
        %4334 = vmatprep.subr.bf16.mxu0 0
        %4335 = vmatpush1.bf16.msra.mxu0 %v2816
        %4336 = vmatprep.mubr.bf16.mxu0 %v652
        %4337 = vmatmul.mubr.bf16.gmra.mrb[0].mxu0 %v651
        %v4338 = vpop.f32.mrb[0].mxu0
        %v4339 = vadd.f32 %v4274, %v4338
        %v4340 = vpop.f32.mrb[0].mxu0
        %v4341 = vpop.f32.mrb[0].mxu0
        %v4342 = vadd.f32 %v4277, %v4341
        %v4343 = vpop.f32.mrb[0].mxu0
        %4344 = vmatprep.mubr.bf16.mxu0 %v669
        %4345 = vmatmul.mubr.bf16.gmra.mrb[0].mxu0 %v668
        %v4346 = vpop.f32.mrb[0].mxu0
        %v4347 = vadd.f32 %v4282, %v4346
        %v4348 = vpop.f32.mrb[0].mxu0
        %v4349 = vpop.f32.mrb[0].mxu0
        %v4350 = vadd.f32 %v4285, %v4349
        %v4351 = vpop.f32.mrb[0].mxu0
        %4352 = vmatprep.mubr.bf16.mxu0 %v686
        %4353 = vmatmul.mubr.bf16.gmra.mrb[0].mxu0 %v685
        %v4354 = vpop.f32.mrb[0].mxu0
        %v4355 = vadd.f32 %v4290, %v4354
        %v4356 = vpop.f32.mrb[0].mxu0
        %v4357 = vpop.f32.mrb[0].mxu0
        %v4358 = vadd.f32 %v4293, %v4357
        %v4359 = vpop.f32.mrb[0].mxu0
        %4360 = vmatprep.mubr.bf16.mxu0 %v703
        %4361 = vmatmul.mubr.bf16.gmra.mrb[0].mxu0 %v702
        %v4362 = vpop.f32.mrb[0].mxu0
        %v4363 = vadd.f32 %v4298, %v4362
        %v4364 = vpop.f32.mrb[0].mxu0
        %v4365 = vpop.f32.mrb[0].mxu0
        %v4366 = vadd.f32 %v4301, %v4365
        %v4367 = vpop.f32.mrb[0].mxu0
        %4368 = vdwg.mxu0
        %4369 = vmatprep.subr.bf16.mxu0 0
        %4370 = vmatpush1.bf16.msra.mxu0 %v2819
        %4371 = vmatprep.subr.bf16.mxu0 0
        %4372 = vmatpush1.bf16.msra.mxu0 %v2822
        %4373 = vmatprep.subr.bf16.mxu0 0
        %4374 = vmatpush1.bf16.msra.mxu0 %v2825
        %4375 = vmatprep.subr.bf16.mxu0 0
        %4376 = vmatpush1.bf16.msra.mxu0 %v2828
        %4377 = vmatprep.subr.bf16.mxu0 0
        %4378 = vmatpush1.bf16.msra.mxu0 %v2831
        %4379 = vmatprep.subr.bf16.mxu0 0
        %4380 = vmatpush1.bf16.msra.mxu0 %v2834
        %4381 = vmatprep.subr.bf16.mxu0 0
        %4382 = vmatpush1.bf16.msra.mxu0 %v2837
        %4383 = vmatprep.subr.bf16.mxu0 0
        %4384 = vmatpush1.bf16.msra.mxu0 %v2840
        %4385 = vmatprep.subr.bf16.mxu0 0
        %4386 = vmatpush1.bf16.msra.mxu0 %v2843
        %4387 = vmatprep.subr.bf16.mxu0 0
        %4388 = vmatpush1.bf16.msra.mxu0 %v2846
        %4389 = vmatprep.subr.bf16.mxu0 0
        %4390 = vmatpush1.bf16.msra.mxu0 %v2849
        %4391 = vmatprep.subr.bf16.mxu0 0
        %4392 = vmatpush1.bf16.msra.mxu0 %v2852
        %4393 = vmatprep.subr.bf16.mxu0 0
        %4394 = vmatpush1.bf16.msra.mxu0 %v2855
        %4395 = vmatprep.subr.bf16.mxu0 0
        %4396 = vmatpush1.bf16.msra.mxu0 %v2858
        %4397 = vmatprep.subr.bf16.mxu0 0
        %4398 = vmatpush1.bf16.msra.mxu0 %v2861
        %4399 = vmatprep.subr.bf16.mxu0 0
        %4400 = vmatpush1.bf16.msra.mxu0 %v2864
        %4401 = vmatprep.mubr.bf16.mxu0 %v654
        %4402 = vmatmul.mubr.bf16.gmra.mrb[0].mxu0 %v653
        %v4403 = vpop.f32.mrb[0].mxu0
        %v4404 = vadd.f32 %v4339, %v4403
        %v4405 = vpop.f32.mrb[0].mxu0
        %v4406 = vpop.f32.mrb[0].mxu0
        %v4407 = vadd.f32 %v4342, %v4406
        %v4408 = vpop.f32.mrb[0].mxu0
        %4409 = vmatprep.mubr.bf16.mxu0 %v671
        %4410 = vmatmul.mubr.bf16.gmra.mrb[0].mxu0 %v670
        %v4411 = vpop.f32.mrb[0].mxu0
        %v4412 = vadd.f32 %v4347, %v4411
        %v4413 = vpop.f32.mrb[0].mxu0
        %v4414 = vpop.f32.mrb[0].mxu0
        %v4415 = vadd.f32 %v4350, %v4414
        %v4416 = vpop.f32.mrb[0].mxu0
        %4417 = vmatprep.mubr.bf16.mxu0 %v688
        %4418 = vmatmul.mubr.bf16.gmra.mrb[0].mxu0 %v687
        %v4419 = vpop.f32.mrb[0].mxu0
        %v4420 = vadd.f32 %v4355, %v4419
        %v4421 = vpop.f32.mrb[0].mxu0
        %v4422 = vpop.f32.mrb[0].mxu0
        %v4423 = vadd.f32 %v4358, %v4422
        %v4424 = vpop.f32.mrb[0].mxu0
        %4425 = vmatprep.mubr.bf16.mxu0 %v705
        %4426 = vmatmul.mubr.bf16.gmra.mrb[0].mxu0 %v704
        %v4427 = vpop.f32.mrb[0].mxu0
        %v4428 = vadd.f32 %v4363, %v4427
        %v4429 = vpop.f32.mrb[0].mxu0
        %v4430 = vpop.f32.mrb[0].mxu0
        %v4431 = vadd.f32 %v4366, %v4430
        %v4432 = vpop.f32.mrb[0].mxu0
        %4433 = vdwg.mxu0
        %4434 = vmatprep.subr.bf16.mxu0 0
        %4435 = vmatpush1.bf16.msra.mxu0 %v2867
        %4436 = vmatprep.subr.bf16.mxu0 0
        %4437 = vmatpush1.bf16.msra.mxu0 %v2870
        %4438 = vmatprep.subr.bf16.mxu0 0
        %4439 = vmatpush1.bf16.msra.mxu0 %v2873
        %4440 = vmatprep.subr.bf16.mxu0 0
        %4441 = vmatpush1.bf16.msra.mxu0 %v2876
        %4442 = vmatprep.subr.bf16.mxu0 0
        %4443 = vmatpush1.bf16.msra.mxu0 %v2879
        %4444 = vmatprep.subr.bf16.mxu0 0
        %4445 = vmatpush1.bf16.msra.mxu0 %v2882
        %4446 = vmatprep.subr.bf16.mxu0 0
        %4447 = vmatpush1.bf16.msra.mxu0 %v2885
        %4448 = vmatprep.subr.bf16.mxu0 0
        %4449 = vmatpush1.bf16.msra.mxu0 %v2888
        %4450 = vmatprep.subr.bf16.mxu0 0
        %4451 = vmatpush1.bf16.msra.mxu0 %v2891
        %4452 = vmatprep.subr.bf16.mxu0 0
        %4453 = vmatpush1.bf16.msra.mxu0 %v2894
        %4454 = vmatprep.subr.bf16.mxu0 0
        %4455 = vmatpush1.bf16.msra.mxu0 %v2897
        %4456 = vmatprep.subr.bf16.mxu0 0
        %4457 = vmatpush1.bf16.msra.mxu0 %v2900
        %4458 = vmatprep.subr.bf16.mxu0 0
        %4459 = vmatpush1.bf16.msra.mxu0 %v2903
        %4460 = vmatprep.subr.bf16.mxu0 0
        %4461 = vmatpush1.bf16.msra.mxu0 %v2906
        %4462 = vmatprep.subr.bf16.mxu0 0
        %4463 = vmatpush1.bf16.msra.mxu0 %v2909
        %4464 = vmatprep.subr.bf16.mxu0 0
        %4465 = vmatpush1.bf16.msra.mxu0 %v2912
        %4466 = vmatprep.mubr.bf16.mxu0 %v656
        %4467 = vmatmul.mubr.bf16.gmra.mrb[0].mxu0 %v655
        %v4468 = vpop.f32.mrb[0].mxu0
        %v4469 = vadd.f32 %v4404, %v4468
        %v4470 = vpop.f32.mrb[0].mxu0
        %v4471 = vpop.f32.mrb[0].mxu0
        %v4472 = vadd.f32 %v4407, %v4471
        %v4473 = vpop.f32.mrb[0].mxu0
        %4474 = vmatprep.mubr.bf16.mxu0 %v673
        %4475 = vmatmul.mubr.bf16.gmra.mrb[0].mxu0 %v672
        %v4476 = vpop.f32.mrb[0].mxu0
        %v4477 = vadd.f32 %v4412, %v4476
        %v4478 = vpop.f32.mrb[0].mxu0
        %v4479 = vpop.f32.mrb[0].mxu0
        %v4480 = vadd.f32 %v4415, %v4479
        %v4481 = vpop.f32.mrb[0].mxu0
        %4482 = vmatprep.mubr.bf16.mxu0 %v690
        %4483 = vmatmul.mubr.bf16.gmra.mrb[0].mxu0 %v689
        %v4484 = vpop.f32.mrb[0].mxu0
        %v4485 = vadd.f32 %v4420, %v4484
        %v4486 = vpop.f32.mrb[0].mxu0
        %v4487 = vpop.f32.mrb[0].mxu0
        %v4488 = vadd.f32 %v4423, %v4487
        %v4489 = vpop.f32.mrb[0].mxu0
        %4490 = vmatprep.mubr.bf16.mxu0 %v707
        %4491 = vmatmul.mubr.bf16.gmra.mrb[0].mxu0 %v706
        %v4492 = vpop.f32.mrb[0].mxu0
        %v4493 = vadd.f32 %v4428, %v4492
        %v4494 = vpop.f32.mrb[0].mxu0
        %v4495 = vpop.f32.mrb[0].mxu0
        %v4496 = vadd.f32 %v4431, %v4495
        %v4497 = vpop.f32.mrb[0].mxu0
        %4498 = vdwg.mxu0
        %4499 = vmatprep.subr.bf16.mxu0 0
        %4500 = vmatpush1.bf16.msra.mxu0 %v2915
        %4501 = vmatprep.subr.bf16.mxu0 0
        %4502 = vmatpush1.bf16.msra.mxu0 %v2918
        %4503 = vmatprep.subr.bf16.mxu0 0
        %4504 = vmatpush1.bf16.msra.mxu0 0
        %4505 = vmatprep.subr.bf16.mxu0 0
        %4506 = vmatpush1.bf16.msra.mxu0 0
        %4507 = vmatprep.subr.bf16.mxu0 0
        %4508 = vmatpush1.bf16.msra.mxu0 0
        %4509 = vmatprep.subr.bf16.mxu0 0
        %4510 = vmatpush1.bf16.msra.mxu0 0
        %4511 = vmatprep.subr.bf16.mxu0 0
        %4512 = vmatpush1.bf16.msra.mxu0 0
        %4513 = vmatprep.subr.bf16.mxu0 0
        %4514 = vmatpush1.bf16.msra.mxu0 0
        %4515 = vmatprep.subr.bf16.mxu0 0
        %4516 = vmatpush1.bf16.msra.mxu0 0
        %4517 = vmatprep.subr.bf16.mxu0 0
        %4518 = vmatpush1.bf16.msra.mxu0 0
        %4519 = vmatprep.subr.bf16.mxu0 0
        %4520 = vmatpush1.bf16.msra.mxu0 0
        %4521 = vmatprep.subr.bf16.mxu0 0
        %4522 = vmatpush1.bf16.msra.mxu0 0
        %4523 = vmatprep.subr.bf16.mxu0 0
        %4524 = vmatpush1.bf16.msra.mxu0 0
        %4525 = vmatprep.subr.bf16.mxu0 0
        %4526 = vmatpush1.bf16.msra.mxu0 0
        %4527 = vmatprep.subr.bf16.mxu0 0
        %4528 = vmatpush1.bf16.msra.mxu0 0
        %4529 = vmatprep.subr.bf16.mxu0 0
        %4530 = vmatpush1.bf16.msra.mxu0 0
        %4531 = vmatprep.mubr.bf16.mxu0 0
        %4532 = vmatmul.mubr.bf16.gmra.mrb[0].mxu0 %v3311
        %v4533 = vpop.f32.mrb[0].mxu0
        %v4534 = vadd.f32 %v4469, %v4533
        %v4535 = vpop.f32.mrb[0].mxu0
        %v4536 = vpop.f32.mrb[0].mxu0
        %v4537 = vadd.f32 %v4472, %v4536
        %v4538 = vpop.f32.mrb[0].mxu0
        %4539 = vmatprep.mubr.bf16.mxu0 0
        %4540 = vmatmul.mubr.bf16.gmra.mrb[0].mxu0 %v3314
        %v4541 = vpop.f32.mrb[0].mxu0
        %v4542 = vadd.f32 %v4477, %v4541
        %v4543 = vpop.f32.mrb[0].mxu0
        %v4544 = vpop.f32.mrb[0].mxu0
        %v4545 = vadd.f32 %v4480, %v4544
        %v4546 = vpop.f32.mrb[0].mxu0
        %4547 = vmatprep.mubr.bf16.mxu0 0
        %4548 = vmatmul.mubr.bf16.gmra.mrb[0].mxu0 %v3317
        %v4549 = vpop.f32.mrb[0].mxu0
        %v4550 = vadd.f32 %v4485, %v4549
        %v4551 = vpop.f32.mrb[0].mxu0
        %v4552 = vpop.f32.mrb[0].mxu0
        %v4553 = vadd.f32 %v4488, %v4552
        %v4554 = vpop.f32.mrb[0].mxu0
        %4555 = vmatprep.mubr.bf16.mxu0 0
        %4556 = vmatmul.mubr.bf16.gmra.mrb[0].mxu0 %v3320
        %v4557 = vpop.f32.mrb[0].mxu0
        %v4558 = vadd.f32 %v4493, %v4557
        %v4559 = vpop.f32.mrb[0].mxu0
        %v4560 = vpop.f32.mrb[0].mxu0
        %v4561 = vadd.f32 %v4496, %v4560
        %v4562 = vpop.f32.mrb[0].mxu0
        %4563 = vdwg.mxu0
        %v4564 = vld [vmem:[#allocation6] sm:$0x7]
        %v4566 = vlaneseq
        %v4567 = vshrl.u32 %v4566, 7
        %v4568 = vsub.s32 0, %v4567
        %v4569 = vrot.slane %v4564, %v4568
        %v4570 = vlaneseq
        %v4571 = vshrl.u32 %v4570, 7
        %v4572 = vsub.s32 1, %v4571
        %v4573 = vrot.slane %v4564, %v4572
        %v4574 = vlaneseq
        %v4575 = vshrl.u32 %v4574, 7
        %v4576 = vsub.s32 2, %v4575
        %v4577 = vrot.slane %v4564, %v4576
        %v4581 = vmul.f32 %v3941, %v4569
        %v4582 = vmul.f32 %v3943, %v4573
        %v4583 = vmul.f32 %v4534, %v4577
        %v4584 = vmul.f32 %v3945, %v4569
        %v4585 = vmul.f32 %v3947, %v4573
        %v4586 = vmul.f32 %v4537, %v4577
        %v4587 = vmul.f32 %v3951, %v4569
        %v4588 = vmul.f32 %v3953, %v4573
        %v4589 = vmul.f32 %v4542, %v4577
        %v4590 = vmul.f32 %v3955, %v4569
        %v4591 = vmul.f32 %v3957, %v4573
        %v4592 = vmul.f32 %v4545, %v4577
        %v4593 = vmul.f32 %v3961, %v4569
        %v4594 = vmul.f32 %v3963, %v4573
        %v4595 = vmul.f32 %v4550, %v4577
        %v4596 = vmul.f32 %v3965, %v4569
        %v4597 = vmul.f32 %v3967, %v4573
        %v4598 = vmul.f32 %v4553, %v4577
        %v4599 = vmul.f32 %v3971, %v4569
        %v4600 = vmul.f32 %v3973, %v4573
        %v4601 = vmul.f32 %v4558, %v4577
        %v4602 = vmul.f32 %v3975, %v4569
        %v4603 = vmul.f32 %v3977, %v4573
        %v4604 = vmul.f32 %v4561, %v4577
        %v4605 = vld [vmem:[#allocation7] sm:$0x7]
        %v4607 = vlaneseq
        %v4608 = vshrl.u32 %v4607, 7
        %v4609 = vsub.s32 0, %v4608
        %v4610 = vrot.slane %v4605, %v4609
        %v4611 = vlaneseq
        %v4612 = vshrl.u32 %v4611, 7
        %v4613 = vsub.s32 1, %v4612
        %v4614 = vrot.slane %v4605, %v4613
        %v4615 = vlaneseq
        %v4616 = vshrl.u32 %v4615, 7
        %v4617 = vsub.s32 2, %v4616
        %v4618 = vrot.slane %v4605, %v4617
        %v4622 = vadd.f32 %v4581, %v4610
        %v4623 = vadd.f32 %v4582, %v4614
        %v4624 = vadd.f32 %v4583, %v4618
        %v4625 = vadd.f32 %v4584, %v4610
        %v4626 = vadd.f32 %v4585, %v4614
        %v4627 = vadd.f32 %v4586, %v4618
        %v4628 = vadd.f32 %v4587, %v4610
        %v4629 = vadd.f32 %v4588, %v4614
        %v4630 = vadd.f32 %v4589, %v4618
        %v4631 = vadd.f32 %v4590, %v4610
        %v4632 = vadd.f32 %v4591, %v4614
        %v4633 = vadd.f32 %v4592, %v4618
        %v4634 = vadd.f32 %v4593, %v4610
        %v4635 = vadd.f32 %v4594, %v4614
        %v4636 = vadd.f32 %v4595, %v4618
        %v4637 = vadd.f32 %v4596, %v4610
        %v4638 = vadd.f32 %v4597, %v4614
        %v4639 = vadd.f32 %v4598, %v4618
        %v4640 = vadd.f32 %v4599, %v4610
        %v4641 = vadd.f32 %v4600, %v4614
        %v4642 = vadd.f32 %v4601, %v4618
        %v4643 = vadd.f32 %v4602, %v4610
        %v4644 = vadd.f32 %v4603, %v4614
        %v4645 = vadd.f32 %v4604, %v4618
        %v4646 = vmax.f32 %v4622, 0.0
        %v4647 = vmax.f32 %v4623, 0.0
        %v4648 = vmax.f32 %v4624, 0.0
        %v4649 = vmax.f32 %v4625, 0.0
        %v4650 = vmax.f32 %v4626, 0.0
        %v4651 = vmax.f32 %v4627, 0.0
        %v4652 = vmax.f32 %v4628, 0.0
        %v4653 = vmax.f32 %v4629, 0.0
        %v4654 = vmax.f32 %v4630, 0.0
        %v4655 = vmax.f32 %v4631, 0.0
        %v4656 = vmax.f32 %v4632, 0.0
        %v4657 = vmax.f32 %v4633, 0.0
        %v4658 = vmax.f32 %v4634, 0.0
        %v4659 = vmax.f32 %v4635, 0.0
        %v4660 = vmax.f32 %v4636, 0.0
        %v4661 = vmax.f32 %v4637, 0.0
        %v4662 = vmax.f32 %v4638, 0.0
        %v4663 = vmax.f32 %v4639, 0.0
        %v4664 = vmax.f32 %v4640, 0.0
        %v4665 = vmax.f32 %v4641, 0.0
        %v4666 = vmax.f32 %v4642, 0.0
        %v4667 = vmax.f32 %v4643, 0.0
        %v4668 = vmax.f32 %v4644, 0.0
        %v4669 = vmax.f32 %v4645, 0.0
        %v4670 = vlaneseq
        %v4671 = vshrl.u32 %v4670, 7
        %v4672 = vadd.s32 %v4671, 8
        %v4673 = vadd.s32 %v4671, 16
        %v4674 = vadd.s32 %v4671, 24
        %v4675 = vadd.s32 %v4671, 32
        %v4676 = vadd.s32 %v4671, 40
        %v4677 = vadd.s32 %v4671, 48
        %v4678 = vadd.s32 %v4671, 56
        %vm4679 = vcmp.lt.s32.totalorder %v4671, 0
        %v4680 = vsub.s32 0, %v4671
        %v4681 = vsel %vm4679, %v4680, %v4671
        %v4682 = vshrl.u32 %v4681, 3
        %v4683 = vand.u32 %v4681, 7
        %v4684 = vsub.s32 0, %v4683
        %v4685 = vsel %vm4679, %v4684, %v4683
        %vm4686 = vcmp.lt.s32.totalorder %v4672, 0
        %v4687 = vsub.s32 0, %v4672
        %v4688 = vsel %vm4686, %v4687, %v4672
        %v4689 = vshrl.u32 %v4688, 3
        %v4690 = vand.u32 %v4688, 7
        %v4691 = vsub.s32 0, %v4690
        %v4692 = vsel %vm4686, %v4691, %v4690
        %vm4693 = vcmp.lt.s32.totalorder %v4673, 0
        %v4694 = vsub.s32 0, %v4673
        %v4695 = vsel %vm4693, %v4694, %v4673
        %v4696 = vshrl.u32 %v4695, 3
        %v4697 = vand.u32 %v4695, 7
        %v4698 = vsub.s32 0, %v4697
        %v4699 = vsel %vm4693, %v4698, %v4697
        %vm4700 = vcmp.lt.s32.totalorder %v4674, 0
        %v4701 = vsub.s32 0, %v4674
        %v4702 = vsel %vm4700, %v4701, %v4674
        %v4703 = vshrl.u32 %v4702, 3
        %v4704 = vand.u32 %v4702, 7
        %v4705 = vsub.s32 0, %v4704
        %v4706 = vsel %vm4700, %v4705, %v4704
        %vm4707 = vcmp.lt.s32.totalorder %v4675, 0
        %v4708 = vsub.s32 0, %v4675
        %v4709 = vsel %vm4707, %v4708, %v4675
        %v4710 = vshrl.u32 %v4709, 3
        %v4711 = vand.u32 %v4709, 7
        %v4712 = vsub.s32 0, %v4711
        %v4713 = vsel %vm4707, %v4712, %v4711
        %vm4714 = vcmp.lt.s32.totalorder %v4676, 0
        %v4715 = vsub.s32 0, %v4676
        %v4716 = vsel %vm4714, %v4715, %v4676
        %v4717 = vshrl.u32 %v4716, 3
        %v4718 = vand.u32 %v4716, 7
        %v4719 = vsub.s32 0, %v4718
        %v4720 = vsel %vm4714, %v4719, %v4718
        %vm4721 = vcmp.lt.s32.totalorder %v4677, 0
        %v4722 = vsub.s32 0, %v4677
        %v4723 = vsel %vm4721, %v4722, %v4677
        %v4724 = vshrl.u32 %v4723, 3
        %v4725 = vand.u32 %v4723, 7
        %v4726 = vsub.s32 0, %v4725
        %v4727 = vsel %vm4721, %v4726, %v4725
        %vm4728 = vcmp.lt.s32.totalorder %v4678, 0
        %v4729 = vsub.s32 0, %v4678
        %v4730 = vsel %vm4728, %v4729, %v4678
        %v4731 = vshrl.u32 %v4730, 3
        %v4732 = vand.u32 %v4730, 7
        %v4733 = vsub.s32 0, %v4732
        %v4734 = vsel %vm4728, %v4733, %v4732
        %vm4735 = vcmp.ne.s32.totalorder %v4685, 0
        %vm4736 = vcmp.ne.s32.totalorder %v4692, 0
        %vm4737 = vcmp.ne.s32.totalorder %v4699, 0
        %vm4738 = vcmp.ne.s32.totalorder %v4706, 0
        %vm4739 = vcmp.ne.s32.totalorder %v4713, 0
        %vm4740 = vcmp.ne.s32.totalorder %v4720, 0
        %vm4741 = vcmp.ne.s32.totalorder %v4727, 0
        %vm4742 = vcmp.ne.s32.totalorder %v4734, 0
        %vm4743 = vcmp.lt.s32.totalorder %v4685, 0
        %vm4744 = vcmp.lt.s32.totalorder %v4692, 0
        %vm4745 = vcmp.lt.s32.totalorder %v4699, 0
        %vm4746 = vcmp.lt.s32.totalorder %v4706, 0
        %vm4747 = vcmp.lt.s32.totalorder %v4713, 0
        %vm4748 = vcmp.lt.s32.totalorder %v4720, 0
        %vm4749 = vcmp.lt.s32.totalorder %v4727, 0
        %vm4750 = vcmp.lt.s32.totalorder %v4734, 0
        %vm4751 = vmand %vm4743, %vm4735
        %vm4752 = vmand %vm4744, %vm4736
        %vm4753 = vmand %vm4745, %vm4737
        %vm4754 = vmand %vm4746, %vm4738
        %vm4755 = vmand %vm4747, %vm4739
        %vm4756 = vmand %vm4748, %vm4740
        %vm4757 = vmand %vm4749, %vm4741
        %vm4758 = vmand %vm4750, %vm4742
        %v4759 = vadd.s32 %v4685, 8
        %v4760 = vadd.s32 %v4692, 8
        %v4761 = vadd.s32 %v4699, 8
        %v4762 = vadd.s32 %v4706, 8
        %v4763 = vadd.s32 %v4713, 8
        %v4764 = vadd.s32 %v4720, 8
        %v4765 = vadd.s32 %v4727, 8
        %v4766 = vadd.s32 %v4734, 8
        %v4767 = vsel %vm4751, %v4759, %v4685
        %v4768 = vsel %vm4752, %v4760, %v4692
        %v4769 = vsel %vm4753, %v4761, %v4699
        %v4770 = vsel %vm4754, %v4762, %v4706
        %v4771 = vsel %vm4755, %v4763, %v4713
        %v4772 = vsel %vm4756, %v4764, %v4720
        %v4773 = vsel %vm4757, %v4765, %v4727
        %v4774 = vsel %vm4758, %v4766, %v4734
        %vm4775 = vcmp.ne.s32.totalorder %v4767, 0
        %vm4776 = vcmp.ne.s32.totalorder %v4768, 0
        %vm4777 = vcmp.ne.s32.totalorder %v4769, 0
        %vm4778 = vcmp.ne.s32.totalorder %v4770, 0
        %vm4779 = vcmp.ne.s32.totalorder %v4771, 0
        %vm4780 = vcmp.ne.s32.totalorder %v4772, 0
        %vm4781 = vcmp.ne.s32.totalorder %v4773, 0
        %vm4782 = vcmp.ne.s32.totalorder %v4774, 0
        %4799 = vrot.lane.b32.xlu0 %v4647, 64
        %v4800 = vpop.permute.xlu0 %4799
        %4801 = vrot.lane.b32.xlu0 %v4648, 64
        %v4802 = vpop.permute.xlu0 %4801
        %4803 = vrot.lane.b32.xlu0 %v4650, 64
        %v4804 = vpop.permute.xlu0 %4803
        %4805 = vrot.lane.b32.xlu0 %v4651, 64
        %v4806 = vpop.permute.xlu0 %4805
        %4807 = vrot.lane.b32.xlu0 %v4653, 64
        %v4808 = vpop.permute.xlu0 %4807
        %4809 = vrot.lane.b32.xlu0 %v4654, 64
        %v4810 = vpop.permute.xlu0 %4809
        %4811 = vrot.lane.b32.xlu0 %v4656, 64
        %v4812 = vpop.permute.xlu0 %4811
        %4813 = vrot.lane.b32.xlu0 %v4657, 64
        %v4814 = vpop.permute.xlu0 %4813
        %4815 = vrot.lane.b32.xlu0 %v4659, 64
        %v4816 = vpop.permute.xlu0 %4815
        %4817 = vrot.lane.b32.xlu0 %v4660, 64
        %v4818 = vpop.permute.xlu0 %4817
        %4819 = vrot.lane.b32.xlu0 %v4662, 64
        %v4820 = vpop.permute.xlu0 %4819
        %4821 = vrot.lane.b32.xlu0 %v4663, 64
        %v4822 = vpop.permute.xlu0 %4821
        %4823 = vrot.lane.b32.xlu0 %v4665, 64
        %v4824 = vpop.permute.xlu0 %4823
        %4825 = vrot.lane.b32.xlu0 %v4666, 64
        %v4826 = vpop.permute.xlu0 %4825
        %4827 = vrot.lane.b32.xlu0 %v4668, 64
        %v4828 = vpop.permute.xlu0 %4827
        %4829 = vrot.lane.b32.xlu0 %v4669, 64
        %v4830 = vpop.permute.xlu0 %4829
        %vm4831 = vcmask 523264
        %v4832 = vsel %vm4831, %v4800, %v4802
        %v4833 = vsel %vm4831, %v4804, %v4806
        %v4834 = vsel %vm4831, %v4808, %v4810
        %v4835 = vsel %vm4831, %v4812, %v4814
        %v4836 = vsel %vm4831, %v4816, %v4818
        %v4837 = vsel %vm4831, %v4820, %v4822
        %v4838 = vsel %vm4831, %v4824, %v4826
        %v4839 = vsel %vm4831, %v4828, %v4830
        %v4856 = vrot.slane %v4832, 7
        %v4857 = vrot.slane %v4802, 7
        %v4858 = vrot.slane %v4833, 7
        %v4859 = vrot.slane %v4806, 7
        %v4860 = vrot.slane %v4834, 7
        %v4861 = vrot.slane %v4810, 7
        %v4862 = vrot.slane %v4835, 7
        %v4863 = vrot.slane %v4814, 7
        %v4864 = vrot.slane %v4836, 7
        %v4865 = vrot.slane %v4818, 7
        %v4866 = vrot.slane %v4837, 7
        %v4867 = vrot.slane %v4822, 7
        %v4868 = vrot.slane %v4838, 7
        %v4869 = vrot.slane %v4826, 7
        %v4870 = vrot.slane %v4839, 7
        %v4871 = vrot.slane %v4830, 7
        %vm4872 = vcmp.lt.s32.totalorder %v4671, 1
        %v4873 = vsel %vm4872, %v4868, %v4870
        %v4874 = vsel %vm4872, %v4869, %v4871
        %v4875 = vsel %vm4872, %v4866, %v4868
        %v4876 = vsel %vm4872, %v4867, %v4869
        %v4877 = vsel %vm4872, %v4864, %v4866
        %v4878 = vsel %vm4872, %v4865, %v4867
        %v4879 = vsel %vm4872, %v4862, %v4864
        %v4880 = vsel %vm4872, %v4863, %v4865
        %v4881 = vsel %vm4872, %v4860, %v4862
        %v4882 = vsel %vm4872, %v4861, %v4863
        %v4883 = vsel %vm4872, %v4858, %v4860
        %v4884 = vsel %vm4872, %v4859, %v4861
        %v4885 = vsel %vm4872, %v4856, %v4858
        %v4886 = vsel %vm4872, %v4857, %v4859
        %v4887 = vsel %vm4872, %v4870, %v4856
        %v4888 = vsel %vm4872, %v4871, %v4857
        %v4889 = vsel %vm4775, 1, 0
        %v4890 = vsel %vm4776, 1, 0
        %v4891 = vsel %vm4777, 1, 0
        %v4892 = vsel %vm4778, 1, 0
        %v4893 = vsel %vm4779, 1, 0
        %v4894 = vsel %vm4780, 1, 0
        %v4895 = vsel %vm4781, 1, 0
        %v4896 = vsel %vm4782, 1, 0
        %vm4897 = vcmp.eq.s32.totalorder %v4889, 1
        %vm4898 = vcmp.eq.s32.totalorder %v4890, 1
        %vm4899 = vcmp.eq.s32.totalorder %v4891, 1
        %vm4900 = vcmp.eq.s32.totalorder %v4892, 1
        %vm4901 = vcmp.eq.s32.totalorder %v4893, 1
        %vm4902 = vcmp.eq.s32.totalorder %v4894, 1
        %vm4903 = vcmp.eq.s32.totalorder %v4895, 1
        %vm4904 = vcmp.eq.s32.totalorder %v4896, 1
        %v4905 = vsel %vm4897, %v4887, 0.0
        %v4906 = vsel %vm4897, %v4888, 0.0
        %v4907 = vsel %vm4898, %v4885, 0.0
        %v4908 = vsel %vm4898, %v4886, 0.0
        %v4909 = vsel %vm4899, %v4883, 0.0
        %v4910 = vsel %vm4899, %v4884, 0.0
        %v4911 = vsel %vm4900, %v4881, 0.0
        %v4912 = vsel %vm4900, %v4882, 0.0
        %v4913 = vsel %vm4901, %v4879, 0.0
        %v4914 = vsel %vm4901, %v4880, 0.0
        %v4915 = vsel %vm4902, %v4877, 0.0
        %v4916 = vsel %vm4902, %v4878, 0.0
        %v4917 = vsel %vm4903, %v4875, 0.0
        %v4918 = vsel %vm4903, %v4876, 0.0
        %v4919 = vsel %vm4904, %v4873, 0.0
        %v4920 = vsel %vm4904, %v4874, 0.0
        %v4921 = vpack.c.bf16 %v4907, %v4905
        %v4922 = vpack.c.bf16 %v4908, %v4906
        %v4923 = vpack.c.bf16 %v4911, %v4909
        %v4924 = vpack.c.bf16 %v4912, %v4910
        %v4925 = vpack.c.bf16 %v4915, %v4913
        %v4926 = vpack.c.bf16 %v4916, %v4914
        %v4927 = vpack.c.bf16 %v4919, %v4917
        %v4928 = vpack.c.bf16 %v4920, %v4918
        %vm4929 = vcmp.ne.s32.totalorder %v4767, 7
        %vm4930 = vcmp.ne.s32.totalorder %v4768, 7
        %vm4931 = vcmp.ne.s32.totalorder %v4769, 7
        %vm4932 = vcmp.ne.s32.totalorder %v4770, 7
        %vm4933 = vcmp.ne.s32.totalorder %v4771, 7
        %vm4934 = vcmp.ne.s32.totalorder %v4772, 7
        %vm4935 = vcmp.ne.s32.totalorder %v4773, 7
        %vm4936 = vcmp.ne.s32.totalorder %v4774, 7
        %v4937 = vrot.slane %v4832, 1
        %v4938 = vrot.slane %v4802, 1
        %v4939 = vrot.slane %v4833, 1
        %v4940 = vrot.slane %v4806, 1
        %v4941 = vrot.slane %v4834, 1
        %v4942 = vrot.slane %v4810, 1
        %v4943 = vrot.slane %v4835, 1
        %v4944 = vrot.slane %v4814, 1
        %v4945 = vrot.slane %v4836, 1
        %v4946 = vrot.slane %v4818, 1
        %v4947 = vrot.slane %v4837, 1
        %v4948 = vrot.slane %v4822, 1
        %v4949 = vrot.slane %v4838, 1
        %v4950 = vrot.slane %v4826, 1
        %v4951 = vrot.slane %v4839, 1
        %v4952 = vrot.slane %v4830, 1
        %vm4953 = vcmp.lt.s32.totalorder %v4671, 7
        %v4954 = vsel %vm4953, %v4949, %v4951
        %v4955 = vsel %vm4953, %v4950, %v4952
        %v4956 = vsel %vm4953, %v4947, %v4949
        %v4957 = vsel %vm4953, %v4948, %v4950
        %v4958 = vsel %vm4953, %v4945, %v4947
        %v4959 = vsel %vm4953, %v4946, %v4948
        %v4960 = vsel %vm4953, %v4943, %v4945
        %v4961 = vsel %vm4953, %v4944, %v4946
        %v4962 = vsel %vm4953, %v4941, %v4943
        %v4963 = vsel %vm4953, %v4942, %v4944
        %v4964 = vsel %vm4953, %v4939, %v4941
        %v4965 = vsel %vm4953, %v4940, %v4942
        %v4966 = vsel %vm4953, %v4937, %v4939
        %v4967 = vsel %vm4953, %v4938, %v4940
        %v4968 = vsel %vm4953, %v4951, %v4937
        %v4969 = vsel %vm4953, %v4952, %v4938
        %v4970 = vsel %vm4929, 1, 0
        %v4971 = vsel %vm4930, 1, 0
        %v4972 = vsel %vm4931, 1, 0
        %v4973 = vsel %vm4932, 1, 0
        %v4974 = vsel %vm4933, 1, 0
        %v4975 = vsel %vm4934, 1, 0
        %v4976 = vsel %vm4935, 1, 0
        %v4977 = vsel %vm4936, 1, 0
        %vm4978 = vcmp.eq.s32.totalorder %v4970, 1
        %vm4979 = vcmp.eq.s32.totalorder %v4971, 1
        %vm4980 = vcmp.eq.s32.totalorder %v4972, 1
        %vm4981 = vcmp.eq.s32.totalorder %v4973, 1
        %vm4982 = vcmp.eq.s32.totalorder %v4974, 1
        %vm4983 = vcmp.eq.s32.totalorder %v4975, 1
        %vm4984 = vcmp.eq.s32.totalorder %v4976, 1
        %vm4985 = vcmp.eq.s32.totalorder %v4977, 1
        %v4986 = vsel %vm4978, %v4966, 0.0
        %v4987 = vsel %vm4978, %v4967, 0.0
        %v4988 = vsel %vm4979, %v4964, 0.0
        %v4989 = vsel %vm4979, %v4965, 0.0
        %v4990 = vsel %vm4980, %v4962, 0.0
        %v4991 = vsel %vm4980, %v4963, 0.0
        %v4992 = vsel %vm4981, %v4960, 0.0
        %v4993 = vsel %vm4981, %v4961, 0.0
        %v4994 = vsel %vm4982, %v4958, 0.0
        %v4995 = vsel %vm4982, %v4959, 0.0
        %v4996 = vsel %vm4983, %v4956, 0.0
        %v4997 = vsel %vm4983, %v4957, 0.0
        %v4998 = vsel %vm4984, %v4954, 0.0
        %v4999 = vsel %vm4984, %v4955, 0.0
        %v5000 = vsel %vm4985, %v4968, 0.0
        %v5001 = vsel %vm4985, %v4969, 0.0
        %v5002 = vpack.c.bf16 %v4988, %v4986
        %v5003 = vpack.c.bf16 %v4989, %v4987
        %v5004 = vpack.c.bf16 %v4992, %v4990
        %v5005 = vpack.c.bf16 %v4993, %v4991
        %v5006 = vpack.c.bf16 %v4996, %v4994
        %v5007 = vpack.c.bf16 %v4997, %v4995
        %v5008 = vpack.c.bf16 %v5000, %v4998
        %v5009 = vpack.c.bf16 %v5001, %v4999
        %v5010 = vld [vmem:[#allocation9] sm:$0xff]
        %v5011 = vld [vmem:[#allocation9 + $0x8] sm:$0xff]
        %v5012 = vld [vmem:[#allocation9 + $0x10] sm:$0xff]
        %v5013 = vld [vmem:[#allocation9 + $0x18] sm:$0xff]
        %v5014 = vld [vmem:[#allocation9 + $0x20] sm:$0xff]
        %v5015 = vld [vmem:[#allocation9 + $0x28] sm:$0xff]
        %v5016 = vld [vmem:[#allocation9 + $0x30] sm:$0xff]
        %v5017 = vld [vmem:[#allocation9 + $0x38] sm:$0xff]
        %v5018 = vld [vmem:[#allocation9 + $0x40] sm:$0xff]
        %v5019 = vld [vmem:[#allocation9 + $0x48] sm:$0xff]
        %v5020 = vld [vmem:[#allocation9 + $0x50] sm:$0xff]
        %v5021 = vld [vmem:[#allocation9 + $0x58] sm:$0xff]
        %v5022 = vld [vmem:[#allocation9 + $0x60] sm:$0xff]
        %v5023 = vld [vmem:[#allocation9 + $0x68] sm:$0xff]
        %v5024 = vld [vmem:[#allocation9 + $0x70] sm:$0xff]
        %v5025 = vld [vmem:[#allocation9 + $0x78] sm:$0xff]
        %v5026 = vld [vmem:[#allocation9 + $0x80] sm:$0xff]
        %v5027 = vld [vmem:[#allocation9 + $0x88] sm:$0xff]
        %v5028 = vld [vmem:[#allocation9 + $0x90] sm:$0xff]
        %v5029 = vld [vmem:[#allocation9 + $0x98] sm:$0xff]
        %v5030 = vld [vmem:[#allocation9 + $0xa0] sm:$0xff]
        %v5031 = vld [vmem:[#allocation9 + $0xa8] sm:$0xff]
        %v5032 = vld [vmem:[#allocation9 + $0xb0] sm:$0xff]
        %v5033 = vld [vmem:[#allocation9 + $0xb8] sm:$0xff]
        %v5034 = vpack.c.bf16 %v4650, %v4647
        %v5035 = vpack.c.bf16 %v4651, %v4648
        %v5036 = vpack.c.bf16 %v4656, %v4653
        %v5037 = vpack.c.bf16 %v4657, %v4654
        %v5038 = vpack.c.bf16 %v4662, %v4659
        %v5039 = vpack.c.bf16 %v4663, %v4660
        %v5040 = vpack.c.bf16 %v4668, %v4665
        %v5041 = vpack.c.bf16 %v4669, %v4666
        %s5042 = scalar_lea.vmem [#allocation9], 192
        %v5043 = vld [vmem:[%s5042] sm:$0xff]
        %v5044 = vld [vmem:[%s5042 + $0x8] sm:$0xff]
        %v5045 = vld [vmem:[%s5042 + $0x10] sm:$0xff]
        %v5046 = vld [vmem:[%s5042 + $0x18] sm:$0xff]
        %v5047 = vld [vmem:[%s5042 + $0x20] sm:$0xff]
        %v5048 = vld [vmem:[%s5042 + $0x28] sm:$0xff]
        %v5049 = vld [vmem:[%s5042 + $0x30] sm:$0xff]
        %v5050 = vld [vmem:[%s5042 + $0x38] sm:$0xff]
        %v5051 = vld [vmem:[%s5042 + $0x40] sm:$0xff]
        %v5052 = vld [vmem:[%s5042 + $0x48] sm:$0xff]
        %v5053 = vld [vmem:[%s5042 + $0x50] sm:$0xff]
        %v5054 = vld [vmem:[%s5042 + $0x58] sm:$0xff]
        %v5055 = vld [vmem:[%s5042 + $0x60] sm:$0xff]
        %v5056 = vld [vmem:[%s5042 + $0x68] sm:$0xff]
        %v5057 = vld [vmem:[%s5042 + $0x70] sm:$0xff]
        %v5058 = vld [vmem:[%s5042 + $0x78] sm:$0xff]
        %v5059 = vld [vmem:[%s5042 + $0x80] sm:$0xff]
        %v5060 = vld [vmem:[%s5042 + $0x88] sm:$0xff]
        %v5061 = vld [vmem:[%s5042 + $0x90] sm:$0xff]
        %v5062 = vld [vmem:[%s5042 + $0x98] sm:$0xff]
        %v5063 = vld [vmem:[%s5042 + $0xa0] sm:$0xff]
        %v5064 = vld [vmem:[%s5042 + $0xa8] sm:$0xff]
        %v5065 = vld [vmem:[%s5042 + $0xb0] sm:$0xff]
        %v5066 = vld [vmem:[%s5042 + $0xb8] sm:$0xff]
        %5075 = vrot.lane.b32.xlu0 %v5034, 64
        %v5076 = vpop.permute.xlu0 %5075
        %5077 = vrot.lane.b32.xlu0 %v5035, 64
        %v5078 = vpop.permute.xlu0 %5077
        %5079 = vrot.lane.b32.xlu0 %v5036, 64
        %v5080 = vpop.permute.xlu0 %5079
        %5081 = vrot.lane.b32.xlu0 %v5037, 64
        %v5082 = vpop.permute.xlu0 %5081
        %5083 = vrot.lane.b32.xlu0 %v5038, 64
        %v5084 = vpop.permute.xlu0 %5083
        %5085 = vrot.lane.b32.xlu0 %v5039, 64
        %v5086 = vpop.permute.xlu0 %5085
        %5087 = vrot.lane.b32.xlu0 %v5040, 64
        %v5088 = vpop.permute.xlu0 %5087
        %5089 = vrot.lane.b32.xlu0 %v5041, 64
        %v5090 = vpop.permute.xlu0 %5089
        %vm5091 = vcmask 523264
        %v5092 = vsel %vm5091, %v5076, %v5078
        %v5093 = vsel %vm5091, %v5080, %v5082
        %v5094 = vsel %vm5091, %v5084, %v5086
        %v5095 = vsel %vm5091, %v5088, %v5090
        %v5124 = vunpack.c.l.b16 %v5043
        %v5125 = vunpack.c.h.b16 %v5043
        %v5126 = vunpack.c.l.b16 %v5044
        %v5127 = vunpack.c.h.b16 %v5044
        %v5128 = vunpack.c.l.b16 %v5045
        %v5129 = vunpack.c.h.b16 %v5045
        %v5130 = vunpack.c.l.b16 %v5046
        %v5131 = vunpack.c.h.b16 %v5046
        %v5132 = vunpack.c.l.b16 %v5047
        %v5133 = vunpack.c.h.b16 %v5047
        %v5134 = vunpack.c.l.b16 %v5048
        %v5135 = vunpack.c.h.b16 %v5048
        %v5136 = vunpack.c.l.b16 %v5049
        %v5137 = vunpack.c.h.b16 %v5049
        %v5138 = vunpack.c.l.b16 %v5050
        %v5139 = vunpack.c.h.b16 %v5050
        %v5140 = vunpack.c.l.b16 %v5051
        %v5141 = vunpack.c.h.b16 %v5051
        %v5142 = vunpack.c.l.b16 %v5052
        %v5143 = vunpack.c.h.b16 %v5052
        %v5144 = vunpack.c.l.b16 %v5053
        %v5145 = vunpack.c.h.b16 %v5053
        %v5146 = vunpack.c.l.b16 %v5054
        %v5147 = vunpack.c.h.b16 %v5054
        %v5148 = vunpack.c.l.b16 %v5055
        %v5149 = vunpack.c.h.b16 %v5055
        %v5150 = vunpack.c.l.b16 %v5056
        %v5151 = vunpack.c.h.b16 %v5056
        %v5152 = vunpack.c.l.b16 %v5057
        %v5153 = vunpack.c.h.b16 %v5057
        %v5154 = vunpack.c.l.b16 %v5058
        %v5155 = vunpack.c.h.b16 %v5058
        %v5156 = vunpack.c.l.b16 %v5059
        %v5157 = vunpack.c.h.b16 %v5059
        %v5158 = vunpack.c.l.b16 %v5060
        %v5159 = vunpack.c.h.b16 %v5060
        %v5160 = vunpack.c.l.b16 %v5061
        %v5161 = vunpack.c.h.b16 %v5061
        %v5162 = vunpack.c.l.b16 %v5062
        %v5163 = vunpack.c.h.b16 %v5062
        %v5164 = vunpack.c.l.b16 %v5063
        %v5165 = vunpack.c.h.b16 %v5063
        %v5166 = vunpack.c.l.b16 %v5064
        %v5167 = vunpack.c.h.b16 %v5064
        %v5168 = vunpack.c.l.b16 %v5065
        %v5169 = vunpack.c.h.b16 %v5065
        %v5170 = vunpack.c.l.b16 %v5066
        %v5171 = vunpack.c.h.b16 %v5066
        %v5172 = vpack.c.b16 %v5126, %v5124
        %v5173 = vpack.c.b16 %v5127, %v5125
        %v5174 = vpack.c.b16 %v5130, %v5128
        %v5175 = vpack.c.b16 %v5131, %v5129
        %v5176 = vpack.c.b16 %v5134, %v5132
        %v5177 = vpack.c.b16 %v5135, %v5133
        %v5178 = vpack.c.b16 %v5138, %v5136
        %v5179 = vpack.c.b16 %v5139, %v5137
        %v5180 = vpack.c.b16 %v5142, %v5140
        %v5181 = vpack.c.b16 %v5143, %v5141
        %v5182 = vpack.c.b16 %v5146, %v5144
        %v5183 = vpack.c.b16 %v5147, %v5145
        %v5184 = vpack.c.b16 %v5150, %v5148
        %v5185 = vpack.c.b16 %v5151, %v5149
        %v5186 = vpack.c.b16 %v5154, %v5152
        %v5187 = vpack.c.b16 %v5155, %v5153
        %v5188 = vpack.c.b16 %v5158, %v5156
        %v5189 = vpack.c.b16 %v5159, %v5157
        %v5190 = vpack.c.b16 %v5162, %v5160
        %v5191 = vpack.c.b16 %v5163, %v5161
        %v5192 = vpack.c.b16 %v5166, %v5164
        %v5193 = vpack.c.b16 %v5167, %v5165
        %v5194 = vpack.c.b16 %v5170, %v5168
        %v5195 = vpack.c.b16 %v5171, %v5169
        %v5221 = vsel %vm4831, %v5078, 0
        %v5224 = vsel %vm4831, %v5082, 0
        %v5227 = vsel %vm4831, %v5086, 0
        %v5230 = vsel %vm4831, %v5090, 0
        %5232 = vmatprep.subr.bf16.mxu0 %v5173
        %5233 = vmatpush1.bf16.msra.mxu0 %v5172
        %5234 = vmatprep.subr.bf16.mxu0 %v5175
        %5235 = vmatpush1.bf16.msra.mxu0 %v5174
        %5236 = vmatprep.subr.bf16.mxu0 %v5177
        %5237 = vmatpush1.bf16.msra.mxu0 %v5176
        %5238 = vmatprep.subr.bf16.mxu0 %v5179
        %5239 = vmatpush1.bf16.msra.mxu0 %v5178
        %5240 = vmatprep.subr.bf16.mxu0 %v5181
        %5241 = vmatpush1.bf16.msra.mxu0 %v5180
        %5242 = vmatprep.subr.bf16.mxu0 %v5183
        %5243 = vmatpush1.bf16.msra.mxu0 %v5182
        %5244 = vmatprep.subr.bf16.mxu0 %v5185
        %5245 = vmatpush1.bf16.msra.mxu0 %v5184
        %5246 = vmatprep.subr.bf16.mxu0 %v5187
        %5247 = vmatpush1.bf16.msra.mxu0 %v5186
        %5248 = vmatprep.subr.bf16.mxu0 %v5189
        %5249 = vmatpush1.bf16.msra.mxu0 %v5188
        %5250 = vmatprep.subr.bf16.mxu0 %v5191
        %5251 = vmatpush1.bf16.msra.mxu0 %v5190
        %5252 = vmatprep.subr.bf16.mxu0 %v5193
        %5253 = vmatpush1.bf16.msra.mxu0 %v5192
        %5254 = vmatprep.subr.bf16.mxu0 %v5195
        %5255 = vmatpush1.bf16.msra.mxu0 %v5194
        %5256 = vmatprep.subr.bf16.mxu0 0
        %5257 = vmatpush1.bf16.msra.mxu0 0
        %5258 = vmatprep.subr.bf16.mxu0 0
        %5259 = vmatpush1.bf16.msra.mxu0 0
        %5260 = vmatprep.subr.bf16.mxu0 0
        %5261 = vmatpush1.bf16.msra.mxu0 0
        %5262 = vmatprep.subr.bf16.mxu0 0
        %5263 = vmatpush1.bf16.msra.mxu0 0
        %5264 = vmatprep.mubr.bf16.mxu0 %v5221
        %5265 = vmatmul.mubr.bf16.gmra.mrb[0].mxu0 %v5092
        %v5266 = vpop.f32.mrb[0].mxu0
        %v5267 = vadd.f32 0.0, %v5266
        %v5268 = vpop.f32.mrb[0].mxu0
        %v5269 = vadd.f32 0.0, %v5268
        %v5270 = vpop.f32.mrb[0].mxu0
        %v5271 = vadd.f32 0.0, %v5270
        %v5272 = vpop.f32.mrb[0].mxu0
        %v5273 = vadd.f32 0.0, %v5272
        %5274 = vmatprep.mubr.bf16.mxu0 %v5224
        %5275 = vmatmul.mubr.bf16.gmra.mrb[0].mxu0 %v5093
        %v5276 = vpop.f32.mrb[0].mxu0
        %v5277 = vadd.f32 0.0, %v5276
        %v5278 = vpop.f32.mrb[0].mxu0
        %v5279 = vadd.f32 0.0, %v5278
        %v5280 = vpop.f32.mrb[0].mxu0
        %v5281 = vadd.f32 0.0, %v5280
        %v5282 = vpop.f32.mrb[0].mxu0
        %v5283 = vadd.f32 0.0, %v5282
        %5284 = vmatprep.mubr.bf16.mxu0 %v5227
        %5285 = vmatmul.mubr.bf16.gmra.mrb[0].mxu0 %v5094
        %v5286 = vpop.f32.mrb[0].mxu0
        %v5287 = vadd.f32 0.0, %v5286
        %v5288 = vpop.f32.mrb[0].mxu0
        %v5289 = vadd.f32 0.0, %v5288
        %v5290 = vpop.f32.mrb[0].mxu0
        %v5291 = vadd.f32 0.0, %v5290
        %v5292 = vpop.f32.mrb[0].mxu0
        %v5293 = vadd.f32 0.0, %v5292
        %5294 = vmatprep.mubr.bf16.mxu0 %v5230
        %5295 = vmatmul.mubr.bf16.gmra.mrb[0].mxu0 %v5095
        %v5296 = vpop.f32.mrb[0].mxu0
        %v5297 = vadd.f32 0.0, %v5296
        %v5298 = vpop.f32.mrb[0].mxu0
        %v5299 = vadd.f32 0.0, %v5298
        %v5300 = vpop.f32.mrb[0].mxu0
        %v5301 = vadd.f32 0.0, %v5300
        %v5302 = vpop.f32.mrb[0].mxu0
        %v5303 = vadd.f32 0.0, %v5302
        %5304 = vdwg.mxu0
        %v5329 = vunpack.c.l.b16 %v5010
        %v5330 = vunpack.c.h.b16 %v5010
        %v5331 = vunpack.c.l.b16 %v5011
        %v5332 = vunpack.c.h.b16 %v5011
        %v5333 = vunpack.c.l.b16 %v5012
        %v5334 = vunpack.c.h.b16 %v5012
        %v5335 = vunpack.c.l.b16 %v5013
        %v5336 = vunpack.c.h.b16 %v5013
        %v5337 = vunpack.c.l.b16 %v5014
        %v5338 = vunpack.c.h.b16 %v5014
        %v5339 = vunpack.c.l.b16 %v5015
        %v5340 = vunpack.c.h.b16 %v5015
        %v5341 = vunpack.c.l.b16 %v5016
        %v5342 = vunpack.c.h.b16 %v5016
        %v5343 = vunpack.c.l.b16 %v5017
        %v5344 = vunpack.c.h.b16 %v5017
        %v5345 = vunpack.c.l.b16 %v5018
        %v5346 = vunpack.c.h.b16 %v5018
        %v5347 = vunpack.c.l.b16 %v5019
        %v5348 = vunpack.c.h.b16 %v5019
        %v5349 = vunpack.c.l.b16 %v5020
        %v5350 = vunpack.c.h.b16 %v5020
        %v5351 = vunpack.c.l.b16 %v5021
        %v5352 = vunpack.c.h.b16 %v5021
        %v5353 = vunpack.c.l.b16 %v5022
        %v5354 = vunpack.c.h.b16 %v5022
        %v5355 = vunpack.c.l.b16 %v5023
        %v5356 = vunpack.c.h.b16 %v5023
        %v5357 = vunpack.c.l.b16 %v5024
        %v5358 = vunpack.c.h.b16 %v5024
        %v5359 = vunpack.c.l.b16 %v5025
        %v5360 = vunpack.c.h.b16 %v5025
        %v5361 = vunpack.c.l.b16 %v5026
        %v5362 = vunpack.c.h.b16 %v5026
        %v5363 = vunpack.c.l.b16 %v5027
        %v5364 = vunpack.c.h.b16 %v5027
        %v5365 = vunpack.c.l.b16 %v5028
        %v5366 = vunpack.c.h.b16 %v5028
        %v5367 = vunpack.c.l.b16 %v5029
        %v5368 = vunpack.c.h.b16 %v5029
        %v5369 = vunpack.c.l.b16 %v5030
        %v5370 = vunpack.c.h.b16 %v5030
        %v5371 = vunpack.c.l.b16 %v5031
        %v5372 = vunpack.c.h.b16 %v5031
        %v5373 = vunpack.c.l.b16 %v5032
        %v5374 = vunpack.c.h.b16 %v5032
        %v5375 = vunpack.c.l.b16 %v5033
        %v5376 = vunpack.c.h.b16 %v5033
        %v5377 = vpack.c.b16 %v5331, %v5329
        %v5378 = vpack.c.b16 %v5332, %v5330
        %v5379 = vpack.c.b16 %v5335, %v5333
        %v5380 = vpack.c.b16 %v5336, %v5334
        %v5381 = vpack.c.b16 %v5339, %v5337
        %v5382 = vpack.c.b16 %v5340, %v5338
        %v5383 = vpack.c.b16 %v5343, %v5341
        %v5384 = vpack.c.b16 %v5344, %v5342
        %v5385 = vpack.c.b16 %v5347, %v5345
        %v5386 = vpack.c.b16 %v5348, %v5346
        %v5387 = vpack.c.b16 %v5351, %v5349
        %v5388 = vpack.c.b16 %v5352, %v5350
        %v5389 = vpack.c.b16 %v5355, %v5353
        %v5390 = vpack.c.b16 %v5356, %v5354
        %v5391 = vpack.c.b16 %v5359, %v5357
        %v5392 = vpack.c.b16 %v5360, %v5358
        %v5393 = vpack.c.b16 %v5363, %v5361
        %v5394 = vpack.c.b16 %v5364, %v5362
        %v5395 = vpack.c.b16 %v5367, %v5365
        %v5396 = vpack.c.b16 %v5368, %v5366
        %v5397 = vpack.c.b16 %v5371, %v5369
        %v5398 = vpack.c.b16 %v5372, %v5370
        %v5399 = vpack.c.b16 %v5375, %v5373
        %v5400 = vpack.c.b16 %v5376, %v5374
        %v5426 = vsel %vm4831, %v4922, 0
        %v5429 = vsel %vm4831, %v4924, 0
        %v5432 = vsel %vm4831, %v4926, 0
        %v5435 = vsel %vm4831, %v4928, 0
        %5437 = vmatprep.subr.bf16.mxu0 %v5378
        %5438 = vmatpush1.bf16.msra.mxu0 %v5377
        %5439 = vmatprep.subr.bf16.mxu0 %v5380
        %5440 = vmatpush1.bf16.msra.mxu0 %v5379
        %5441 = vmatprep.subr.bf16.mxu0 %v5382
        %5442 = vmatpush1.bf16.msra.mxu0 %v5381
        %5443 = vmatprep.subr.bf16.mxu0 %v5384
        %5444 = vmatpush1.bf16.msra.mxu0 %v5383
        %5445 = vmatprep.subr.bf16.mxu0 %v5386
        %5446 = vmatpush1.bf16.msra.mxu0 %v5385
        %5447 = vmatprep.subr.bf16.mxu0 %v5388
        %5448 = vmatpush1.bf16.msra.mxu0 %v5387
        %5449 = vmatprep.subr.bf16.mxu0 %v5390
        %5450 = vmatpush1.bf16.msra.mxu0 %v5389
        %5451 = vmatprep.subr.bf16.mxu0 %v5392
        %5452 = vmatpush1.bf16.msra.mxu0 %v5391
        %5453 = vmatprep.subr.bf16.mxu0 %v5394
        %5454 = vmatpush1.bf16.msra.mxu0 %v5393
        %5455 = vmatprep.subr.bf16.mxu0 %v5396
        %5456 = vmatpush1.bf16.msra.mxu0 %v5395
        %5457 = vmatprep.subr.bf16.mxu0 %v5398
        %5458 = vmatpush1.bf16.msra.mxu0 %v5397
        %5459 = vmatprep.subr.bf16.mxu0 %v5400
        %5460 = vmatpush1.bf16.msra.mxu0 %v5399
        %5461 = vmatprep.subr.bf16.mxu0 0
        %5462 = vmatpush1.bf16.msra.mxu0 0
        %5463 = vmatprep.subr.bf16.mxu0 0
        %5464 = vmatpush1.bf16.msra.mxu0 0
        %5465 = vmatprep.subr.bf16.mxu0 0
        %5466 = vmatpush1.bf16.msra.mxu0 0
        %5467 = vmatprep.subr.bf16.mxu0 0
        %5468 = vmatpush1.bf16.msra.mxu0 0
        %5469 = vmatprep.mubr.bf16.mxu0 %v5426
        %5470 = vmatmul.mubr.bf16.gmra.mrb[0].mxu0 %v4921
        %v5471 = vpop.f32.mrb[0].mxu0
        %v5472 = vadd.f32 %v5267, %v5471
        %v5473 = vpop.f32.mrb[0].mxu0
        %v5474 = vadd.f32 %v5269, %v5473
        %v5475 = vpop.f32.mrb[0].mxu0
        %v5476 = vadd.f32 %v5271, %v5475
        %v5477 = vpop.f32.mrb[0].mxu0
        %v5478 = vadd.f32 %v5273, %v5477
        %5479 = vmatprep.mubr.bf16.mxu0 %v5429
        %5480 = vmatmul.mubr.bf16.gmra.mrb[0].mxu0 %v4923
        %v5481 = vpop.f32.mrb[0].mxu0
        %v5482 = vadd.f32 %v5277, %v5481
        %v5483 = vpop.f32.mrb[0].mxu0
        %v5484 = vadd.f32 %v5279, %v5483
        %v5485 = vpop.f32.mrb[0].mxu0
        %v5486 = vadd.f32 %v5281, %v5485
        %v5487 = vpop.f32.mrb[0].mxu0
        %v5488 = vadd.f32 %v5283, %v5487
        %5489 = vmatprep.mubr.bf16.mxu0 %v5432
        %5490 = vmatmul.mubr.bf16.gmra.mrb[0].mxu0 %v4925
        %v5491 = vpop.f32.mrb[0].mxu0
        %v5492 = vadd.f32 %v5287, %v5491
        %v5493 = vpop.f32.mrb[0].mxu0
        %v5494 = vadd.f32 %v5289, %v5493
        %v5495 = vpop.f32.mrb[0].mxu0
        %v5496 = vadd.f32 %v5291, %v5495
        %v5497 = vpop.f32.mrb[0].mxu0
        %v5498 = vadd.f32 %v5293, %v5497
        %5499 = vmatprep.mubr.bf16.mxu0 %v5435
        %5500 = vmatmul.mubr.bf16.gmra.mrb[0].mxu0 %v4927
        %v5501 = vpop.f32.mrb[0].mxu0
        %v5502 = vadd.f32 %v5297, %v5501
        %v5503 = vpop.f32.mrb[0].mxu0
        %v5504 = vadd.f32 %v5299, %v5503
        %v5505 = vpop.f32.mrb[0].mxu0
        %v5506 = vadd.f32 %v5301, %v5505
        %v5507 = vpop.f32.mrb[0].mxu0
        %v5508 = vadd.f32 %v5303, %v5507
        %5509 = vdwg.mxu0
        %s5510 = scalar_lea.vmem [#allocation9], 384
        %v5511 = vld [vmem:[%s5510] sm:$0xff]
        %v5512 = vld [vmem:[%s5510 + $0x8] sm:$0xff]
        %v5513 = vld [vmem:[%s5510 + $0x10] sm:$0xff]
        %v5514 = vld [vmem:[%s5510 + $0x18] sm:$0xff]
        %v5515 = vld [vmem:[%s5510 + $0x20] sm:$0xff]
        %v5516 = vld [vmem:[%s5510 + $0x28] sm:$0xff]
        %v5517 = vld [vmem:[%s5510 + $0x30] sm:$0xff]
        %v5518 = vld [vmem:[%s5510 + $0x38] sm:$0xff]
        %v5519 = vld [vmem:[%s5510 + $0x40] sm:$0xff]
        %v5520 = vld [vmem:[%s5510 + $0x48] sm:$0xff]
        %v5521 = vld [vmem:[%s5510 + $0x50] sm:$0xff]
        %v5522 = vld [vmem:[%s5510 + $0x58] sm:$0xff]
        %v5523 = vld [vmem:[%s5510 + $0x60] sm:$0xff]
        %v5524 = vld [vmem:[%s5510 + $0x68] sm:$0xff]
        %v5525 = vld [vmem:[%s5510 + $0x70] sm:$0xff]
        %v5526 = vld [vmem:[%s5510 + $0x78] sm:$0xff]
        %v5527 = vld [vmem:[%s5510 + $0x80] sm:$0xff]
        %v5528 = vld [vmem:[%s5510 + $0x88] sm:$0xff]
        %v5529 = vld [vmem:[%s5510 + $0x90] sm:$0xff]
        %v5530 = vld [vmem:[%s5510 + $0x98] sm:$0xff]
        %v5531 = vld [vmem:[%s5510 + $0xa0] sm:$0xff]
        %v5532 = vld [vmem:[%s5510 + $0xa8] sm:$0xff]
        %v5533 = vld [vmem:[%s5510 + $0xb0] sm:$0xff]
        %v5534 = vld [vmem:[%s5510 + $0xb8] sm:$0xff]
        %v5559 = vunpack.c.l.b16 %v5511
        %v5560 = vunpack.c.h.b16 %v5511
        %v5561 = vunpack.c.l.b16 %v5512
        %v5562 = vunpack.c.h.b16 %v5512
        %v5563 = vunpack.c.l.b16 %v5513
        %v5564 = vunpack.c.h.b16 %v5513
        %v5565 = vunpack.c.l.b16 %v5514
        %v5566 = vunpack.c.h.b16 %v5514
        %v5567 = vunpack.c.l.b16 %v5515
        %v5568 = vunpack.c.h.b16 %v5515
        %v5569 = vunpack.c.l.b16 %v5516
        %v5570 = vunpack.c.h.b16 %v5516
        %v5571 = vunpack.c.l.b16 %v5517
        %v5572 = vunpack.c.h.b16 %v5517
        %v5573 = vunpack.c.l.b16 %v5518
        %v5574 = vunpack.c.h.b16 %v5518
        %v5575 = vunpack.c.l.b16 %v5519
        %v5576 = vunpack.c.h.b16 %v5519
        %v5577 = vunpack.c.l.b16 %v5520
        %v5578 = vunpack.c.h.b16 %v5520
        %v5579 = vunpack.c.l.b16 %v5521
        %v5580 = vunpack.c.h.b16 %v5521
        %v5581 = vunpack.c.l.b16 %v5522
        %v5582 = vunpack.c.h.b16 %v5522
        %v5583 = vunpack.c.l.b16 %v5523
        %v5584 = vunpack.c.h.b16 %v5523
        %v5585 = vunpack.c.l.b16 %v5524
        %v5586 = vunpack.c.h.b16 %v5524
        %v5587 = vunpack.c.l.b16 %v5525
        %v5588 = vunpack.c.h.b16 %v5525
        %v5589 = vunpack.c.l.b16 %v5526
        %v5590 = vunpack.c.h.b16 %v5526
        %v5591 = vunpack.c.l.b16 %v5527
        %v5592 = vunpack.c.h.b16 %v5527
        %v5593 = vunpack.c.l.b16 %v5528
        %v5594 = vunpack.c.h.b16 %v5528
        %v5595 = vunpack.c.l.b16 %v5529
        %v5596 = vunpack.c.h.b16 %v5529
        %v5597 = vunpack.c.l.b16 %v5530
        %v5598 = vunpack.c.h.b16 %v5530
        %v5599 = vunpack.c.l.b16 %v5531
        %v5600 = vunpack.c.h.b16 %v5531
        %v5601 = vunpack.c.l.b16 %v5532
        %v5602 = vunpack.c.h.b16 %v5532
        %v5603 = vunpack.c.l.b16 %v5533
        %v5604 = vunpack.c.h.b16 %v5533
        %v5605 = vunpack.c.l.b16 %v5534
        %v5606 = vunpack.c.h.b16 %v5534
        %v5607 = vpack.c.b16 %v5561, %v5559
        %v5608 = vpack.c.b16 %v5562, %v5560
        %v5609 = vpack.c.b16 %v5565, %v5563
        %v5610 = vpack.c.b16 %v5566, %v5564
        %v5611 = vpack.c.b16 %v5569, %v5567
        %v5612 = vpack.c.b16 %v5570, %v5568
        %v5613 = vpack.c.b16 %v5573, %v5571
        %v5614 = vpack.c.b16 %v5574, %v5572
        %v5615 = vpack.c.b16 %v5577, %v5575
        %v5616 = vpack.c.b16 %v5578, %v5576
        %v5617 = vpack.c.b16 %v5581, %v5579
        %v5618 = vpack.c.b16 %v5582, %v5580
        %v5619 = vpack.c.b16 %v5585, %v5583
        %v5620 = vpack.c.b16 %v5586, %v5584
        %v5621 = vpack.c.b16 %v5589, %v5587
        %v5622 = vpack.c.b16 %v5590, %v5588
        %v5623 = vpack.c.b16 %v5593, %v5591
        %v5624 = vpack.c.b16 %v5594, %v5592
        %v5625 = vpack.c.b16 %v5597, %v5595
        %v5626 = vpack.c.b16 %v5598, %v5596
        %v5627 = vpack.c.b16 %v5601, %v5599
        %v5628 = vpack.c.b16 %v5602, %v5600
        %v5629 = vpack.c.b16 %v5605, %v5603
        %v5630 = vpack.c.b16 %v5606, %v5604
        %v5656 = vsel %vm4831, %v5003, 0
        %v5659 = vsel %vm4831, %v5005, 0
        %v5662 = vsel %vm4831, %v5007, 0
        %v5665 = vsel %vm4831, %v5009, 0
        %5667 = vmatprep.subr.bf16.mxu0 %v5608
        %5668 = vmatpush1.bf16.msra.mxu0 %v5607
        %5669 = vmatprep.subr.bf16.mxu0 %v5610
        %5670 = vmatpush1.bf16.msra.mxu0 %v5609
        %5671 = vmatprep.subr.bf16.mxu0 %v5612
        %5672 = vmatpush1.bf16.msra.mxu0 %v5611
        %5673 = vmatprep.subr.bf16.mxu0 %v5614
        %5674 = vmatpush1.bf16.msra.mxu0 %v5613
        %5675 = vmatprep.subr.bf16.mxu0 %v5616
        %5676 = vmatpush1.bf16.msra.mxu0 %v5615
        %5677 = vmatprep.subr.bf16.mxu0 %v5618
        %5678 = vmatpush1.bf16.msra.mxu0 %v5617
        %5679 = vmatprep.subr.bf16.mxu0 %v5620
        %5680 = vmatpush1.bf16.msra.mxu0 %v5619
        %5681 = vmatprep.subr.bf16.mxu0 %v5622
        %5682 = vmatpush1.bf16.msra.mxu0 %v5621
        %5683 = vmatprep.subr.bf16.mxu0 %v5624
        %5684 = vmatpush1.bf16.msra.mxu0 %v5623
        %5685 = vmatprep.subr.bf16.mxu0 %v5626
        %5686 = vmatpush1.bf16.msra.mxu0 %v5625
        %5687 = vmatprep.subr.bf16.mxu0 %v5628
        %5688 = vmatpush1.bf16.msra.mxu0 %v5627
        %5689 = vmatprep.subr.bf16.mxu0 %v5630
        %5690 = vmatpush1.bf16.msra.mxu0 %v5629
        %5691 = vmatprep.subr.bf16.mxu0 0
        %5692 = vmatpush1.bf16.msra.mxu0 0
        %5693 = vmatprep.subr.bf16.mxu0 0
        %5694 = vmatpush1.bf16.msra.mxu0 0
        %5695 = vmatprep.subr.bf16.mxu0 0
        %5696 = vmatpush1.bf16.msra.mxu0 0
        %5697 = vmatprep.subr.bf16.mxu0 0
        %5698 = vmatpush1.bf16.msra.mxu0 0
        %5699 = vmatprep.mubr.bf16.mxu0 %v5656
        %5700 = vmatmul.mubr.bf16.gmra.mrb[0].mxu0 %v5002
        %v5701 = vpop.f32.mrb[0].mxu0
        %v5702 = vadd.f32 0.0, %v5701
        %v5703 = vpop.f32.mrb[0].mxu0
        %v5704 = vadd.f32 0.0, %v5703
        %v5705 = vpop.f32.mrb[0].mxu0
        %v5706 = vadd.f32 0.0, %v5705
        %v5707 = vpop.f32.mrb[0].mxu0
        %v5708 = vadd.f32 0.0, %v5707
        %5709 = vmatprep.mubr.bf16.mxu0 %v5659
        %5710 = vmatmul.mubr.bf16.gmra.mrb[0].mxu0 %v5004
        %v5711 = vpop.f32.mrb[0].mxu0
        %v5712 = vadd.f32 0.0, %v5711
        %v5713 = vpop.f32.mrb[0].mxu0
        %v5714 = vadd.f32 0.0, %v5713
        %v5715 = vpop.f32.mrb[0].mxu0
        %v5716 = vadd.f32 0.0, %v5715
        %v5717 = vpop.f32.mrb[0].mxu0
        %v5718 = vadd.f32 0.0, %v5717
        %5719 = vmatprep.mubr.bf16.mxu0 %v5662
        %5720 = vmatmul.mubr.bf16.gmra.mrb[0].mxu0 %v5006
        %v5721 = vpop.f32.mrb[0].mxu0
        %v5722 = vadd.f32 0.0, %v5721
        %v5723 = vpop.f32.mrb[0].mxu0
        %v5724 = vadd.f32 0.0, %v5723
        %v5725 = vpop.f32.mrb[0].mxu0
        %v5726 = vadd.f32 0.0, %v5725
        %v5727 = vpop.f32.mrb[0].mxu0
        %v5728 = vadd.f32 0.0, %v5727
        %5729 = vmatprep.mubr.bf16.mxu0 %v5665
        %5730 = vmatmul.mubr.bf16.gmra.mrb[0].mxu0 %v5008
        %v5731 = vpop.f32.mrb[0].mxu0
        %v5732 = vadd.f32 0.0, %v5731
        %v5733 = vpop.f32.mrb[0].mxu0
        %v5734 = vadd.f32 0.0, %v5733
        %v5735 = vpop.f32.mrb[0].mxu0
        %v5736 = vadd.f32 0.0, %v5735
        %v5737 = vpop.f32.mrb[0].mxu0
        %v5738 = vadd.f32 0.0, %v5737
        %5739 = vdwg.mxu0
        %v5740 = vadd.f32 %v5472, %v5702
        %v5741 = vadd.f32 %v5474, %v5704
        %v5742 = vadd.f32 %v5476, %v5706
        %v5743 = vadd.f32 %v5478, %v5708
        %v5744 = vadd.f32 %v5482, %v5712
        %v5745 = vadd.f32 %v5484, %v5714
        %v5746 = vadd.f32 %v5486, %v5716
        %v5747 = vadd.f32 %v5488, %v5718
        %v5748 = vadd.f32 %v5492, %v5722
        %v5749 = vadd.f32 %v5494, %v5724
        %v5750 = vadd.f32 %v5496, %v5726
        %v5751 = vadd.f32 %v5498, %v5728
        %v5752 = vadd.f32 %v5502, %v5732
        %v5753 = vadd.f32 %v5504, %v5734
        %v5754 = vadd.f32 %v5506, %v5736
        %v5755 = vadd.f32 %v5508, %v5738
        %v5756 = vld [vmem:[#allocation10] sm:$0x3]
        %v5758 = vlaneseq
        %v5759 = vshrl.u32 %v5758, 7
        %v5760 = vsub.s32 0, %v5759
        %v5761 = vrot.slane %v5756, %v5760
        %v5762 = vlaneseq
        %v5763 = vshrl.u32 %v5762, 7
        %v5764 = vsub.s32 1, %v5763
        %v5765 = vrot.slane %v5756, %v5764
        %v5768 = vmul.f32 %v5740, %v5761
        %v5769 = vmul.f32 %v5741, %v5765
        %v5770 = vmul.f32 %v5742, %v5761
        %v5771 = vmul.f32 %v5743, %v5765
        %v5772 = vmul.f32 %v5744, %v5761
        %v5773 = vmul.f32 %v5745, %v5765
        %v5774 = vmul.f32 %v5746, %v5761
        %v5775 = vmul.f32 %v5747, %v5765
        %v5776 = vmul.f32 %v5748, %v5761
        %v5777 = vmul.f32 %v5749, %v5765
        %v5778 = vmul.f32 %v5750, %v5761
        %v5779 = vmul.f32 %v5751, %v5765
        %v5780 = vmul.f32 %v5752, %v5761
        %v5781 = vmul.f32 %v5753, %v5765
        %v5782 = vmul.f32 %v5754, %v5761
        %v5783 = vmul.f32 %v5755, %v5765
        %v5784 = vld [vmem:[#allocation12] sm:$0x3]
        %v5786 = vlaneseq
        %v5787 = vshrl.u32 %v5786, 7
        %v5788 = vsub.s32 0, %v5787
        %v5789 = vrot.slane %v5784, %v5788
        %v5790 = vlaneseq
        %v5791 = vshrl.u32 %v5790, 7
        %v5792 = vsub.s32 1, %v5791
        %v5793 = vrot.slane %v5784, %v5792
        %v5796 = vadd.f32 %v5768, %v5789
        %v5797 = vadd.f32 %v5769, %v5793
        %v5798 = vadd.f32 %v5770, %v5789
        %v5799 = vadd.f32 %v5771, %v5793
        %v5800 = vadd.f32 %v5772, %v5789
        %v5801 = vadd.f32 %v5773, %v5793
        %v5802 = vadd.f32 %v5774, %v5789
        %v5803 = vadd.f32 %v5775, %v5793
        %v5804 = vadd.f32 %v5776, %v5789
        %v5805 = vadd.f32 %v5777, %v5793
        %v5806 = vadd.f32 %v5778, %v5789
        %v5807 = vadd.f32 %v5779, %v5793
        %v5808 = vadd.f32 %v5780, %v5789
        %v5809 = vadd.f32 %v5781, %v5793
        %v5810 = vadd.f32 %v5782, %v5789
        %v5811 = vadd.f32 %v5783, %v5793
        %v5812 = vmax.f32 %v5796, 0.0
        %v5813 = vmax.f32 %v5797, 0.0
        %v5814 = vmax.f32 %v5798, 0.0
        %v5815 = vmax.f32 %v5799, 0.0
        %v5816 = vmax.f32 %v5800, 0.0
        %v5817 = vmax.f32 %v5801, 0.0
        %v5818 = vmax.f32 %v5802, 0.0
        %v5819 = vmax.f32 %v5803, 0.0
        %v5820 = vmax.f32 %v5804, 0.0
        %v5821 = vmax.f32 %v5805, 0.0
        %v5822 = vmax.f32 %v5806, 0.0
        %v5823 = vmax.f32 %v5807, 0.0
        %v5824 = vmax.f32 %v5808, 0.0
        %v5825 = vmax.f32 %v5809, 0.0
        %v5826 = vmax.f32 %v5810, 0.0
        %v5827 = vmax.f32 %v5811, 0.0
        %vm5828 = vcmp.ge.s32.totalorder %v4671, 8
        %vm5829 = vcmp.ge.s32.totalorder %v4672, 8
        %vm5830 = vcmp.ge.s32.totalorder %v4673, 8
        %vm5831 = vcmp.ge.s32.totalorder %v4674, 8
        %vm5832 = vcmp.ge.s32.totalorder %v4675, 8
        %vm5833 = vcmp.ge.s32.totalorder %v4676, 8
        %vm5834 = vcmp.ge.s32.totalorder %v4677, 8
        %vm5835 = vcmp.ge.s32.totalorder %v4678, 8
        %v5836 = vsel %vm5828, 1, 0
        %v5837 = vsel %vm5829, 1, 0
        %v5838 = vsel %vm5830, 1, 0
        %v5839 = vsel %vm5831, 1, 0
        %v5840 = vsel %vm5832, 1, 0
        %v5841 = vsel %vm5833, 1, 0
        %v5842 = vsel %vm5834, 1, 0
        %v5843 = vsel %vm5835, 1, 0
        %vm5844 = vcmp.eq.s32.totalorder %v5836, 1
        %vm5845 = vcmp.eq.s32.totalorder %v5837, 1
        %vm5846 = vcmp.eq.s32.totalorder %v5838, 1
        %vm5847 = vcmp.eq.s32.totalorder %v5839, 1
        %vm5848 = vcmp.eq.s32.totalorder %v5840, 1
        %vm5849 = vcmp.eq.s32.totalorder %v5841, 1
        %vm5850 = vcmp.eq.s32.totalorder %v5842, 1
        %vm5851 = vcmp.eq.s32.totalorder %v5843, 1
        %v5852 = vsel %vm5844, %v5826, 0.0
        %v5853 = vsel %vm5844, %v5827, 0.0
        %v5854 = vsel %vm5845, %v5812, 0.0
        %v5855 = vsel %vm5845, %v5813, 0.0
        %v5856 = vsel %vm5846, %v5814, 0.0
        %v5857 = vsel %vm5846, %v5815, 0.0
        %v5858 = vsel %vm5847, %v5816, 0.0
        %v5859 = vsel %vm5847, %v5817, 0.0
        %v5860 = vsel %vm5848, %v5818, 0.0
        %v5861 = vsel %vm5848, %v5819, 0.0
        %v5862 = vsel %vm5849, %v5820, 0.0
        %v5863 = vsel %vm5849, %v5821, 0.0
        %v5864 = vsel %vm5850, %v5822, 0.0
        %v5865 = vsel %vm5850, %v5823, 0.0
        %v5866 = vsel %vm5851, %v5824, 0.0
        %v5867 = vsel %vm5851, %v5825, 0.0
        %v5868 = vpack.c.bf16 %v5854, %v5852
        %v5869 = vpack.c.bf16 %v5855, %v5853
        %v5870 = vpack.c.bf16 %v5858, %v5856
        %v5871 = vpack.c.bf16 %v5859, %v5857
        %v5872 = vpack.c.bf16 %v5862, %v5860
        %v5873 = vpack.c.bf16 %v5863, %v5861
        %v5874 = vpack.c.bf16 %v5866, %v5864
        %v5875 = vpack.c.bf16 %v5867, %v5865
        %vm5876 = vcmp.lt.s32.totalorder %v4671, 56
        %vm5877 = vcmp.lt.s32.totalorder %v4672, 56
        %vm5878 = vcmp.lt.s32.totalorder %v4673, 56
        %vm5879 = vcmp.lt.s32.totalorder %v4674, 56
        %vm5880 = vcmp.lt.s32.totalorder %v4675, 56
        %vm5881 = vcmp.lt.s32.totalorder %v4676, 56
        %vm5882 = vcmp.lt.s32.totalorder %v4677, 56
        %vm5883 = vcmp.lt.s32.totalorder %v4678, 56
        %v5884 = vsel %vm5876, 1, 0
        %v5885 = vsel %vm5877, 1, 0
        %v5886 = vsel %vm5878, 1, 0
        %v5887 = vsel %vm5879, 1, 0
        %v5888 = vsel %vm5880, 1, 0
        %v5889 = vsel %vm5881, 1, 0
        %v5890 = vsel %vm5882, 1, 0
        %v5891 = vsel %vm5883, 1, 0
        %vm5892 = vcmp.eq.s32.totalorder %v5884, 1
        %vm5893 = vcmp.eq.s32.totalorder %v5885, 1
        %vm5894 = vcmp.eq.s32.totalorder %v5886, 1
        %vm5895 = vcmp.eq.s32.totalorder %v5887, 1
        %vm5896 = vcmp.eq.s32.totalorder %v5888, 1
        %vm5897 = vcmp.eq.s32.totalorder %v5889, 1
        %vm5898 = vcmp.eq.s32.totalorder %v5890, 1
        %vm5899 = vcmp.eq.s32.totalorder %v5891, 1
        %v5900 = vsel %vm5892, %v5814, 0.0
        %v5901 = vsel %vm5892, %v5815, 0.0
        %v5902 = vsel %vm5893, %v5816, 0.0
        %v5903 = vsel %vm5893, %v5817, 0.0
        %v5904 = vsel %vm5894, %v5818, 0.0
        %v5905 = vsel %vm5894, %v5819, 0.0
        %v5906 = vsel %vm5895, %v5820, 0.0
        %v5907 = vsel %vm5895, %v5821, 0.0
        %v5908 = vsel %vm5896, %v5822, 0.0
        %v5909 = vsel %vm5896, %v5823, 0.0
        %v5910 = vsel %vm5897, %v5824, 0.0
        %v5911 = vsel %vm5897, %v5825, 0.0
        %v5912 = vsel %vm5898, %v5826, 0.0
        %v5913 = vsel %vm5898, %v5827, 0.0
        %v5914 = vsel %vm5899, %v5812, 0.0
        %v5915 = vsel %vm5899, %v5813, 0.0
        %v5916 = vpack.c.bf16 %v5902, %v5900
        %v5917 = vpack.c.bf16 %v5903, %v5901
        %v5918 = vpack.c.bf16 %v5906, %v5904
        %v5919 = vpack.c.bf16 %v5907, %v5905
        %v5920 = vpack.c.bf16 %v5910, %v5908
        %v5921 = vpack.c.bf16 %v5911, %v5909
        %v5922 = vpack.c.bf16 %v5914, %v5912
        %v5923 = vpack.c.bf16 %v5915, %v5913
        %v5924 = vld [vmem:[#allocation13] sm:$0xff]
        %v5925 = vld [vmem:[#allocation13 + $0x8] sm:$0xff]
        %v5926 = vld [vmem:[#allocation13 + $0x10] sm:$0xff]
        %v5927 = vld [vmem:[#allocation13 + $0x18] sm:$0xff]
        %v5928 = vld [vmem:[#allocation13 + $0x20] sm:$0xff]
        %v5929 = vld [vmem:[#allocation13 + $0x28] sm:$0xff]
        %v5930 = vld [vmem:[#allocation13 + $0x30] sm:$0xff]
        %v5931 = vld [vmem:[#allocation13 + $0x38] sm:$0xff]
        %v5932 = vld [vmem:[#allocation13 + $0x40] sm:$0xff]
        %v5933 = vld [vmem:[#allocation13 + $0x48] sm:$0xff]
        %v5934 = vld [vmem:[#allocation13 + $0x50] sm:$0xff]
        %v5935 = vld [vmem:[#allocation13 + $0x58] sm:$0xff]
        %v5936 = vld [vmem:[#allocation13 + $0x60] sm:$0xff]
        %v5937 = vld [vmem:[#allocation13 + $0x68] sm:$0xff]
        %v5938 = vld [vmem:[#allocation13 + $0x70] sm:$0xff]
        %v5939 = vld [vmem:[#allocation13 + $0x78] sm:$0xff]
        %v5940 = vld [vmem:[#allocation13 + $0x80] sm:$0xff]
        %v5941 = vld [vmem:[#allocation13 + $0x88] sm:$0xff]
        %v5942 = vld [vmem:[#allocation13 + $0x90] sm:$0xff]
        %v5943 = vld [vmem:[#allocation13 + $0x98] sm:$0xff]
        %v5944 = vld [vmem:[#allocation13 + $0xa0] sm:$0xff]
        %v5945 = vld [vmem:[#allocation13 + $0xa8] sm:$0xff]
        %v5946 = vld [vmem:[#allocation13 + $0xb0] sm:$0xff]
        %v5947 = vld [vmem:[#allocation13 + $0xb8] sm:$0xff]
        %v5948 = vld [vmem:[#allocation13 + $0xc0] sm:$0xff]
        %v5949 = vld [vmem:[#allocation13 + $0xc8] sm:$0xff]
        %v5950 = vld [vmem:[#allocation13 + $0xd0] sm:$0xff]
        %v5951 = vld [vmem:[#allocation13 + $0xd8] sm:$0xff]
        %v5952 = vpack.c.bf16 %v5814, %v5812
        %v5953 = vpack.c.bf16 %v5815, %v5813
        %v5954 = vpack.c.bf16 %v5818, %v5816
        %v5955 = vpack.c.bf16 %v5819, %v5817
        %v5956 = vpack.c.bf16 %v5822, %v5820
        %v5957 = vpack.c.bf16 %v5823, %v5821
        %v5958 = vpack.c.bf16 %v5826, %v5824
        %v5959 = vpack.c.bf16 %v5827, %v5825
        %s5960 = scalar_lea.vmem [#allocation13], 224
        %v5961 = vld [vmem:[%s5960] sm:$0xff]
        %v5962 = vld [vmem:[%s5960 + $0x8] sm:$0xff]
        %v5963 = vld [vmem:[%s5960 + $0x10] sm:$0xff]
        %v5964 = vld [vmem:[%s5960 + $0x18] sm:$0xff]
        %v5965 = vld [vmem:[%s5960 + $0x20] sm:$0xff]
        %v5966 = vld [vmem:[%s5960 + $0x28] sm:$0xff]
        %v5967 = vld [vmem:[%s5960 + $0x30] sm:$0xff]
        %v5968 = vld [vmem:[%s5960 + $0x38] sm:$0xff]
        %v5969 = vld [vmem:[%s5960 + $0x40] sm:$0xff]
        %v5970 = vld [vmem:[%s5960 + $0x48] sm:$0xff]
        %v5971 = vld [vmem:[%s5960 + $0x50] sm:$0xff]
        %v5972 = vld [vmem:[%s5960 + $0x58] sm:$0xff]
        %v5973 = vld [vmem:[%s5960 + $0x60] sm:$0xff]
        %v5974 = vld [vmem:[%s5960 + $0x68] sm:$0xff]
        %v5975 = vld [vmem:[%s5960 + $0x70] sm:$0xff]
        %v5976 = vld [vmem:[%s5960 + $0x78] sm:$0xff]
        %v5977 = vld [vmem:[%s5960 + $0x80] sm:$0xff]
        %v5978 = vld [vmem:[%s5960 + $0x88] sm:$0xff]
        %v5979 = vld [vmem:[%s5960 + $0x90] sm:$0xff]
        %v5980 = vld [vmem:[%s5960 + $0x98] sm:$0xff]
        %v5981 = vld [vmem:[%s5960 + $0xa0] sm:$0xff]
        %v5982 = vld [vmem:[%s5960 + $0xa8] sm:$0xff]
        %v5983 = vld [vmem:[%s5960 + $0xb0] sm:$0xff]
        %v5984 = vld [vmem:[%s5960 + $0xb8] sm:$0xff]
        %v5985 = vld [vmem:[%s5960 + $0xc0] sm:$0xff]
        %v5986 = vld [vmem:[%s5960 + $0xc8] sm:$0xff]
        %v5987 = vld [vmem:[%s5960 + $0xd0] sm:$0xff]
        %v5988 = vld [vmem:[%s5960 + $0xd8] sm:$0xff]
        %v6017 = vunpack.c.l.b16 %v5961
        %v6018 = vunpack.c.h.b16 %v5961
        %v6019 = vunpack.c.l.b16 %v5962
        %v6020 = vunpack.c.h.b16 %v5962
        %v6021 = vunpack.c.l.b16 %v5963
        %v6022 = vunpack.c.h.b16 %v5963
        %v6023 = vunpack.c.l.b16 %v5964
        %v6024 = vunpack.c.h.b16 %v5964
        %v6025 = vunpack.c.l.b16 %v5965
        %v6026 = vunpack.c.h.b16 %v5965
        %v6027 = vunpack.c.l.b16 %v5966
        %v6028 = vunpack.c.h.b16 %v5966
        %v6029 = vunpack.c.l.b16 %v5967
        %v6030 = vunpack.c.h.b16 %v5967
        %v6031 = vunpack.c.l.b16 %v5968
        %v6032 = vunpack.c.h.b16 %v5968
        %v6033 = vunpack.c.l.b16 %v5969
        %v6034 = vunpack.c.h.b16 %v5969
        %v6035 = vunpack.c.l.b16 %v5970
        %v6036 = vunpack.c.h.b16 %v5970
        %v6037 = vunpack.c.l.b16 %v5971
        %v6038 = vunpack.c.h.b16 %v5971
        %v6039 = vunpack.c.l.b16 %v5972
        %v6040 = vunpack.c.h.b16 %v5972
        %v6041 = vunpack.c.l.b16 %v5973
        %v6042 = vunpack.c.h.b16 %v5973
        %v6043 = vunpack.c.l.b16 %v5974
        %v6044 = vunpack.c.h.b16 %v5974
        %v6045 = vunpack.c.l.b16 %v5975
        %v6046 = vunpack.c.h.b16 %v5975
        %v6047 = vunpack.c.l.b16 %v5976
        %v6048 = vunpack.c.h.b16 %v5976
        %v6049 = vunpack.c.l.b16 %v5977
        %v6050 = vunpack.c.h.b16 %v5977
        %v6051 = vunpack.c.l.b16 %v5978
        %v6052 = vunpack.c.h.b16 %v5978
        %v6053 = vunpack.c.l.b16 %v5979
        %v6054 = vunpack.c.h.b16 %v5979
        %v6055 = vunpack.c.l.b16 %v5980
        %v6056 = vunpack.c.h.b16 %v5980
        %v6057 = vunpack.c.l.b16 %v5981
        %v6058 = vunpack.c.h.b16 %v5981
        %v6059 = vunpack.c.l.b16 %v5982
        %v6060 = vunpack.c.h.b16 %v5982
        %v6061 = vunpack.c.l.b16 %v5983
        %v6062 = vunpack.c.h.b16 %v5983
        %v6063 = vunpack.c.l.b16 %v5984
        %v6064 = vunpack.c.h.b16 %v5984
        %v6065 = vunpack.c.l.b16 %v5985
        %v6066 = vunpack.c.h.b16 %v5985
        %v6067 = vunpack.c.l.b16 %v5986
        %v6068 = vunpack.c.h.b16 %v5986
        %v6069 = vunpack.c.l.b16 %v5987
        %v6070 = vunpack.c.h.b16 %v5987
        %v6071 = vunpack.c.l.b16 %v5988
        %v6072 = vunpack.c.h.b16 %v5988
        %v6073 = vpack.c.b16 %v6019, %v6017
        %v6074 = vpack.c.b16 %v6020, %v6018
        %v6075 = vpack.c.b16 %v6023, %v6021
        %v6076 = vpack.c.b16 %v6024, %v6022
        %v6077 = vpack.c.b16 %v6027, %v6025
        %v6078 = vpack.c.b16 %v6028, %v6026
        %v6079 = vpack.c.b16 %v6031, %v6029
        %v6080 = vpack.c.b16 %v6032, %v6030
        %v6081 = vpack.c.b16 %v6035, %v6033
        %v6082 = vpack.c.b16 %v6036, %v6034
        %v6083 = vpack.c.b16 %v6039, %v6037
        %v6084 = vpack.c.b16 %v6040, %v6038
        %v6085 = vpack.c.b16 %v6043, %v6041
        %v6086 = vpack.c.b16 %v6044, %v6042
        %v6087 = vpack.c.b16 %v6047, %v6045
        %v6088 = vpack.c.b16 %v6048, %v6046
        %v6089 = vpack.c.b16 %v6051, %v6049
        %v6090 = vpack.c.b16 %v6052, %v6050
        %v6091 = vpack.c.b16 %v6055, %v6053
        %v6092 = vpack.c.b16 %v6056, %v6054
        %v6093 = vpack.c.b16 %v6059, %v6057
        %v6094 = vpack.c.b16 %v6060, %v6058
        %v6095 = vpack.c.b16 %v6063, %v6061
        %v6096 = vpack.c.b16 %v6064, %v6062
        %v6097 = vpack.c.b16 %v6067, %v6065
        %v6098 = vpack.c.b16 %v6068, %v6066
        %v6099 = vpack.c.b16 %v6071, %v6069
        %v6100 = vpack.c.b16 %v6072, %v6070
        %vm6129 = vcmask 785408
        %v6131 = vsel %vm6129, %v5953, 0
        %v6134 = vsel %vm6129, %v5955, 0
        %v6137 = vsel %vm6129, %v5957, 0
        %v6140 = vsel %vm6129, %v5959, 0
        %6142 = vmatprep.subr.bf16.mxu0 %v6074
        %6143 = vmatpush1.bf16.msra.mxu0 %v6073
        %6144 = vmatprep.subr.bf16.mxu0 %v6076
        %6145 = vmatpush1.bf16.msra.mxu0 %v6075
        %6146 = vmatprep.subr.bf16.mxu0 %v6078
        %6147 = vmatpush1.bf16.msra.mxu0 %v6077
        %6148 = vmatprep.subr.bf16.mxu0 %v6080
        %6149 = vmatpush1.bf16.msra.mxu0 %v6079
        %6150 = vmatprep.subr.bf16.mxu0 %v6082
        %6151 = vmatpush1.bf16.msra.mxu0 %v6081
        %6152 = vmatprep.subr.bf16.mxu0 %v6084
        %6153 = vmatpush1.bf16.msra.mxu0 %v6083
        %6154 = vmatprep.subr.bf16.mxu0 %v6086
        %6155 = vmatpush1.bf16.msra.mxu0 %v6085
        %6156 = vmatprep.subr.bf16.mxu0 %v6088
        %6157 = vmatpush1.bf16.msra.mxu0 %v6087
        %6158 = vmatprep.subr.bf16.mxu0 %v6090
        %6159 = vmatpush1.bf16.msra.mxu0 %v6089
        %6160 = vmatprep.subr.bf16.mxu0 %v6092
        %6161 = vmatpush1.bf16.msra.mxu0 %v6091
        %6162 = vmatprep.subr.bf16.mxu0 %v6094
        %6163 = vmatpush1.bf16.msra.mxu0 %v6093
        %6164 = vmatprep.subr.bf16.mxu0 %v6096
        %6165 = vmatpush1.bf16.msra.mxu0 %v6095
        %6166 = vmatprep.subr.bf16.mxu0 %v6098
        %6167 = vmatpush1.bf16.msra.mxu0 %v6097
        %6168 = vmatprep.subr.bf16.mxu0 %v6100
        %6169 = vmatpush1.bf16.msra.mxu0 %v6099
        %6170 = vmatprep.subr.bf16.mxu0 0
        %6171 = vmatpush1.bf16.msra.mxu0 0
        %6172 = vmatprep.subr.bf16.mxu0 0
        %6173 = vmatpush1.bf16.msra.mxu0 0
        %6174 = vmatprep.mubr.bf16.mxu0 %v6131
        %6175 = vmatmul.mubr.bf16.gmra.mrb[0].mxu0 %v5952
        %v6176 = vpop.f32.mrb[0].mxu0
        %v6177 = vadd.f32 0.0, %v6176
        %v6178 = vpop.f32.mrb[0].mxu0
        %v6179 = vadd.f32 0.0, %v6178
        %v6180 = vpop.f32.mrb[0].mxu0
        %v6181 = vadd.f32 0.0, %v6180
        %v6182 = vpop.f32.mrb[0].mxu0
        %v6183 = vadd.f32 0.0, %v6182
        %6184 = vmatprep.mubr.bf16.mxu0 %v6134
        %6185 = vmatmul.mubr.bf16.gmra.mrb[0].mxu0 %v5954
        %v6186 = vpop.f32.mrb[0].mxu0
        %v6187 = vadd.f32 0.0, %v6186
        %v6188 = vpop.f32.mrb[0].mxu0
        %v6189 = vadd.f32 0.0, %v6188
        %v6190 = vpop.f32.mrb[0].mxu0
        %v6191 = vadd.f32 0.0, %v6190
        %v6192 = vpop.f32.mrb[0].mxu0
        %v6193 = vadd.f32 0.0, %v6192
        %6194 = vmatprep.mubr.bf16.mxu0 %v6137
        %6195 = vmatmul.mubr.bf16.gmra.mrb[0].mxu0 %v5956
        %v6196 = vpop.f32.mrb[0].mxu0
        %v6197 = vadd.f32 0.0, %v6196
        %v6198 = vpop.f32.mrb[0].mxu0
        %v6199 = vadd.f32 0.0, %v6198
        %v6200 = vpop.f32.mrb[0].mxu0
        %v6201 = vadd.f32 0.0, %v6200
        %v6202 = vpop.f32.mrb[0].mxu0
        %v6203 = vadd.f32 0.0, %v6202
        %6204 = vmatprep.mubr.bf16.mxu0 %v6140
        %6205 = vmatmul.mubr.bf16.gmra.mrb[0].mxu0 %v5958
        %v6206 = vpop.f32.mrb[0].mxu0
        %v6207 = vadd.f32 0.0, %v6206
        %v6208 = vpop.f32.mrb[0].mxu0
        %v6209 = vadd.f32 0.0, %v6208
        %v6210 = vpop.f32.mrb[0].mxu0
        %v6211 = vadd.f32 0.0, %v6210
        %v6212 = vpop.f32.mrb[0].mxu0
        %v6213 = vadd.f32 0.0, %v6212
        %6214 = vdwg.mxu0
        %v6243 = vunpack.c.l.b16 %v5924
        %v6244 = vunpack.c.h.b16 %v5924
        %v6245 = vunpack.c.l.b16 %v5925
        %v6246 = vunpack.c.h.b16 %v5925
        %v6247 = vunpack.c.l.b16 %v5926
        %v6248 = vunpack.c.h.b16 %v5926
        %v6249 = vunpack.c.l.b16 %v5927
        %v6250 = vunpack.c.h.b16 %v5927
        %v6251 = vunpack.c.l.b16 %v5928
        %v6252 = vunpack.c.h.b16 %v5928
        %v6253 = vunpack.c.l.b16 %v5929
        %v6254 = vunpack.c.h.b16 %v5929
        %v6255 = vunpack.c.l.b16 %v5930
        %v6256 = vunpack.c.h.b16 %v5930
        %v6257 = vunpack.c.l.b16 %v5931
        %v6258 = vunpack.c.h.b16 %v5931
        %v6259 = vunpack.c.l.b16 %v5932
        %v6260 = vunpack.c.h.b16 %v5932
        %v6261 = vunpack.c.l.b16 %v5933
        %v6262 = vunpack.c.h.b16 %v5933
        %v6263 = vunpack.c.l.b16 %v5934
        %v6264 = vunpack.c.h.b16 %v5934
        %v6265 = vunpack.c.l.b16 %v5935
        %v6266 = vunpack.c.h.b16 %v5935
        %v6267 = vunpack.c.l.b16 %v5936
        %v6268 = vunpack.c.h.b16 %v5936
        %v6269 = vunpack.c.l.b16 %v5937
        %v6270 = vunpack.c.h.b16 %v5937
        %v6271 = vunpack.c.l.b16 %v5938
        %v6272 = vunpack.c.h.b16 %v5938
        %v6273 = vunpack.c.l.b16 %v5939
        %v6274 = vunpack.c.h.b16 %v5939
        %v6275 = vunpack.c.l.b16 %v5940
        %v6276 = vunpack.c.h.b16 %v5940
        %v6277 = vunpack.c.l.b16 %v5941
        %v6278 = vunpack.c.h.b16 %v5941
        %v6279 = vunpack.c.l.b16 %v5942
        %v6280 = vunpack.c.h.b16 %v5942
        %v6281 = vunpack.c.l.b16 %v5943
        %v6282 = vunpack.c.h.b16 %v5943
        %v6283 = vunpack.c.l.b16 %v5944
        %v6284 = vunpack.c.h.b16 %v5944
        %v6285 = vunpack.c.l.b16 %v5945
        %v6286 = vunpack.c.h.b16 %v5945
        %v6287 = vunpack.c.l.b16 %v5946
        %v6288 = vunpack.c.h.b16 %v5946
        %v6289 = vunpack.c.l.b16 %v5947
        %v6290 = vunpack.c.h.b16 %v5947
        %v6291 = vunpack.c.l.b16 %v5948
        %v6292 = vunpack.c.h.b16 %v5948
        %v6293 = vunpack.c.l.b16 %v5949
        %v6294 = vunpack.c.h.b16 %v5949
        %v6295 = vunpack.c.l.b16 %v5950
        %v6296 = vunpack.c.h.b16 %v5950
        %v6297 = vunpack.c.l.b16 %v5951
        %v6298 = vunpack.c.h.b16 %v5951
        %v6299 = vpack.c.b16 %v6245, %v6243
        %v6300 = vpack.c.b16 %v6246, %v6244
        %v6301 = vpack.c.b16 %v6249, %v6247
        %v6302 = vpack.c.b16 %v6250, %v6248
        %v6303 = vpack.c.b16 %v6253, %v6251
        %v6304 = vpack.c.b16 %v6254, %v6252
        %v6305 = vpack.c.b16 %v6257, %v6255
        %v6306 = vpack.c.b16 %v6258, %v6256
        %v6307 = vpack.c.b16 %v6261, %v6259
        %v6308 = vpack.c.b16 %v6262, %v6260
        %v6309 = vpack.c.b16 %v6265, %v6263
        %v6310 = vpack.c.b16 %v6266, %v6264
        %v6311 = vpack.c.b16 %v6269, %v6267
        %v6312 = vpack.c.b16 %v6270, %v6268
        %v6313 = vpack.c.b16 %v6273, %v6271
        %v6314 = vpack.c.b16 %v6274, %v6272
        %v6315 = vpack.c.b16 %v6277, %v6275
        %v6316 = vpack.c.b16 %v6278, %v6276
        %v6317 = vpack.c.b16 %v6281, %v6279
        %v6318 = vpack.c.b16 %v6282, %v6280
        %v6319 = vpack.c.b16 %v6285, %v6283
        %v6320 = vpack.c.b16 %v6286, %v6284
        %v6321 = vpack.c.b16 %v6289, %v6287
        %v6322 = vpack.c.b16 %v6290, %v6288
        %v6323 = vpack.c.b16 %v6293, %v6291
        %v6324 = vpack.c.b16 %v6294, %v6292
        %v6325 = vpack.c.b16 %v6297, %v6295
        %v6326 = vpack.c.b16 %v6298, %v6296
        %v6356 = vsel %vm6129, %v5869, 0
        %v6359 = vsel %vm6129, %v5871, 0
        %v6362 = vsel %vm6129, %v5873, 0
        %v6365 = vsel %vm6129, %v5875, 0
        %6367 = vmatprep.subr.bf16.mxu0 %v6300
        %6368 = vmatpush1.bf16.msra.mxu0 %v6299
        %6369 = vmatprep.subr.bf16.mxu0 %v6302
        %6370 = vmatpush1.bf16.msra.mxu0 %v6301
        %6371 = vmatprep.subr.bf16.mxu0 %v6304
        %6372 = vmatpush1.bf16.msra.mxu0 %v6303
        %6373 = vmatprep.subr.bf16.mxu0 %v6306
        %6374 = vmatpush1.bf16.msra.mxu0 %v6305
        %6375 = vmatprep.subr.bf16.mxu0 %v6308
        %6376 = vmatpush1.bf16.msra.mxu0 %v6307
        %6377 = vmatprep.subr.bf16.mxu0 %v6310
        %6378 = vmatpush1.bf16.msra.mxu0 %v6309
        %6379 = vmatprep.subr.bf16.mxu0 %v6312
        %6380 = vmatpush1.bf16.msra.mxu0 %v6311
        %6381 = vmatprep.subr.bf16.mxu0 %v6314
        %6382 = vmatpush1.bf16.msra.mxu0 %v6313
        %6383 = vmatprep.subr.bf16.mxu0 %v6316
        %6384 = vmatpush1.bf16.msra.mxu0 %v6315
        %6385 = vmatprep.subr.bf16.mxu0 %v6318
        %6386 = vmatpush1.bf16.msra.mxu0 %v6317
        %6387 = vmatprep.subr.bf16.mxu0 %v6320
        %6388 = vmatpush1.bf16.msra.mxu0 %v6319
        %6389 = vmatprep.subr.bf16.mxu0 %v6322
        %6390 = vmatpush1.bf16.msra.mxu0 %v6321
        %6391 = vmatprep.subr.bf16.mxu0 %v6324
        %6392 = vmatpush1.bf16.msra.mxu0 %v6323
        %6393 = vmatprep.subr.bf16.mxu0 %v6326
        %6394 = vmatpush1.bf16.msra.mxu0 %v6325
        %6395 = vmatprep.subr.bf16.mxu0 0
        %6396 = vmatpush1.bf16.msra.mxu0 0
        %6397 = vmatprep.subr.bf16.mxu0 0
        %6398 = vmatpush1.bf16.msra.mxu0 0
        %6399 = vmatprep.mubr.bf16.mxu0 %v6356
        %6400 = vmatmul.mubr.bf16.gmra.mrb[0].mxu0 %v5868
        %v6401 = vpop.f32.mrb[0].mxu0
        %v6402 = vadd.f32 %v6177, %v6401
        %v6403 = vpop.f32.mrb[0].mxu0
        %v6404 = vadd.f32 %v6179, %v6403
        %v6405 = vpop.f32.mrb[0].mxu0
        %v6406 = vadd.f32 %v6181, %v6405
        %v6407 = vpop.f32.mrb[0].mxu0
        %v6408 = vadd.f32 %v6183, %v6407
        %6409 = vmatprep.mubr.bf16.mxu0 %v6359
        %6410 = vmatmul.mubr.bf16.gmra.mrb[0].mxu0 %v5870
        %v6411 = vpop.f32.mrb[0].mxu0
        %v6412 = vadd.f32 %v6187, %v6411
        %v6413 = vpop.f32.mrb[0].mxu0
        %v6414 = vadd.f32 %v6189, %v6413
        %v6415 = vpop.f32.mrb[0].mxu0
        %v6416 = vadd.f32 %v6191, %v6415
        %v6417 = vpop.f32.mrb[0].mxu0
        %v6418 = vadd.f32 %v6193, %v6417
        %6419 = vmatprep.mubr.bf16.mxu0 %v6362
        %6420 = vmatmul.mubr.bf16.gmra.mrb[0].mxu0 %v5872
        %v6421 = vpop.f32.mrb[0].mxu0
        %v6422 = vadd.f32 %v6197, %v6421
        %v6423 = vpop.f32.mrb[0].mxu0
        %v6424 = vadd.f32 %v6199, %v6423
        %v6425 = vpop.f32.mrb[0].mxu0
        %v6426 = vadd.f32 %v6201, %v6425
        %v6427 = vpop.f32.mrb[0].mxu0
        %v6428 = vadd.f32 %v6203, %v6427
        %6429 = vmatprep.mubr.bf16.mxu0 %v6365
        %6430 = vmatmul.mubr.bf16.gmra.mrb[0].mxu0 %v5874
        %v6431 = vpop.f32.mrb[0].mxu0
        %v6432 = vadd.f32 %v6207, %v6431
        %v6433 = vpop.f32.mrb[0].mxu0
        %v6434 = vadd.f32 %v6209, %v6433
        %v6435 = vpop.f32.mrb[0].mxu0
        %v6436 = vadd.f32 %v6211, %v6435
        %v6437 = vpop.f32.mrb[0].mxu0
        %v6438 = vadd.f32 %v6213, %v6437
        %6439 = vdwg.mxu0
        %s6440 = scalar_lea.vmem [#allocation13], 448
        %v6441 = vld [vmem:[%s6440] sm:$0xff]
        %v6442 = vld [vmem:[%s6440 + $0x8] sm:$0xff]
        %v6443 = vld [vmem:[%s6440 + $0x10] sm:$0xff]
        %v6444 = vld [vmem:[%s6440 + $0x18] sm:$0xff]
        %v6445 = vld [vmem:[%s6440 + $0x20] sm:$0xff]
        %v6446 = vld [vmem:[%s6440 + $0x28] sm:$0xff]
        %v6447 = vld [vmem:[%s6440 + $0x30] sm:$0xff]
        %v6448 = vld [vmem:[%s6440 + $0x38] sm:$0xff]
        %v6449 = vld [vmem:[%s6440 + $0x40] sm:$0xff]
        %v6450 = vld [vmem:[%s6440 + $0x48] sm:$0xff]
        %v6451 = vld [vmem:[%s6440 + $0x50] sm:$0xff]
        %v6452 = vld [vmem:[%s6440 + $0x58] sm:$0xff]
        %v6453 = vld [vmem:[%s6440 + $0x60] sm:$0xff]
        %v6454 = vld [vmem:[%s6440 + $0x68] sm:$0xff]
        %v6455 = vld [vmem:[%s6440 + $0x70] sm:$0xff]
        %v6456 = vld [vmem:[%s6440 + $0x78] sm:$0xff]
        %v6457 = vld [vmem:[%s6440 + $0x80] sm:$0xff]
        %v6458 = vld [vmem:[%s6440 + $0x88] sm:$0xff]
        %v6459 = vld [vmem:[%s6440 + $0x90] sm:$0xff]
        %v6460 = vld [vmem:[%s6440 + $0x98] sm:$0xff]
        %v6461 = vld [vmem:[%s6440 + $0xa0] sm:$0xff]
        %v6462 = vld [vmem:[%s6440 + $0xa8] sm:$0xff]
        %v6463 = vld [vmem:[%s6440 + $0xb0] sm:$0xff]
        %v6464 = vld [vmem:[%s6440 + $0xb8] sm:$0xff]
        %v6465 = vld [vmem:[%s6440 + $0xc0] sm:$0xff]
        %v6466 = vld [vmem:[%s6440 + $0xc8] sm:$0xff]
        %v6467 = vld [vmem:[%s6440 + $0xd0] sm:$0xff]
        %v6468 = vld [vmem:[%s6440 + $0xd8] sm:$0xff]
        %v6497 = vunpack.c.l.b16 %v6441
        %v6498 = vunpack.c.h.b16 %v6441
        %v6499 = vunpack.c.l.b16 %v6442
        %v6500 = vunpack.c.h.b16 %v6442
        %v6501 = vunpack.c.l.b16 %v6443
        %v6502 = vunpack.c.h.b16 %v6443
        %v6503 = vunpack.c.l.b16 %v6444
        %v6504 = vunpack.c.h.b16 %v6444
        %v6505 = vunpack.c.l.b16 %v6445
        %v6506 = vunpack.c.h.b16 %v6445
        %v6507 = vunpack.c.l.b16 %v6446
        %v6508 = vunpack.c.h.b16 %v6446
        %v6509 = vunpack.c.l.b16 %v6447
        %v6510 = vunpack.c.h.b16 %v6447
        %v6511 = vunpack.c.l.b16 %v6448
        %v6512 = vunpack.c.h.b16 %v6448
        %v6513 = vunpack.c.l.b16 %v6449
        %v6514 = vunpack.c.h.b16 %v6449
        %v6515 = vunpack.c.l.b16 %v6450
        %v6516 = vunpack.c.h.b16 %v6450
        %v6517 = vunpack.c.l.b16 %v6451
        %v6518 = vunpack.c.h.b16 %v6451
        %v6519 = vunpack.c.l.b16 %v6452
        %v6520 = vunpack.c.h.b16 %v6452
        %v6521 = vunpack.c.l.b16 %v6453
        %v6522 = vunpack.c.h.b16 %v6453
        %v6523 = vunpack.c.l.b16 %v6454
        %v6524 = vunpack.c.h.b16 %v6454
        %v6525 = vunpack.c.l.b16 %v6455
        %v6526 = vunpack.c.h.b16 %v6455
        %v6527 = vunpack.c.l.b16 %v6456
        %v6528 = vunpack.c.h.b16 %v6456
        %v6529 = vunpack.c.l.b16 %v6457
        %v6530 = vunpack.c.h.b16 %v6457
        %v6531 = vunpack.c.l.b16 %v6458
        %v6532 = vunpack.c.h.b16 %v6458
        %v6533 = vunpack.c.l.b16 %v6459
        %v6534 = vunpack.c.h.b16 %v6459
        %v6535 = vunpack.c.l.b16 %v6460
        %v6536 = vunpack.c.h.b16 %v6460
        %v6537 = vunpack.c.l.b16 %v6461
        %v6538 = vunpack.c.h.b16 %v6461
        %v6539 = vunpack.c.l.b16 %v6462
        %v6540 = vunpack.c.h.b16 %v6462
        %v6541 = vunpack.c.l.b16 %v6463
        %v6542 = vunpack.c.h.b16 %v6463
        %v6543 = vunpack.c.l.b16 %v6464
        %v6544 = vunpack.c.h.b16 %v6464
        %v6545 = vunpack.c.l.b16 %v6465
        %v6546 = vunpack.c.h.b16 %v6465
        %v6547 = vunpack.c.l.b16 %v6466
        %v6548 = vunpack.c.h.b16 %v6466
        %v6549 = vunpack.c.l.b16 %v6467
        %v6550 = vunpack.c.h.b16 %v6467
        %v6551 = vunpack.c.l.b16 %v6468
        %v6552 = vunpack.c.h.b16 %v6468
        %v6553 = vpack.c.b16 %v6499, %v6497
        %v6554 = vpack.c.b16 %v6500, %v6498
        %v6555 = vpack.c.b16 %v6503, %v6501
        %v6556 = vpack.c.b16 %v6504, %v6502
        %v6557 = vpack.c.b16 %v6507, %v6505
        %v6558 = vpack.c.b16 %v6508, %v6506
        %v6559 = vpack.c.b16 %v6511, %v6509
        %v6560 = vpack.c.b16 %v6512, %v6510
        %v6561 = vpack.c.b16 %v6515, %v6513
        %v6562 = vpack.c.b16 %v6516, %v6514
        %v6563 = vpack.c.b16 %v6519, %v6517
        %v6564 = vpack.c.b16 %v6520, %v6518
        %v6565 = vpack.c.b16 %v6523, %v6521
        %v6566 = vpack.c.b16 %v6524, %v6522
        %v6567 = vpack.c.b16 %v6527, %v6525
        %v6568 = vpack.c.b16 %v6528, %v6526
        %v6569 = vpack.c.b16 %v6531, %v6529
        %v6570 = vpack.c.b16 %v6532, %v6530
        %v6571 = vpack.c.b16 %v6535, %v6533
        %v6572 = vpack.c.b16 %v6536, %v6534
        %v6573 = vpack.c.b16 %v6539, %v6537
        %v6574 = vpack.c.b16 %v6540, %v6538
        %v6575 = vpack.c.b16 %v6543, %v6541
        %v6576 = vpack.c.b16 %v6544, %v6542
        %v6577 = vpack.c.b16 %v6547, %v6545
        %v6578 = vpack.c.b16 %v6548, %v6546
        %v6579 = vpack.c.b16 %v6551, %v6549
        %v6580 = vpack.c.b16 %v6552, %v6550
        %v6610 = vsel %vm6129, %v5917, 0
        %v6613 = vsel %vm6129, %v5919, 0
        %v6616 = vsel %vm6129, %v5921, 0
        %v6619 = vsel %vm6129, %v5923, 0
        %6621 = vmatprep.subr.bf16.mxu0 %v6554
        %6622 = vmatpush1.bf16.msra.mxu0 %v6553
        %6623 = vmatprep.subr.bf16.mxu0 %v6556
        %6624 = vmatpush1.bf16.msra.mxu0 %v6555
        %6625 = vmatprep.subr.bf16.mxu0 %v6558
        %6626 = vmatpush1.bf16.msra.mxu0 %v6557
        %6627 = vmatprep.subr.bf16.mxu0 %v6560
        %6628 = vmatpush1.bf16.msra.mxu0 %v6559
        %6629 = vmatprep.subr.bf16.mxu0 %v6562
        %6630 = vmatpush1.bf16.msra.mxu0 %v6561
        %6631 = vmatprep.subr.bf16.mxu0 %v6564
        %6632 = vmatpush1.bf16.msra.mxu0 %v6563
        %6633 = vmatprep.subr.bf16.mxu0 %v6566
        %6634 = vmatpush1.bf16.msra.mxu0 %v6565
        %6635 = vmatprep.subr.bf16.mxu0 %v6568
        %6636 = vmatpush1.bf16.msra.mxu0 %v6567
        %6637 = vmatprep.subr.bf16.mxu0 %v6570
        %6638 = vmatpush1.bf16.msra.mxu0 %v6569
        %6639 = vmatprep.subr.bf16.mxu0 %v6572
        %6640 = vmatpush1.bf16.msra.mxu0 %v6571
        %6641 = vmatprep.subr.bf16.mxu0 %v6574
        %6642 = vmatpush1.bf16.msra.mxu0 %v6573
        %6643 = vmatprep.subr.bf16.mxu0 %v6576
        %6644 = vmatpush1.bf16.msra.mxu0 %v6575
        %6645 = vmatprep.subr.bf16.mxu0 %v6578
        %6646 = vmatpush1.bf16.msra.mxu0 %v6577
        %6647 = vmatprep.subr.bf16.mxu0 %v6580
        %6648 = vmatpush1.bf16.msra.mxu0 %v6579
        %6649 = vmatprep.subr.bf16.mxu0 0
        %6650 = vmatpush1.bf16.msra.mxu0 0
        %6651 = vmatprep.subr.bf16.mxu0 0
        %6652 = vmatpush1.bf16.msra.mxu0 0
        %6653 = vmatprep.mubr.bf16.mxu0 %v6610
        %6654 = vmatmul.mubr.bf16.gmra.mrb[0].mxu0 %v5916
        %v6655 = vpop.f32.mrb[0].mxu0
        %v6656 = vadd.f32 0.0, %v6655
        %v6657 = vpop.f32.mrb[0].mxu0
        %v6658 = vadd.f32 0.0, %v6657
        %v6659 = vpop.f32.mrb[0].mxu0
        %v6660 = vadd.f32 0.0, %v6659
        %v6661 = vpop.f32.mrb[0].mxu0
        %v6662 = vadd.f32 0.0, %v6661
        %6663 = vmatprep.mubr.bf16.mxu0 %v6613
        %6664 = vmatmul.mubr.bf16.gmra.mrb[0].mxu0 %v5918
        %v6665 = vpop.f32.mrb[0].mxu0
        %v6666 = vadd.f32 0.0, %v6665
        %v6667 = vpop.f32.mrb[0].mxu0
        %v6668 = vadd.f32 0.0, %v6667
        %v6669 = vpop.f32.mrb[0].mxu0
        %v6670 = vadd.f32 0.0, %v6669
        %v6671 = vpop.f32.mrb[0].mxu0
        %v6672 = vadd.f32 0.0, %v6671
        %6673 = vmatprep.mubr.bf16.mxu0 %v6616
        %6674 = vmatmul.mubr.bf16.gmra.mrb[0].mxu0 %v5920
        %v6675 = vpop.f32.mrb[0].mxu0
        %v6676 = vadd.f32 0.0, %v6675
        %v6677 = vpop.f32.mrb[0].mxu0
        %v6678 = vadd.f32 0.0, %v6677
        %v6679 = vpop.f32.mrb[0].mxu0
        %v6680 = vadd.f32 0.0, %v6679
        %v6681 = vpop.f32.mrb[0].mxu0
        %v6682 = vadd.f32 0.0, %v6681
        %6683 = vmatprep.mubr.bf16.mxu0 %v6619
        %6684 = vmatmul.mubr.bf16.gmra.mrb[0].mxu0 %v5922
        %v6685 = vpop.f32.mrb[0].mxu0
        %v6686 = vadd.f32 0.0, %v6685
        %v6687 = vpop.f32.mrb[0].mxu0
        %v6688 = vadd.f32 0.0, %v6687
        %v6689 = vpop.f32.mrb[0].mxu0
        %v6690 = vadd.f32 0.0, %v6689
        %v6691 = vpop.f32.mrb[0].mxu0
        %v6692 = vadd.f32 0.0, %v6691
        %6693 = vdwg.mxu0
        %v6694 = vadd.f32 %v6402, %v6656
        %v6695 = vadd.f32 %v6404, %v6658
        %v6696 = vadd.f32 %v6406, %v6660
        %v6697 = vadd.f32 %v6408, %v6662
        %v6698 = vadd.f32 %v6412, %v6666
        %v6699 = vadd.f32 %v6414, %v6668
        %v6700 = vadd.f32 %v6416, %v6670
        %v6701 = vadd.f32 %v6418, %v6672
        %v6702 = vadd.f32 %v6422, %v6676
        %v6703 = vadd.f32 %v6424, %v6678
        %v6704 = vadd.f32 %v6426, %v6680
        %v6705 = vadd.f32 %v6428, %v6682
        %v6706 = vadd.f32 %v6432, %v6686
        %v6707 = vadd.f32 %v6434, %v6688
        %v6708 = vadd.f32 %v6436, %v6690
        %v6709 = vadd.f32 %v6438, %v6692
        %v6710 = vld [vmem:[#allocation15] sm:$0x3]
        %v6712 = vlaneseq
        %v6713 = vshrl.u32 %v6712, 7
        %v6714 = vsub.s32 0, %v6713
        %v6715 = vrot.slane %v6710, %v6714
        %v6716 = vlaneseq
        %v6717 = vshrl.u32 %v6716, 7
        %v6718 = vsub.s32 1, %v6717
        %v6719 = vrot.slane %v6710, %v6718
        %v6722 = vmul.f32 %v6694, %v6715
        %v6723 = vmul.f32 %v6695, %v6719
        %v6724 = vmul.f32 %v6696, %v6715
        %v6725 = vmul.f32 %v6697, %v6719
        %v6726 = vmul.f32 %v6698, %v6715
        %v6727 = vmul.f32 %v6699, %v6719
        %v6728 = vmul.f32 %v6700, %v6715
        %v6729 = vmul.f32 %v6701, %v6719
        %v6730 = vmul.f32 %v6702, %v6715
        %v6731 = vmul.f32 %v6703, %v6719
        %v6732 = vmul.f32 %v6704, %v6715
        %v6733 = vmul.f32 %v6705, %v6719
        %v6734 = vmul.f32 %v6706, %v6715
        %v6735 = vmul.f32 %v6707, %v6719
        %v6736 = vmul.f32 %v6708, %v6715
        %v6737 = vmul.f32 %v6709, %v6719
        %v6738 = vld [vmem:[#allocation16] sm:$0x3]
        %v6740 = vlaneseq
        %v6741 = vshrl.u32 %v6740, 7
        %v6742 = vsub.s32 0, %v6741
        %v6743 = vrot.slane %v6738, %v6742
        %v6744 = vlaneseq
        %v6745 = vshrl.u32 %v6744, 7
        %v6746 = vsub.s32 1, %v6745
        %v6747 = vrot.slane %v6738, %v6746
        %v6750 = vadd.f32 %v6722, %v6743
        %v6751 = vadd.f32 %v6723, %v6747
        %v6752 = vadd.f32 %v6724, %v6743
        %v6753 = vadd.f32 %v6725, %v6747
        %v6754 = vadd.f32 %v6726, %v6743
        %v6755 = vadd.f32 %v6727, %v6747
        %v6756 = vadd.f32 %v6728, %v6743
        %v6757 = vadd.f32 %v6729, %v6747
        %v6758 = vadd.f32 %v6730, %v6743
        %v6759 = vadd.f32 %v6731, %v6747
        %v6760 = vadd.f32 %v6732, %v6743
        %v6761 = vadd.f32 %v6733, %v6747
        %v6762 = vadd.f32 %v6734, %v6743
        %v6763 = vadd.f32 %v6735, %v6747
        %v6764 = vadd.f32 %v6736, %v6743
        %v6765 = vadd.f32 %v6737, %v6747
        %v6766 = vmax.f32 %v6750, 0.0
        %v6767 = vmax.f32 %v6751, 0.0
        %v6768 = vmax.f32 %v6752, 0.0
        %v6769 = vmax.f32 %v6753, 0.0
        %v6770 = vmax.f32 %v6754, 0.0
        %v6771 = vmax.f32 %v6755, 0.0
        %v6772 = vmax.f32 %v6756, 0.0
        %v6773 = vmax.f32 %v6757, 0.0
        %v6774 = vmax.f32 %v6758, 0.0
        %v6775 = vmax.f32 %v6759, 0.0
        %v6776 = vmax.f32 %v6760, 0.0
        %v6777 = vmax.f32 %v6761, 0.0
        %v6778 = vmax.f32 %v6762, 0.0
        %v6779 = vmax.f32 %v6763, 0.0
        %v6780 = vmax.f32 %v6764, 0.0
        %v6781 = vmax.f32 %v6765, 0.0
        %v6782 = vpack.c.bf16 %v4649, %v4646
        %v6783 = vpack.c.bf16 %v4655, %v4652
        %v6784 = vpack.c.bf16 %v4661, %v4658
        %v6785 = vpack.c.bf16 %v4667, %v4664
        %v6786 = vpack.c.bf16 %v6768, %v6766
        %v6787 = vpack.c.bf16 %v6769, %v6767
        %v6788 = vpack.c.bf16 %v6772, %v6770
        %v6789 = vpack.c.bf16 %v6773, %v6771
        %v6790 = vpack.c.bf16 %v6776, %v6774
        %v6791 = vpack.c.bf16 %v6777, %v6775
        %v6792 = vpack.c.bf16 %v6780, %v6778
        %v6793 = vpack.c.bf16 %v6781, %v6779
        %6802 = vrot.lane.b32.xlu0 %v6786, 64
        %v6803 = vpop.permute.xlu0 %6802
        %6804 = vrot.lane.b32.xlu0 %v6787, 64
        %v6805 = vpop.permute.xlu0 %6804
        %6806 = vrot.lane.b32.xlu0 %v6788, 64
        %v6807 = vpop.permute.xlu0 %6806
        %6808 = vrot.lane.b32.xlu0 %v6789, 64
        %v6809 = vpop.permute.xlu0 %6808
        %6810 = vrot.lane.b32.xlu0 %v6790, 64
        %v6811 = vpop.permute.xlu0 %6810
        %6812 = vrot.lane.b32.xlu0 %v6791, 64
        %v6813 = vpop.permute.xlu0 %6812
        %6814 = vrot.lane.b32.xlu0 %v6792, 64
        %v6815 = vpop.permute.xlu0 %6814
        %6816 = vrot.lane.b32.xlu0 %v6793, 64
        %v6817 = vpop.permute.xlu0 %6816
        %v6818 = vsel %vm5091, %v6803, %v6805
        %v6819 = vsel %vm5091, %v6807, %v6809
        %v6820 = vsel %vm5091, %v6811, %v6813
        %v6821 = vsel %vm5091, %v6815, %v6817
        %v6824 = vsel %vm4831, %v5034, %v6803
        %v6827 = vsel %vm4831, %v5036, %v6807
        %v6830 = vsel %vm4831, %v5038, %v6811
        %v6833 = vsel %vm4831, %v5040, %v6815
        %v6842 = vunpack.c.l.b16 %v6782
        %v6843 = vunpack.c.l.b16 %v6824
        %v6844 = vunpack.c.l.b16 %v6818
        %v6845 = vunpack.c.l.b16 %v6805
        %v6846 = vunpack.c.h.b16 %v6782
        %v6847 = vunpack.c.h.b16 %v6824
        %v6848 = vunpack.c.h.b16 %v6818
        %v6849 = vunpack.c.h.b16 %v6805
        %v6850 = vunpack.c.l.b16 %v6783
        %v6851 = vunpack.c.l.b16 %v6827
        %v6852 = vunpack.c.l.b16 %v6819
        %v6853 = vunpack.c.l.b16 %v6809
        %v6854 = vunpack.c.h.b16 %v6783
        %v6855 = vunpack.c.h.b16 %v6827
        %v6856 = vunpack.c.h.b16 %v6819
        %v6857 = vunpack.c.h.b16 %v6809
        %v6858 = vunpack.c.l.b16 %v6784
        %v6859 = vunpack.c.l.b16 %v6830
        %v6860 = vunpack.c.l.b16 %v6820
        %v6861 = vunpack.c.l.b16 %v6813
        %v6862 = vunpack.c.h.b16 %v6784
        %v6863 = vunpack.c.h.b16 %v6830
        %v6864 = vunpack.c.h.b16 %v6820
        %v6865 = vunpack.c.h.b16 %v6813
        %v6866 = vunpack.c.l.b16 %v6785
        %v6867 = vunpack.c.l.b16 %v6833
        %v6868 = vunpack.c.l.b16 %v6821
        %v6869 = vunpack.c.l.b16 %v6817
        %v6870 = vunpack.c.h.b16 %v6785
        %v6871 = vunpack.c.h.b16 %v6833
        %v6872 = vunpack.c.h.b16 %v6821
        %v6873 = vunpack.c.h.b16 %v6817
        %v6874 = vpack.c.b16 %v6843, %v6842
        %v6875 = vpack.c.b16 %v6845, %v6844
        %v6876 = vpack.c.b16 %v6847, %v6846
        %v6877 = vpack.c.b16 %v6849, %v6848
        %v6878 = vpack.c.b16 %v6851, %v6850
        %v6879 = vpack.c.b16 %v6853, %v6852
        %v6880 = vpack.c.b16 %v6855, %v6854
        %v6881 = vpack.c.b16 %v6857, %v6856
        %v6882 = vpack.c.b16 %v6859, %v6858
        %v6883 = vpack.c.b16 %v6861, %v6860
        %v6884 = vpack.c.b16 %v6863, %v6862
        %v6885 = vpack.c.b16 %v6865, %v6864
        %v6886 = vpack.c.b16 %v6867, %v6866
        %v6887 = vpack.c.b16 %v6869, %v6868
        %v6888 = vpack.c.b16 %v6871, %v6870
        %v6889 = vpack.c.b16 %v6873, %v6872
        %6906 = vst [vmem:[%s502] sm:$0xff] %v6874
        %vm6907 = vcmask 1043456
        %vm6908 = vcmask 523268
        %vm6909 = vmor %vm6908, %vm6907
        %6910 = vst.msk [vmem:[%s502 + $0x8] sm:$0xff] %vm6909, %v6875
        %6911 = vst [vmem:[%s502 + $0x10] sm:$0xff] %v6876
        %6912 = vst.msk [vmem:[%s502 + $0x18] sm:$0xff] %vm6909, %v6877
        %6913 = vst [vmem:[%s502 + $0x20] sm:$0xff] %v6878
        %6914 = vst.msk [vmem:[%s502 + $0x28] sm:$0xff] %vm6909, %v6879
        %6915 = vst [vmem:[%s502 + $0x30] sm:$0xff] %v6880
        %6916 = vst.msk [vmem:[%s502 + $0x38] sm:$0xff] %vm6909, %v6881
        %6917 = vst [vmem:[%s502 + $0x40] sm:$0xff] %v6882
        %6918 = vst.msk [vmem:[%s502 + $0x48] sm:$0xff] %vm6909, %v6883
        %6919 = vst [vmem:[%s502 + $0x50] sm:$0xff] %v6884
        %6920 = vst.msk [vmem:[%s502 + $0x58] sm:$0xff] %vm6909, %v6885
        %6921 = vst [vmem:[%s502 + $0x60] sm:$0xff] %v6886
        %6922 = vst.msk [vmem:[%s502 + $0x68] sm:$0xff] %vm6909, %v6887
        %6923 = vst [vmem:[%s502 + $0x70] sm:$0xff] %v6888
        %6924 = vst.msk [vmem:[%s502 + $0x78] sm:$0xff] %vm6909, %v6889
        %s6925 = smul.u32 8, %s29
        %p6926 = scmp.lt.s32.totalorder %s6925, 15
        %s6927 = scalar_select %p6926, %s6925, 15
        %s6928 = smul.addr %s6927, 4
        %s6929 = smul.addr %s6928, 4
        %s6930 = scalar_lea.vmem %s10, %s6929
        // Predicated region
        $region101: #{block8_forward.2} parent=59 // pred_check
          %p6931 = pneg %p262
        $region102: #{block8_forward.2} parent=59 // pred_check_branch
          %6933 = sbr.rel (%p6931) target = $region104
        $region103: #{block8_forward.2} parent=59 // pred_region
          %s6934 = smul.u32 8, %s29
        $region104: #{block8_forward.2} parent=59 // pred_fallthru
          _
      $region60: #{block8_forward.2} parent=5 // pred_fallthru
        _
      %p6935 = scmp.le.s32.totalorder 2, %s24
      // Predicated region
      $region105: #{block8_forward.2} parent=5 // pred_check
        %p6936 = pneg %p6935
      $region106: #{block8_forward.2} parent=5 // pred_check_branch
        %6938 = sbr.rel (%p6936) target = $region108
      $region107: #{block8_forward.2} parent=5 // pred_region
        %s6939 = ssub.s32 %s24, 2
        // Predicated region
        $region109: #{block8_forward.2} parent=107 // pred_check
          %p6940 = pneg %p268
        $region110: #{block8_forward.2} parent=107 // pred_check_branch
          %6942 = sbr.rel (%p6940) target = $region112
        $region111: #{block8_forward.2} parent=107 // pred_region
          %s6943 = smul.u32 8, %s30
          %p6944 = scmp.lt.s32.totalorder %s6943, 15
          %s6945 = scalar_select %p6944, %s6943, 15
          %s6946 = smul.addr %s6945, 4
          %s6947 = smul.addr %s6946, 4
          %s6948 = scalar_lea.vmem %s10, %s6947
        $region112: #{block8_forward.2} parent=107 // pred_fallthru
          _
      $region108: #{block8_forward.2} parent=5 // pred_fallthru
        _
    $region6: #{block8_forward.2} parent=1 // loop_footer
      %s28 = sadd.s32 1, %s24
    $region7: #{block8_forward.2} parent=1 // loop_footer_branch
      %23 = sbr.rel target = $region3
    $region8: #{block8_forward.2} parent=1 // loop_exit
      _
    %6949 = vsyncpa [#allocation3], 1
    %s6950 = scalar_lea.sflag [#allocation3], 1
    %6951 = vsyncpa %s6950, 1
    %6952 = vsyncpa [#allocation5], 1
    %6953 = vsyncpa [#allocation8], 1
    %6954 = vsyncpa [#allocation11], 1
    %6955 = vsyncpa [#allocation14], 1
    %6956 = vsyncpa [#allocation17], 1

</llo_original>
